<compile_context>
chip_gen: v7x
topology: tpu7x:2x2x1
jax: 0.10.0
libtpu: 0.0.40
codegen_flags: <defaults>
</compile_context>

<pallas_src>
import functools

import jax
import jax.numpy as jnp
from jax import lax
from jax.experimental import pallas as pl
from jax.experimental.pallas import tpu as pltpu

BN_EPS = 1e-5
LEAK = 0.2
TM_MAX = 1024                     # max rows per M-tile (review: 512-1024)
VMEM_LIMIT = 32 * 1024 * 1024     # explicit scoped-VMEM cap, safe on v5e/v6e/v7x


def _leaky(z):
    return jnp.where(z >= 0, z, LEAK * z)


def _full_spec(shape):
    # rank bound via default arg -> no late-binding closure bug
    return pl.BlockSpec(shape, lambda i, _n=len(shape): (0,) * _n)


# ---------------------------------------------------------------------------
# Pallas kernels
# ---------------------------------------------------------------------------
def _fused_block_kernel(p_ref, w_ref, g_ref, b_ref, o_ref):
    """conv (bf16 MXU, f32 acc) + BatchNorm(batch stats) + LeakyReLU, one tile."""
    m = p_ref.shape[0]
    y = jnp.dot(p_ref[...], w_ref[...], preferred_element_type=jnp.float32)  # (m, C) f32
    # one-pass per-channel sum / sum-of-squares on the MXU (ones-row matmul)
    ones = jnp.ones((8, m), jnp.float32)
    s1 = jnp.dot(ones, y, preferred_element_type=jnp.float32)        # (8, C), rows equal
    s2 = jnp.dot(ones, y * y, preferred_element_type=jnp.float32)
    inv_m = 1.0 / m
    mean = s1[0:1, :] * inv_m
    var = s2[0:1, :] * inv_m - mean * mean                            # biased variance
    scale = lax.rsqrt(var + BN_EPS) * g_ref[...]
    shift = b_ref[...] - mean * scale
    o_ref[...] = _leaky(y * scale + shift).astype(o_ref.dtype)


def _conv_stats_kernel(p_ref, w_ref, y_ref, s1_ref, s2_ref):
    """Pass A: conv matmul for one M-tile; stage y; accumulate global channel stats."""
    i = pl.program_id(0)
    y = jnp.dot(p_ref[...], w_ref[...], preferred_element_type=jnp.float32)  # (tm, C)
    y_ref[...] = y.astype(y_ref.dtype)
    ones = jnp.ones((8, y.shape[0]), jnp.float32)
    s1 = jnp.dot(ones, y, preferred_element_type=jnp.float32)
    s2 = jnp.dot(ones, y * y, preferred_element_type=jnp.float32)

    @pl.when(i == 0)
    def _():
        s1_ref[...] = jnp.zeros_like(s1_ref)
        s2_ref[...] = jnp.zeros_like(s2_ref)

    s1_ref[...] += s1
    s2_ref[...] += s2


def _bn_lrelu_kernel(y_ref, s1_ref, s2_ref, g_ref, b_ref, o_ref, *, inv_m):
    """Pass B: apply global-stat BatchNorm + affine + LeakyReLU to one M-tile."""
    mean = s1_ref[0:1, :] * inv_m
    var = s2_ref[0:1, :] * inv_m - mean * mean
    scale = lax.rsqrt(var + BN_EPS) * g_ref[...]
    shift = b_ref[...] - mean * scale
    y = y_ref[...].astype(jnp.float32)
    o_ref[...] = _leaky(y * scale + shift).astype(o_ref.dtype)


def _final_kernel(p_ref, w_ref, b_ref, o_ref):
    """final 4x4 valid conv (with bias) + sigmoid."""
    y = jnp.dot(p_ref[...], w_ref[...], preferred_element_type=jnp.float32)
    y = y + b_ref[...]
    o_ref[...] = 1.0 / (1.0 + jnp.exp(-y))


# ---------------------------------------------------------------------------
# pallas_call wrappers
# ---------------------------------------------------------------------------
def _downblock_fused(patches, w, gamma, beta):
    M, K = patches.shape
    C = w.shape[1]
    return pl.pallas_call(
        _fused_block_kernel,
        out_shape=jax.ShapeDtypeStruct((M, C), jnp.bfloat16),
        grid=(1,),
        in_specs=[_full_spec((M, K)), _full_spec((K, C)),
                  _full_spec((1, C)), _full_spec((1, C))],
        out_specs=_full_spec((M, C)),
        compiler_params=pltpu.CompilerParams(
            dimension_semantics=("arbitrary",),
            vmem_limit_bytes=VMEM_LIMIT),
    )(patches, w, gamma, beta)


def _downblock_tiled(patches, w, gamma, beta, tm):
    M, K = patches.shape
    C = w.shape[1]
    nt = M // tm
    # Pass A: conv + stat accumulation (stats outputs stay VMEM-resident).
    y, s1, s2 = pl.pallas_call(
        _conv_stats_kernel,
        out_shape=(jax.ShapeDtypeStruct((M, C), jnp.bfloat16),
                   jax.ShapeDtypeStruct((8, C), jnp.float32),
                   jax.ShapeDtypeStruct((8, C), jnp.float32)),
        grid=(nt,),
        in_specs=[pl.BlockSpec((tm, K), lambda i: (i, 0)),
                  pl.BlockSpec((K, C), lambda i: (0, 0))],
        out_specs=(pl.BlockSpec((tm, C), lambda i: (i, 0)),
                   pl.BlockSpec((8, C), lambda i: (0, 0)),
                   pl.BlockSpec((8, C), lambda i: (0, 0))),
        compiler_params=pltpu.CompilerParams(
            dimension_semantics=("arbitrary",),
            vmem_limit_bytes=VMEM_LIMIT),
    )(patches, w)
    # Pass B: per-tile normalize + LeakyReLU; tiles independent -> "parallel".
    return pl.pallas_call(
        functools.partial(_bn_lrelu_kernel, inv_m=1.0 / M),
        out_shape=jax.ShapeDtypeStruct((M, C), jnp.bfloat16),
        grid=(nt,),
        in_specs=[pl.BlockSpec((tm, C), lambda i: (i, 0)),
                  pl.BlockSpec((8, C), lambda i: (0, 0)),
                  pl.BlockSpec((8, C), lambda i: (0, 0)),
                  pl.BlockSpec((1, C), lambda i: (0, 0)),
                  pl.BlockSpec((1, C), lambda i: (0, 0))],
        out_specs=pl.BlockSpec((tm, C), lambda i: (i, 0)),
        compiler_params=pltpu.CompilerParams(
            dimension_semantics=("parallel",),
            vmem_limit_bytes=VMEM_LIMIT),
    )(y, s1, s2, gamma, beta)


def _final_conv(patches, w, bias):
    M, K = patches.shape
    C = w.shape[1]
    return pl.pallas_call(
        _final_kernel,
        out_shape=jax.ShapeDtypeStruct((M, C), jnp.float32),
        grid=(1,),
        in_specs=[_full_spec((M, K)), _full_spec((K, C)), _full_spec((1, C))],
        out_specs=_full_spec((M, C)),
        compiler_params=pltpu.CompilerParams(
            dimension_semantics=("arbitrary",),
            vmem_limit_bytes=VMEM_LIMIT),
    )(patches, w, bias)


# ---------------------------------------------------------------------------
# Glue: im2col, parameter setup, network wrapper
# ---------------------------------------------------------------------------
def im2col(x_nhwc, ksize, stride, pad):
    """[N,H,W,C] -> patches [N*Ho*Wo, ksize*ksize*C], feature order (kh,kw,c)."""
    x = jnp.pad(x_nhwc, ((0, 0), (pad, pad), (pad, pad), (0, 0)))
    N, H, W, C = x.shape
    Ho = (H - ksize) // stride + 1
    Wo = (W - ksize) // stride + 1
    cols = []
    for kh in range(ksize):
        for kw in range(ksize):
            cols.append(
                x[:, kh:kh + stride * Ho:stride, kw:kw + stride * Wo:stride, :])
    p = jnp.stack(cols, axis=3)  # [N,Ho,Wo,kh*kw,C]
    return p.reshape(N * Ho * Wo, ksize * ksize * C), (N, Ho, Wo)


def conv_weight_to_mat(w_oihw):
    """PyTorch conv weight [Cout,Cin,kh,kw] -> matmul weight [kh*kw*Cin, Cout]."""
    cout, cin, kh, kw = w_oihw.shape
    return jnp.transpose(w_oihw, (2, 3, 1, 0)).reshape(kh * kw * cin, cout)


def _pick_tile(m, tmax=TM_MAX):
    """Largest divisor of m that is <= tmax and a multiple of 8 (None if none)."""
    best = None
    for t in range(8, min(m, tmax) + 1, 8):
        if m % t == 0:
            best = t
    return best


def init_params(key, nc=1):
    chans = [(nc, 16), (16, 32), (32, 64), (64, 128)]
    params = {"blocks": []}
    for cin, cout in chans:
        key, kw, kg = jax.random.split(key, 3)
        w = 0.02 * jax.random.normal(kw, (cout, cin, 4, 4), jnp.float32)
        gamma = 1.0 + 0.02 * jax.random.normal(kg, (1, cout), jnp.float32)
        beta = jnp.zeros((1, cout), jnp.float32)
        params["blocks"].append({
            "w": conv_weight_to_mat(w).astype(jnp.bfloat16),
            "gamma": gamma, "beta": beta})
    key, kw, kb = jax.random.split(key, 3)
    w7 = 0.02 * jax.random.normal(kw, (1, 128, 4, 4), jnp.float32)
    bound = 1.0 / jnp.sqrt(128.0 * 4 * 4)
    b7 = jax.random.uniform(kb, (1, 1), jnp.float32, -bound, bound)
    params["final"] = {"w": conv_weight_to_mat(w7).astype(jnp.bfloat16), "b": b7}
    return params


@jax.jit
def discriminator_forward(x_nchw, params):
    """x_nchw: [N, nc, H, W] float32 (PyTorch layout). Returns sigmoid(logits).squeeze()."""
    h = jnp.transpose(x_nchw, (0, 2, 3, 1)).astype(jnp.bfloat16)  # NHWC, bf16
    for blk in params["blocks"]:
        patches, (N, Ho, Wo) = im2col(h, ksize=4, stride=2, pad=1)
        M = patches.shape[0]
        tm = _pick_tile(M) if M > TM_MAX else None
        if tm is None:
            out = _downblock_fused(patches, blk["w"], blk["gamma"], blk["beta"])
        else:
            out = _downblock_tiled(patches, blk["w"], blk["gamma"], blk["beta"], tm)
        h = out.reshape(N, Ho, Wo, out.shape[-1])
    # final conv 4x4, stride 1, pad 0 -> spatial 1x1
    patches, (N, Ho, Wo) = im2col(h, ksize=4, stride=1, pad=0)
    out = _final_conv(patches, params["final"]["w"], params["final"]["b"])
    return jnp.squeeze(out.reshape(N, Ho, Wo, 1))  # matches torch .squeeze()


if __name__ == "__main__":
    key = jax.random.PRNGKey(0)
    kp, kx = jax.random.split(key)
    params = init_params(kp, nc=1)
    # smallest input for which the architecture is valid: 64x64 (4 stride-2
    # halvings -> 4x4, then the final 4x4 valid conv -> 1x1).
    x = jax.random.normal(kx, (2, 1, 64, 64), jnp.float32)
    y = discriminator_forward(x, params)
    jax.block_until_ready(y)
    assert y.shape == (2,), y.shape
    assert bool(jnp.all((y >= 0.0) & (y <= 1.0)))
    print("KERNEL_OK")
</pallas_src>

<mosaic_0001>
module attributes {stable_mosaic.version = 11 : i64} {
  func.func @_conv_stats_kernel(%arg0: i32, %arg1: memref<1024x16xbf16, #tpu.memory_space<vmem>>, %arg2: memref<16x16xbf16, #tpu.memory_space<vmem>>, %arg3: memref<1024x16xbf16, #tpu.memory_space<vmem>>, %arg4: memref<8x16xf32, #tpu.memory_space<vmem>>, %arg5: memref<8x16xf32, #tpu.memory_space<vmem>>) attributes {dimension_semantics = [#tpu.dimension_semantics<arbitrary>], iteration_bounds = array<i64: 2>, scalar_prefetch = 0 : i64, scratch_operands = 0 : i64, tpu.core_type = #tpu.core_type<tc>, window_params = [{transform_indices = @transform_0, window_bounds = array<i64: 1024, 16>}, {pipeline_mode = #tpu.pipeline_mode<synchronous>, transform_indices = @transform_1, window_bounds = array<i64: 16, 16>}, {transform_indices = @transform_2, window_bounds = array<i64: 1024, 16>}, {pipeline_mode = #tpu.pipeline_mode<synchronous>, transform_indices = @transform_3, window_bounds = array<i64: 8, 16>}, {pipeline_mode = #tpu.pipeline_mode<synchronous>, transform_indices = @transform_4, window_bounds = array<i64: 8, 16>}]} {
    %c0 = arith.constant 0 : index
    %c0_0 = arith.constant 0 : index
    %0 = vector.load %arg1[%c0, %c0_0] : memref<1024x16xbf16, #tpu.memory_space<vmem>>, vector<1024x16xbf16>
    %c0_1 = arith.constant 0 : index
    %c0_2 = arith.constant 0 : index
    %1 = vector.load %arg2[%c0_1, %c0_2] : memref<16x16xbf16, #tpu.memory_space<vmem>>, vector<16x16xbf16>
    %cst = arith.constant dense<0.000000e+00> : vector<1024x16xf32>
    %2 = tpu.matmul %0, %1, %cst {dimension_numbers = #tpu.dot_dimension_numbers<[1], [0], [0], [1], [0, 0, 1, 1], [], []>} : vector<1024x16xbf16>, vector<16x16xbf16>, vector<1024x16xf32> -> vector<1024x16xf32>
    %3 = arith.truncf %2 : vector<1024x16xf32> to vector<1024x16xbf16>
    %c0_3 = arith.constant 0 : index
    %c0_4 = arith.constant 0 : index
    %4 = vector.load %arg3[%c0_3, %c0_4] : memref<1024x16xbf16, #tpu.memory_space<vmem>>, vector<1024x16xbf16>
    tpu.vector_store %arg3[%c0_3, %c0_4], %3 {strides = array<i32>} : memref<1024x16xbf16, #tpu.memory_space<vmem>>, vector<1024x16xbf16>,
    %cst_5 = arith.constant 1.000000e+00 : f32
    %5 = vector.broadcast %cst_5 : f32 to vector<8x1024xf32>
    %cst_6 = arith.constant dense<0.000000e+00> : vector<8x16xf32>
    %6 = tpu.matmul %5, %2, %cst_6 {dimension_numbers = #tpu.dot_dimension_numbers<[1], [0], [0], [1], [0, 0, 1, 1], [], []>} : vector<8x1024xf32>, vector<1024x16xf32>, vector<8x16xf32> -> vector<8x16xf32>
    %7 = arith.mulf %2, %2 : vector<1024x16xf32>
    %cst_7 = arith.constant dense<0.000000e+00> : vector<8x16xf32>
    %8 = tpu.matmul %5, %7, %cst_7 {dimension_numbers = #tpu.dot_dimension_numbers<[1], [0], [0], [1], [0, 0, 1, 1], [], []>} : vector<8x1024xf32>, vector<1024x16xf32>, vector<8x16xf32> -> vector<8x16xf32>
    %c0_i32 = arith.constant 0 : i32
    %9 = arith.cmpi eq, %arg0, %c0_i32 : i32
    %10 = arith.extui %9 : i1 to i32
    %c0_i32_8 = arith.constant 0 : i32
    %11 = arith.cmpi ne, %10, %c0_i32_8 : i32
    scf.if %11 {
      %cst_17 = arith.constant 0.000000e+00 : f32
      %18 = vector.broadcast %cst_17 : f32 to vector<8x16xf32>
      %c0_18 = arith.constant 0 : index
      %c0_19 = arith.constant 0 : index
      %19 = vector.load %arg4[%c0_18, %c0_19] : memref<8x16xf32, #tpu.memory_space<vmem>>, vector<8x16xf32>
      tpu.vector_store %arg4[%c0_18, %c0_19], %18 {strides = array<i32>} : memref<8x16xf32, #tpu.memory_space<vmem>>, vector<8x16xf32>,
      %cst_20 = arith.constant 0.000000e+00 : f32
      %20 = vector.broadcast %cst_20 : f32 to vector<8x16xf32>
      %c0_21 = arith.constant 0 : index
      %c0_22 = arith.constant 0 : index
      %21 = vector.load %arg5[%c0_21, %c0_22] : memref<8x16xf32, #tpu.memory_space<vmem>>, vector<8x16xf32>
      tpu.vector_store %arg5[%c0_21, %c0_22], %20 {strides = array<i32>} : memref<8x16xf32, #tpu.memory_space<vmem>>, vector<8x16xf32>,
    } else {
    }
    %c0_9 = arith.constant 0 : index
    %c0_10 = arith.constant 0 : index
    %12 = vector.load %arg4[%c0_9, %c0_10] : memref<8x16xf32, #tpu.memory_space<vmem>>, vector<8x16xf32>
    %13 = arith.addf %12, %6 : vector<8x16xf32>
    %c0_11 = arith.constant 0 : index
    %c0_12 = arith.constant 0 : index
    %14 = vector.load %arg4[%c0_11, %c0_12] : memref<8x16xf32, #tpu.memory_space<vmem>>, vector<8x16xf32>
    tpu.vector_store %arg4[%c0_11, %c0_12], %13 {strides = array<i32>} : memref<8x16xf32, #tpu.memory_space<vmem>>, vector<8x16xf32>,
    %c0_13 = arith.constant 0 : index
    %c0_14 = arith.constant 0 : index
    %15 = vector.load %arg5[%c0_13, %c0_14] : memref<8x16xf32, #tpu.memory_space<vmem>>, vector<8x16xf32>
    %16 = arith.addf %15, %8 : vector<8x16xf32>
    %c0_15 = arith.constant 0 : index
    %c0_16 = arith.constant 0 : index
    %17 = vector.load %arg5[%c0_15, %c0_16] : memref<8x16xf32, #tpu.memory_space<vmem>>, vector<8x16xf32>
    tpu.vector_store %arg5[%c0_15, %c0_16], %16 {strides = array<i32>} : memref<8x16xf32, #tpu.memory_space<vmem>>, vector<8x16xf32>,
    return
  }
  func.func @transform_0(%arg0: i32) -> (i32, i32) {
    %c0_i32 = arith.constant 0 : i32
    %c0_i32_0 = arith.constant 0 : i32
    return %arg0, %c0_i32 : i32, i32
  }
  func.func @transform_1(%arg0: i32) -> (i32, i32) {
    %c0_i32 = arith.constant 0 : i32
    %c0_i32_0 = arith.constant 0 : i32
    %c0_i32_1 = arith.constant 0 : i32
    return %c0_i32, %c0_i32_0 : i32, i32
  }
  func.func @transform_2(%arg0: i32) -> (i32, i32) {
    %c0_i32 = arith.constant 0 : i32
    %c0_i32_0 = arith.constant 0 : i32
    return %arg0, %c0_i32 : i32, i32
  }
  func.func @transform_3(%arg0: i32) -> (i32, i32) {
    %c0_i32 = arith.constant 0 : i32
    %c0_i32_0 = arith.constant 0 : i32
    %c0_i32_1 = arith.constant 0 : i32
    return %c0_i32, %c0_i32_0 : i32, i32
  }
  func.func @transform_4(%arg0: i32) -> (i32, i32) {
    %c0_i32 = arith.constant 0 : i32
    %c0_i32_0 = arith.constant 0 : i32
    %c0_i32_1 = arith.constant 0 : i32
    return %c0_i32, %c0_i32_0 : i32, i32
  }
}

module attributes {stable_mosaic.version = 11 : i64} {
  func.func @_bn_lrelu_kernel(%arg0: i32, %arg1: memref<1024x16xbf16, #tpu.memory_space<vmem>>, %arg2: memref<8x16xf32, #tpu.memory_space<vmem>>, %arg3: memref<8x16xf32, #tpu.memory_space<vmem>>, %arg4: memref<1x16xf32, #tpu.memory_space<vmem>>, %arg5: memref<1x16xf32, #tpu.memory_space<vmem>>, %arg6: memref<1024x16xbf16, #tpu.memory_space<vmem>>) attributes {dimension_semantics = [#tpu.dimension_semantics<parallel>], iteration_bounds = array<i64: 2>, scalar_prefetch = 0 : i64, scratch_operands = 0 : i64, tpu.core_type = #tpu.core_type<tc>, window_params = [{transform_indices = @transform_0, window_bounds = array<i64: 1024, 16>}, {pipeline_mode = #tpu.pipeline_mode<synchronous>, transform_indices = @transform_1, window_bounds = array<i64: 8, 16>}, {pipeline_mode = #tpu.pipeline_mode<synchronous>, transform_indices = @transform_2, window_bounds = array<i64: 8, 16>}, {pipeline_mode = #tpu.pipeline_mode<synchronous>, transform_indices = @transform_3, window_bounds = array<i64: 1, 16>}, {pipeline_mode = #tpu.pipeline_mode<synchronous>, transform_indices = @transform_4, window_bounds = array<i64: 1, 16>}, {transform_indices = @transform_5, window_bounds = array<i64: 1024, 16>}]} {
    %c0 = arith.constant 0 : index
    %c0_0 = arith.constant 0 : index
    %0 = vector.load %arg2[%c0, %c0_0] : memref<8x16xf32, #tpu.memory_space<vmem>>, vector<1x16xf32>
    %cst = arith.constant 4.8828125E-4 : f32
    %1 = vector.broadcast %cst : f32 to vector<1x16xf32>
    %2 = arith.mulf %0, %1 : vector<1x16xf32>
    %c0_1 = arith.constant 0 : index
    %c0_2 = arith.constant 0 : index
    %3 = vector.load %arg3[%c0_1, %c0_2] : memref<8x16xf32, #tpu.memory_space<vmem>>, vector<1x16xf32>
    %cst_3 = arith.constant 4.8828125E-4 : f32
    %4 = vector.broadcast %cst_3 : f32 to vector<1x16xf32>
    %5 = arith.mulf %3, %4 : vector<1x16xf32>
    %6 = arith.mulf %2, %2 : vector<1x16xf32>
    %7 = arith.subf %5, %6 : vector<1x16xf32>
    %cst_4 = arith.constant 9.99999974E-6 : f32
    %8 = vector.broadcast %cst_4 : f32 to vector<1x16xf32>
    %9 = arith.addf %7, %8 : vector<1x16xf32>
    %10 = math.rsqrt %9 : vector<1x16xf32>
    %c0_5 = arith.constant 0 : index
    %c0_6 = arith.constant 0 : index
    %11 = vector.load %arg4[%c0_5, %c0_6] : memref<1x16xf32, #tpu.memory_space<vmem>>, vector<1x16xf32>
    %12 = arith.mulf %10, %11 : vector<1x16xf32>
    %c0_7 = arith.constant 0 : index
    %c0_8 = arith.constant 0 : index
    %13 = vector.load %arg5[%c0_7, %c0_8] : memref<1x16xf32, #tpu.memory_space<vmem>>, vector<1x16xf32>
    %14 = arith.mulf %2, %12 : vector<1x16xf32>
    %15 = arith.subf %13, %14 : vector<1x16xf32>
    %c0_9 = arith.constant 0 : index
    %c0_10 = arith.constant 0 : index
    %16 = vector.load %arg1[%c0_9, %c0_10] : memref<1024x16xbf16, #tpu.memory_space<vmem>>, vector<1024x16xbf16>
    %17 = arith.extf %16 : vector<1024x16xbf16> to vector<1024x16xf32>
    %18 = vector.broadcast %12 : vector<1x16xf32> to vector<1024x16xf32>
    %19 = arith.mulf %17, %18 : vector<1024x16xf32>
    %20 = vector.broadcast %15 : vector<1x16xf32> to vector<1024x16xf32>
    %21 = arith.addf %19, %20 : vector<1024x16xf32>
    %cst_11 = arith.constant 0.000000e+00 : f32
    %22 = vector.broadcast %cst_11 : f32 to vector<1024x16xf32>
    %23 = arith.cmpf oge, %21, %22 : vector<1024x16xf32>
    %cst_12 = arith.constant 2.000000e-01 : f32
    %24 = vector.broadcast %cst_12 : f32 to vector<1024x16xf32>
    %25 = arith.mulf %24, %21 : vector<1024x16xf32>
    %26 = arith.select %23, %21, %25 : vector<1024x16xi1>, vector<1024x16xf32>
    %27 = arith.truncf %26 : vector<1024x16xf32> to vector<1024x16xbf16>
    %c0_13 = arith.constant 0 : index
    %c0_14 = arith.constant 0 : index
    %28 = vector.load %arg6[%c0_13, %c0_14] : memref<1024x16xbf16, #tpu.memory_space<vmem>>, vector<1024x16xbf16>
    tpu.vector_store %arg6[%c0_13, %c0_14], %27 {strides = array<i32>} : memref<1024x16xbf16, #tpu.memory_space<vmem>>, vector<1024x16xbf16>,
    return
  }
  func.func @transform_0(%arg0: i32) -> (i32, i32) {
    %c0_i32 = arith.constant 0 : i32
    %c0_i32_0 = arith.constant 0 : i32
    return %arg0, %c0_i32 : i32, i32
  }
  func.func @transform_1(%arg0: i32) -> (i32, i32) {
    %c0_i32 = arith.constant 0 : i32
    %c0_i32_0 = arith.constant 0 : i32
    %c0_i32_1 = arith.constant 0 : i32
    return %c0_i32, %c0_i32_0 : i32, i32
  }
  func.func @transform_2(%arg0: i32) -> (i32, i32) {
    %c0_i32 = arith.constant 0 : i32
    %c0_i32_0 = arith.constant 0 : i32
    %c0_i32_1 = arith.constant 0 : i32
    return %c0_i32, %c0_i32_0 : i32, i32
  }
  func.func @transform_3(%arg0: i32) -> (i32, i32) {
    %c0_i32 = arith.constant 0 : i32
    %c0_i32_0 = arith.constant 0 : i32
    %c0_i32_1 = arith.constant 0 : i32
    return %c0_i32, %c0_i32_0 : i32, i32
  }
  func.func @transform_4(%arg0: i32) -> (i32, i32) {
    %c0_i32 = arith.constant 0 : i32
    %c0_i32_0 = arith.constant 0 : i32
    %c0_i32_1 = arith.constant 0 : i32
    return %c0_i32, %c0_i32_0 : i32, i32
  }
  func.func @transform_5(%arg0: i32) -> (i32, i32) {
    %c0_i32 = arith.constant 0 : i32
    %c0_i32_0 = arith.constant 0 : i32
    return %arg0, %c0_i32 : i32, i32
  }
}

module attributes {stable_mosaic.version = 11 : i64} {
  func.func @_fused_block_kernel(%arg0: i32, %arg1: memref<512x256xbf16, #tpu.memory_space<vmem>>, %arg2: memref<256x32xbf16, #tpu.memory_space<vmem>>, %arg3: memref<1x32xf32, #tpu.memory_space<vmem>>, %arg4: memref<1x32xf32, #tpu.memory_space<vmem>>, %arg5: memref<512x32xbf16, #tpu.memory_space<vmem>>) attributes {dimension_semantics = [#tpu.dimension_semantics<arbitrary>], iteration_bounds = array<i64: 1>, scalar_prefetch = 0 : i64, scratch_operands = 0 : i64, tpu.core_type = #tpu.core_type<tc>, window_params = [{pipeline_mode = #tpu.pipeline_mode<synchronous>, transform_indices = @transform_0, window_bounds = array<i64: 512, 256>}, {pipeline_mode = #tpu.pipeline_mode<synchronous>, transform_indices = @transform_1, window_bounds = array<i64: 256, 32>}, {pipeline_mode = #tpu.pipeline_mode<synchronous>, transform_indices = @transform_2, window_bounds = array<i64: 1, 32>}, {pipeline_mode = #tpu.pipeline_mode<synchronous>, transform_indices = @transform_3, window_bounds = array<i64: 1, 32>}, {pipeline_mode = #tpu.pipeline_mode<synchronous>, transform_indices = @transform_4, window_bounds = array<i64: 512, 32>}]} {
    %c0 = arith.constant 0 : index
    %c0_0 = arith.constant 0 : index
    %0 = vector.load %arg1[%c0, %c0_0] : memref<512x256xbf16, #tpu.memory_space<vmem>>, vector<512x256xbf16>
    %c0_1 = arith.constant 0 : index
    %c0_2 = arith.constant 0 : index
    %1 = vector.load %arg2[%c0_1, %c0_2] : memref<256x32xbf16, #tpu.memory_space<vmem>>, vector<256x32xbf16>
    %cst = arith.constant dense<0.000000e+00> : vector<512x32xf32>
    %2 = tpu.matmul %0, %1, %cst {dimension_numbers = #tpu.dot_dimension_numbers<[1], [0], [0], [1], [0, 0, 1, 1], [], []>} : vector<512x256xbf16>, vector<256x32xbf16>, vector<512x32xf32> -> vector<512x32xf32>
    %cst_3 = arith.constant 1.000000e+00 : f32
    %3 = vector.broadcast %cst_3 : f32 to vector<8x512xf32>
    %cst_4 = arith.constant dense<0.000000e+00> : vector<8x32xf32>
    %4 = tpu.matmul %3, %2, %cst_4 {dimension_numbers = #tpu.dot_dimension_numbers<[1], [0], [0], [1], [0, 0, 1, 1], [], []>} : vector<8x512xf32>, vector<512x32xf32>, vector<8x32xf32> -> vector<8x32xf32>
    %5 = arith.mulf %2, %2 : vector<512x32xf32>
    %cst_5 = arith.constant dense<0.000000e+00> : vector<8x32xf32>
    %6 = tpu.matmul %3, %5, %cst_5 {dimension_numbers = #tpu.dot_dimension_numbers<[1], [0], [0], [1], [0, 0, 1, 1], [], []>} : vector<8x512xf32>, vector<512x32xf32>, vector<8x32xf32> -> vector<8x32xf32>
    %7 = vector.extract_strided_slice %4 {offsets = [0, 0], sizes = [1, 32], strides = [1, 1]} : vector<8x32xf32> to vector<1x32xf32>
    %cst_6 = arith.constant 0.001953125 : f32
    %8 = vector.broadcast %cst_6 : f32 to vector<1x32xf32>
    %9 = arith.mulf %7, %8 : vector<1x32xf32>
    %10 = vector.extract_strided_slice %6 {offsets = [0, 0], sizes = [1, 32], strides = [1, 1]} : vector<8x32xf32> to vector<1x32xf32>
    %cst_7 = arith.constant 0.001953125 : f32
    %11 = vector.broadcast %cst_7 : f32 to vector<1x32xf32>
    %12 = arith.mulf %10, %11 : vector<1x32xf32>
    %13 = arith.mulf %9, %9 : vector<1x32xf32>
    %14 = arith.subf %12, %13 : vector<1x32xf32>
    %cst_8 = arith.constant 9.99999974E-6 : f32
    %15 = vector.broadcast %cst_8 : f32 to vector<1x32xf32>
    %16 = arith.addf %14, %15 : vector<1x32xf32>
    %17 = math.rsqrt %16 : vector<1x32xf32>
    %c0_9 = arith.constant 0 : index
    %c0_10 = arith.constant 0 : index
    %18 = vector.load %arg3[%c0_9, %c0_10] : memref<1x32xf32, #tpu.memory_space<vmem>>, vector<1x32xf32>
    %19 = arith.mulf %17, %18 : vector<1x32xf32>
    %c0_11 = arith.constant 0 : index
    %c0_12 = arith.constant 0 : index
    %20 = vector.load %arg4[%c0_11, %c0_12] : memref<1x32xf32, #tpu.memory_space<vmem>>, vector<1x32xf32>
    %21 = arith.mulf %9, %19 : vector<1x32xf32>
    %22 = arith.subf %20, %21 : vector<1x32xf32>
    %23 = vector.broadcast %19 : vector<1x32xf32> to vector<512x32xf32>
    %24 = arith.mulf %2, %23 : vector<512x32xf32>
    %25 = vector.broadcast %22 : vector<1x32xf32> to vector<512x32xf32>
    %26 = arith.addf %24, %25 : vector<512x32xf32>
    %cst_13 = arith.constant 0.000000e+00 : f32
    %27 = vector.broadcast %cst_13 : f32 to vector<512x32xf32>
    %28 = arith.cmpf oge, %26, %27 : vector<512x32xf32>
    %cst_14 = arith.constant 2.000000e-01 : f32
    %29 = vector.broadcast %cst_14 : f32 to vector<512x32xf32>
    %30 = arith.mulf %29, %26 : vector<512x32xf32>
    %31 = arith.select %28, %26, %30 : vector<512x32xi1>, vector<512x32xf32>
    %32 = arith.truncf %31 : vector<512x32xf32> to vector<512x32xbf16>
    %c0_15 = arith.constant 0 : index
    %c0_16 = arith.constant 0 : index
    %33 = vector.load %arg5[%c0_15, %c0_16] : memref<512x32xbf16, #tpu.memory_space<vmem>>, vector<512x32xbf16>
    tpu.vector_store %arg5[%c0_15, %c0_16], %32 {strides = array<i32>} : memref<512x32xbf16, #tpu.memory_space<vmem>>, vector<512x32xbf16>,
    return
  }
  func.func @transform_0(%arg0: i32) -> (i32, i32) {
    %c0_i32 = arith.constant 0 : i32
    %c0_i32_0 = arith.constant 0 : i32
    %c0_i32_1 = arith.constant 0 : i32
    return %c0_i32, %c0_i32_0 : i32, i32
  }
  func.func @transform_1(%arg0: i32) -> (i32, i32) {
    %c0_i32 = arith.constant 0 : i32
    %c0_i32_0 = arith.constant 0 : i32
    %c0_i32_1 = arith.constant 0 : i32
    return %c0_i32, %c0_i32_0 : i32, i32
  }
  func.func @transform_2(%arg0: i32) -> (i32, i32) {
    %c0_i32 = arith.constant 0 : i32
    %c0_i32_0 = arith.constant 0 : i32
    %c0_i32_1 = arith.constant 0 : i32
    return %c0_i32, %c0_i32_0 : i32, i32
  }
  func.func @transform_3(%arg0: i32) -> (i32, i32) {
    %c0_i32 = arith.constant 0 : i32
    %c0_i32_0 = arith.constant 0 : i32
    %c0_i32_1 = arith.constant 0 : i32
    return %c0_i32, %c0_i32_0 : i32, i32
  }
  func.func @transform_4(%arg0: i32) -> (i32, i32) {
    %c0_i32 = arith.constant 0 : i32
    %c0_i32_0 = arith.constant 0 : i32
    %c0_i32_1 = arith.constant 0 : i32
    return %c0_i32, %c0_i32_0 : i32, i32
  }
}

module attributes {stable_mosaic.version = 11 : i64} {
  func.func @_fused_block_kernel(%arg0: i32, %arg1: memref<128x512xbf16, #tpu.memory_space<vmem>>, %arg2: memref<512x64xbf16, #tpu.memory_space<vmem>>, %arg3: memref<1x64xf32, #tpu.memory_space<vmem>>, %arg4: memref<1x64xf32, #tpu.memory_space<vmem>>, %arg5: memref<128x64xbf16, #tpu.memory_space<vmem>>) attributes {dimension_semantics = [#tpu.dimension_semantics<arbitrary>], iteration_bounds = array<i64: 1>, scalar_prefetch = 0 : i64, scratch_operands = 0 : i64, tpu.core_type = #tpu.core_type<tc>, window_params = [{pipeline_mode = #tpu.pipeline_mode<synchronous>, transform_indices = @transform_0, window_bounds = array<i64: 128, 512>}, {pipeline_mode = #tpu.pipeline_mode<synchronous>, transform_indices = @transform_1, window_bounds = array<i64: 512, 64>}, {pipeline_mode = #tpu.pipeline_mode<synchronous>, transform_indices = @transform_2, window_bounds = array<i64: 1, 64>}, {pipeline_mode = #tpu.pipeline_mode<synchronous>, transform_indices = @transform_3, window_bounds = array<i64: 1, 64>}, {pipeline_mode = #tpu.pipeline_mode<synchronous>, transform_indices = @transform_4, window_bounds = array<i64: 128, 64>}]} {
    %c0 = arith.constant 0 : index
    %c0_0 = arith.constant 0 : index
    %0 = vector.load %arg1[%c0, %c0_0] : memref<128x512xbf16, #tpu.memory_space<vmem>>, vector<128x512xbf16>
    %c0_1 = arith.constant 0 : index
    %c0_2 = arith.constant 0 : index
    %1 = vector.load %arg2[%c0_1, %c0_2] : memref<512x64xbf16, #tpu.memory_space<vmem>>, vector<512x64xbf16>
    %cst = arith.constant dense<0.000000e+00> : vector<128x64xf32>
    %2 = tpu.matmul %0, %1, %cst {dimension_numbers = #tpu.dot_dimension_numbers<[1], [0], [0], [1], [0, 0, 1, 1], [], []>} : vector<128x512xbf16>, vector<512x64xbf16>, vector<128x64xf32> -> vector<128x64xf32>
    %cst_3 = arith.constant 1.000000e+00 : f32
    %3 = vector.broadcast %cst_3 : f32 to vector<8x128xf32>
    %cst_4 = arith.constant dense<0.000000e+00> : vector<8x64xf32>
    %4 = tpu.matmul %3, %2, %cst_4 {dimension_numbers = #tpu.dot_dimension_numbers<[1], [0], [0], [1], [0, 0, 1, 1], [], []>} : vector<8x128xf32>, vector<128x64xf32>, vector<8x64xf32> -> vector<8x64xf32>
    %5 = arith.mulf %2, %2 : vector<128x64xf32>
    %cst_5 = arith.constant dense<0.000000e+00> : vector<8x64xf32>
    %6 = tpu.matmul %3, %5, %cst_5 {dimension_numbers = #tpu.dot_dimension_numbers<[1], [0], [0], [1], [0, 0, 1, 1], [], []>} : vector<8x128xf32>, vector<128x64xf32>, vector<8x64xf32> -> vector<8x64xf32>
    %7 = vector.extract_strided_slice %4 {offsets = [0, 0], sizes = [1, 64], strides = [1, 1]} : vector<8x64xf32> to vector<1x64xf32>
    %cst_6 = arith.constant 7.812500e-03 : f32
    %8 = vector.broadcast %cst_6 : f32 to vector<1x64xf32>
    %9 = arith.mulf %7, %8 : vector<1x64xf32>
    %10 = vector.extract_strided_slice %6 {offsets = [0, 0], sizes = [1, 64], strides = [1, 1]} : vector<8x64xf32> to vector<1x64xf32>
    %cst_7 = arith.constant 7.812500e-03 : f32
    %11 = vector.broadcast %cst_7 : f32 to vector<1x64xf32>
    %12 = arith.mulf %10, %11 : vector<1x64xf32>
    %13 = arith.mulf %9, %9 : vector<1x64xf32>
    %14 = arith.subf %12, %13 : vector<1x64xf32>
    %cst_8 = arith.constant 9.99999974E-6 : f32
    %15 = vector.broadcast %cst_8 : f32 to vector<1x64xf32>
    %16 = arith.addf %14, %15 : vector<1x64xf32>
    %17 = math.rsqrt %16 : vector<1x64xf32>
    %c0_9 = arith.constant 0 : index
    %c0_10 = arith.constant 0 : index
    %18 = vector.load %arg3[%c0_9, %c0_10] : memref<1x64xf32, #tpu.memory_space<vmem>>, vector<1x64xf32>
    %19 = arith.mulf %17, %18 : vector<1x64xf32>
    %c0_11 = arith.constant 0 : index
    %c0_12 = arith.constant 0 : index
    %20 = vector.load %arg4[%c0_11, %c0_12] : memref<1x64xf32, #tpu.memory_space<vmem>>, vector<1x64xf32>
    %21 = arith.mulf %9, %19 : vector<1x64xf32>
    %22 = arith.subf %20, %21 : vector<1x64xf32>
    %23 = vector.broadcast %19 : vector<1x64xf32> to vector<128x64xf32>
    %24 = arith.mulf %2, %23 : vector<128x64xf32>
    %25 = vector.broadcast %22 : vector<1x64xf32> to vector<128x64xf32>
    %26 = arith.addf %24, %25 : vector<128x64xf32>
    %cst_13 = arith.constant 0.000000e+00 : f32
    %27 = vector.broadcast %cst_13 : f32 to vector<128x64xf32>
    %28 = arith.cmpf oge, %26, %27 : vector<128x64xf32>
    %cst_14 = arith.constant 2.000000e-01 : f32
    %29 = vector.broadcast %cst_14 : f32 to vector<128x64xf32>
    %30 = arith.mulf %29, %26 : vector<128x64xf32>
    %31 = arith.select %28, %26, %30 : vector<128x64xi1>, vector<128x64xf32>
    %32 = arith.truncf %31 : vector<128x64xf32> to vector<128x64xbf16>
    %c0_15 = arith.constant 0 : index
    %c0_16 = arith.constant 0 : index
    %33 = vector.load %arg5[%c0_15, %c0_16] : memref<128x64xbf16, #tpu.memory_space<vmem>>, vector<128x64xbf16>
    tpu.vector_store %arg5[%c0_15, %c0_16], %32 {strides = array<i32>} : memref<128x64xbf16, #tpu.memory_space<vmem>>, vector<128x64xbf16>,
    return
  }
  func.func @transform_0(%arg0: i32) -> (i32, i32) {
    %c0_i32 = arith.constant 0 : i32
    %c0_i32_0 = arith.constant 0 : i32
    %c0_i32_1 = arith.constant 0 : i32
    return %c0_i32, %c0_i32_0 : i32, i32
  }
  func.func @transform_1(%arg0: i32) -> (i32, i32) {
    %c0_i32 = arith.constant 0 : i32
    %c0_i32_0 = arith.constant 0 : i32
    %c0_i32_1 = arith.constant 0 : i32
    return %c0_i32, %c0_i32_0 : i32, i32
  }
  func.func @transform_2(%arg0: i32) -> (i32, i32) {
    %c0_i32 = arith.constant 0 : i32
    %c0_i32_0 = arith.constant 0 : i32
    %c0_i32_1 = arith.constant 0 : i32
    return %c0_i32, %c0_i32_0 : i32, i32
  }
  func.func @transform_3(%arg0: i32) -> (i32, i32) {
    %c0_i32 = arith.constant 0 : i32
    %c0_i32_0 = arith.constant 0 : i32
    %c0_i32_1 = arith.constant 0 : i32
    return %c0_i32, %c0_i32_0 : i32, i32
  }
  func.func @transform_4(%arg0: i32) -> (i32, i32) {
    %c0_i32 = arith.constant 0 : i32
    %c0_i32_0 = arith.constant 0 : i32
    %c0_i32_1 = arith.constant 0 : i32
    return %c0_i32, %c0_i32_0 : i32, i32
  }
}

module attributes {stable_mosaic.version = 11 : i64} {
  func.func @_fused_block_kernel(%arg0: i32, %arg1: memref<32x1024xbf16, #tpu.memory_space<vmem>>, %arg2: memref<1024x128xbf16, #tpu.memory_space<vmem>>, %arg3: memref<1x128xf32, #tpu.memory_space<vmem>>, %arg4: memref<1x128xf32, #tpu.memory_space<vmem>>, %arg5: memref<32x128xbf16, #tpu.memory_space<vmem>>) attributes {dimension_semantics = [#tpu.dimension_semantics<arbitrary>], iteration_bounds = array<i64: 1>, scalar_prefetch = 0 : i64, scratch_operands = 0 : i64, tpu.core_type = #tpu.core_type<tc>, window_params = [{pipeline_mode = #tpu.pipeline_mode<synchronous>, transform_indices = @transform_0, window_bounds = array<i64: 32, 1024>}, {pipeline_mode = #tpu.pipeline_mode<synchronous>, transform_indices = @transform_1, window_bounds = array<i64: 1024, 128>}, {pipeline_mode = #tpu.pipeline_mode<synchronous>, transform_indices = @transform_2, window_bounds = array<i64: 1, 128>}, {pipeline_mode = #tpu.pipeline_mode<synchronous>, transform_indices = @transform_3, window_bounds = array<i64: 1, 128>}, {pipeline_mode = #tpu.pipeline_mode<synchronous>, transform_indices = @transform_4, window_bounds = array<i64: 32, 128>}]} {
    %c0 = arith.constant 0 : index
    %c0_0 = arith.constant 0 : index
    %0 = vector.load %arg1[%c0, %c0_0] : memref<32x1024xbf16, #tpu.memory_space<vmem>>, vector<32x1024xbf16>
    %c0_1 = arith.constant 0 : index
    %c0_2 = arith.constant 0 : index
    %1 = vector.load %arg2[%c0_1, %c0_2] : memref<1024x128xbf16, #tpu.memory_space<vmem>>, vector<1024x128xbf16>
    %cst = arith.constant dense<0.000000e+00> : vector<32x128xf32>
    %2 = tpu.matmul %0, %1, %cst {dimension_numbers = #tpu.dot_dimension_numbers<[1], [0], [0], [1], [0, 0, 1, 1], [], []>} : vector<32x1024xbf16>, vector<1024x128xbf16>, vector<32x128xf32> -> vector<32x128xf32>
    %cst_3 = arith.constant 1.000000e+00 : f32
    %3 = vector.broadcast %cst_3 : f32 to vector<8x32xf32>
    %cst_4 = arith.constant dense<0.000000e+00> : vector<8x128xf32>
    %4 = tpu.matmul %3, %2, %cst_4 {dimension_numbers = #tpu.dot_dimension_numbers<[1], [0], [0], [1], [0, 0, 1, 1], [], []>} : vector<8x32xf32>, vector<32x128xf32>, vector<8x128xf32> -> vector<8x128xf32>
    %5 = arith.mulf %2, %2 : vector<32x128xf32>
    %cst_5 = arith.constant dense<0.000000e+00> : vector<8x128xf32>
    %6 = tpu.matmul %3, %5, %cst_5 {dimension_numbers = #tpu.dot_dimension_numbers<[1], [0], [0], [1], [0, 0, 1, 1], [], []>} : vector<8x32xf32>, vector<32x128xf32>, vector<8x128xf32> -> vector<8x128xf32>
    %7 = vector.extract_strided_slice %4 {offsets = [0, 0], sizes = [1, 128], strides = [1, 1]} : vector<8x128xf32> to vector<1x128xf32>
    %cst_6 = arith.constant 3.125000e-02 : f32
    %8 = vector.broadcast %cst_6 : f32 to vector<1x128xf32>
    %9 = arith.mulf %7, %8 : vector<1x128xf32>
    %10 = vector.extract_strided_slice %6 {offsets = [0, 0], sizes = [1, 128], strides = [1, 1]} : vector<8x128xf32> to vector<1x128xf32>
    %cst_7 = arith.constant 3.125000e-02 : f32
    %11 = vector.broadcast %cst_7 : f32 to vector<1x128xf32>
    %12 = arith.mulf %10, %11 : vector<1x128xf32>
    %13 = arith.mulf %9, %9 : vector<1x128xf32>
    %14 = arith.subf %12, %13 : vector<1x128xf32>
    %cst_8 = arith.constant 9.99999974E-6 : f32
    %15 = vector.broadcast %cst_8 : f32 to vector<1x128xf32>
    %16 = arith.addf %14, %15 : vector<1x128xf32>
    %17 = math.rsqrt %16 : vector<1x128xf32>
    %c0_9 = arith.constant 0 : index
    %c0_10 = arith.constant 0 : index
    %18 = vector.load %arg3[%c0_9, %c0_10] : memref<1x128xf32, #tpu.memory_space<vmem>>, vector<1x128xf32>
    %19 = arith.mulf %17, %18 : vector<1x128xf32>
    %c0_11 = arith.constant 0 : index
    %c0_12 = arith.constant 0 : index
    %20 = vector.load %arg4[%c0_11, %c0_12] : memref<1x128xf32, #tpu.memory_space<vmem>>, vector<1x128xf32>
    %21 = arith.mulf %9, %19 : vector<1x128xf32>
    %22 = arith.subf %20, %21 : vector<1x128xf32>
    %23 = vector.broadcast %19 : vector<1x128xf32> to vector<32x128xf32>
    %24 = arith.mulf %2, %23 : vector<32x128xf32>
    %25 = vector.broadcast %22 : vector<1x128xf32> to vector<32x128xf32>
    %26 = arith.addf %24, %25 : vector<32x128xf32>
    %cst_13 = arith.constant 0.000000e+00 : f32
    %27 = vector.broadcast %cst_13 : f32 to vector<32x128xf32>
    %28 = arith.cmpf oge, %26, %27 : vector<32x128xf32>
    %cst_14 = arith.constant 2.000000e-01 : f32
    %29 = vector.broadcast %cst_14 : f32 to vector<32x128xf32>
    %30 = arith.mulf %29, %26 : vector<32x128xf32>
    %31 = arith.select %28, %26, %30 : vector<32x128xi1>, vector<32x128xf32>
    %32 = arith.truncf %31 : vector<32x128xf32> to vector<32x128xbf16>
    %c0_15 = arith.constant 0 : index
    %c0_16 = arith.constant 0 : index
    %33 = vector.load %arg5[%c0_15, %c0_16] : memref<32x128xbf16, #tpu.memory_space<vmem>>, vector<32x128xbf16>
    tpu.vector_store %arg5[%c0_15, %c0_16], %32 {strides = array<i32>} : memref<32x128xbf16, #tpu.memory_space<vmem>>, vector<32x128xbf16>,
    return
  }
  func.func @transform_0(%arg0: i32) -> (i32, i32) {
    %c0_i32 = arith.constant 0 : i32
    %c0_i32_0 = arith.constant 0 : i32
    %c0_i32_1 = arith.constant 0 : i32
    return %c0_i32, %c0_i32_0 : i32, i32
  }
  func.func @transform_1(%arg0: i32) -> (i32, i32) {
    %c0_i32 = arith.constant 0 : i32
    %c0_i32_0 = arith.constant 0 : i32
    %c0_i32_1 = arith.constant 0 : i32
    return %c0_i32, %c0_i32_0 : i32, i32
  }
  func.func @transform_2(%arg0: i32) -> (i32, i32) {
    %c0_i32 = arith.constant 0 : i32
    %c0_i32_0 = arith.constant 0 : i32
    %c0_i32_1 = arith.constant 0 : i32
    return %c0_i32, %c0_i32_0 : i32, i32
  }
  func.func @transform_3(%arg0: i32) -> (i32, i32) {
    %c0_i32 = arith.constant 0 : i32
    %c0_i32_0 = arith.constant 0 : i32
    %c0_i32_1 = arith.constant 0 : i32
    return %c0_i32, %c0_i32_0 : i32, i32
  }
  func.func @transform_4(%arg0: i32) -> (i32, i32) {
    %c0_i32 = arith.constant 0 : i32
    %c0_i32_0 = arith.constant 0 : i32
    %c0_i32_1 = arith.constant 0 : i32
    return %c0_i32, %c0_i32_0 : i32, i32
  }
}

module attributes {stable_mosaic.version = 11 : i64} {
  func.func @_final_kernel(%arg0: i32, %arg1: memref<2x2048xbf16, #tpu.memory_space<vmem>>, %arg2: memref<2048x1xbf16, #tpu.memory_space<vmem>>, %arg3: memref<1x1xf32, #tpu.memory_space<vmem>>, %arg4: memref<2x1xf32, #tpu.memory_space<vmem>>) attributes {dimension_semantics = [#tpu.dimension_semantics<arbitrary>], iteration_bounds = array<i64: 1>, scalar_prefetch = 0 : i64, scratch_operands = 0 : i64, tpu.core_type = #tpu.core_type<tc>, window_params = [{pipeline_mode = #tpu.pipeline_mode<synchronous>, transform_indices = @transform_0, window_bounds = array<i64: 2, 2048>}, {pipeline_mode = #tpu.pipeline_mode<synchronous>, transform_indices = @transform_1, window_bounds = array<i64: 2048, 1>}, {pipeline_mode = #tpu.pipeline_mode<synchronous>, transform_indices = @transform_2, window_bounds = array<i64: 1, 1>}, {pipeline_mode = #tpu.pipeline_mode<synchronous>, transform_indices = @transform_3, window_bounds = array<i64: 2, 1>}]} {
    %c0 = arith.constant 0 : index
    %c0_0 = arith.constant 0 : index
    %0 = vector.load %arg1[%c0, %c0_0] : memref<2x2048xbf16, #tpu.memory_space<vmem>>, vector<2x2048xbf16>
    %c0_1 = arith.constant 0 : index
    %c0_2 = arith.constant 0 : index
    %1 = vector.load %arg2[%c0_1, %c0_2] : memref<2048x1xbf16, #tpu.memory_space<vmem>>, vector<2048x1xbf16>
    %cst = arith.constant dense<0.000000e+00> : vector<2x1xf32>
    %2 = tpu.matmul %0, %1, %cst {dimension_numbers = #tpu.dot_dimension_numbers<[1], [0], [0], [1], [0, 0, 1, 1], [], []>} : vector<2x2048xbf16>, vector<2048x1xbf16>, vector<2x1xf32> -> vector<2x1xf32>
    %c0_3 = arith.constant 0 : index
    %c0_4 = arith.constant 0 : index
    %3 = vector.load %arg3[%c0_3, %c0_4] : memref<1x1xf32, #tpu.memory_space<vmem>>, vector<1x1xf32>
    %4 = vector.broadcast %3 : vector<1x1xf32> to vector<2x1xf32>
    %5 = arith.addf %2, %4 : vector<2x1xf32>
    %cst_5 = arith.constant 0.000000e+00 : f32
    %6 = vector.broadcast %cst_5 : f32 to vector<2x1xf32>
    %7 = arith.subf %6, %5 : vector<2x1xf32>
    %8 = math.exp %7 : vector<2x1xf32>
    %cst_6 = arith.constant 1.000000e+00 : f32
    %9 = vector.broadcast %cst_6 : f32 to vector<2x1xf32>
    %10 = arith.addf %9, %8 : vector<2x1xf32>
    %cst_7 = arith.constant 1.000000e+00 : f32
    %11 = vector.broadcast %cst_7 : f32 to vector<2x1xf32>
    %12 = arith.divf %11, %10 : vector<2x1xf32>
    %c0_8 = arith.constant 0 : index
    %c0_9 = arith.constant 0 : index
    %13 = vector.load %arg4[%c0_8, %c0_9] : memref<2x1xf32, #tpu.memory_space<vmem>>, vector<2x1xf32>
    tpu.vector_store %arg4[%c0_8, %c0_9], %12 {strides = array<i32>} : memref<2x1xf32, #tpu.memory_space<vmem>>, vector<2x1xf32>,
    return
  }
  func.func @transform_0(%arg0: i32) -> (i32, i32) {
    %c0_i32 = arith.constant 0 : i32
    %c0_i32_0 = arith.constant 0 : i32
    %c0_i32_1 = arith.constant 0 : i32
    return %c0_i32, %c0_i32_0 : i32, i32
  }
  func.func @transform_1(%arg0: i32) -> (i32, i32) {
    %c0_i32 = arith.constant 0 : i32
    %c0_i32_0 = arith.constant 0 : i32
    %c0_i32_1 = arith.constant 0 : i32
    return %c0_i32, %c0_i32_0 : i32, i32
  }
  func.func @transform_2(%arg0: i32) -> (i32, i32) {
    %c0_i32 = arith.constant 0 : i32
    %c0_i32_0 = arith.constant 0 : i32
    %c0_i32_1 = arith.constant 0 : i32
    return %c0_i32, %c0_i32_0 : i32, i32
  }
  func.func @transform_3(%arg0: i32) -> (i32, i32) {
    %c0_i32 = arith.constant 0 : i32
    %c0_i32_0 = arith.constant 0 : i32
    %c0_i32_1 = arith.constant 0 : i32
    return %c0_i32, %c0_i32_0 : i32, i32
  }
}

</mosaic_0001>

<llo_original>
// kernel: discriminator_forward.7
$region0: #{discriminator_forward.7}
  #allocation0 [shape = 'u32[]', space=smem, size = 0x4, offset = 0x4, fixed_abs, tag = 'smem constant byte address 0x4 - core index']
  #allocation1 [shape = 'u32[144,128]{1,0:T(1,128)}', space=vmem, size = 0x12000, scoped, tag = 'internal scratch']
  %s0 = inlined_call_operand.vmem [shape: bf16[2048,16], index: 0, kind: input, shape index: {}]
  %s1 = inlined_call_operand.vmem [shape: f32[8,16], index: 1, kind: input, shape index: {}]
  %s2 = inlined_call_operand.vmem [shape: f32[8,16], index: 2, kind: input, shape index: {}]
  %s3 = inlined_call_operand.vmem [shape: f32[1,16], index: 3, kind: input, shape index: {}]
  %s4 = inlined_call_operand.vmem [shape: f32[1,16], index: 4, kind: input, shape index: {}]
  %s5 = inlined_call_operand.vmem [shape: bf16[2048,16], index: 5, kind: output, shape index: {}]
  %s6 = sld [smem:[#allocation0]]
  $region53: #{discriminator_forward.7} parent=0
    _
  %s8 = ssub.s32 1, %s6
  %s9 = scalar_select 0, %s8, %s6
  loop: start=0, step=1, limit=4
  $region2: #{discriminator_forward.7} parent=0 // loop_pre_header
    _
  $region3: #{discriminator_forward.7} parent=0 // loop_header
    %s11 = sphi 0, %s15
    %p12 = scmp.ge.s32.totalorder %s11, 4
    %s21 = sphi 0, %s23
    %s24 = sphi 0, %s21
    %s25 = sphi 0, %s24
    %s41 = sphi 0, %s25
    %s45 = sphi 0, %s45
    %s47 = sphi 0, %s45
    %s48 = sphi 0, %s47
    %s62 = sphi 0, %s48
    %s66 = sphi 0, %s66
    %s68 = sphi 0, %s66
    %s69 = sphi 0, %s68
    %s83 = sphi 0, %s69
    %s87 = sphi 0, %s87
    %s89 = sphi 0, %s87
    %s90 = sphi 0, %s89
    %s104 = sphi 0, %s90
    %s108 = sphi 0, %s108
    %s110 = sphi 0, %s108
    %s111 = sphi 0, %s110
    %s125 = sphi 0, %s111
    %s131 = sphi 0, %s133
    %s134 = sphi 0, %s131
    %s135 = sphi 0, %s134
    %s151 = sphi 0, %s135
  $region4: #{discriminator_forward.7} parent=0 // loop_header_branch
    %14 = sbr.rel (%p12) target = $region8
  $region5: #{discriminator_forward.7} parent=0 // loop_body
    %s16 = ssub.s32 %s11, 1
    %s17 = ssub.s32 %s11, 2
    %s18 = sadd.s32 %s11, 1
    %s19 = ssub.s32 %s11, %s18
    %p20 = scmp.eq.s32.totalorder %s19, 0
    %s22 = sadd.s32 %s21, 1
    %s23 = scalar_select %p20, %s21, %s22
    %p26 = pneg %p20
    %p27 = scmp.eq.s32.totalorder %s11, 1
    %p28 = por %p26, %p27
    %p29 = scmp.ne.s32.totalorder %s21, %s24
    %p30 = scmp.eq.s32.totalorder %s11, 0
    %p31 = por %p29, %p30
    %p32 = scmp.ne.s32.totalorder %s21, %s24
    %p33 = scmp.eq.s32.totalorder %s16, 1
    %p34 = por %p32, %p33
    %p35 = scmp.ne.s32.totalorder %s24, %s25
    %p36 = scmp.eq.s32.totalorder %s16, 0
    %p37 = por %p35, %p36
    %p38 = scmp.ne.s32.totalorder %s24, %s25
    %p39 = scmp.eq.s32.totalorder %s17, 1
    %p40 = por %p38, %p39
    %p42 = scmp.ne.s32.totalorder %s25, %s41
    %p43 = scmp.eq.s32.totalorder %s17, 0
    %p44 = por %p42, %p43
    %s46 = sadd.s32 %s45, 1
    %p49 = scmp.eq.s32.totalorder %s11, 1
    %p50 = scmp.ne.s32.totalorder %s45, %s47
    %p51 = scmp.eq.s32.totalorder %s11, 0
    %p52 = por %p50, %p51
    %p53 = scmp.ne.s32.totalorder %s45, %s47
    %p54 = scmp.eq.s32.totalorder %s16, 1
    %p55 = por %p53, %p54
    %p56 = scmp.ne.s32.totalorder %s47, %s48
    %p57 = scmp.eq.s32.totalorder %s16, 0
    %p58 = por %p56, %p57
    %p59 = scmp.ne.s32.totalorder %s47, %s48
    %p60 = scmp.eq.s32.totalorder %s17, 1
    %p61 = por %p59, %p60
    %p63 = scmp.ne.s32.totalorder %s48, %s62
    %p64 = scmp.eq.s32.totalorder %s17, 0
    %p65 = por %p63, %p64
    %s67 = sadd.s32 %s66, 1
    %p70 = scmp.eq.s32.totalorder %s11, 1
    %p71 = scmp.ne.s32.totalorder %s66, %s68
    %p72 = scmp.eq.s32.totalorder %s11, 0
    %p73 = por %p71, %p72
    %p74 = scmp.ne.s32.totalorder %s66, %s68
    %p75 = scmp.eq.s32.totalorder %s16, 1
    %p76 = por %p74, %p75
    %p77 = scmp.ne.s32.totalorder %s68, %s69
    %p78 = scmp.eq.s32.totalorder %s16, 0
    %p79 = por %p77, %p78
    %p80 = scmp.ne.s32.totalorder %s68, %s69
    %p81 = scmp.eq.s32.totalorder %s17, 1
    %p82 = por %p80, %p81
    %p84 = scmp.ne.s32.totalorder %s69, %s83
    %p85 = scmp.eq.s32.totalorder %s17, 0
    %p86 = por %p84, %p85
    %s88 = sadd.s32 %s87, 1
    %p91 = scmp.eq.s32.totalorder %s11, 1
    %p92 = scmp.ne.s32.totalorder %s87, %s89
    %p93 = scmp.eq.s32.totalorder %s11, 0
    %p94 = por %p92, %p93
    %p95 = scmp.ne.s32.totalorder %s87, %s89
    %p96 = scmp.eq.s32.totalorder %s16, 1
    %p97 = por %p95, %p96
    %p98 = scmp.ne.s32.totalorder %s89, %s90
    %p99 = scmp.eq.s32.totalorder %s16, 0
    %p100 = por %p98, %p99
    %p101 = scmp.ne.s32.totalorder %s89, %s90
    %p102 = scmp.eq.s32.totalorder %s17, 1
    %p103 = por %p101, %p102
    %p105 = scmp.ne.s32.totalorder %s90, %s104
    %p106 = scmp.eq.s32.totalorder %s17, 0
    %p107 = por %p105, %p106
    %s109 = sadd.s32 %s108, 1
    %p112 = scmp.eq.s32.totalorder %s11, 1
    %p113 = scmp.ne.s32.totalorder %s108, %s110
    %p114 = scmp.eq.s32.totalorder %s11, 0
    %p115 = por %p113, %p114
    %p116 = scmp.ne.s32.totalorder %s108, %s110
    %p117 = scmp.eq.s32.totalorder %s16, 1
    %p118 = por %p116, %p117
    %p119 = scmp.ne.s32.totalorder %s110, %s111
    %p120 = scmp.eq.s32.totalorder %s16, 0
    %p121 = por %p119, %p120
    %p122 = scmp.ne.s32.totalorder %s110, %s111
    %p123 = scmp.eq.s32.totalorder %s17, 1
    %p124 = por %p122, %p123
    %p126 = scmp.ne.s32.totalorder %s111, %s125
    %p127 = scmp.eq.s32.totalorder %s17, 0
    %p128 = por %p126, %p127
    %s129 = ssub.s32 %s11, %s18
    %p130 = scmp.eq.s32.totalorder %s129, 0
    %s132 = sadd.s32 %s131, 1
    %s133 = scalar_select %p130, %s131, %s132
    %p136 = pneg %p130
    %p137 = scmp.eq.s32.totalorder %s11, 1
    %p138 = por %p136, %p137
    %p139 = scmp.ne.s32.totalorder %s131, %s134
    %p140 = scmp.eq.s32.totalorder %s11, 0
    %p141 = por %p139, %p140
    %p142 = scmp.ne.s32.totalorder %s131, %s134
    %p143 = scmp.eq.s32.totalorder %s16, 1
    %p144 = por %p142, %p143
    %p145 = scmp.ne.s32.totalorder %s134, %s135
    %p146 = scmp.eq.s32.totalorder %s16, 0
    %p147 = por %p145, %p146
    %p148 = scmp.ne.s32.totalorder %s134, %s135
    %p149 = scmp.eq.s32.totalorder %s17, 1
    %p150 = por %p148, %p149
    %p152 = scmp.ne.s32.totalorder %s135, %s151
    %p153 = scmp.eq.s32.totalorder %s17, 0
    %p154 = por %p152, %p153
    %p155 = scmp.le.s32.totalorder 1, %s11
    %p156 = scmp.lt.s32.totalorder %s11, 3
    %p157 = pnand %p155, %p156
    %p158 = pneg %p157
    // Predicated region
    $region9: #{discriminator_forward.7} parent=5 // pred_check
      _
    $region10: #{discriminator_forward.7} parent=5 // pred_check_branch
      %160 = sbr.rel (%p157) target = $region12
    $region11: #{discriminator_forward.7} parent=5 // pred_region
      %s161 = ssub.s32 %s11, 1
      // Predicated region
      $region13: #{discriminator_forward.7} parent=11 // pred_check
        %p162 = pneg %p58
      $region14: #{discriminator_forward.7} parent=11 // pred_check_branch
        %164 = sbr.rel (%p162) target = $region16
      $region15: #{discriminator_forward.7} parent=11 // pred_region
        _
      $region16: #{discriminator_forward.7} parent=11 // pred_fallthru
        _
      // Predicated region
      $region17: #{discriminator_forward.7} parent=11 // pred_check
        %p165 = pneg %p79
      $region18: #{discriminator_forward.7} parent=11 // pred_check_branch
        %167 = sbr.rel (%p165) target = $region20
      $region19: #{discriminator_forward.7} parent=11 // pred_region
        _
      $region20: #{discriminator_forward.7} parent=11 // pred_fallthru
        _
      // Predicated region
      $region21: #{discriminator_forward.7} parent=11 // pred_check
        %p168 = pneg %p100
      $region22: #{discriminator_forward.7} parent=11 // pred_check_branch
        %170 = sbr.rel (%p168) target = $region24
      $region23: #{discriminator_forward.7} parent=11 // pred_region
        _
      $region24: #{discriminator_forward.7} parent=11 // pred_fallthru
        _
      // Predicated region
      $region25: #{discriminator_forward.7} parent=11 // pred_check
        %p171 = pneg %p121
      $region26: #{discriminator_forward.7} parent=11 // pred_check_branch
        %173 = sbr.rel (%p171) target = $region28
      $region27: #{discriminator_forward.7} parent=11 // pred_region
        _
      $region28: #{discriminator_forward.7} parent=11 // pred_fallthru
        _
    $region12: #{discriminator_forward.7} parent=5 // pred_fallthru
      _
    %p174 = scmp.lt.s32.totalorder %s11, 2
    // Predicated region
    $region29: #{discriminator_forward.7} parent=5 // pred_check
      %p175 = pneg %p174
    $region30: #{discriminator_forward.7} parent=5 // pred_check_branch
      %177 = sbr.rel (%p175) target = $region32
    $region31: #{discriminator_forward.7} parent=5 // pred_region
      // Predicated region
      $region33: #{discriminator_forward.7} parent=31 // pred_check
        %p178 = pneg %p31
      $region34: #{discriminator_forward.7} parent=31 // pred_check_branch
        %180 = sbr.rel (%p178) target = $region36
      $region35: #{discriminator_forward.7} parent=31 // pred_region
        %s181 = smul.u32 128, %s11
        %p182 = scmp.lt.s32.totalorder %s181, 255
        %s183 = scalar_select %p182, %s181, 255
        %s184 = smul.addr %s183, 4
        %s185 = scalar_lea.vmem %s0, %s184
        %s186 = smul.u32 128, %s11
      $region36: #{discriminator_forward.7} parent=31 // pred_fallthru
        _
    $region32: #{discriminator_forward.7} parent=5 // pred_fallthru
      _
    %p187 = scmp.le.s32.totalorder 1, %s11
    %p188 = scmp.lt.s32.totalorder %s11, 3
    %p189 = pnand %p187, %p188
    %p190 = pneg %p189
    // Predicated region
    $region37: #{discriminator_forward.7} parent=5 // pred_check
      _
    $region38: #{discriminator_forward.7} parent=5 // pred_check_branch
      %192 = sbr.rel (%p189) target = $region40
    $region39: #{discriminator_forward.7} parent=5 // pred_region
      %s193 = ssub.s32 %s11, 1
      %s194 = smul.u32 128, %s16
      %p195 = scmp.lt.s32.totalorder %s194, 255
      %s196 = scalar_select %p195, %s194, 255
      %s197 = smul.addr %s196, 4
      %s198 = scalar_lea.vmem %s0, %s197
      %p199 = pneg %p37
      %p200 = pneg %p34
      %p201 = pneg %p58
      %p202 = pneg %p55
      %p203 = pneg %p79
      %p204 = pneg %p76
      %p205 = pneg %p100
      %p206 = pneg %p97
      %p207 = pneg %p121
      %p208 = pneg %p118
      %p209 = pneg %p147
      %p210 = pneg %p144
      %s211 = smul.u32 128, %s16
      %p212 = scmp.lt.s32.totalorder %s211, 255
      %s213 = scalar_select %p212, %s211, 255
      %s214 = smul.addr %s213, 4
      %s215 = scalar_lea.vmem %s5, %s214
      %s216 = smul.u32 128, %s16
      %p217 = scmp.lt.s32.totalorder %s216, 255
      %s218 = scalar_select %p217, %s216, 255
      %s219 = smul.addr %s218, 4
      %s220 = scalar_lea.vmem %s0, %s219
      %s221 = smul.u32 128, %s16
      %s222 = smul.u32 128, %s16
      %p223 = scmp.lt.s32.totalorder %s222, 255
      %s224 = scalar_select %p223, %s222, 255
      %s225 = smul.addr %s224, 4
      %s226 = scalar_lea.vmem %s5, %s225
      %s227 = smul.u32 128, %s16
      %v228 = vld [vmem:[%s1] sm:$0x1]
      %v229 = vmul.f32 %v228, 0.00048828125
      %v230 = vld [vmem:[%s2] sm:$0x1]
      %v231 = vmul.f32 %v230, 0.00048828125
      %v232 = vmul.f32 %v229, %v229
      %v233 = vsub.f32 %v231, %v232
      %v234 = vadd.f32 %v233, 1e-05
      %v235 = vrsqrt.pop %v234
      %v236 = vld [vmem:[%s3] sm:$0x1]
      %v237 = vmul.f32 %v235, %v236
      %v238 = vld [vmem:[%s4] sm:$0x1]
      %v239 = vmul.f32 %v229, %v237
      %v240 = vsub.f32 %v238, %v239
      %v241 = vld [vmem:[%s220] sm:$0xf]
      %v242 = vld [vmem:[%s220 + $0x4] sm:$0xf]
      %v243 = vld [vmem:[%s220 + $0x8] sm:$0xf]
      %v244 = vld [vmem:[%s220 + $0xc] sm:$0xf]
      %v245 = vld [vmem:[%s220 + $0x10] sm:$0xf]
      %v246 = vld [vmem:[%s220 + $0x14] sm:$0xf]
      %v247 = vld [vmem:[%s220 + $0x18] sm:$0xf]
      %v248 = vld [vmem:[%s220 + $0x1c] sm:$0xf]
      %v249 = vld [vmem:[%s220 + $0x20] sm:$0xf]
      %v250 = vld [vmem:[%s220 + $0x24] sm:$0xf]
      %v251 = vld [vmem:[%s220 + $0x28] sm:$0xf]
      %v252 = vld [vmem:[%s220 + $0x2c] sm:$0xf]
      %v253 = vld [vmem:[%s220 + $0x30] sm:$0xf]
      %v254 = vld [vmem:[%s220 + $0x34] sm:$0xf]
      %v255 = vld [vmem:[%s220 + $0x38] sm:$0xf]
      %v256 = vld [vmem:[%s220 + $0x3c] sm:$0xf]
      %v257 = vld [vmem:[%s220 + $0x40] sm:$0xf]
      %v258 = vld [vmem:[%s220 + $0x44] sm:$0xf]
      %v259 = vld [vmem:[%s220 + $0x48] sm:$0xf]
      %v260 = vld [vmem:[%s220 + $0x4c] sm:$0xf]
      %v261 = vld [vmem:[%s220 + $0x50] sm:$0xf]
      %v262 = vld [vmem:[%s220 + $0x54] sm:$0xf]
      %v263 = vld [vmem:[%s220 + $0x58] sm:$0xf]
      %v264 = vld [vmem:[%s220 + $0x5c] sm:$0xf]
      %v265 = vld [vmem:[%s220 + $0x60] sm:$0xf]
      %v266 = vld [vmem:[%s220 + $0x64] sm:$0xf]
      %v267 = vld [vmem:[%s220 + $0x68] sm:$0xf]
      %v268 = vld [vmem:[%s220 + $0x6c] sm:$0xf]
      %v269 = vld [vmem:[%s220 + $0x70] sm:$0xf]
      %v270 = vld [vmem:[%s220 + $0x74] sm:$0xf]
      %v271 = vld [vmem:[%s220 + $0x78] sm:$0xf]
      %v272 = vld [vmem:[%s220 + $0x7c] sm:$0xf]
      %v273 = vld [vmem:[%s220 + $0x80] sm:$0xf]
      %v274 = vld [vmem:[%s220 + $0x84] sm:$0xf]
      %v275 = vld [vmem:[%s220 + $0x88] sm:$0xf]
      %v276 = vld [vmem:[%s220 + $0x8c] sm:$0xf]
      %v277 = vld [vmem:[%s220 + $0x90] sm:$0xf]
      %v278 = vld [vmem:[%s220 + $0x94] sm:$0xf]
      %v279 = vld [vmem:[%s220 + $0x98] sm:$0xf]
      %v280 = vld [vmem:[%s220 + $0x9c] sm:$0xf]
      %v281 = vld [vmem:[%s220 + $0xa0] sm:$0xf]
      %v282 = vld [vmem:[%s220 + $0xa4] sm:$0xf]
      %v283 = vld [vmem:[%s220 + $0xa8] sm:$0xf]
      %v284 = vld [vmem:[%s220 + $0xac] sm:$0xf]
      %v285 = vld [vmem:[%s220 + $0xb0] sm:$0xf]
      %v286 = vld [vmem:[%s220 + $0xb4] sm:$0xf]
      %v287 = vld [vmem:[%s220 + $0xb8] sm:$0xf]
      %v288 = vld [vmem:[%s220 + $0xbc] sm:$0xf]
      %v289 = vld [vmem:[%s220 + $0xc0] sm:$0xf]
      %v290 = vld [vmem:[%s220 + $0xc4] sm:$0xf]
      %v291 = vld [vmem:[%s220 + $0xc8] sm:$0xf]
      %v292 = vld [vmem:[%s220 + $0xcc] sm:$0xf]
      %v293 = vld [vmem:[%s220 + $0xd0] sm:$0xf]
      %v294 = vld [vmem:[%s220 + $0xd4] sm:$0xf]
      %v295 = vld [vmem:[%s220 + $0xd8] sm:$0xf]
      %v296 = vld [vmem:[%s220 + $0xdc] sm:$0xf]
      %v297 = vld [vmem:[%s220 + $0xe0] sm:$0xf]
      %v298 = vld [vmem:[%s220 + $0xe4] sm:$0xf]
      %v299 = vld [vmem:[%s220 + $0xe8] sm:$0xf]
      %v300 = vld [vmem:[%s220 + $0xec] sm:$0xf]
      %v301 = vld [vmem:[%s220 + $0xf0] sm:$0xf]
      %v302 = vld [vmem:[%s220 + $0xf4] sm:$0xf]
      %v303 = vld [vmem:[%s220 + $0xf8] sm:$0xf]
      %v304 = vld [vmem:[%s220 + $0xfc] sm:$0xf]
      %v305 = vld [vmem:[%s220 + $0x100] sm:$0xf]
      %v306 = vld [vmem:[%s220 + $0x104] sm:$0xf]
      %v307 = vld [vmem:[%s220 + $0x108] sm:$0xf]
      %v308 = vld [vmem:[%s220 + $0x10c] sm:$0xf]
      %v309 = vld [vmem:[%s220 + $0x110] sm:$0xf]
      %v310 = vld [vmem:[%s220 + $0x114] sm:$0xf]
      %v311 = vld [vmem:[%s220 + $0x118] sm:$0xf]
      %v312 = vld [vmem:[%s220 + $0x11c] sm:$0xf]
      %v313 = vld [vmem:[%s220 + $0x120] sm:$0xf]
      %v314 = vld [vmem:[%s220 + $0x124] sm:$0xf]
      %v315 = vld [vmem:[%s220 + $0x128] sm:$0xf]
      %v316 = vld [vmem:[%s220 + $0x12c] sm:$0xf]
      %v317 = vld [vmem:[%s220 + $0x130] sm:$0xf]
      %v318 = vld [vmem:[%s220 + $0x134] sm:$0xf]
      %v319 = vld [vmem:[%s220 + $0x138] sm:$0xf]
      %v320 = vld [vmem:[%s220 + $0x13c] sm:$0xf]
      %v321 = vld [vmem:[%s220 + $0x140] sm:$0xf]
      %v322 = vld [vmem:[%s220 + $0x144] sm:$0xf]
      %v323 = vld [vmem:[%s220 + $0x148] sm:$0xf]
      %v324 = vld [vmem:[%s220 + $0x14c] sm:$0xf]
      %v325 = vld [vmem:[%s220 + $0x150] sm:$0xf]
      %v326 = vld [vmem:[%s220 + $0x154] sm:$0xf]
      %v327 = vld [vmem:[%s220 + $0x158] sm:$0xf]
      %v328 = vld [vmem:[%s220 + $0x15c] sm:$0xf]
      %v329 = vld [vmem:[%s220 + $0x160] sm:$0xf]
      %v330 = vld [vmem:[%s220 + $0x164] sm:$0xf]
      %v331 = vld [vmem:[%s220 + $0x168] sm:$0xf]
      %v332 = vld [vmem:[%s220 + $0x16c] sm:$0xf]
      %v333 = vld [vmem:[%s220 + $0x170] sm:$0xf]
      %v334 = vld [vmem:[%s220 + $0x174] sm:$0xf]
      %v335 = vld [vmem:[%s220 + $0x178] sm:$0xf]
      %v336 = vld [vmem:[%s220 + $0x17c] sm:$0xf]
      %v337 = vld [vmem:[%s220 + $0x180] sm:$0xf]
      %v338 = vld [vmem:[%s220 + $0x184] sm:$0xf]
      %v339 = vld [vmem:[%s220 + $0x188] sm:$0xf]
      %v340 = vld [vmem:[%s220 + $0x18c] sm:$0xf]
      %v341 = vld [vmem:[%s220 + $0x190] sm:$0xf]
      %v342 = vld [vmem:[%s220 + $0x194] sm:$0xf]
      %v343 = vld [vmem:[%s220 + $0x198] sm:$0xf]
      %v344 = vld [vmem:[%s220 + $0x19c] sm:$0xf]
      %v345 = vld [vmem:[%s220 + $0x1a0] sm:$0xf]
      %v346 = vld [vmem:[%s220 + $0x1a4] sm:$0xf]
      %v347 = vld [vmem:[%s220 + $0x1a8] sm:$0xf]
      %v348 = vld [vmem:[%s220 + $0x1ac] sm:$0xf]
      %v349 = vld [vmem:[%s220 + $0x1b0] sm:$0xf]
      %v350 = vld [vmem:[%s220 + $0x1b4] sm:$0xf]
      %v351 = vld [vmem:[%s220 + $0x1b8] sm:$0xf]
      %v352 = vld [vmem:[%s220 + $0x1bc] sm:$0xf]
      %v353 = vld [vmem:[%s220 + $0x1c0] sm:$0xf]
      %v354 = vld [vmem:[%s220 + $0x1c4] sm:$0xf]
      %v355 = vld [vmem:[%s220 + $0x1c8] sm:$0xf]
      %v356 = vld [vmem:[%s220 + $0x1cc] sm:$0xf]
      %v357 = vld [vmem:[%s220 + $0x1d0] sm:$0xf]
      %v358 = vld [vmem:[%s220 + $0x1d4] sm:$0xf]
      %v359 = vld [vmem:[%s220 + $0x1d8] sm:$0xf]
      %v360 = vld [vmem:[%s220 + $0x1dc] sm:$0xf]
      %v361 = vld [vmem:[%s220 + $0x1e0] sm:$0xf]
      %v362 = vld [vmem:[%s220 + $0x1e4] sm:$0xf]
      %v363 = vld [vmem:[%s220 + $0x1e8] sm:$0xf]
      %v364 = vld [vmem:[%s220 + $0x1ec] sm:$0xf]
      %v365 = vld [vmem:[%s220 + $0x1f0] sm:$0xf]
      %v366 = vld [vmem:[%s220 + $0x1f4] sm:$0xf]
      %v367 = vld [vmem:[%s220 + $0x1f8] sm:$0xf]
      %v368 = vld [vmem:[%s220 + $0x1fc] sm:$0xf]
      %v369 = vunpack.c.l.bf16 %v241
      %v370 = vunpack.c.l.bf16 %v242
      %v371 = vunpack.c.l.bf16 %v243
      %v372 = vunpack.c.l.bf16 %v244
      %v373 = vunpack.c.l.bf16 %v245
      %v374 = vunpack.c.l.bf16 %v246
      %v375 = vunpack.c.l.bf16 %v247
      %v376 = vunpack.c.l.bf16 %v248
      %v377 = vunpack.c.l.bf16 %v249
      %v378 = vunpack.c.l.bf16 %v250
      %v379 = vunpack.c.l.bf16 %v251
      %v380 = vunpack.c.l.bf16 %v252
      %v381 = vunpack.c.l.bf16 %v253
      %v382 = vunpack.c.l.bf16 %v254
      %v383 = vunpack.c.l.bf16 %v255
      %v384 = vunpack.c.l.bf16 %v256
      %v385 = vunpack.c.l.bf16 %v257
      %v386 = vunpack.c.l.bf16 %v258
      %v387 = vunpack.c.l.bf16 %v259
      %v388 = vunpack.c.l.bf16 %v260
      %v389 = vunpack.c.l.bf16 %v261
      %v390 = vunpack.c.l.bf16 %v262
      %v391 = vunpack.c.l.bf16 %v263
      %v392 = vunpack.c.l.bf16 %v264
      %v393 = vunpack.c.l.bf16 %v265
      %v394 = vunpack.c.l.bf16 %v266
      %v395 = vunpack.c.l.bf16 %v267
      %v396 = vunpack.c.l.bf16 %v268
      %v397 = vunpack.c.l.bf16 %v269
      %v398 = vunpack.c.l.bf16 %v270
      %v399 = vunpack.c.l.bf16 %v271
      %v400 = vunpack.c.l.bf16 %v272
      %v401 = vunpack.c.l.bf16 %v273
      %v402 = vunpack.c.l.bf16 %v274
      %v403 = vunpack.c.l.bf16 %v275
      %v404 = vunpack.c.l.bf16 %v276
      %v405 = vunpack.c.l.bf16 %v277
      %v406 = vunpack.c.l.bf16 %v278
      %v407 = vunpack.c.l.bf16 %v279
      %v408 = vunpack.c.l.bf16 %v280
      %v409 = vunpack.c.l.bf16 %v281
      %v410 = vunpack.c.l.bf16 %v282
      %v411 = vunpack.c.l.bf16 %v283
      %v412 = vunpack.c.l.bf16 %v284
      %v413 = vunpack.c.l.bf16 %v285
      %v414 = vunpack.c.l.bf16 %v286
      %v415 = vunpack.c.l.bf16 %v287
      %v416 = vunpack.c.l.bf16 %v288
      %v417 = vunpack.c.l.bf16 %v289
      %v418 = vunpack.c.l.bf16 %v290
      %v419 = vunpack.c.l.bf16 %v291
      %v420 = vunpack.c.l.bf16 %v292
      %v421 = vunpack.c.l.bf16 %v293
      %v422 = vunpack.c.l.bf16 %v294
      %v423 = vunpack.c.l.bf16 %v295
      %v424 = vunpack.c.l.bf16 %v296
      %v425 = vunpack.c.l.bf16 %v297
      %v426 = vunpack.c.l.bf16 %v298
      %v427 = vunpack.c.l.bf16 %v299
      %v428 = vunpack.c.l.bf16 %v300
      %v429 = vunpack.c.l.bf16 %v301
      %v430 = vunpack.c.l.bf16 %v302
      %v431 = vunpack.c.l.bf16 %v303
      %v432 = vunpack.c.l.bf16 %v304
      %v433 = vunpack.c.l.bf16 %v305
      %v434 = vunpack.c.l.bf16 %v306
      %v435 = vunpack.c.l.bf16 %v307
      %v436 = vunpack.c.l.bf16 %v308
      %v437 = vunpack.c.l.bf16 %v309
      %v438 = vunpack.c.l.bf16 %v310
      %v439 = vunpack.c.l.bf16 %v311
      %v440 = vunpack.c.l.bf16 %v312
      %v441 = vunpack.c.l.bf16 %v313
      %v442 = vunpack.c.l.bf16 %v314
      %v443 = vunpack.c.l.bf16 %v315
      %v444 = vunpack.c.l.bf16 %v316
      %v445 = vunpack.c.l.bf16 %v317
      %v446 = vunpack.c.l.bf16 %v318
      %v447 = vunpack.c.l.bf16 %v319
      %v448 = vunpack.c.l.bf16 %v320
      %v449 = vunpack.c.l.bf16 %v321
      %v450 = vunpack.c.l.bf16 %v322
      %v451 = vunpack.c.l.bf16 %v323
      %v452 = vunpack.c.l.bf16 %v324
      %v453 = vunpack.c.l.bf16 %v325
      %v454 = vunpack.c.l.bf16 %v326
      %v455 = vunpack.c.l.bf16 %v327
      %v456 = vunpack.c.l.bf16 %v328
      %v457 = vunpack.c.l.bf16 %v329
      %v458 = vunpack.c.l.bf16 %v330
      %v459 = vunpack.c.l.bf16 %v331
      %v460 = vunpack.c.l.bf16 %v332
      %v461 = vunpack.c.l.bf16 %v333
      %v462 = vunpack.c.l.bf16 %v334
      %v463 = vunpack.c.l.bf16 %v335
      %v464 = vunpack.c.l.bf16 %v336
      %v465 = vunpack.c.l.bf16 %v337
      %v466 = vunpack.c.l.bf16 %v338
      %v467 = vunpack.c.l.bf16 %v339
      %v468 = vunpack.c.l.bf16 %v340
      %v469 = vunpack.c.l.bf16 %v341
      %v470 = vunpack.c.l.bf16 %v342
      %v471 = vunpack.c.l.bf16 %v343
      %v472 = vunpack.c.l.bf16 %v344
      %v473 = vunpack.c.l.bf16 %v345
      %v474 = vunpack.c.l.bf16 %v346
      %v475 = vunpack.c.l.bf16 %v347
      %v476 = vunpack.c.l.bf16 %v348
      %v477 = vunpack.c.l.bf16 %v349
      %v478 = vunpack.c.l.bf16 %v350
      %v479 = vunpack.c.l.bf16 %v351
      %v480 = vunpack.c.l.bf16 %v352
      %v481 = vunpack.c.l.bf16 %v353
      %v482 = vunpack.c.l.bf16 %v354
      %v483 = vunpack.c.l.bf16 %v355
      %v484 = vunpack.c.l.bf16 %v356
      %v485 = vunpack.c.l.bf16 %v357
      %v486 = vunpack.c.l.bf16 %v358
      %v487 = vunpack.c.l.bf16 %v359
      %v488 = vunpack.c.l.bf16 %v360
      %v489 = vunpack.c.l.bf16 %v361
      %v490 = vunpack.c.l.bf16 %v362
      %v491 = vunpack.c.l.bf16 %v363
      %v492 = vunpack.c.l.bf16 %v364
      %v493 = vunpack.c.l.bf16 %v365
      %v494 = vunpack.c.l.bf16 %v366
      %v495 = vunpack.c.l.bf16 %v367
      %v496 = vunpack.c.l.bf16 %v368
      %v497 = vlaneseq
      %v498 = vshrl.u32 %v497, 7
      %v499 = vsub.s32 0, %v498
      %v500 = vrot.slane %v237, %v499
      %v501 = vmul.f32 %v369, %v500
      %v502 = vmul.f32 %v370, %v500
      %v503 = vmul.f32 %v371, %v500
      %v504 = vmul.f32 %v372, %v500
      %v505 = vmul.f32 %v373, %v500
      %v506 = vmul.f32 %v374, %v500
      %v507 = vmul.f32 %v375, %v500
      %v508 = vmul.f32 %v376, %v500
      %v509 = vmul.f32 %v377, %v500
      %v510 = vmul.f32 %v378, %v500
      %v511 = vmul.f32 %v379, %v500
      %v512 = vmul.f32 %v380, %v500
      %v513 = vmul.f32 %v381, %v500
      %v514 = vmul.f32 %v382, %v500
      %v515 = vmul.f32 %v383, %v500
      %v516 = vmul.f32 %v384, %v500
      %v517 = vmul.f32 %v385, %v500
      %v518 = vmul.f32 %v386, %v500
      %v519 = vmul.f32 %v387, %v500
      %v520 = vmul.f32 %v388, %v500
      %v521 = vmul.f32 %v389, %v500
      %v522 = vmul.f32 %v390, %v500
      %v523 = vmul.f32 %v391, %v500
      %v524 = vmul.f32 %v392, %v500
      %v525 = vmul.f32 %v393, %v500
      %v526 = vmul.f32 %v394, %v500
      %v527 = vmul.f32 %v395, %v500
      %v528 = vmul.f32 %v396, %v500
      %v529 = vmul.f32 %v397, %v500
      %v530 = vmul.f32 %v398, %v500
      %v531 = vmul.f32 %v399, %v500
      %v532 = vmul.f32 %v400, %v500
      %v533 = vmul.f32 %v401, %v500
      %v534 = vmul.f32 %v402, %v500
      %v535 = vmul.f32 %v403, %v500
      %v536 = vmul.f32 %v404, %v500
      %v537 = vmul.f32 %v405, %v500
      %v538 = vmul.f32 %v406, %v500
      %v539 = vmul.f32 %v407, %v500
      %v540 = vmul.f32 %v408, %v500
      %v541 = vmul.f32 %v409, %v500
      %v542 = vmul.f32 %v410, %v500
      %v543 = vmul.f32 %v411, %v500
      %v544 = vmul.f32 %v412, %v500
      %v545 = vmul.f32 %v413, %v500
      %v546 = vmul.f32 %v414, %v500
      %v547 = vmul.f32 %v415, %v500
      %v548 = vmul.f32 %v416, %v500
      %v549 = vmul.f32 %v417, %v500
      %v550 = vmul.f32 %v418, %v500
      %v551 = vmul.f32 %v419, %v500
      %v552 = vmul.f32 %v420, %v500
      %v553 = vmul.f32 %v421, %v500
      %v554 = vmul.f32 %v422, %v500
      %v555 = vmul.f32 %v423, %v500
      %v556 = vmul.f32 %v424, %v500
      %v557 = vmul.f32 %v425, %v500
      %v558 = vmul.f32 %v426, %v500
      %v559 = vmul.f32 %v427, %v500
      %v560 = vmul.f32 %v428, %v500
      %v561 = vmul.f32 %v429, %v500
      %v562 = vmul.f32 %v430, %v500
      %v563 = vmul.f32 %v431, %v500
      %v564 = vmul.f32 %v432, %v500
      %v565 = vmul.f32 %v433, %v500
      %v566 = vmul.f32 %v434, %v500
      %v567 = vmul.f32 %v435, %v500
      %v568 = vmul.f32 %v436, %v500
      %v569 = vmul.f32 %v437, %v500
      %v570 = vmul.f32 %v438, %v500
      %v571 = vmul.f32 %v439, %v500
      %v572 = vmul.f32 %v440, %v500
      %v573 = vmul.f32 %v441, %v500
      %v574 = vmul.f32 %v442, %v500
      %v575 = vmul.f32 %v443, %v500
      %v576 = vmul.f32 %v444, %v500
      %v577 = vmul.f32 %v445, %v500
      %v578 = vmul.f32 %v446, %v500
      %v579 = vmul.f32 %v447, %v500
      %v580 = vmul.f32 %v448, %v500
      %v581 = vmul.f32 %v449, %v500
      %v582 = vmul.f32 %v450, %v500
      %v583 = vmul.f32 %v451, %v500
      %v584 = vmul.f32 %v452, %v500
      %v585 = vmul.f32 %v453, %v500
      %v586 = vmul.f32 %v454, %v500
      %v587 = vmul.f32 %v455, %v500
      %v588 = vmul.f32 %v456, %v500
      %v589 = vmul.f32 %v457, %v500
      %v590 = vmul.f32 %v458, %v500
      %v591 = vmul.f32 %v459, %v500
      %v592 = vmul.f32 %v460, %v500
      %v593 = vmul.f32 %v461, %v500
      %v594 = vmul.f32 %v462, %v500
      %v595 = vmul.f32 %v463, %v500
      %v596 = vmul.f32 %v464, %v500
      %v597 = vmul.f32 %v465, %v500
      %v598 = vmul.f32 %v466, %v500
      %v599 = vmul.f32 %v467, %v500
      %v600 = vmul.f32 %v468, %v500
      %v601 = vmul.f32 %v469, %v500
      %v602 = vmul.f32 %v470, %v500
      %v603 = vmul.f32 %v471, %v500
      %v604 = vmul.f32 %v472, %v500
      %v605 = vmul.f32 %v473, %v500
      %v606 = vmul.f32 %v474, %v500
      %v607 = vmul.f32 %v475, %v500
      %v608 = vmul.f32 %v476, %v500
      %v609 = vmul.f32 %v477, %v500
      %v610 = vmul.f32 %v478, %v500
      %v611 = vmul.f32 %v479, %v500
      %v612 = vmul.f32 %v480, %v500
      %v613 = vmul.f32 %v481, %v500
      %v614 = vmul.f32 %v482, %v500
      %v615 = vmul.f32 %v483, %v500
      %v616 = vmul.f32 %v484, %v500
      %v617 = vmul.f32 %v485, %v500
      %v618 = vmul.f32 %v486, %v500
      %v619 = vmul.f32 %v487, %v500
      %v620 = vmul.f32 %v488, %v500
      %v621 = vmul.f32 %v489, %v500
      %v622 = vmul.f32 %v490, %v500
      %v623 = vmul.f32 %v491, %v500
      %v624 = vmul.f32 %v492, %v500
      %v625 = vmul.f32 %v493, %v500
      %v626 = vmul.f32 %v494, %v500
      %v627 = vmul.f32 %v495, %v500
      %v628 = vmul.f32 %v496, %v500
      %v630 = vlaneseq
      %v631 = vshrl.u32 %v630, 7
      %v632 = vsub.s32 0, %v631
      %v633 = vrot.slane %v240, %v632
      %v635 = vadd.f32 %v501, %v633
      %v636 = vadd.f32 %v502, %v633
      %v637 = vadd.f32 %v503, %v633
      %v638 = vadd.f32 %v504, %v633
      %v639 = vadd.f32 %v505, %v633
      %v640 = vadd.f32 %v506, %v633
      %v641 = vadd.f32 %v507, %v633
      %v642 = vadd.f32 %v508, %v633
      %v643 = vadd.f32 %v509, %v633
      %v644 = vadd.f32 %v510, %v633
      %v645 = vadd.f32 %v511, %v633
      %v646 = vadd.f32 %v512, %v633
      %v647 = vadd.f32 %v513, %v633
      %v648 = vadd.f32 %v514, %v633
      %v649 = vadd.f32 %v515, %v633
      %v650 = vadd.f32 %v516, %v633
      %v651 = vadd.f32 %v517, %v633
      %v652 = vadd.f32 %v518, %v633
      %v653 = vadd.f32 %v519, %v633
      %v654 = vadd.f32 %v520, %v633
      %v655 = vadd.f32 %v521, %v633
      %v656 = vadd.f32 %v522, %v633
      %v657 = vadd.f32 %v523, %v633
      %v658 = vadd.f32 %v524, %v633
      %v659 = vadd.f32 %v525, %v633
      %v660 = vadd.f32 %v526, %v633
      %v661 = vadd.f32 %v527, %v633
      %v662 = vadd.f32 %v528, %v633
      %v663 = vadd.f32 %v529, %v633
      %v664 = vadd.f32 %v530, %v633
      %v665 = vadd.f32 %v531, %v633
      %v666 = vadd.f32 %v532, %v633
      %v667 = vadd.f32 %v533, %v633
      %v668 = vadd.f32 %v534, %v633
      %v669 = vadd.f32 %v535, %v633
      %v670 = vadd.f32 %v536, %v633
      %v671 = vadd.f32 %v537, %v633
      %v672 = vadd.f32 %v538, %v633
      %v673 = vadd.f32 %v539, %v633
      %v674 = vadd.f32 %v540, %v633
      %v675 = vadd.f32 %v541, %v633
      %v676 = vadd.f32 %v542, %v633
      %v677 = vadd.f32 %v543, %v633
      %v678 = vadd.f32 %v544, %v633
      %v679 = vadd.f32 %v545, %v633
      %v680 = vadd.f32 %v546, %v633
      %v681 = vadd.f32 %v547, %v633
      %v682 = vadd.f32 %v548, %v633
      %v683 = vadd.f32 %v549, %v633
      %v684 = vadd.f32 %v550, %v633
      %v685 = vadd.f32 %v551, %v633
      %v686 = vadd.f32 %v552, %v633
      %v687 = vadd.f32 %v553, %v633
      %v688 = vadd.f32 %v554, %v633
      %v689 = vadd.f32 %v555, %v633
      %v690 = vadd.f32 %v556, %v633
      %v691 = vadd.f32 %v557, %v633
      %v692 = vadd.f32 %v558, %v633
      %v693 = vadd.f32 %v559, %v633
      %v694 = vadd.f32 %v560, %v633
      %v695 = vadd.f32 %v561, %v633
      %v696 = vadd.f32 %v562, %v633
      %v697 = vadd.f32 %v563, %v633
      %v698 = vadd.f32 %v564, %v633
      %v699 = vadd.f32 %v565, %v633
      %v700 = vadd.f32 %v566, %v633
      %v701 = vadd.f32 %v567, %v633
      %v702 = vadd.f32 %v568, %v633
      %v703 = vadd.f32 %v569, %v633
      %v704 = vadd.f32 %v570, %v633
      %v705 = vadd.f32 %v571, %v633
      %v706 = vadd.f32 %v572, %v633
      %v707 = vadd.f32 %v573, %v633
      %v708 = vadd.f32 %v574, %v633
      %v709 = vadd.f32 %v575, %v633
      %v710 = vadd.f32 %v576, %v633
      %v711 = vadd.f32 %v577, %v633
      %v712 = vadd.f32 %v578, %v633
      %v713 = vadd.f32 %v579, %v633
      %v714 = vadd.f32 %v580, %v633
      %v715 = vadd.f32 %v581, %v633
      %v716 = vadd.f32 %v582, %v633
      %v717 = vadd.f32 %v583, %v633
      %v718 = vadd.f32 %v584, %v633
      %v719 = vadd.f32 %v585, %v633
      %v720 = vadd.f32 %v586, %v633
      %v721 = vadd.f32 %v587, %v633
      %v722 = vadd.f32 %v588, %v633
      %v723 = vadd.f32 %v589, %v633
      %v724 = vadd.f32 %v590, %v633
      %v725 = vadd.f32 %v591, %v633
      %v726 = vadd.f32 %v592, %v633
      %v727 = vadd.f32 %v593, %v633
      %v728 = vadd.f32 %v594, %v633
      %v729 = vadd.f32 %v595, %v633
      %v730 = vadd.f32 %v596, %v633
      %v731 = vadd.f32 %v597, %v633
      %v732 = vadd.f32 %v598, %v633
      %v733 = vadd.f32 %v599, %v633
      %v734 = vadd.f32 %v600, %v633
      %v735 = vadd.f32 %v601, %v633
      %v736 = vadd.f32 %v602, %v633
      %v737 = vadd.f32 %v603, %v633
      %v738 = vadd.f32 %v604, %v633
      %v739 = vadd.f32 %v605, %v633
      %v740 = vadd.f32 %v606, %v633
      %v741 = vadd.f32 %v607, %v633
      %v742 = vadd.f32 %v608, %v633
      %v743 = vadd.f32 %v609, %v633
      %v744 = vadd.f32 %v610, %v633
      %v745 = vadd.f32 %v611, %v633
      %v746 = vadd.f32 %v612, %v633
      %v747 = vadd.f32 %v613, %v633
      %v748 = vadd.f32 %v614, %v633
      %v749 = vadd.f32 %v615, %v633
      %v750 = vadd.f32 %v616, %v633
      %v751 = vadd.f32 %v617, %v633
      %v752 = vadd.f32 %v618, %v633
      %v753 = vadd.f32 %v619, %v633
      %v754 = vadd.f32 %v620, %v633
      %v755 = vadd.f32 %v621, %v633
      %v756 = vadd.f32 %v622, %v633
      %v757 = vadd.f32 %v623, %v633
      %v758 = vadd.f32 %v624, %v633
      %v759 = vadd.f32 %v625, %v633
      %v760 = vadd.f32 %v626, %v633
      %v761 = vadd.f32 %v627, %v633
      %v762 = vadd.f32 %v628, %v633
      %vm763 = vcmp.ge.f32.partialorder %v635, 0.0
      %vm764 = vcmp.ge.f32.partialorder %v636, 0.0
      %vm765 = vcmp.ge.f32.partialorder %v637, 0.0
      %vm766 = vcmp.ge.f32.partialorder %v638, 0.0
      %vm767 = vcmp.ge.f32.partialorder %v639, 0.0
      %vm768 = vcmp.ge.f32.partialorder %v640, 0.0
      %vm769 = vcmp.ge.f32.partialorder %v641, 0.0
      %vm770 = vcmp.ge.f32.partialorder %v642, 0.0
      %vm771 = vcmp.ge.f32.partialorder %v643, 0.0
      %vm772 = vcmp.ge.f32.partialorder %v644, 0.0
      %vm773 = vcmp.ge.f32.partialorder %v645, 0.0
      %vm774 = vcmp.ge.f32.partialorder %v646, 0.0
      %vm775 = vcmp.ge.f32.partialorder %v647, 0.0
      %vm776 = vcmp.ge.f32.partialorder %v648, 0.0
      %vm777 = vcmp.ge.f32.partialorder %v649, 0.0
      %vm778 = vcmp.ge.f32.partialorder %v650, 0.0
      %vm779 = vcmp.ge.f32.partialorder %v651, 0.0
      %vm780 = vcmp.ge.f32.partialorder %v652, 0.0
      %vm781 = vcmp.ge.f32.partialorder %v653, 0.0
      %vm782 = vcmp.ge.f32.partialorder %v654, 0.0
      %vm783 = vcmp.ge.f32.partialorder %v655, 0.0
      %vm784 = vcmp.ge.f32.partialorder %v656, 0.0
      %vm785 = vcmp.ge.f32.partialorder %v657, 0.0
      %vm786 = vcmp.ge.f32.partialorder %v658, 0.0
      %vm787 = vcmp.ge.f32.partialorder %v659, 0.0
      %vm788 = vcmp.ge.f32.partialorder %v660, 0.0
      %vm789 = vcmp.ge.f32.partialorder %v661, 0.0
      %vm790 = vcmp.ge.f32.partialorder %v662, 0.0
      %vm791 = vcmp.ge.f32.partialorder %v663, 0.0
      %vm792 = vcmp.ge.f32.partialorder %v664, 0.0
      %vm793 = vcmp.ge.f32.partialorder %v665, 0.0
      %vm794 = vcmp.ge.f32.partialorder %v666, 0.0
      %vm795 = vcmp.ge.f32.partialorder %v667, 0.0
      %vm796 = vcmp.ge.f32.partialorder %v668, 0.0
      %vm797 = vcmp.ge.f32.partialorder %v669, 0.0
      %vm798 = vcmp.ge.f32.partialorder %v670, 0.0
      %vm799 = vcmp.ge.f32.partialorder %v671, 0.0
      %vm800 = vcmp.ge.f32.partialorder %v672, 0.0
      %vm801 = vcmp.ge.f32.partialorder %v673, 0.0
      %vm802 = vcmp.ge.f32.partialorder %v674, 0.0
      %vm803 = vcmp.ge.f32.partialorder %v675, 0.0
      %vm804 = vcmp.ge.f32.partialorder %v676, 0.0
      %vm805 = vcmp.ge.f32.partialorder %v677, 0.0
      %vm806 = vcmp.ge.f32.partialorder %v678, 0.0
      %vm807 = vcmp.ge.f32.partialorder %v679, 0.0
      %vm808 = vcmp.ge.f32.partialorder %v680, 0.0
      %vm809 = vcmp.ge.f32.partialorder %v681, 0.0
      %vm810 = vcmp.ge.f32.partialorder %v682, 0.0
      %vm811 = vcmp.ge.f32.partialorder %v683, 0.0
      %vm812 = vcmp.ge.f32.partialorder %v684, 0.0
      %vm813 = vcmp.ge.f32.partialorder %v685, 0.0
      %vm814 = vcmp.ge.f32.partialorder %v686, 0.0
      %vm815 = vcmp.ge.f32.partialorder %v687, 0.0
      %vm816 = vcmp.ge.f32.partialorder %v688, 0.0
      %vm817 = vcmp.ge.f32.partialorder %v689, 0.0
      %vm818 = vcmp.ge.f32.partialorder %v690, 0.0
      %vm819 = vcmp.ge.f32.partialorder %v691, 0.0
      %vm820 = vcmp.ge.f32.partialorder %v692, 0.0
      %vm821 = vcmp.ge.f32.partialorder %v693, 0.0
      %vm822 = vcmp.ge.f32.partialorder %v694, 0.0
      %vm823 = vcmp.ge.f32.partialorder %v695, 0.0
      %vm824 = vcmp.ge.f32.partialorder %v696, 0.0
      %vm825 = vcmp.ge.f32.partialorder %v697, 0.0
      %vm826 = vcmp.ge.f32.partialorder %v698, 0.0
      %vm827 = vcmp.ge.f32.partialorder %v699, 0.0
      %vm828 = vcmp.ge.f32.partialorder %v700, 0.0
      %vm829 = vcmp.ge.f32.partialorder %v701, 0.0
      %vm830 = vcmp.ge.f32.partialorder %v702, 0.0
      %vm831 = vcmp.ge.f32.partialorder %v703, 0.0
      %vm832 = vcmp.ge.f32.partialorder %v704, 0.0
      %vm833 = vcmp.ge.f32.partialorder %v705, 0.0
      %vm834 = vcmp.ge.f32.partialorder %v706, 0.0
      %vm835 = vcmp.ge.f32.partialorder %v707, 0.0
      %vm836 = vcmp.ge.f32.partialorder %v708, 0.0
      %vm837 = vcmp.ge.f32.partialorder %v709, 0.0
      %vm838 = vcmp.ge.f32.partialorder %v710, 0.0
      %vm839 = vcmp.ge.f32.partialorder %v711, 0.0
      %vm840 = vcmp.ge.f32.partialorder %v712, 0.0
      %vm841 = vcmp.ge.f32.partialorder %v713, 0.0
      %vm842 = vcmp.ge.f32.partialorder %v714, 0.0
      %vm843 = vcmp.ge.f32.partialorder %v715, 0.0
      %vm844 = vcmp.ge.f32.partialorder %v716, 0.0
      %vm845 = vcmp.ge.f32.partialorder %v717, 0.0
      %vm846 = vcmp.ge.f32.partialorder %v718, 0.0
      %vm847 = vcmp.ge.f32.partialorder %v719, 0.0
      %vm848 = vcmp.ge.f32.partialorder %v720, 0.0
      %vm849 = vcmp.ge.f32.partialorder %v721, 0.0
      %vm850 = vcmp.ge.f32.partialorder %v722, 0.0
      %vm851 = vcmp.ge.f32.partialorder %v723, 0.0
      %vm852 = vcmp.ge.f32.partialorder %v724, 0.0
      %vm853 = vcmp.ge.f32.partialorder %v725, 0.0
      %vm854 = vcmp.ge.f32.partialorder %v726, 0.0
      %vm855 = vcmp.ge.f32.partialorder %v727, 0.0
      %vm856 = vcmp.ge.f32.partialorder %v728, 0.0
      %vm857 = vcmp.ge.f32.partialorder %v729, 0.0
      %vm858 = vcmp.ge.f32.partialorder %v730, 0.0
      %vm859 = vcmp.ge.f32.partialorder %v731, 0.0
      %vm860 = vcmp.ge.f32.partialorder %v732, 0.0
      %vm861 = vcmp.ge.f32.partialorder %v733, 0.0
      %vm862 = vcmp.ge.f32.partialorder %v734, 0.0
      %vm863 = vcmp.ge.f32.partialorder %v735, 0.0
      %vm864 = vcmp.ge.f32.partialorder %v736, 0.0
      %vm865 = vcmp.ge.f32.partialorder %v737, 0.0
      %vm866 = vcmp.ge.f32.partialorder %v738, 0.0
      %vm867 = vcmp.ge.f32.partialorder %v739, 0.0
      %vm868 = vcmp.ge.f32.partialorder %v740, 0.0
      %vm869 = vcmp.ge.f32.partialorder %v741, 0.0
      %vm870 = vcmp.ge.f32.partialorder %v742, 0.0
      %vm871 = vcmp.ge.f32.partialorder %v743, 0.0
      %vm872 = vcmp.ge.f32.partialorder %v744, 0.0
      %vm873 = vcmp.ge.f32.partialorder %v745, 0.0
      %vm874 = vcmp.ge.f32.partialorder %v746, 0.0
      %vm875 = vcmp.ge.f32.partialorder %v747, 0.0
      %vm876 = vcmp.ge.f32.partialorder %v748, 0.0
      %vm877 = vcmp.ge.f32.partialorder %v749, 0.0
      %vm878 = vcmp.ge.f32.partialorder %v750, 0.0
      %vm879 = vcmp.ge.f32.partialorder %v751, 0.0
      %vm880 = vcmp.ge.f32.partialorder %v752, 0.0
      %vm881 = vcmp.ge.f32.partialorder %v753, 0.0
      %vm882 = vcmp.ge.f32.partialorder %v754, 0.0
      %vm883 = vcmp.ge.f32.partialorder %v755, 0.0
      %vm884 = vcmp.ge.f32.partialorder %v756, 0.0
      %vm885 = vcmp.ge.f32.partialorder %v757, 0.0
      %vm886 = vcmp.ge.f32.partialorder %v758, 0.0
      %vm887 = vcmp.ge.f32.partialorder %v759, 0.0
      %vm888 = vcmp.ge.f32.partialorder %v760, 0.0
      %vm889 = vcmp.ge.f32.partialorder %v761, 0.0
      %vm890 = vcmp.ge.f32.partialorder %v762, 0.0
      %v891 = vmul.f32 %v635, 0.2
      %v892 = vmul.f32 %v636, 0.2
      %v893 = vmul.f32 %v637, 0.2
      %v894 = vmul.f32 %v638, 0.2
      %v895 = vmul.f32 %v639, 0.2
      %v896 = vmul.f32 %v640, 0.2
      %v897 = vmul.f32 %v641, 0.2
      %v898 = vmul.f32 %v642, 0.2
      %v899 = vmul.f32 %v643, 0.2
      %v900 = vmul.f32 %v644, 0.2
      %v901 = vmul.f32 %v645, 0.2
      %v902 = vmul.f32 %v646, 0.2
      %v903 = vmul.f32 %v647, 0.2
      %v904 = vmul.f32 %v648, 0.2
      %v905 = vmul.f32 %v649, 0.2
      %v906 = vmul.f32 %v650, 0.2
      %v907 = vmul.f32 %v651, 0.2
      %v908 = vmul.f32 %v652, 0.2
      %v909 = vmul.f32 %v653, 0.2
      %v910 = vmul.f32 %v654, 0.2
      %v911 = vmul.f32 %v655, 0.2
      %v912 = vmul.f32 %v656, 0.2
      %v913 = vmul.f32 %v657, 0.2
      %v914 = vmul.f32 %v658, 0.2
      %v915 = vmul.f32 %v659, 0.2
      %v916 = vmul.f32 %v660, 0.2
      %v917 = vmul.f32 %v661, 0.2
      %v918 = vmul.f32 %v662, 0.2
      %v919 = vmul.f32 %v663, 0.2
      %v920 = vmul.f32 %v664, 0.2
      %v921 = vmul.f32 %v665, 0.2
      %v922 = vmul.f32 %v666, 0.2
      %v923 = vmul.f32 %v667, 0.2
      %v924 = vmul.f32 %v668, 0.2
      %v925 = vmul.f32 %v669, 0.2
      %v926 = vmul.f32 %v670, 0.2
      %v927 = vmul.f32 %v671, 0.2
      %v928 = vmul.f32 %v672, 0.2
      %v929 = vmul.f32 %v673, 0.2
      %v930 = vmul.f32 %v674, 0.2
      %v931 = vmul.f32 %v675, 0.2
      %v932 = vmul.f32 %v676, 0.2
      %v933 = vmul.f32 %v677, 0.2
      %v934 = vmul.f32 %v678, 0.2
      %v935 = vmul.f32 %v679, 0.2
      %v936 = vmul.f32 %v680, 0.2
      %v937 = vmul.f32 %v681, 0.2
      %v938 = vmul.f32 %v682, 0.2
      %v939 = vmul.f32 %v683, 0.2
      %v940 = vmul.f32 %v684, 0.2
      %v941 = vmul.f32 %v685, 0.2
      %v942 = vmul.f32 %v686, 0.2
      %v943 = vmul.f32 %v687, 0.2
      %v944 = vmul.f32 %v688, 0.2
      %v945 = vmul.f32 %v689, 0.2
      %v946 = vmul.f32 %v690, 0.2
      %v947 = vmul.f32 %v691, 0.2
      %v948 = vmul.f32 %v692, 0.2
      %v949 = vmul.f32 %v693, 0.2
      %v950 = vmul.f32 %v694, 0.2
      %v951 = vmul.f32 %v695, 0.2
      %v952 = vmul.f32 %v696, 0.2
      %v953 = vmul.f32 %v697, 0.2
      %v954 = vmul.f32 %v698, 0.2
      %v955 = vmul.f32 %v699, 0.2
      %v956 = vmul.f32 %v700, 0.2
      %v957 = vmul.f32 %v701, 0.2
      %v958 = vmul.f32 %v702, 0.2
      %v959 = vmul.f32 %v703, 0.2
      %v960 = vmul.f32 %v704, 0.2
      %v961 = vmul.f32 %v705, 0.2
      %v962 = vmul.f32 %v706, 0.2
      %v963 = vmul.f32 %v707, 0.2
      %v964 = vmul.f32 %v708, 0.2
      %v965 = vmul.f32 %v709, 0.2
      %v966 = vmul.f32 %v710, 0.2
      %v967 = vmul.f32 %v711, 0.2
      %v968 = vmul.f32 %v712, 0.2
      %v969 = vmul.f32 %v713, 0.2
      %v970 = vmul.f32 %v714, 0.2
      %v971 = vmul.f32 %v715, 0.2
      %v972 = vmul.f32 %v716, 0.2
      %v973 = vmul.f32 %v717, 0.2
      %v974 = vmul.f32 %v718, 0.2
      %v975 = vmul.f32 %v719, 0.2
      %v976 = vmul.f32 %v720, 0.2
      %v977 = vmul.f32 %v721, 0.2
      %v978 = vmul.f32 %v722, 0.2
      %v979 = vmul.f32 %v723, 0.2
      %v980 = vmul.f32 %v724, 0.2
      %v981 = vmul.f32 %v725, 0.2
      %v982 = vmul.f32 %v726, 0.2
      %v983 = vmul.f32 %v727, 0.2
      %v984 = vmul.f32 %v728, 0.2
      %v985 = vmul.f32 %v729, 0.2
      %v986 = vmul.f32 %v730, 0.2
      %v987 = vmul.f32 %v731, 0.2
      %v988 = vmul.f32 %v732, 0.2
      %v989 = vmul.f32 %v733, 0.2
      %v990 = vmul.f32 %v734, 0.2
      %v991 = vmul.f32 %v735, 0.2
      %v992 = vmul.f32 %v736, 0.2
      %v993 = vmul.f32 %v737, 0.2
      %v994 = vmul.f32 %v738, 0.2
      %v995 = vmul.f32 %v739, 0.2
      %v996 = vmul.f32 %v740, 0.2
      %v997 = vmul.f32 %v741, 0.2
      %v998 = vmul.f32 %v742, 0.2
      %v999 = vmul.f32 %v743, 0.2
      %v1000 = vmul.f32 %v744, 0.2
      %v1001 = vmul.f32 %v745, 0.2
      %v1002 = vmul.f32 %v746, 0.2
      %v1003 = vmul.f32 %v747, 0.2
      %v1004 = vmul.f32 %v748, 0.2
      %v1005 = vmul.f32 %v749, 0.2
      %v1006 = vmul.f32 %v750, 0.2
      %v1007 = vmul.f32 %v751, 0.2
      %v1008 = vmul.f32 %v752, 0.2
      %v1009 = vmul.f32 %v753, 0.2
      %v1010 = vmul.f32 %v754, 0.2
      %v1011 = vmul.f32 %v755, 0.2
      %v1012 = vmul.f32 %v756, 0.2
      %v1013 = vmul.f32 %v757, 0.2
      %v1014 = vmul.f32 %v758, 0.2
      %v1015 = vmul.f32 %v759, 0.2
      %v1016 = vmul.f32 %v760, 0.2
      %v1017 = vmul.f32 %v761, 0.2
      %v1018 = vmul.f32 %v762, 0.2
      %v1019 = vsel %vm763, %v635, %v891
      %v1020 = vsel %vm764, %v636, %v892
      %v1021 = vsel %vm765, %v637, %v893
      %v1022 = vsel %vm766, %v638, %v894
      %v1023 = vsel %vm767, %v639, %v895
      %v1024 = vsel %vm768, %v640, %v896
      %v1025 = vsel %vm769, %v641, %v897
      %v1026 = vsel %vm770, %v642, %v898
      %v1027 = vsel %vm771, %v643, %v899
      %v1028 = vsel %vm772, %v644, %v900
      %v1029 = vsel %vm773, %v645, %v901
      %v1030 = vsel %vm774, %v646, %v902
      %v1031 = vsel %vm775, %v647, %v903
      %v1032 = vsel %vm776, %v648, %v904
      %v1033 = vsel %vm777, %v649, %v905
      %v1034 = vsel %vm778, %v650, %v906
      %v1035 = vsel %vm779, %v651, %v907
      %v1036 = vsel %vm780, %v652, %v908
      %v1037 = vsel %vm781, %v653, %v909
      %v1038 = vsel %vm782, %v654, %v910
      %v1039 = vsel %vm783, %v655, %v911
      %v1040 = vsel %vm784, %v656, %v912
      %v1041 = vsel %vm785, %v657, %v913
      %v1042 = vsel %vm786, %v658, %v914
      %v1043 = vsel %vm787, %v659, %v915
      %v1044 = vsel %vm788, %v660, %v916
      %v1045 = vsel %vm789, %v661, %v917
      %v1046 = vsel %vm790, %v662, %v918
      %v1047 = vsel %vm791, %v663, %v919
      %v1048 = vsel %vm792, %v664, %v920
      %v1049 = vsel %vm793, %v665, %v921
      %v1050 = vsel %vm794, %v666, %v922
      %v1051 = vsel %vm795, %v667, %v923
      %v1052 = vsel %vm796, %v668, %v924
      %v1053 = vsel %vm797, %v669, %v925
      %v1054 = vsel %vm798, %v670, %v926
      %v1055 = vsel %vm799, %v671, %v927
      %v1056 = vsel %vm800, %v672, %v928
      %v1057 = vsel %vm801, %v673, %v929
      %v1058 = vsel %vm802, %v674, %v930
      %v1059 = vsel %vm803, %v675, %v931
      %v1060 = vsel %vm804, %v676, %v932
      %v1061 = vsel %vm805, %v677, %v933
      %v1062 = vsel %vm806, %v678, %v934
      %v1063 = vsel %vm807, %v679, %v935
      %v1064 = vsel %vm808, %v680, %v936
      %v1065 = vsel %vm809, %v681, %v937
      %v1066 = vsel %vm810, %v682, %v938
      %v1067 = vsel %vm811, %v683, %v939
      %v1068 = vsel %vm812, %v684, %v940
      %v1069 = vsel %vm813, %v685, %v941
      %v1070 = vsel %vm814, %v686, %v942
      %v1071 = vsel %vm815, %v687, %v943
      %v1072 = vsel %vm816, %v688, %v944
      %v1073 = vsel %vm817, %v689, %v945
      %v1074 = vsel %vm818, %v690, %v946
      %v1075 = vsel %vm819, %v691, %v947
      %v1076 = vsel %vm820, %v692, %v948
      %v1077 = vsel %vm821, %v693, %v949
      %v1078 = vsel %vm822, %v694, %v950
      %v1079 = vsel %vm823, %v695, %v951
      %v1080 = vsel %vm824, %v696, %v952
      %v1081 = vsel %vm825, %v697, %v953
      %v1082 = vsel %vm826, %v698, %v954
      %v1083 = vsel %vm827, %v699, %v955
      %v1084 = vsel %vm828, %v700, %v956
      %v1085 = vsel %vm829, %v701, %v957
      %v1086 = vsel %vm830, %v702, %v958
      %v1087 = vsel %vm831, %v703, %v959
      %v1088 = vsel %vm832, %v704, %v960
      %v1089 = vsel %vm833, %v705, %v961
      %v1090 = vsel %vm834, %v706, %v962
      %v1091 = vsel %vm835, %v707, %v963
      %v1092 = vsel %vm836, %v708, %v964
      %v1093 = vsel %vm837, %v709, %v965
      %v1094 = vsel %vm838, %v710, %v966
      %v1095 = vsel %vm839, %v711, %v967
      %v1096 = vsel %vm840, %v712, %v968
      %v1097 = vsel %vm841, %v713, %v969
      %v1098 = vsel %vm842, %v714, %v970
      %v1099 = vsel %vm843, %v715, %v971
      %v1100 = vsel %vm844, %v716, %v972
      %v1101 = vsel %vm845, %v717, %v973
      %v1102 = vsel %vm846, %v718, %v974
      %v1103 = vsel %vm847, %v719, %v975
      %v1104 = vsel %vm848, %v720, %v976
      %v1105 = vsel %vm849, %v721, %v977
      %v1106 = vsel %vm850, %v722, %v978
      %v1107 = vsel %vm851, %v723, %v979
      %v1108 = vsel %vm852, %v724, %v980
      %v1109 = vsel %vm853, %v725, %v981
      %v1110 = vsel %vm854, %v726, %v982
      %v1111 = vsel %vm855, %v727, %v983
      %v1112 = vsel %vm856, %v728, %v984
      %v1113 = vsel %vm857, %v729, %v985
      %v1114 = vsel %vm858, %v730, %v986
      %v1115 = vsel %vm859, %v731, %v987
      %v1116 = vsel %vm860, %v732, %v988
      %v1117 = vsel %vm861, %v733, %v989
      %v1118 = vsel %vm862, %v734, %v990
      %v1119 = vsel %vm863, %v735, %v991
      %v1120 = vsel %vm864, %v736, %v992
      %v1121 = vsel %vm865, %v737, %v993
      %v1122 = vsel %vm866, %v738, %v994
      %v1123 = vsel %vm867, %v739, %v995
      %v1124 = vsel %vm868, %v740, %v996
      %v1125 = vsel %vm869, %v741, %v997
      %v1126 = vsel %vm870, %v742, %v998
      %v1127 = vsel %vm871, %v743, %v999
      %v1128 = vsel %vm872, %v744, %v1000
      %v1129 = vsel %vm873, %v745, %v1001
      %v1130 = vsel %vm874, %v746, %v1002
      %v1131 = vsel %vm875, %v747, %v1003
      %v1132 = vsel %vm876, %v748, %v1004
      %v1133 = vsel %vm877, %v749, %v1005
      %v1134 = vsel %vm878, %v750, %v1006
      %v1135 = vsel %vm879, %v751, %v1007
      %v1136 = vsel %vm880, %v752, %v1008
      %v1137 = vsel %vm881, %v753, %v1009
      %v1138 = vsel %vm882, %v754, %v1010
      %v1139 = vsel %vm883, %v755, %v1011
      %v1140 = vsel %vm884, %v756, %v1012
      %v1141 = vsel %vm885, %v757, %v1013
      %v1142 = vsel %vm886, %v758, %v1014
      %v1143 = vsel %vm887, %v759, %v1015
      %v1144 = vsel %vm888, %v760, %v1016
      %v1145 = vsel %vm889, %v761, %v1017
      %v1146 = vsel %vm890, %v762, %v1018
      %v1147 = vpack.c.bf16 %v1020, %v1019
      %v1148 = vpack.c.bf16 %v1022, %v1021
      %v1149 = vpack.c.bf16 %v1024, %v1023
      %v1150 = vpack.c.bf16 %v1026, %v1025
      %v1151 = vpack.c.bf16 %v1028, %v1027
      %v1152 = vpack.c.bf16 %v1030, %v1029
      %v1153 = vpack.c.bf16 %v1032, %v1031
      %v1154 = vpack.c.bf16 %v1034, %v1033
      %v1155 = vpack.c.bf16 %v1036, %v1035
      %v1156 = vpack.c.bf16 %v1038, %v1037
      %v1157 = vpack.c.bf16 %v1040, %v1039
      %v1158 = vpack.c.bf16 %v1042, %v1041
      %v1159 = vpack.c.bf16 %v1044, %v1043
      %v1160 = vpack.c.bf16 %v1046, %v1045
      %v1161 = vpack.c.bf16 %v1048, %v1047
      %v1162 = vpack.c.bf16 %v1050, %v1049
      %v1163 = vpack.c.bf16 %v1052, %v1051
      %v1164 = vpack.c.bf16 %v1054, %v1053
      %v1165 = vpack.c.bf16 %v1056, %v1055
      %v1166 = vpack.c.bf16 %v1058, %v1057
      %v1167 = vpack.c.bf16 %v1060, %v1059
      %v1168 = vpack.c.bf16 %v1062, %v1061
      %v1169 = vpack.c.bf16 %v1064, %v1063
      %v1170 = vpack.c.bf16 %v1066, %v1065
      %v1171 = vpack.c.bf16 %v1068, %v1067
      %v1172 = vpack.c.bf16 %v1070, %v1069
      %v1173 = vpack.c.bf16 %v1072, %v1071
      %v1174 = vpack.c.bf16 %v1074, %v1073
      %v1175 = vpack.c.bf16 %v1076, %v1075
      %v1176 = vpack.c.bf16 %v1078, %v1077
      %v1177 = vpack.c.bf16 %v1080, %v1079
      %v1178 = vpack.c.bf16 %v1082, %v1081
      %v1179 = vpack.c.bf16 %v1084, %v1083
      %v1180 = vpack.c.bf16 %v1086, %v1085
      %v1181 = vpack.c.bf16 %v1088, %v1087
      %v1182 = vpack.c.bf16 %v1090, %v1089
      %v1183 = vpack.c.bf16 %v1092, %v1091
      %v1184 = vpack.c.bf16 %v1094, %v1093
      %v1185 = vpack.c.bf16 %v1096, %v1095
      %v1186 = vpack.c.bf16 %v1098, %v1097
      %v1187 = vpack.c.bf16 %v1100, %v1099
      %v1188 = vpack.c.bf16 %v1102, %v1101
      %v1189 = vpack.c.bf16 %v1104, %v1103
      %v1190 = vpack.c.bf16 %v1106, %v1105
      %v1191 = vpack.c.bf16 %v1108, %v1107
      %v1192 = vpack.c.bf16 %v1110, %v1109
      %v1193 = vpack.c.bf16 %v1112, %v1111
      %v1194 = vpack.c.bf16 %v1114, %v1113
      %v1195 = vpack.c.bf16 %v1116, %v1115
      %v1196 = vpack.c.bf16 %v1118, %v1117
      %v1197 = vpack.c.bf16 %v1120, %v1119
      %v1198 = vpack.c.bf16 %v1122, %v1121
      %v1199 = vpack.c.bf16 %v1124, %v1123
      %v1200 = vpack.c.bf16 %v1126, %v1125
      %v1201 = vpack.c.bf16 %v1128, %v1127
      %v1202 = vpack.c.bf16 %v1130, %v1129
      %v1203 = vpack.c.bf16 %v1132, %v1131
      %v1204 = vpack.c.bf16 %v1134, %v1133
      %v1205 = vpack.c.bf16 %v1136, %v1135
      %v1206 = vpack.c.bf16 %v1138, %v1137
      %v1207 = vpack.c.bf16 %v1140, %v1139
      %v1208 = vpack.c.bf16 %v1142, %v1141
      %v1209 = vpack.c.bf16 %v1144, %v1143
      %v1210 = vpack.c.bf16 %v1146, %v1145
      %v1275 = vunpack.c.l.b16 %v1147
      %v1276 = vunpack.c.h.b16 %v1147
      %v1277 = vunpack.c.l.b16 %v1148
      %v1278 = vunpack.c.h.b16 %v1148
      %v1279 = vunpack.c.l.b16 %v1149
      %v1280 = vunpack.c.h.b16 %v1149
      %v1281 = vunpack.c.l.b16 %v1150
      %v1282 = vunpack.c.h.b16 %v1150
      %v1283 = vunpack.c.l.b16 %v1151
      %v1284 = vunpack.c.h.b16 %v1151
      %v1285 = vunpack.c.l.b16 %v1152
      %v1286 = vunpack.c.h.b16 %v1152
      %v1287 = vunpack.c.l.b16 %v1153
      %v1288 = vunpack.c.h.b16 %v1153
      %v1289 = vunpack.c.l.b16 %v1154
      %v1290 = vunpack.c.h.b16 %v1154
      %v1291 = vunpack.c.l.b16 %v1155
      %v1292 = vunpack.c.h.b16 %v1155
      %v1293 = vunpack.c.l.b16 %v1156
      %v1294 = vunpack.c.h.b16 %v1156
      %v1295 = vunpack.c.l.b16 %v1157
      %v1296 = vunpack.c.h.b16 %v1157
      %v1297 = vunpack.c.l.b16 %v1158
      %v1298 = vunpack.c.h.b16 %v1158
      %v1299 = vunpack.c.l.b16 %v1159
      %v1300 = vunpack.c.h.b16 %v1159
      %v1301 = vunpack.c.l.b16 %v1160
      %v1302 = vunpack.c.h.b16 %v1160
      %v1303 = vunpack.c.l.b16 %v1161
      %v1304 = vunpack.c.h.b16 %v1161
      %v1305 = vunpack.c.l.b16 %v1162
      %v1306 = vunpack.c.h.b16 %v1162
      %v1307 = vunpack.c.l.b16 %v1163
      %v1308 = vunpack.c.h.b16 %v1163
      %v1309 = vunpack.c.l.b16 %v1164
      %v1310 = vunpack.c.h.b16 %v1164
      %v1311 = vunpack.c.l.b16 %v1165
      %v1312 = vunpack.c.h.b16 %v1165
      %v1313 = vunpack.c.l.b16 %v1166
      %v1314 = vunpack.c.h.b16 %v1166
      %v1315 = vunpack.c.l.b16 %v1167
      %v1316 = vunpack.c.h.b16 %v1167
      %v1317 = vunpack.c.l.b16 %v1168
      %v1318 = vunpack.c.h.b16 %v1168
      %v1319 = vunpack.c.l.b16 %v1169
      %v1320 = vunpack.c.h.b16 %v1169
      %v1321 = vunpack.c.l.b16 %v1170
      %v1322 = vunpack.c.h.b16 %v1170
      %v1323 = vunpack.c.l.b16 %v1171
      %v1324 = vunpack.c.h.b16 %v1171
      %v1325 = vunpack.c.l.b16 %v1172
      %v1326 = vunpack.c.h.b16 %v1172
      %v1327 = vunpack.c.l.b16 %v1173
      %v1328 = vunpack.c.h.b16 %v1173
      %v1329 = vunpack.c.l.b16 %v1174
      %v1330 = vunpack.c.h.b16 %v1174
      %v1331 = vunpack.c.l.b16 %v1175
      %v1332 = vunpack.c.h.b16 %v1175
      %v1333 = vunpack.c.l.b16 %v1176
      %v1334 = vunpack.c.h.b16 %v1176
      %v1335 = vunpack.c.l.b16 %v1177
      %v1336 = vunpack.c.h.b16 %v1177
      %v1337 = vunpack.c.l.b16 %v1178
      %v1338 = vunpack.c.h.b16 %v1178
      %v1339 = vunpack.c.l.b16 %v1179
      %v1340 = vunpack.c.h.b16 %v1179
      %v1341 = vunpack.c.l.b16 %v1180
      %v1342 = vunpack.c.h.b16 %v1180
      %v1343 = vunpack.c.l.b16 %v1181
      %v1344 = vunpack.c.h.b16 %v1181
      %v1345 = vunpack.c.l.b16 %v1182
      %v1346 = vunpack.c.h.b16 %v1182
      %v1347 = vunpack.c.l.b16 %v1183
      %v1348 = vunpack.c.h.b16 %v1183
      %v1349 = vunpack.c.l.b16 %v1184
      %v1350 = vunpack.c.h.b16 %v1184
      %v1351 = vunpack.c.l.b16 %v1185
      %v1352 = vunpack.c.h.b16 %v1185
      %v1353 = vunpack.c.l.b16 %v1186
      %v1354 = vunpack.c.h.b16 %v1186
      %v1355 = vunpack.c.l.b16 %v1187
      %v1356 = vunpack.c.h.b16 %v1187
      %v1357 = vunpack.c.l.b16 %v1188
      %v1358 = vunpack.c.h.b16 %v1188
      %v1359 = vunpack.c.l.b16 %v1189
      %v1360 = vunpack.c.h.b16 %v1189
      %v1361 = vunpack.c.l.b16 %v1190
      %v1362 = vunpack.c.h.b16 %v1190
      %v1363 = vunpack.c.l.b16 %v1191
      %v1364 = vunpack.c.h.b16 %v1191
      %v1365 = vunpack.c.l.b16 %v1192
      %v1366 = vunpack.c.h.b16 %v1192
      %v1367 = vunpack.c.l.b16 %v1193
      %v1368 = vunpack.c.h.b16 %v1193
      %v1369 = vunpack.c.l.b16 %v1194
      %v1370 = vunpack.c.h.b16 %v1194
      %v1371 = vunpack.c.l.b16 %v1195
      %v1372 = vunpack.c.h.b16 %v1195
      %v1373 = vunpack.c.l.b16 %v1196
      %v1374 = vunpack.c.h.b16 %v1196
      %v1375 = vunpack.c.l.b16 %v1197
      %v1376 = vunpack.c.h.b16 %v1197
      %v1377 = vunpack.c.l.b16 %v1198
      %v1378 = vunpack.c.h.b16 %v1198
      %v1379 = vunpack.c.l.b16 %v1199
      %v1380 = vunpack.c.h.b16 %v1199
      %v1381 = vunpack.c.l.b16 %v1200
      %v1382 = vunpack.c.h.b16 %v1200
      %v1383 = vunpack.c.l.b16 %v1201
      %v1384 = vunpack.c.h.b16 %v1201
      %v1385 = vunpack.c.l.b16 %v1202
      %v1386 = vunpack.c.h.b16 %v1202
      %v1387 = vunpack.c.l.b16 %v1203
      %v1388 = vunpack.c.h.b16 %v1203
      %v1389 = vunpack.c.l.b16 %v1204
      %v1390 = vunpack.c.h.b16 %v1204
      %v1391 = vunpack.c.l.b16 %v1205
      %v1392 = vunpack.c.h.b16 %v1205
      %v1393 = vunpack.c.l.b16 %v1206
      %v1394 = vunpack.c.h.b16 %v1206
      %v1395 = vunpack.c.l.b16 %v1207
      %v1396 = vunpack.c.h.b16 %v1207
      %v1397 = vunpack.c.l.b16 %v1208
      %v1398 = vunpack.c.h.b16 %v1208
      %v1399 = vunpack.c.l.b16 %v1209
      %v1400 = vunpack.c.h.b16 %v1209
      %v1401 = vunpack.c.l.b16 %v1210
      %v1402 = vunpack.c.h.b16 %v1210
      %v1403 = vpack.c.b16 %v1275, %v1275
      %v1404 = vpack.c.b16 %v1276, %v1276
      %v1405 = vpack.c.b16 %v1277, %v1277
      %v1406 = vpack.c.b16 %v1278, %v1278
      %v1407 = vpack.c.b16 %v1279, %v1279
      %v1408 = vpack.c.b16 %v1280, %v1280
      %v1409 = vpack.c.b16 %v1281, %v1281
      %v1410 = vpack.c.b16 %v1282, %v1282
      %v1411 = vpack.c.b16 %v1283, %v1283
      %v1412 = vpack.c.b16 %v1284, %v1284
      %v1413 = vpack.c.b16 %v1285, %v1285
      %v1414 = vpack.c.b16 %v1286, %v1286
      %v1415 = vpack.c.b16 %v1287, %v1287
      %v1416 = vpack.c.b16 %v1288, %v1288
      %v1417 = vpack.c.b16 %v1289, %v1289
      %v1418 = vpack.c.b16 %v1290, %v1290
      %v1419 = vpack.c.b16 %v1291, %v1291
      %v1420 = vpack.c.b16 %v1292, %v1292
      %v1421 = vpack.c.b16 %v1293, %v1293
      %v1422 = vpack.c.b16 %v1294, %v1294
      %v1423 = vpack.c.b16 %v1295, %v1295
      %v1424 = vpack.c.b16 %v1296, %v1296
      %v1425 = vpack.c.b16 %v1297, %v1297
      %v1426 = vpack.c.b16 %v1298, %v1298
      %v1427 = vpack.c.b16 %v1299, %v1299
      %v1428 = vpack.c.b16 %v1300, %v1300
      %v1429 = vpack.c.b16 %v1301, %v1301
      %v1430 = vpack.c.b16 %v1302, %v1302
      %v1431 = vpack.c.b16 %v1303, %v1303
      %v1432 = vpack.c.b16 %v1304, %v1304
      %v1433 = vpack.c.b16 %v1305, %v1305
      %v1434 = vpack.c.b16 %v1306, %v1306
      %v1435 = vpack.c.b16 %v1307, %v1307
      %v1436 = vpack.c.b16 %v1308, %v1308
      %v1437 = vpack.c.b16 %v1309, %v1309
      %v1438 = vpack.c.b16 %v1310, %v1310
      %v1439 = vpack.c.b16 %v1311, %v1311
      %v1440 = vpack.c.b16 %v1312, %v1312
      %v1441 = vpack.c.b16 %v1313, %v1313
      %v1442 = vpack.c.b16 %v1314, %v1314
      %v1443 = vpack.c.b16 %v1315, %v1315
      %v1444 = vpack.c.b16 %v1316, %v1316
      %v1445 = vpack.c.b16 %v1317, %v1317
      %v1446 = vpack.c.b16 %v1318, %v1318
      %v1447 = vpack.c.b16 %v1319, %v1319
      %v1448 = vpack.c.b16 %v1320, %v1320
      %v1449 = vpack.c.b16 %v1321, %v1321
      %v1450 = vpack.c.b16 %v1322, %v1322
      %v1451 = vpack.c.b16 %v1323, %v1323
      %v1452 = vpack.c.b16 %v1324, %v1324
      %v1453 = vpack.c.b16 %v1325, %v1325
      %v1454 = vpack.c.b16 %v1326, %v1326
      %v1455 = vpack.c.b16 %v1327, %v1327
      %v1456 = vpack.c.b16 %v1328, %v1328
      %v1457 = vpack.c.b16 %v1329, %v1329
      %v1458 = vpack.c.b16 %v1330, %v1330
      %v1459 = vpack.c.b16 %v1331, %v1331
      %v1460 = vpack.c.b16 %v1332, %v1332
      %v1461 = vpack.c.b16 %v1333, %v1333
      %v1462 = vpack.c.b16 %v1334, %v1334
      %v1463 = vpack.c.b16 %v1335, %v1335
      %v1464 = vpack.c.b16 %v1336, %v1336
      %v1465 = vpack.c.b16 %v1337, %v1337
      %v1466 = vpack.c.b16 %v1338, %v1338
      %v1467 = vpack.c.b16 %v1339, %v1339
      %v1468 = vpack.c.b16 %v1340, %v1340
      %v1469 = vpack.c.b16 %v1341, %v1341
      %v1470 = vpack.c.b16 %v1342, %v1342
      %v1471 = vpack.c.b16 %v1343, %v1343
      %v1472 = vpack.c.b16 %v1344, %v1344
      %v1473 = vpack.c.b16 %v1345, %v1345
      %v1474 = vpack.c.b16 %v1346, %v1346
      %v1475 = vpack.c.b16 %v1347, %v1347
      %v1476 = vpack.c.b16 %v1348, %v1348
      %v1477 = vpack.c.b16 %v1349, %v1349
      %v1478 = vpack.c.b16 %v1350, %v1350
      %v1479 = vpack.c.b16 %v1351, %v1351
      %v1480 = vpack.c.b16 %v1352, %v1352
      %v1481 = vpack.c.b16 %v1353, %v1353
      %v1482 = vpack.c.b16 %v1354, %v1354
      %v1483 = vpack.c.b16 %v1355, %v1355
      %v1484 = vpack.c.b16 %v1356, %v1356
      %v1485 = vpack.c.b16 %v1357, %v1357
      %v1486 = vpack.c.b16 %v1358, %v1358
      %v1487 = vpack.c.b16 %v1359, %v1359
      %v1488 = vpack.c.b16 %v1360, %v1360
      %v1489 = vpack.c.b16 %v1361, %v1361
      %v1490 = vpack.c.b16 %v1362, %v1362
      %v1491 = vpack.c.b16 %v1363, %v1363
      %v1492 = vpack.c.b16 %v1364, %v1364
      %v1493 = vpack.c.b16 %v1365, %v1365
      %v1494 = vpack.c.b16 %v1366, %v1366
      %v1495 = vpack.c.b16 %v1367, %v1367
      %v1496 = vpack.c.b16 %v1368, %v1368
      %v1497 = vpack.c.b16 %v1369, %v1369
      %v1498 = vpack.c.b16 %v1370, %v1370
      %v1499 = vpack.c.b16 %v1371, %v1371
      %v1500 = vpack.c.b16 %v1372, %v1372
      %v1501 = vpack.c.b16 %v1373, %v1373
      %v1502 = vpack.c.b16 %v1374, %v1374
      %v1503 = vpack.c.b16 %v1375, %v1375
      %v1504 = vpack.c.b16 %v1376, %v1376
      %v1505 = vpack.c.b16 %v1377, %v1377
      %v1506 = vpack.c.b16 %v1378, %v1378
      %v1507 = vpack.c.b16 %v1379, %v1379
      %v1508 = vpack.c.b16 %v1380, %v1380
      %v1509 = vpack.c.b16 %v1381, %v1381
      %v1510 = vpack.c.b16 %v1382, %v1382
      %v1511 = vpack.c.b16 %v1383, %v1383
      %v1512 = vpack.c.b16 %v1384, %v1384
      %v1513 = vpack.c.b16 %v1385, %v1385
      %v1514 = vpack.c.b16 %v1386, %v1386
      %v1515 = vpack.c.b16 %v1387, %v1387
      %v1516 = vpack.c.b16 %v1388, %v1388
      %v1517 = vpack.c.b16 %v1389, %v1389
      %v1518 = vpack.c.b16 %v1390, %v1390
      %v1519 = vpack.c.b16 %v1391, %v1391
      %v1520 = vpack.c.b16 %v1392, %v1392
      %v1521 = vpack.c.b16 %v1393, %v1393
      %v1522 = vpack.c.b16 %v1394, %v1394
      %v1523 = vpack.c.b16 %v1395, %v1395
      %v1524 = vpack.c.b16 %v1396, %v1396
      %v1525 = vpack.c.b16 %v1397, %v1397
      %v1526 = vpack.c.b16 %v1398, %v1398
      %v1527 = vpack.c.b16 %v1399, %v1399
      %v1528 = vpack.c.b16 %v1400, %v1400
      %v1529 = vpack.c.b16 %v1401, %v1401
      %v1530 = vpack.c.b16 %v1402, %v1402
      %vm1659 = vcmask 125952
      %1660 = vst.msk [vmem:[%s226] sm:$0xf] %vm1659, %v1403
      %1661 = vst.msk [vmem:[%s226 + $0x4] sm:$0xf] %vm1659, %v1404
      %1662 = vst.msk [vmem:[%s226 + $0x8] sm:$0xf] %vm1659, %v1405
      %1663 = vst.msk [vmem:[%s226 + $0xc] sm:$0xf] %vm1659, %v1406
      %1664 = vst.msk [vmem:[%s226 + $0x10] sm:$0xf] %vm1659, %v1407
      %1665 = vst.msk [vmem:[%s226 + $0x14] sm:$0xf] %vm1659, %v1408
      %1666 = vst.msk [vmem:[%s226 + $0x18] sm:$0xf] %vm1659, %v1409
      %1667 = vst.msk [vmem:[%s226 + $0x1c] sm:$0xf] %vm1659, %v1410
      %1668 = vst.msk [vmem:[%s226 + $0x20] sm:$0xf] %vm1659, %v1411
      %1669 = vst.msk [vmem:[%s226 + $0x24] sm:$0xf] %vm1659, %v1412
      %1670 = vst.msk [vmem:[%s226 + $0x28] sm:$0xf] %vm1659, %v1413
      %1671 = vst.msk [vmem:[%s226 + $0x2c] sm:$0xf] %vm1659, %v1414
      %1672 = vst.msk [vmem:[%s226 + $0x30] sm:$0xf] %vm1659, %v1415
      %1673 = vst.msk [vmem:[%s226 + $0x34] sm:$0xf] %vm1659, %v1416
      %1674 = vst.msk [vmem:[%s226 + $0x38] sm:$0xf] %vm1659, %v1417
      %1675 = vst.msk [vmem:[%s226 + $0x3c] sm:$0xf] %vm1659, %v1418
      %1676 = vst.msk [vmem:[%s226 + $0x40] sm:$0xf] %vm1659, %v1419
      %1677 = vst.msk [vmem:[%s226 + $0x44] sm:$0xf] %vm1659, %v1420
      %1678 = vst.msk [vmem:[%s226 + $0x48] sm:$0xf] %vm1659, %v1421
      %1679 = vst.msk [vmem:[%s226 + $0x4c] sm:$0xf] %vm1659, %v1422
      %1680 = vst.msk [vmem:[%s226 + $0x50] sm:$0xf] %vm1659, %v1423
      %1681 = vst.msk [vmem:[%s226 + $0x54] sm:$0xf] %vm1659, %v1424
      %1682 = vst.msk [vmem:[%s226 + $0x58] sm:$0xf] %vm1659, %v1425
      %1683 = vst.msk [vmem:[%s226 + $0x5c] sm:$0xf] %vm1659, %v1426
      %1684 = vst.msk [vmem:[%s226 + $0x60] sm:$0xf] %vm1659, %v1427
      %1685 = vst.msk [vmem:[%s226 + $0x64] sm:$0xf] %vm1659, %v1428
      %1686 = vst.msk [vmem:[%s226 + $0x68] sm:$0xf] %vm1659, %v1429
      %1687 = vst.msk [vmem:[%s226 + $0x6c] sm:$0xf] %vm1659, %v1430
      %1688 = vst.msk [vmem:[%s226 + $0x70] sm:$0xf] %vm1659, %v1431
      %1689 = vst.msk [vmem:[%s226 + $0x74] sm:$0xf] %vm1659, %v1432
      %1690 = vst.msk [vmem:[%s226 + $0x78] sm:$0xf] %vm1659, %v1433
      %1691 = vst.msk [vmem:[%s226 + $0x7c] sm:$0xf] %vm1659, %v1434
      %1692 = vst.msk [vmem:[%s226 + $0x80] sm:$0xf] %vm1659, %v1435
      %1693 = vst.msk [vmem:[%s226 + $0x84] sm:$0xf] %vm1659, %v1436
      %1694 = vst.msk [vmem:[%s226 + $0x88] sm:$0xf] %vm1659, %v1437
      %1695 = vst.msk [vmem:[%s226 + $0x8c] sm:$0xf] %vm1659, %v1438
      %1696 = vst.msk [vmem:[%s226 + $0x90] sm:$0xf] %vm1659, %v1439
      %1697 = vst.msk [vmem:[%s226 + $0x94] sm:$0xf] %vm1659, %v1440
      %1698 = vst.msk [vmem:[%s226 + $0x98] sm:$0xf] %vm1659, %v1441
      %1699 = vst.msk [vmem:[%s226 + $0x9c] sm:$0xf] %vm1659, %v1442
      %1700 = vst.msk [vmem:[%s226 + $0xa0] sm:$0xf] %vm1659, %v1443
      %1701 = vst.msk [vmem:[%s226 + $0xa4] sm:$0xf] %vm1659, %v1444
      %1702 = vst.msk [vmem:[%s226 + $0xa8] sm:$0xf] %vm1659, %v1445
      %1703 = vst.msk [vmem:[%s226 + $0xac] sm:$0xf] %vm1659, %v1446
      %1704 = vst.msk [vmem:[%s226 + $0xb0] sm:$0xf] %vm1659, %v1447
      %1705 = vst.msk [vmem:[%s226 + $0xb4] sm:$0xf] %vm1659, %v1448
      %1706 = vst.msk [vmem:[%s226 + $0xb8] sm:$0xf] %vm1659, %v1449
      %1707 = vst.msk [vmem:[%s226 + $0xbc] sm:$0xf] %vm1659, %v1450
      %1708 = vst.msk [vmem:[%s226 + $0xc0] sm:$0xf] %vm1659, %v1451
      %1709 = vst.msk [vmem:[%s226 + $0xc4] sm:$0xf] %vm1659, %v1452
      %1710 = vst.msk [vmem:[%s226 + $0xc8] sm:$0xf] %vm1659, %v1453
      %1711 = vst.msk [vmem:[%s226 + $0xcc] sm:$0xf] %vm1659, %v1454
      %1712 = vst.msk [vmem:[%s226 + $0xd0] sm:$0xf] %vm1659, %v1455
      %1713 = vst.msk [vmem:[%s226 + $0xd4] sm:$0xf] %vm1659, %v1456
      %1714 = vst.msk [vmem:[%s226 + $0xd8] sm:$0xf] %vm1659, %v1457
      %1715 = vst.msk [vmem:[%s226 + $0xdc] sm:$0xf] %vm1659, %v1458
      %1716 = vst.msk [vmem:[%s226 + $0xe0] sm:$0xf] %vm1659, %v1459
      %1717 = vst.msk [vmem:[%s226 + $0xe4] sm:$0xf] %vm1659, %v1460
      %1718 = vst.msk [vmem:[%s226 + $0xe8] sm:$0xf] %vm1659, %v1461
      %1719 = vst.msk [vmem:[%s226 + $0xec] sm:$0xf] %vm1659, %v1462
      %1720 = vst.msk [vmem:[%s226 + $0xf0] sm:$0xf] %vm1659, %v1463
      %1721 = vst.msk [vmem:[%s226 + $0xf4] sm:$0xf] %vm1659, %v1464
      %1722 = vst.msk [vmem:[%s226 + $0xf8] sm:$0xf] %vm1659, %v1465
      %1723 = vst.msk [vmem:[%s226 + $0xfc] sm:$0xf] %vm1659, %v1466
      %1724 = vst.msk [vmem:[%s226 + $0x100] sm:$0xf] %vm1659, %v1467
      %1725 = vst.msk [vmem:[%s226 + $0x104] sm:$0xf] %vm1659, %v1468
      %1726 = vst.msk [vmem:[%s226 + $0x108] sm:$0xf] %vm1659, %v1469
      %1727 = vst.msk [vmem:[%s226 + $0x10c] sm:$0xf] %vm1659, %v1470
      %1728 = vst.msk [vmem:[%s226 + $0x110] sm:$0xf] %vm1659, %v1471
      %1729 = vst.msk [vmem:[%s226 + $0x114] sm:$0xf] %vm1659, %v1472
      %1730 = vst.msk [vmem:[%s226 + $0x118] sm:$0xf] %vm1659, %v1473
      %1731 = vst.msk [vmem:[%s226 + $0x11c] sm:$0xf] %vm1659, %v1474
      %1732 = vst.msk [vmem:[%s226 + $0x120] sm:$0xf] %vm1659, %v1475
      %1733 = vst.msk [vmem:[%s226 + $0x124] sm:$0xf] %vm1659, %v1476
      %1734 = vst.msk [vmem:[%s226 + $0x128] sm:$0xf] %vm1659, %v1477
      %1735 = vst.msk [vmem:[%s226 + $0x12c] sm:$0xf] %vm1659, %v1478
      %1736 = vst.msk [vmem:[%s226 + $0x130] sm:$0xf] %vm1659, %v1479
      %1737 = vst.msk [vmem:[%s226 + $0x134] sm:$0xf] %vm1659, %v1480
      %1738 = vst.msk [vmem:[%s226 + $0x138] sm:$0xf] %vm1659, %v1481
      %1739 = vst.msk [vmem:[%s226 + $0x13c] sm:$0xf] %vm1659, %v1482
      %1740 = vst.msk [vmem:[%s226 + $0x140] sm:$0xf] %vm1659, %v1483
      %1741 = vst.msk [vmem:[%s226 + $0x144] sm:$0xf] %vm1659, %v1484
      %1742 = vst.msk [vmem:[%s226 + $0x148] sm:$0xf] %vm1659, %v1485
      %1743 = vst.msk [vmem:[%s226 + $0x14c] sm:$0xf] %vm1659, %v1486
      %1744 = vst.msk [vmem:[%s226 + $0x150] sm:$0xf] %vm1659, %v1487
      %1745 = vst.msk [vmem:[%s226 + $0x154] sm:$0xf] %vm1659, %v1488
      %1746 = vst.msk [vmem:[%s226 + $0x158] sm:$0xf] %vm1659, %v1489
      %1747 = vst.msk [vmem:[%s226 + $0x15c] sm:$0xf] %vm1659, %v1490
      %1748 = vst.msk [vmem:[%s226 + $0x160] sm:$0xf] %vm1659, %v1491
      %1749 = vst.msk [vmem:[%s226 + $0x164] sm:$0xf] %vm1659, %v1492
      %1750 = vst.msk [vmem:[%s226 + $0x168] sm:$0xf] %vm1659, %v1493
      %1751 = vst.msk [vmem:[%s226 + $0x16c] sm:$0xf] %vm1659, %v1494
      %1752 = vst.msk [vmem:[%s226 + $0x170] sm:$0xf] %vm1659, %v1495
      %1753 = vst.msk [vmem:[%s226 + $0x174] sm:$0xf] %vm1659, %v1496
      %1754 = vst.msk [vmem:[%s226 + $0x178] sm:$0xf] %vm1659, %v1497
      %1755 = vst.msk [vmem:[%s226 + $0x17c] sm:$0xf] %vm1659, %v1498
      %1756 = vst.msk [vmem:[%s226 + $0x180] sm:$0xf] %vm1659, %v1499
      %1757 = vst.msk [vmem:[%s226 + $0x184] sm:$0xf] %vm1659, %v1500
      %1758 = vst.msk [vmem:[%s226 + $0x188] sm:$0xf] %vm1659, %v1501
      %1759 = vst.msk [vmem:[%s226 + $0x18c] sm:$0xf] %vm1659, %v1502
      %1760 = vst.msk [vmem:[%s226 + $0x190] sm:$0xf] %vm1659, %v1503
      %1761 = vst.msk [vmem:[%s226 + $0x194] sm:$0xf] %vm1659, %v1504
      %1762 = vst.msk [vmem:[%s226 + $0x198] sm:$0xf] %vm1659, %v1505
      %1763 = vst.msk [vmem:[%s226 + $0x19c] sm:$0xf] %vm1659, %v1506
      %1764 = vst.msk [vmem:[%s226 + $0x1a0] sm:$0xf] %vm1659, %v1507
      %1765 = vst.msk [vmem:[%s226 + $0x1a4] sm:$0xf] %vm1659, %v1508
      %1766 = vst.msk [vmem:[%s226 + $0x1a8] sm:$0xf] %vm1659, %v1509
      %1767 = vst.msk [vmem:[%s226 + $0x1ac] sm:$0xf] %vm1659, %v1510
      %1768 = vst.msk [vmem:[%s226 + $0x1b0] sm:$0xf] %vm1659, %v1511
      %1769 = vst.msk [vmem:[%s226 + $0x1b4] sm:$0xf] %vm1659, %v1512
      %1770 = vst.msk [vmem:[%s226 + $0x1b8] sm:$0xf] %vm1659, %v1513
      %1771 = vst.msk [vmem:[%s226 + $0x1bc] sm:$0xf] %vm1659, %v1514
      %1772 = vst.msk [vmem:[%s226 + $0x1c0] sm:$0xf] %vm1659, %v1515
      %1773 = vst.msk [vmem:[%s226 + $0x1c4] sm:$0xf] %vm1659, %v1516
      %1774 = vst.msk [vmem:[%s226 + $0x1c8] sm:$0xf] %vm1659, %v1517
      %1775 = vst.msk [vmem:[%s226 + $0x1cc] sm:$0xf] %vm1659, %v1518
      %1776 = vst.msk [vmem:[%s226 + $0x1d0] sm:$0xf] %vm1659, %v1519
      %1777 = vst.msk [vmem:[%s226 + $0x1d4] sm:$0xf] %vm1659, %v1520
      %1778 = vst.msk [vmem:[%s226 + $0x1d8] sm:$0xf] %vm1659, %v1521
      %1779 = vst.msk [vmem:[%s226 + $0x1dc] sm:$0xf] %vm1659, %v1522
      %1780 = vst.msk [vmem:[%s226 + $0x1e0] sm:$0xf] %vm1659, %v1523
      %1781 = vst.msk [vmem:[%s226 + $0x1e4] sm:$0xf] %vm1659, %v1524
      %1782 = vst.msk [vmem:[%s226 + $0x1e8] sm:$0xf] %vm1659, %v1525
      %1783 = vst.msk [vmem:[%s226 + $0x1ec] sm:$0xf] %vm1659, %v1526
      %1784 = vst.msk [vmem:[%s226 + $0x1f0] sm:$0xf] %vm1659, %v1527
      %1785 = vst.msk [vmem:[%s226 + $0x1f4] sm:$0xf] %vm1659, %v1528
      %1786 = vst.msk [vmem:[%s226 + $0x1f8] sm:$0xf] %vm1659, %v1529
      %1787 = vst.msk [vmem:[%s226 + $0x1fc] sm:$0xf] %vm1659, %v1530
      %s1788 = smul.u32 128, %s16
      %p1789 = scmp.lt.s32.totalorder %s1788, 255
      %s1790 = scalar_select %p1789, %s1788, 255
      %s1791 = smul.addr %s1790, 4
      %s1792 = scalar_lea.vmem %s5, %s1791
      // Predicated region
      $region41: #{discriminator_forward.7} parent=39 // pred_check
        %p1793 = pneg %p144
      $region42: #{discriminator_forward.7} parent=39 // pred_check_branch
        %1795 = sbr.rel (%p1793) target = $region44
      $region43: #{discriminator_forward.7} parent=39 // pred_region
        %s1796 = smul.u32 128, %s16
      $region44: #{discriminator_forward.7} parent=39 // pred_fallthru
        _
    $region40: #{discriminator_forward.7} parent=5 // pred_fallthru
      _
    %p1797 = scmp.le.s32.totalorder 2, %s11
    // Predicated region
    $region45: #{discriminator_forward.7} parent=5 // pred_check
      %p1798 = pneg %p1797
    $region46: #{discriminator_forward.7} parent=5 // pred_check_branch
      %1800 = sbr.rel (%p1798) target = $region48
    $region47: #{discriminator_forward.7} parent=5 // pred_region
      %s1801 = ssub.s32 %s11, 2
      // Predicated region
      $region49: #{discriminator_forward.7} parent=47 // pred_check
        %p1802 = pneg %p150
      $region50: #{discriminator_forward.7} parent=47 // pred_check_branch
        %1804 = sbr.rel (%p1802) target = $region52
      $region51: #{discriminator_forward.7} parent=47 // pred_region
        %s1805 = smul.u32 128, %s17
        %p1806 = scmp.lt.s32.totalorder %s1805, 255
        %s1807 = scalar_select %p1806, %s1805, 255
        %s1808 = smul.addr %s1807, 4
        %s1809 = scalar_lea.vmem %s5, %s1808
      $region52: #{discriminator_forward.7} parent=47 // pred_fallthru
        _
    $region48: #{discriminator_forward.7} parent=5 // pred_fallthru
      _
  $region6: #{discriminator_forward.7} parent=0 // loop_footer
    %s15 = sadd.s32 1, %s11
  $region7: #{discriminator_forward.7} parent=0 // loop_footer_branch
    %10 = sbr.rel target = $region3
  $region8: #{discriminator_forward.7} parent=0 // loop_exit
    _

// kernel: discriminator_forward.6
$region0: #{discriminator_forward.6}
  #allocation0 [shape = 'u32[]', space=smem, size = 0x4, offset = 0x4, fixed_abs, tag = 'smem constant byte address 0x4 - core index']
  #allocation1 [shape = 'u32[144,128]{1,0:T(1,128)}', space=vmem, size = 0x12000, scoped, tag = 'internal scratch']
  %s0 = inlined_call_operand.vmem [shape: bf16[2048,16], index: 0, kind: input, shape index: {}]
  %s1 = inlined_call_operand.hbm [shape: bf16[16,16], index: 1, kind: input, shape index: {}]
  %s2 = inlined_call_operand.vmem [shape: bf16[2048,16], index: 2, kind: output, shape index: {0}]
  %s3 = inlined_call_operand.vmem [shape: f32[8,16], index: 3, kind: output, shape index: {1}]
  %s4 = inlined_call_operand.vmem [shape: f32[8,16], index: 4, kind: output, shape index: {2}]
  %5 = xla_tuple %s2, %s3, %s4
  %s6 = sld [smem:[#allocation0]]
  $region65: #{discriminator_forward.6} parent=0
    _
  %s8 = ssub.s32 1, %s6
  %s9 = scalar_select 0, %s8, %s6
  $region1: #{discriminator_forward.6} parent=0
    #allocation2 [shape = 'u8[4096]{0}', space=vmem, size = 0x1000, scoped, tag = 'input window, operand 1, single buffered']
    #allocation3 [shape = 's32[2]{0}', space=sflag, size = 0x8, scoped, tag = 'scoped memory for discriminator_forward.6']
    %10 = vsyncpa [#allocation3], 0
    loop: start=0, step=1, limit=4
    $region2: #{discriminator_forward.6} parent=1 // loop_pre_header
      _
    $region3: #{discriminator_forward.6} parent=1 // loop_header
      %s12 = sphi 0, %s16
      %p13 = scmp.ge.s32.totalorder %s12, 4
      %s22 = sphi 0, %s24
      %s25 = sphi 0, %s22
      %s26 = sphi 0, %s25
      %s42 = sphi 0, %s26
      %s46 = sphi 0, %s46
      %s48 = sphi 0, %s46
      %s49 = sphi 0, %s48
      %s63 = sphi 0, %s49
      %s69 = sphi 0, %s71
      %s72 = sphi 0, %s69
      %s73 = sphi 0, %s72
      %s89 = sphi 0, %s73
      %s93 = sphi 0, %s93
      %s95 = sphi 0, %s93
      %s96 = sphi 0, %s95
      %s110 = sphi 0, %s96
      %s114 = sphi 0, %s114
      %s116 = sphi 0, %s114
      %s117 = sphi 0, %s116
      %s131 = sphi 0, %s117
    $region4: #{discriminator_forward.6} parent=1 // loop_header_branch
      %15 = sbr.rel (%p13) target = $region8
    $region5: #{discriminator_forward.6} parent=1 // loop_body
      %s17 = ssub.s32 %s12, 1
      %s18 = ssub.s32 %s12, 2
      %s19 = sadd.s32 %s12, 1
      %s20 = ssub.s32 %s12, %s19
      %p21 = scmp.eq.s32.totalorder %s20, 0
      %s23 = sadd.s32 %s22, 1
      %s24 = scalar_select %p21, %s22, %s23
      %p27 = pneg %p21
      %p28 = scmp.eq.s32.totalorder %s12, 1
      %p29 = por %p27, %p28
      %p30 = scmp.ne.s32.totalorder %s22, %s25
      %p31 = scmp.eq.s32.totalorder %s12, 0
      %p32 = por %p30, %p31
      %p33 = scmp.ne.s32.totalorder %s22, %s25
      %p34 = scmp.eq.s32.totalorder %s17, 1
      %p35 = por %p33, %p34
      %p36 = scmp.ne.s32.totalorder %s25, %s26
      %p37 = scmp.eq.s32.totalorder %s17, 0
      %p38 = por %p36, %p37
      %p39 = scmp.ne.s32.totalorder %s25, %s26
      %p40 = scmp.eq.s32.totalorder %s18, 1
      %p41 = por %p39, %p40
      %p43 = scmp.ne.s32.totalorder %s26, %s42
      %p44 = scmp.eq.s32.totalorder %s18, 0
      %p45 = por %p43, %p44
      %s47 = sadd.s32 %s46, 1
      %p50 = scmp.eq.s32.totalorder %s12, 1
      %p51 = scmp.ne.s32.totalorder %s46, %s48
      %p52 = scmp.eq.s32.totalorder %s12, 0
      %p53 = por %p51, %p52
      %p54 = scmp.ne.s32.totalorder %s46, %s48
      %p55 = scmp.eq.s32.totalorder %s17, 1
      %p56 = por %p54, %p55
      %p57 = scmp.ne.s32.totalorder %s48, %s49
      %p58 = scmp.eq.s32.totalorder %s17, 0
      %p59 = por %p57, %p58
      %p60 = scmp.ne.s32.totalorder %s48, %s49
      %p61 = scmp.eq.s32.totalorder %s18, 1
      %p62 = por %p60, %p61
      %p64 = scmp.ne.s32.totalorder %s49, %s63
      %p65 = scmp.eq.s32.totalorder %s18, 0
      %p66 = por %p64, %p65
      %s67 = ssub.s32 %s12, %s19
      %p68 = scmp.eq.s32.totalorder %s67, 0
      %s70 = sadd.s32 %s69, 1
      %s71 = scalar_select %p68, %s69, %s70
      %p74 = pneg %p68
      %p75 = scmp.eq.s32.totalorder %s12, 1
      %p76 = por %p74, %p75
      %p77 = scmp.ne.s32.totalorder %s69, %s72
      %p78 = scmp.eq.s32.totalorder %s12, 0
      %p79 = por %p77, %p78
      %p80 = scmp.ne.s32.totalorder %s69, %s72
      %p81 = scmp.eq.s32.totalorder %s17, 1
      %p82 = por %p80, %p81
      %p83 = scmp.ne.s32.totalorder %s72, %s73
      %p84 = scmp.eq.s32.totalorder %s17, 0
      %p85 = por %p83, %p84
      %p86 = scmp.ne.s32.totalorder %s72, %s73
      %p87 = scmp.eq.s32.totalorder %s18, 1
      %p88 = por %p86, %p87
      %p90 = scmp.ne.s32.totalorder %s73, %s89
      %p91 = scmp.eq.s32.totalorder %s18, 0
      %p92 = por %p90, %p91
      %s94 = sadd.s32 %s93, 1
      %p97 = scmp.eq.s32.totalorder %s12, 1
      %p98 = scmp.ne.s32.totalorder %s93, %s95
      %p99 = scmp.eq.s32.totalorder %s12, 0
      %p100 = por %p98, %p99
      %p101 = scmp.ne.s32.totalorder %s93, %s95
      %p102 = scmp.eq.s32.totalorder %s17, 1
      %p103 = por %p101, %p102
      %p104 = scmp.ne.s32.totalorder %s95, %s96
      %p105 = scmp.eq.s32.totalorder %s17, 0
      %p106 = por %p104, %p105
      %p107 = scmp.ne.s32.totalorder %s95, %s96
      %p108 = scmp.eq.s32.totalorder %s18, 1
      %p109 = por %p107, %p108
      %p111 = scmp.ne.s32.totalorder %s96, %s110
      %p112 = scmp.eq.s32.totalorder %s18, 0
      %p113 = por %p111, %p112
      %s115 = sadd.s32 %s114, 1
      %p118 = scmp.eq.s32.totalorder %s12, 1
      %p119 = scmp.ne.s32.totalorder %s114, %s116
      %p120 = scmp.eq.s32.totalorder %s12, 0
      %p121 = por %p119, %p120
      %p122 = scmp.ne.s32.totalorder %s114, %s116
      %p123 = scmp.eq.s32.totalorder %s17, 1
      %p124 = por %p122, %p123
      %p125 = scmp.ne.s32.totalorder %s116, %s117
      %p126 = scmp.eq.s32.totalorder %s17, 0
      %p127 = por %p125, %p126
      %p128 = scmp.ne.s32.totalorder %s116, %s117
      %p129 = scmp.eq.s32.totalorder %s18, 1
      %p130 = por %p128, %p129
      %p132 = scmp.ne.s32.totalorder %s117, %s131
      %p133 = scmp.eq.s32.totalorder %s18, 0
      %p134 = por %p132, %p133
      %p135 = scmp.le.s32.totalorder 1, %s12
      %p136 = scmp.lt.s32.totalorder %s12, 3
      %p137 = pnand %p135, %p136
      %p138 = pneg %p137
      // Predicated region
      $region9: #{discriminator_forward.6} parent=5 // pred_check
        _
      $region10: #{discriminator_forward.6} parent=5 // pred_check_branch
        %140 = sbr.rel (%p137) target = $region12
      $region11: #{discriminator_forward.6} parent=5 // pred_region
        %s141 = ssub.s32 %s12, 1
        // Predicated region
        $region13: #{discriminator_forward.6} parent=11 // pred_check
          %p142 = pneg %p59
        $region14: #{discriminator_forward.6} parent=11 // pred_check_branch
          %144 = sbr.rel (%p142) target = $region16
        $region15: #{discriminator_forward.6} parent=11 // pred_region
          %s146 = ssub.s32 128, 128
          %147 = vsyncadd [#allocation3], %s146
          %s148 = sshll.u32 [#allocation2], 4
          %s149 = int_to_ptr.vmem [resolvable:$true] %s148
          %154 = dma.hbm_to_vmem [thread:$0]  %s1, 128, %s149, [#allocation3], 64, 64, 4
        $region16: #{discriminator_forward.6} parent=11 // pred_fallthru
          _
      $region12: #{discriminator_forward.6} parent=5 // pred_fallthru
        _
      %p155 = scmp.lt.s32.totalorder %s12, 2
      // Predicated region
      $region17: #{discriminator_forward.6} parent=5 // pred_check
        %p156 = pneg %p155
      $region18: #{discriminator_forward.6} parent=5 // pred_check_branch
        %158 = sbr.rel (%p156) target = $region20
      $region19: #{discriminator_forward.6} parent=5 // pred_region
        // Predicated region
        $region21: #{discriminator_forward.6} parent=19 // pred_check
          %p159 = pneg %p32
        $region22: #{discriminator_forward.6} parent=19 // pred_check_branch
          %161 = sbr.rel (%p159) target = $region24
        $region23: #{discriminator_forward.6} parent=19 // pred_region
          %s162 = smul.u32 128, %s12
          %p163 = scmp.lt.s32.totalorder %s162, 255
          %s164 = scalar_select %p163, %s162, 255
          %s165 = smul.addr %s164, 4
          %s166 = scalar_lea.vmem %s0, %s165
          %s167 = smul.u32 128, %s12
        $region24: #{discriminator_forward.6} parent=19 // pred_fallthru
          _
      $region20: #{discriminator_forward.6} parent=5 // pred_fallthru
        _
      %p168 = scmp.le.s32.totalorder 1, %s12
      %p169 = scmp.lt.s32.totalorder %s12, 3
      %p170 = pnand %p168, %p169
      %p171 = pneg %p170
      // Predicated region
      $region25: #{discriminator_forward.6} parent=5 // pred_check
        _
      $region26: #{discriminator_forward.6} parent=5 // pred_check_branch
        %173 = sbr.rel (%p170) target = $region28
      $region27: #{discriminator_forward.6} parent=5 // pred_region
        %s174 = ssub.s32 %s12, 1
        // Predicated region
        $region29: #{discriminator_forward.6} parent=27 // pred_check
          %p175 = pneg %p59
        $region30: #{discriminator_forward.6} parent=27 // pred_check_branch
          %177 = sbr.rel (%p175) target = $region32
        $region31: #{discriminator_forward.6} parent=27 // pred_region
          %178 = dma.done [#allocation3], 128
        $region32: #{discriminator_forward.6} parent=27 // pred_fallthru
          _
        %s179 = smul.u32 128, %s17
        %p180 = scmp.lt.s32.totalorder %s179, 255
        %s181 = scalar_select %p180, %s179, 255
        %s182 = smul.addr %s181, 4
        %s183 = scalar_lea.vmem %s0, %s182
        %p184 = pneg %p38
        %p185 = pneg %p35
        %p186 = pneg %p59
        %p187 = pneg %p56
        %p188 = pneg %p85
        %p189 = pneg %p82
        %s190 = smul.u32 128, %s17
        %p191 = scmp.lt.s32.totalorder %s190, 255
        %s192 = scalar_select %p191, %s190, 255
        %s193 = smul.addr %s192, 4
        %s194 = scalar_lea.vmem %s2, %s193
        %p195 = pneg %p106
        %p196 = pneg %p103
        %p197 = pneg %p127
        %p198 = pneg %p124
        %s199 = smul.u32 128, %s17
        %p200 = scmp.lt.s32.totalorder %s199, 255
        %s201 = scalar_select %p200, %s199, 255
        %s202 = smul.addr %s201, 4
        %s203 = scalar_lea.vmem %s0, %s202
        %s204 = smul.u32 128, %s17
        %s205 = smul.u32 128, %s17
        %p206 = scmp.lt.s32.totalorder %s205, 255
        %s207 = scalar_select %p206, %s205, 255
        %s208 = smul.addr %s207, 4
        %s209 = scalar_lea.vmem %s2, %s208
        %s210 = smul.u32 128, %s17
        %v212 = vld [vmem:[%s203] sm:$0xf]
        %v213 = vld [vmem:[%s203 + $0x4] sm:$0xf]
        %v214 = vld [vmem:[%s203 + $0x8] sm:$0xf]
        %v215 = vld [vmem:[%s203 + $0xc] sm:$0xf]
        %v216 = vld [vmem:[%s203 + $0x10] sm:$0xf]
        %v217 = vld [vmem:[%s203 + $0x14] sm:$0xf]
        %v218 = vld [vmem:[%s203 + $0x18] sm:$0xf]
        %v219 = vld [vmem:[%s203 + $0x1c] sm:$0xf]
        %v220 = vld [vmem:[%s203 + $0x20] sm:$0xf]
        %v221 = vld [vmem:[%s203 + $0x24] sm:$0xf]
        %v222 = vld [vmem:[%s203 + $0x28] sm:$0xf]
        %v223 = vld [vmem:[%s203 + $0x2c] sm:$0xf]
        %v224 = vld [vmem:[%s203 + $0x30] sm:$0xf]
        %v225 = vld [vmem:[%s203 + $0x34] sm:$0xf]
        %v226 = vld [vmem:[%s203 + $0x38] sm:$0xf]
        %v227 = vld [vmem:[%s203 + $0x3c] sm:$0xf]
        %v228 = vld [vmem:[%s203 + $0x40] sm:$0xf]
        %v229 = vld [vmem:[%s203 + $0x44] sm:$0xf]
        %v230 = vld [vmem:[%s203 + $0x48] sm:$0xf]
        %v231 = vld [vmem:[%s203 + $0x4c] sm:$0xf]
        %v232 = vld [vmem:[%s203 + $0x50] sm:$0xf]
        %v233 = vld [vmem:[%s203 + $0x54] sm:$0xf]
        %v234 = vld [vmem:[%s203 + $0x58] sm:$0xf]
        %v235 = vld [vmem:[%s203 + $0x5c] sm:$0xf]
        %v236 = vld [vmem:[%s203 + $0x60] sm:$0xf]
        %v237 = vld [vmem:[%s203 + $0x64] sm:$0xf]
        %v238 = vld [vmem:[%s203 + $0x68] sm:$0xf]
        %v239 = vld [vmem:[%s203 + $0x6c] sm:$0xf]
        %v240 = vld [vmem:[%s203 + $0x70] sm:$0xf]
        %v241 = vld [vmem:[%s203 + $0x74] sm:$0xf]
        %v242 = vld [vmem:[%s203 + $0x78] sm:$0xf]
        %v243 = vld [vmem:[%s203 + $0x7c] sm:$0xf]
        %v244 = vld [vmem:[%s203 + $0x80] sm:$0xf]
        %v245 = vld [vmem:[%s203 + $0x84] sm:$0xf]
        %v246 = vld [vmem:[%s203 + $0x88] sm:$0xf]
        %v247 = vld [vmem:[%s203 + $0x8c] sm:$0xf]
        %v248 = vld [vmem:[%s203 + $0x90] sm:$0xf]
        %v249 = vld [vmem:[%s203 + $0x94] sm:$0xf]
        %v250 = vld [vmem:[%s203 + $0x98] sm:$0xf]
        %v251 = vld [vmem:[%s203 + $0x9c] sm:$0xf]
        %v252 = vld [vmem:[%s203 + $0xa0] sm:$0xf]
        %v253 = vld [vmem:[%s203 + $0xa4] sm:$0xf]
        %v254 = vld [vmem:[%s203 + $0xa8] sm:$0xf]
        %v255 = vld [vmem:[%s203 + $0xac] sm:$0xf]
        %v256 = vld [vmem:[%s203 + $0xb0] sm:$0xf]
        %v257 = vld [vmem:[%s203 + $0xb4] sm:$0xf]
        %v258 = vld [vmem:[%s203 + $0xb8] sm:$0xf]
        %v259 = vld [vmem:[%s203 + $0xbc] sm:$0xf]
        %v260 = vld [vmem:[%s203 + $0xc0] sm:$0xf]
        %v261 = vld [vmem:[%s203 + $0xc4] sm:$0xf]
        %v262 = vld [vmem:[%s203 + $0xc8] sm:$0xf]
        %v263 = vld [vmem:[%s203 + $0xcc] sm:$0xf]
        %v264 = vld [vmem:[%s203 + $0xd0] sm:$0xf]
        %v265 = vld [vmem:[%s203 + $0xd4] sm:$0xf]
        %v266 = vld [vmem:[%s203 + $0xd8] sm:$0xf]
        %v267 = vld [vmem:[%s203 + $0xdc] sm:$0xf]
        %v268 = vld [vmem:[%s203 + $0xe0] sm:$0xf]
        %v269 = vld [vmem:[%s203 + $0xe4] sm:$0xf]
        %v270 = vld [vmem:[%s203 + $0xe8] sm:$0xf]
        %v271 = vld [vmem:[%s203 + $0xec] sm:$0xf]
        %v272 = vld [vmem:[%s203 + $0xf0] sm:$0xf]
        %v273 = vld [vmem:[%s203 + $0xf4] sm:$0xf]
        %v274 = vld [vmem:[%s203 + $0xf8] sm:$0xf]
        %v275 = vld [vmem:[%s203 + $0xfc] sm:$0xf]
        %v276 = vld [vmem:[%s203 + $0x100] sm:$0xf]
        %v277 = vld [vmem:[%s203 + $0x104] sm:$0xf]
        %v278 = vld [vmem:[%s203 + $0x108] sm:$0xf]
        %v279 = vld [vmem:[%s203 + $0x10c] sm:$0xf]
        %v280 = vld [vmem:[%s203 + $0x110] sm:$0xf]
        %v281 = vld [vmem:[%s203 + $0x114] sm:$0xf]
        %v282 = vld [vmem:[%s203 + $0x118] sm:$0xf]
        %v283 = vld [vmem:[%s203 + $0x11c] sm:$0xf]
        %v284 = vld [vmem:[%s203 + $0x120] sm:$0xf]
        %v285 = vld [vmem:[%s203 + $0x124] sm:$0xf]
        %v286 = vld [vmem:[%s203 + $0x128] sm:$0xf]
        %v287 = vld [vmem:[%s203 + $0x12c] sm:$0xf]
        %v288 = vld [vmem:[%s203 + $0x130] sm:$0xf]
        %v289 = vld [vmem:[%s203 + $0x134] sm:$0xf]
        %v290 = vld [vmem:[%s203 + $0x138] sm:$0xf]
        %v291 = vld [vmem:[%s203 + $0x13c] sm:$0xf]
        %v292 = vld [vmem:[%s203 + $0x140] sm:$0xf]
        %v293 = vld [vmem:[%s203 + $0x144] sm:$0xf]
        %v294 = vld [vmem:[%s203 + $0x148] sm:$0xf]
        %v295 = vld [vmem:[%s203 + $0x14c] sm:$0xf]
        %v296 = vld [vmem:[%s203 + $0x150] sm:$0xf]
        %v297 = vld [vmem:[%s203 + $0x154] sm:$0xf]
        %v298 = vld [vmem:[%s203 + $0x158] sm:$0xf]
        %v299 = vld [vmem:[%s203 + $0x15c] sm:$0xf]
        %v300 = vld [vmem:[%s203 + $0x160] sm:$0xf]
        %v301 = vld [vmem:[%s203 + $0x164] sm:$0xf]
        %v302 = vld [vmem:[%s203 + $0x168] sm:$0xf]
        %v303 = vld [vmem:[%s203 + $0x16c] sm:$0xf]
        %v304 = vld [vmem:[%s203 + $0x170] sm:$0xf]
        %v305 = vld [vmem:[%s203 + $0x174] sm:$0xf]
        %v306 = vld [vmem:[%s203 + $0x178] sm:$0xf]
        %v307 = vld [vmem:[%s203 + $0x17c] sm:$0xf]
        %v308 = vld [vmem:[%s203 + $0x180] sm:$0xf]
        %v309 = vld [vmem:[%s203 + $0x184] sm:$0xf]
        %v310 = vld [vmem:[%s203 + $0x188] sm:$0xf]
        %v311 = vld [vmem:[%s203 + $0x18c] sm:$0xf]
        %v312 = vld [vmem:[%s203 + $0x190] sm:$0xf]
        %v313 = vld [vmem:[%s203 + $0x194] sm:$0xf]
        %v314 = vld [vmem:[%s203 + $0x198] sm:$0xf]
        %v315 = vld [vmem:[%s203 + $0x19c] sm:$0xf]
        %v316 = vld [vmem:[%s203 + $0x1a0] sm:$0xf]
        %v317 = vld [vmem:[%s203 + $0x1a4] sm:$0xf]
        %v318 = vld [vmem:[%s203 + $0x1a8] sm:$0xf]
        %v319 = vld [vmem:[%s203 + $0x1ac] sm:$0xf]
        %v320 = vld [vmem:[%s203 + $0x1b0] sm:$0xf]
        %v321 = vld [vmem:[%s203 + $0x1b4] sm:$0xf]
        %v322 = vld [vmem:[%s203 + $0x1b8] sm:$0xf]
        %v323 = vld [vmem:[%s203 + $0x1bc] sm:$0xf]
        %v324 = vld [vmem:[%s203 + $0x1c0] sm:$0xf]
        %v325 = vld [vmem:[%s203 + $0x1c4] sm:$0xf]
        %v326 = vld [vmem:[%s203 + $0x1c8] sm:$0xf]
        %v327 = vld [vmem:[%s203 + $0x1cc] sm:$0xf]
        %v328 = vld [vmem:[%s203 + $0x1d0] sm:$0xf]
        %v329 = vld [vmem:[%s203 + $0x1d4] sm:$0xf]
        %v330 = vld [vmem:[%s203 + $0x1d8] sm:$0xf]
        %v331 = vld [vmem:[%s203 + $0x1dc] sm:$0xf]
        %v332 = vld [vmem:[%s203 + $0x1e0] sm:$0xf]
        %v333 = vld [vmem:[%s203 + $0x1e4] sm:$0xf]
        %v334 = vld [vmem:[%s203 + $0x1e8] sm:$0xf]
        %v335 = vld [vmem:[%s203 + $0x1ec] sm:$0xf]
        %v336 = vld [vmem:[%s203 + $0x1f0] sm:$0xf]
        %v337 = vld [vmem:[%s203 + $0x1f4] sm:$0xf]
        %v338 = vld [vmem:[%s203 + $0x1f8] sm:$0xf]
        %v339 = vld [vmem:[%s203 + $0x1fc] sm:$0xf]
        %v340 = vld [vmem:[#allocation2] sm:$0xf]
        %v341 = vld [vmem:[#allocation2 + $0x4] sm:$0xf]
        %v470 = vunpack.c.l.b16 %v212
        %v471 = vunpack.c.l.b16 %v213
        %v472 = vunpack.c.l.b16 %v214
        %v473 = vunpack.c.l.b16 %v215
        %v474 = vunpack.c.l.b16 %v216
        %v475 = vunpack.c.l.b16 %v217
        %v476 = vunpack.c.l.b16 %v218
        %v477 = vunpack.c.l.b16 %v219
        %v478 = vunpack.c.l.b16 %v220
        %v479 = vunpack.c.l.b16 %v221
        %v480 = vunpack.c.l.b16 %v222
        %v481 = vunpack.c.l.b16 %v223
        %v482 = vunpack.c.l.b16 %v224
        %v483 = vunpack.c.l.b16 %v225
        %v484 = vunpack.c.l.b16 %v226
        %v485 = vunpack.c.l.b16 %v227
        %v486 = vunpack.c.l.b16 %v228
        %v487 = vunpack.c.l.b16 %v229
        %v488 = vunpack.c.l.b16 %v230
        %v489 = vunpack.c.l.b16 %v231
        %v490 = vunpack.c.l.b16 %v232
        %v491 = vunpack.c.l.b16 %v233
        %v492 = vunpack.c.l.b16 %v234
        %v493 = vunpack.c.l.b16 %v235
        %v494 = vunpack.c.l.b16 %v236
        %v495 = vunpack.c.l.b16 %v237
        %v496 = vunpack.c.l.b16 %v238
        %v497 = vunpack.c.l.b16 %v239
        %v498 = vunpack.c.l.b16 %v240
        %v499 = vunpack.c.l.b16 %v241
        %v500 = vunpack.c.l.b16 %v242
        %v501 = vunpack.c.l.b16 %v243
        %v502 = vunpack.c.l.b16 %v244
        %v503 = vunpack.c.l.b16 %v245
        %v504 = vunpack.c.l.b16 %v246
        %v505 = vunpack.c.l.b16 %v247
        %v506 = vunpack.c.l.b16 %v248
        %v507 = vunpack.c.l.b16 %v249
        %v508 = vunpack.c.l.b16 %v250
        %v509 = vunpack.c.l.b16 %v251
        %v510 = vunpack.c.l.b16 %v252
        %v511 = vunpack.c.l.b16 %v253
        %v512 = vunpack.c.l.b16 %v254
        %v513 = vunpack.c.l.b16 %v255
        %v514 = vunpack.c.l.b16 %v256
        %v515 = vunpack.c.l.b16 %v257
        %v516 = vunpack.c.l.b16 %v258
        %v517 = vunpack.c.l.b16 %v259
        %v518 = vunpack.c.l.b16 %v260
        %v519 = vunpack.c.l.b16 %v261
        %v520 = vunpack.c.l.b16 %v262
        %v521 = vunpack.c.l.b16 %v263
        %v522 = vunpack.c.l.b16 %v264
        %v523 = vunpack.c.l.b16 %v265
        %v524 = vunpack.c.l.b16 %v266
        %v525 = vunpack.c.l.b16 %v267
        %v526 = vunpack.c.l.b16 %v268
        %v527 = vunpack.c.l.b16 %v269
        %v528 = vunpack.c.l.b16 %v270
        %v529 = vunpack.c.l.b16 %v271
        %v530 = vunpack.c.l.b16 %v272
        %v531 = vunpack.c.l.b16 %v273
        %v532 = vunpack.c.l.b16 %v274
        %v533 = vunpack.c.l.b16 %v275
        %v534 = vunpack.c.l.b16 %v276
        %v535 = vunpack.c.l.b16 %v277
        %v536 = vunpack.c.l.b16 %v278
        %v537 = vunpack.c.l.b16 %v279
        %v538 = vunpack.c.l.b16 %v280
        %v539 = vunpack.c.l.b16 %v281
        %v540 = vunpack.c.l.b16 %v282
        %v541 = vunpack.c.l.b16 %v283
        %v542 = vunpack.c.l.b16 %v284
        %v543 = vunpack.c.l.b16 %v285
        %v544 = vunpack.c.l.b16 %v286
        %v545 = vunpack.c.l.b16 %v287
        %v546 = vunpack.c.l.b16 %v288
        %v547 = vunpack.c.l.b16 %v289
        %v548 = vunpack.c.l.b16 %v290
        %v549 = vunpack.c.l.b16 %v291
        %v550 = vunpack.c.l.b16 %v292
        %v551 = vunpack.c.l.b16 %v293
        %v552 = vunpack.c.l.b16 %v294
        %v553 = vunpack.c.l.b16 %v295
        %v554 = vunpack.c.l.b16 %v296
        %v555 = vunpack.c.l.b16 %v297
        %v556 = vunpack.c.l.b16 %v298
        %v557 = vunpack.c.l.b16 %v299
        %v558 = vunpack.c.l.b16 %v300
        %v559 = vunpack.c.l.b16 %v301
        %v560 = vunpack.c.l.b16 %v302
        %v561 = vunpack.c.l.b16 %v303
        %v562 = vunpack.c.l.b16 %v304
        %v563 = vunpack.c.l.b16 %v305
        %v564 = vunpack.c.l.b16 %v306
        %v565 = vunpack.c.l.b16 %v307
        %v566 = vunpack.c.l.b16 %v308
        %v567 = vunpack.c.l.b16 %v309
        %v568 = vunpack.c.l.b16 %v310
        %v569 = vunpack.c.l.b16 %v311
        %v570 = vunpack.c.l.b16 %v312
        %v571 = vunpack.c.l.b16 %v313
        %v572 = vunpack.c.l.b16 %v314
        %v573 = vunpack.c.l.b16 %v315
        %v574 = vunpack.c.l.b16 %v316
        %v575 = vunpack.c.l.b16 %v317
        %v576 = vunpack.c.l.b16 %v318
        %v577 = vunpack.c.l.b16 %v319
        %v578 = vunpack.c.l.b16 %v320
        %v579 = vunpack.c.l.b16 %v321
        %v580 = vunpack.c.l.b16 %v322
        %v581 = vunpack.c.l.b16 %v323
        %v582 = vunpack.c.l.b16 %v324
        %v583 = vunpack.c.l.b16 %v325
        %v584 = vunpack.c.l.b16 %v326
        %v585 = vunpack.c.l.b16 %v327
        %v586 = vunpack.c.l.b16 %v328
        %v587 = vunpack.c.l.b16 %v329
        %v588 = vunpack.c.l.b16 %v330
        %v589 = vunpack.c.l.b16 %v331
        %v590 = vunpack.c.l.b16 %v332
        %v591 = vunpack.c.l.b16 %v333
        %v592 = vunpack.c.l.b16 %v334
        %v593 = vunpack.c.l.b16 %v335
        %v594 = vunpack.c.l.b16 %v336
        %v595 = vunpack.c.l.b16 %v337
        %v596 = vunpack.c.l.b16 %v338
        %v597 = vunpack.c.l.b16 %v339
        %v598 = vpack.c.b16 %v471, %v470
        %v599 = vpack.c.b16 %v473, %v472
        %v600 = vpack.c.b16 %v475, %v474
        %v601 = vpack.c.b16 %v477, %v476
        %v602 = vpack.c.b16 %v479, %v478
        %v603 = vpack.c.b16 %v481, %v480
        %v604 = vpack.c.b16 %v483, %v482
        %v605 = vpack.c.b16 %v485, %v484
        %v606 = vpack.c.b16 %v487, %v486
        %v607 = vpack.c.b16 %v489, %v488
        %v608 = vpack.c.b16 %v491, %v490
        %v609 = vpack.c.b16 %v493, %v492
        %v610 = vpack.c.b16 %v495, %v494
        %v611 = vpack.c.b16 %v497, %v496
        %v612 = vpack.c.b16 %v499, %v498
        %v613 = vpack.c.b16 %v501, %v500
        %v614 = vpack.c.b16 %v503, %v502
        %v615 = vpack.c.b16 %v505, %v504
        %v616 = vpack.c.b16 %v507, %v506
        %v617 = vpack.c.b16 %v509, %v508
        %v618 = vpack.c.b16 %v511, %v510
        %v619 = vpack.c.b16 %v513, %v512
        %v620 = vpack.c.b16 %v515, %v514
        %v621 = vpack.c.b16 %v517, %v516
        %v622 = vpack.c.b16 %v519, %v518
        %v623 = vpack.c.b16 %v521, %v520
        %v624 = vpack.c.b16 %v523, %v522
        %v625 = vpack.c.b16 %v525, %v524
        %v626 = vpack.c.b16 %v527, %v526
        %v627 = vpack.c.b16 %v529, %v528
        %v628 = vpack.c.b16 %v531, %v530
        %v629 = vpack.c.b16 %v533, %v532
        %v630 = vpack.c.b16 %v535, %v534
        %v631 = vpack.c.b16 %v537, %v536
        %v632 = vpack.c.b16 %v539, %v538
        %v633 = vpack.c.b16 %v541, %v540
        %v634 = vpack.c.b16 %v543, %v542
        %v635 = vpack.c.b16 %v545, %v544
        %v636 = vpack.c.b16 %v547, %v546
        %v637 = vpack.c.b16 %v549, %v548
        %v638 = vpack.c.b16 %v551, %v550
        %v639 = vpack.c.b16 %v553, %v552
        %v640 = vpack.c.b16 %v555, %v554
        %v641 = vpack.c.b16 %v557, %v556
        %v642 = vpack.c.b16 %v559, %v558
        %v643 = vpack.c.b16 %v561, %v560
        %v644 = vpack.c.b16 %v563, %v562
        %v645 = vpack.c.b16 %v565, %v564
        %v646 = vpack.c.b16 %v567, %v566
        %v647 = vpack.c.b16 %v569, %v568
        %v648 = vpack.c.b16 %v571, %v570
        %v649 = vpack.c.b16 %v573, %v572
        %v650 = vpack.c.b16 %v575, %v574
        %v651 = vpack.c.b16 %v577, %v576
        %v652 = vpack.c.b16 %v579, %v578
        %v653 = vpack.c.b16 %v581, %v580
        %v654 = vpack.c.b16 %v583, %v582
        %v655 = vpack.c.b16 %v585, %v584
        %v656 = vpack.c.b16 %v587, %v586
        %v657 = vpack.c.b16 %v589, %v588
        %v658 = vpack.c.b16 %v591, %v590
        %v659 = vpack.c.b16 %v593, %v592
        %v660 = vpack.c.b16 %v595, %v594
        %v661 = vpack.c.b16 %v597, %v596
        %v664 = vunpack.c.l.b16 %v340
        %v665 = vunpack.c.l.b16 %v341
        %v666 = vpack.c.b16 %v665, %v664
        %vm668 = vcmask 130048
        %v670 = vsel %vm668, %v598, 0
        %v673 = vsel %vm668, %v599, 0
        %v676 = vsel %vm668, %v600, 0
        %v679 = vsel %vm668, %v601, 0
        %v682 = vsel %vm668, %v602, 0
        %v685 = vsel %vm668, %v603, 0
        %v688 = vsel %vm668, %v604, 0
        %v691 = vsel %vm668, %v605, 0
        %v694 = vsel %vm668, %v606, 0
        %v697 = vsel %vm668, %v607, 0
        %v700 = vsel %vm668, %v608, 0
        %v703 = vsel %vm668, %v609, 0
        %v706 = vsel %vm668, %v610, 0
        %v709 = vsel %vm668, %v611, 0
        %v712 = vsel %vm668, %v612, 0
        %v715 = vsel %vm668, %v613, 0
        %v718 = vsel %vm668, %v614, 0
        %v721 = vsel %vm668, %v615, 0
        %v724 = vsel %vm668, %v616, 0
        %v727 = vsel %vm668, %v617, 0
        %v730 = vsel %vm668, %v618, 0
        %v733 = vsel %vm668, %v619, 0
        %v736 = vsel %vm668, %v620, 0
        %v739 = vsel %vm668, %v621, 0
        %v742 = vsel %vm668, %v622, 0
        %v745 = vsel %vm668, %v623, 0
        %v748 = vsel %vm668, %v624, 0
        %v751 = vsel %vm668, %v625, 0
        %v754 = vsel %vm668, %v626, 0
        %v757 = vsel %vm668, %v627, 0
        %v760 = vsel %vm668, %v628, 0
        %v763 = vsel %vm668, %v629, 0
        %v766 = vsel %vm668, %v630, 0
        %v769 = vsel %vm668, %v631, 0
        %v772 = vsel %vm668, %v632, 0
        %v775 = vsel %vm668, %v633, 0
        %v778 = vsel %vm668, %v634, 0
        %v781 = vsel %vm668, %v635, 0
        %v784 = vsel %vm668, %v636, 0
        %v787 = vsel %vm668, %v637, 0
        %v790 = vsel %vm668, %v638, 0
        %v793 = vsel %vm668, %v639, 0
        %v796 = vsel %vm668, %v640, 0
        %v799 = vsel %vm668, %v641, 0
        %v802 = vsel %vm668, %v642, 0
        %v805 = vsel %vm668, %v643, 0
        %v808 = vsel %vm668, %v644, 0
        %v811 = vsel %vm668, %v645, 0
        %v814 = vsel %vm668, %v646, 0
        %v817 = vsel %vm668, %v647, 0
        %v820 = vsel %vm668, %v648, 0
        %v823 = vsel %vm668, %v649, 0
        %v826 = vsel %vm668, %v650, 0
        %v829 = vsel %vm668, %v651, 0
        %v832 = vsel %vm668, %v652, 0
        %v835 = vsel %vm668, %v653, 0
        %v838 = vsel %vm668, %v654, 0
        %v841 = vsel %vm668, %v655, 0
        %v844 = vsel %vm668, %v656, 0
        %v847 = vsel %vm668, %v657, 0
        %v850 = vsel %vm668, %v658, 0
        %v853 = vsel %vm668, %v659, 0
        %v856 = vsel %vm668, %v660, 0
        %v859 = vsel %vm668, %v661, 0
        %861 = vmatprep.subr.bf16.mxu0 0
        %862 = vmatpush1.bf16.msra.mxu0 %v666
        %863 = vmatprep.subr.bf16.mxu0 0
        %864 = vmatpush1.bf16.msra.mxu0 0
        %865 = vmatprep.subr.bf16.mxu0 0
        %866 = vmatpush1.bf16.msra.mxu0 0
        %867 = vmatprep.subr.bf16.mxu0 0
        %868 = vmatpush1.bf16.msra.mxu0 0
        %869 = vmatprep.subr.bf16.mxu0 0
        %870 = vmatpush1.bf16.msra.mxu0 0
        %871 = vmatprep.subr.bf16.mxu0 0
        %872 = vmatpush1.bf16.msra.mxu0 0
        %873 = vmatprep.subr.bf16.mxu0 0
        %874 = vmatpush1.bf16.msra.mxu0 0
        %875 = vmatprep.subr.bf16.mxu0 0
        %876 = vmatpush1.bf16.msra.mxu0 0
        %877 = vmatprep.subr.bf16.mxu0 0
        %878 = vmatpush1.bf16.msra.mxu0 0
        %879 = vmatprep.subr.bf16.mxu0 0
        %880 = vmatpush1.bf16.msra.mxu0 0
        %881 = vmatprep.subr.bf16.mxu0 0
        %882 = vmatpush1.bf16.msra.mxu0 0
        %883 = vmatprep.subr.bf16.mxu0 0
        %884 = vmatpush1.bf16.msra.mxu0 0
        %885 = vmatprep.subr.bf16.mxu0 0
        %886 = vmatpush1.bf16.msra.mxu0 0
        %887 = vmatprep.subr.bf16.mxu0 0
        %888 = vmatpush1.bf16.msra.mxu0 0
        %889 = vmatprep.subr.bf16.mxu0 0
        %890 = vmatpush1.bf16.msra.mxu0 0
        %891 = vmatprep.subr.bf16.mxu0 0
        %892 = vmatpush1.bf16.msra.mxu0 0
        %893 = vmatprep.mubr.bf16.mxu0 0
        %894 = vmatmul.mubr.bf16.gmra.mrb[0].mxu0 %v670
        %v895 = vpop.f32.mrb[0].mxu0
        %v896 = vadd.f32 0.0, %v895
        %v897 = vpop.f32.mrb[0].mxu0
        %v898 = vpop.f32.mrb[0].mxu0
        %v899 = vadd.f32 0.0, %v898
        %v900 = vpop.f32.mrb[0].mxu0
        %901 = vmatprep.mubr.bf16.mxu0 0
        %902 = vmatmul.mubr.bf16.gmra.mrb[0].mxu0 %v673
        %v903 = vpop.f32.mrb[0].mxu0
        %v904 = vadd.f32 0.0, %v903
        %v905 = vpop.f32.mrb[0].mxu0
        %v906 = vpop.f32.mrb[0].mxu0
        %v907 = vadd.f32 0.0, %v906
        %v908 = vpop.f32.mrb[0].mxu0
        %909 = vmatprep.mubr.bf16.mxu0 0
        %910 = vmatmul.mubr.bf16.gmra.mrb[0].mxu0 %v676
        %v911 = vpop.f32.mrb[0].mxu0
        %v912 = vadd.f32 0.0, %v911
        %v913 = vpop.f32.mrb[0].mxu0
        %v914 = vpop.f32.mrb[0].mxu0
        %v915 = vadd.f32 0.0, %v914
        %v916 = vpop.f32.mrb[0].mxu0
        %917 = vmatprep.mubr.bf16.mxu0 0
        %918 = vmatmul.mubr.bf16.gmra.mrb[0].mxu0 %v679
        %v919 = vpop.f32.mrb[0].mxu0
        %v920 = vadd.f32 0.0, %v919
        %v921 = vpop.f32.mrb[0].mxu0
        %v922 = vpop.f32.mrb[0].mxu0
        %v923 = vadd.f32 0.0, %v922
        %v924 = vpop.f32.mrb[0].mxu0
        %925 = vmatprep.mubr.bf16.mxu0 0
        %926 = vmatmul.mubr.bf16.gmra.mrb[0].mxu0 %v682
        %v927 = vpop.f32.mrb[0].mxu0
        %v928 = vadd.f32 0.0, %v927
        %v929 = vpop.f32.mrb[0].mxu0
        %v930 = vpop.f32.mrb[0].mxu0
        %v931 = vadd.f32 0.0, %v930
        %v932 = vpop.f32.mrb[0].mxu0
        %933 = vmatprep.mubr.bf16.mxu0 0
        %934 = vmatmul.mubr.bf16.gmra.mrb[0].mxu0 %v685
        %v935 = vpop.f32.mrb[0].mxu0
        %v936 = vadd.f32 0.0, %v935
        %v937 = vpop.f32.mrb[0].mxu0
        %v938 = vpop.f32.mrb[0].mxu0
        %v939 = vadd.f32 0.0, %v938
        %v940 = vpop.f32.mrb[0].mxu0
        %941 = vmatprep.mubr.bf16.mxu0 0
        %942 = vmatmul.mubr.bf16.gmra.mrb[0].mxu0 %v688
        %v943 = vpop.f32.mrb[0].mxu0
        %v944 = vadd.f32 0.0, %v943
        %v945 = vpop.f32.mrb[0].mxu0
        %v946 = vpop.f32.mrb[0].mxu0
        %v947 = vadd.f32 0.0, %v946
        %v948 = vpop.f32.mrb[0].mxu0
        %949 = vmatprep.mubr.bf16.mxu0 0
        %950 = vmatmul.mubr.bf16.gmra.mrb[0].mxu0 %v691
        %v951 = vpop.f32.mrb[0].mxu0
        %v952 = vadd.f32 0.0, %v951
        %v953 = vpop.f32.mrb[0].mxu0
        %v954 = vpop.f32.mrb[0].mxu0
        %v955 = vadd.f32 0.0, %v954
        %v956 = vpop.f32.mrb[0].mxu0
        %957 = vmatprep.mubr.bf16.mxu0 0
        %958 = vmatmul.mubr.bf16.gmra.mrb[0].mxu0 %v694
        %v959 = vpop.f32.mrb[0].mxu0
        %v960 = vadd.f32 0.0, %v959
        %v961 = vpop.f32.mrb[0].mxu0
        %v962 = vpop.f32.mrb[0].mxu0
        %v963 = vadd.f32 0.0, %v962
        %v964 = vpop.f32.mrb[0].mxu0
        %965 = vmatprep.mubr.bf16.mxu0 0
        %966 = vmatmul.mubr.bf16.gmra.mrb[0].mxu0 %v697
        %v967 = vpop.f32.mrb[0].mxu0
        %v968 = vadd.f32 0.0, %v967
        %v969 = vpop.f32.mrb[0].mxu0
        %v970 = vpop.f32.mrb[0].mxu0
        %v971 = vadd.f32 0.0, %v970
        %v972 = vpop.f32.mrb[0].mxu0
        %973 = vmatprep.mubr.bf16.mxu0 0
        %974 = vmatmul.mubr.bf16.gmra.mrb[0].mxu0 %v700
        %v975 = vpop.f32.mrb[0].mxu0
        %v976 = vadd.f32 0.0, %v975
        %v977 = vpop.f32.mrb[0].mxu0
        %v978 = vpop.f32.mrb[0].mxu0
        %v979 = vadd.f32 0.0, %v978
        %v980 = vpop.f32.mrb[0].mxu0
        %981 = vmatprep.mubr.bf16.mxu0 0
        %982 = vmatmul.mubr.bf16.gmra.mrb[0].mxu0 %v703
        %v983 = vpop.f32.mrb[0].mxu0
        %v984 = vadd.f32 0.0, %v983
        %v985 = vpop.f32.mrb[0].mxu0
        %v986 = vpop.f32.mrb[0].mxu0
        %v987 = vadd.f32 0.0, %v986
        %v988 = vpop.f32.mrb[0].mxu0
        %989 = vmatprep.mubr.bf16.mxu0 0
        %990 = vmatmul.mubr.bf16.gmra.mrb[0].mxu0 %v706
        %v991 = vpop.f32.mrb[0].mxu0
        %v992 = vadd.f32 0.0, %v991
        %v993 = vpop.f32.mrb[0].mxu0
        %v994 = vpop.f32.mrb[0].mxu0
        %v995 = vadd.f32 0.0, %v994
        %v996 = vpop.f32.mrb[0].mxu0
        %997 = vmatprep.mubr.bf16.mxu0 0
        %998 = vmatmul.mubr.bf16.gmra.mrb[0].mxu0 %v709
        %v999 = vpop.f32.mrb[0].mxu0
        %v1000 = vadd.f32 0.0, %v999
        %v1001 = vpop.f32.mrb[0].mxu0
        %v1002 = vpop.f32.mrb[0].mxu0
        %v1003 = vadd.f32 0.0, %v1002
        %v1004 = vpop.f32.mrb[0].mxu0
        %1005 = vmatprep.mubr.bf16.mxu0 0
        %1006 = vmatmul.mubr.bf16.gmra.mrb[0].mxu0 %v712
        %v1007 = vpop.f32.mrb[0].mxu0
        %v1008 = vadd.f32 0.0, %v1007
        %v1009 = vpop.f32.mrb[0].mxu0
        %v1010 = vpop.f32.mrb[0].mxu0
        %v1011 = vadd.f32 0.0, %v1010
        %v1012 = vpop.f32.mrb[0].mxu0
        %1013 = vmatprep.mubr.bf16.mxu0 0
        %1014 = vmatmul.mubr.bf16.gmra.mrb[0].mxu0 %v715
        %v1015 = vpop.f32.mrb[0].mxu0
        %v1016 = vadd.f32 0.0, %v1015
        %v1017 = vpop.f32.mrb[0].mxu0
        %v1018 = vpop.f32.mrb[0].mxu0
        %v1019 = vadd.f32 0.0, %v1018
        %v1020 = vpop.f32.mrb[0].mxu0
        %1021 = vmatprep.mubr.bf16.mxu0 0
        %1022 = vmatmul.mubr.bf16.gmra.mrb[0].mxu0 %v718
        %v1023 = vpop.f32.mrb[0].mxu0
        %v1024 = vadd.f32 0.0, %v1023
        %v1025 = vpop.f32.mrb[0].mxu0
        %v1026 = vpop.f32.mrb[0].mxu0
        %v1027 = vadd.f32 0.0, %v1026
        %v1028 = vpop.f32.mrb[0].mxu0
        %1029 = vmatprep.mubr.bf16.mxu0 0
        %1030 = vmatmul.mubr.bf16.gmra.mrb[0].mxu0 %v721
        %v1031 = vpop.f32.mrb[0].mxu0
        %v1032 = vadd.f32 0.0, %v1031
        %v1033 = vpop.f32.mrb[0].mxu0
        %v1034 = vpop.f32.mrb[0].mxu0
        %v1035 = vadd.f32 0.0, %v1034
        %v1036 = vpop.f32.mrb[0].mxu0
        %1037 = vmatprep.mubr.bf16.mxu0 0
        %1038 = vmatmul.mubr.bf16.gmra.mrb[0].mxu0 %v724
        %v1039 = vpop.f32.mrb[0].mxu0
        %v1040 = vadd.f32 0.0, %v1039
        %v1041 = vpop.f32.mrb[0].mxu0
        %v1042 = vpop.f32.mrb[0].mxu0
        %v1043 = vadd.f32 0.0, %v1042
        %v1044 = vpop.f32.mrb[0].mxu0
        %1045 = vmatprep.mubr.bf16.mxu0 0
        %1046 = vmatmul.mubr.bf16.gmra.mrb[0].mxu0 %v727
        %v1047 = vpop.f32.mrb[0].mxu0
        %v1048 = vadd.f32 0.0, %v1047
        %v1049 = vpop.f32.mrb[0].mxu0
        %v1050 = vpop.f32.mrb[0].mxu0
        %v1051 = vadd.f32 0.0, %v1050
        %v1052 = vpop.f32.mrb[0].mxu0
        %1053 = vmatprep.mubr.bf16.mxu0 0
        %1054 = vmatmul.mubr.bf16.gmra.mrb[0].mxu0 %v730
        %v1055 = vpop.f32.mrb[0].mxu0
        %v1056 = vadd.f32 0.0, %v1055
        %v1057 = vpop.f32.mrb[0].mxu0
        %v1058 = vpop.f32.mrb[0].mxu0
        %v1059 = vadd.f32 0.0, %v1058
        %v1060 = vpop.f32.mrb[0].mxu0
        %1061 = vmatprep.mubr.bf16.mxu0 0
        %1062 = vmatmul.mubr.bf16.gmra.mrb[0].mxu0 %v733
        %v1063 = vpop.f32.mrb[0].mxu0
        %v1064 = vadd.f32 0.0, %v1063
        %v1065 = vpop.f32.mrb[0].mxu0
        %v1066 = vpop.f32.mrb[0].mxu0
        %v1067 = vadd.f32 0.0, %v1066
        %v1068 = vpop.f32.mrb[0].mxu0
        %1069 = vmatprep.mubr.bf16.mxu0 0
        %1070 = vmatmul.mubr.bf16.gmra.mrb[0].mxu0 %v736
        %v1071 = vpop.f32.mrb[0].mxu0
        %v1072 = vadd.f32 0.0, %v1071
        %v1073 = vpop.f32.mrb[0].mxu0
        %v1074 = vpop.f32.mrb[0].mxu0
        %v1075 = vadd.f32 0.0, %v1074
        %v1076 = vpop.f32.mrb[0].mxu0
        %1077 = vmatprep.mubr.bf16.mxu0 0
        %1078 = vmatmul.mubr.bf16.gmra.mrb[0].mxu0 %v739
        %v1079 = vpop.f32.mrb[0].mxu0
        %v1080 = vadd.f32 0.0, %v1079
        %v1081 = vpop.f32.mrb[0].mxu0
        %v1082 = vpop.f32.mrb[0].mxu0
        %v1083 = vadd.f32 0.0, %v1082
        %v1084 = vpop.f32.mrb[0].mxu0
        %1085 = vmatprep.mubr.bf16.mxu0 0
        %1086 = vmatmul.mubr.bf16.gmra.mrb[0].mxu0 %v742
        %v1087 = vpop.f32.mrb[0].mxu0
        %v1088 = vadd.f32 0.0, %v1087
        %v1089 = vpop.f32.mrb[0].mxu0
        %v1090 = vpop.f32.mrb[0].mxu0
        %v1091 = vadd.f32 0.0, %v1090
        %v1092 = vpop.f32.mrb[0].mxu0
        %1093 = vmatprep.mubr.bf16.mxu0 0
        %1094 = vmatmul.mubr.bf16.gmra.mrb[0].mxu0 %v745
        %v1095 = vpop.f32.mrb[0].mxu0
        %v1096 = vadd.f32 0.0, %v1095
        %v1097 = vpop.f32.mrb[0].mxu0
        %v1098 = vpop.f32.mrb[0].mxu0
        %v1099 = vadd.f32 0.0, %v1098
        %v1100 = vpop.f32.mrb[0].mxu0
        %1101 = vmatprep.mubr.bf16.mxu0 0
        %1102 = vmatmul.mubr.bf16.gmra.mrb[0].mxu0 %v748
        %v1103 = vpop.f32.mrb[0].mxu0
        %v1104 = vadd.f32 0.0, %v1103
        %v1105 = vpop.f32.mrb[0].mxu0
        %v1106 = vpop.f32.mrb[0].mxu0
        %v1107 = vadd.f32 0.0, %v1106
        %v1108 = vpop.f32.mrb[0].mxu0
        %1109 = vmatprep.mubr.bf16.mxu0 0
        %1110 = vmatmul.mubr.bf16.gmra.mrb[0].mxu0 %v751
        %v1111 = vpop.f32.mrb[0].mxu0
        %v1112 = vadd.f32 0.0, %v1111
        %v1113 = vpop.f32.mrb[0].mxu0
        %v1114 = vpop.f32.mrb[0].mxu0
        %v1115 = vadd.f32 0.0, %v1114
        %v1116 = vpop.f32.mrb[0].mxu0
        %1117 = vmatprep.mubr.bf16.mxu0 0
        %1118 = vmatmul.mubr.bf16.gmra.mrb[0].mxu0 %v754
        %v1119 = vpop.f32.mrb[0].mxu0
        %v1120 = vadd.f32 0.0, %v1119
        %v1121 = vpop.f32.mrb[0].mxu0
        %v1122 = vpop.f32.mrb[0].mxu0
        %v1123 = vadd.f32 0.0, %v1122
        %v1124 = vpop.f32.mrb[0].mxu0
        %1125 = vmatprep.mubr.bf16.mxu0 0
        %1126 = vmatmul.mubr.bf16.gmra.mrb[0].mxu0 %v757
        %v1127 = vpop.f32.mrb[0].mxu0
        %v1128 = vadd.f32 0.0, %v1127
        %v1129 = vpop.f32.mrb[0].mxu0
        %v1130 = vpop.f32.mrb[0].mxu0
        %v1131 = vadd.f32 0.0, %v1130
        %v1132 = vpop.f32.mrb[0].mxu0
        %1133 = vmatprep.mubr.bf16.mxu0 0
        %1134 = vmatmul.mubr.bf16.gmra.mrb[0].mxu0 %v760
        %v1135 = vpop.f32.mrb[0].mxu0
        %v1136 = vadd.f32 0.0, %v1135
        %v1137 = vpop.f32.mrb[0].mxu0
        %v1138 = vpop.f32.mrb[0].mxu0
        %v1139 = vadd.f32 0.0, %v1138
        %v1140 = vpop.f32.mrb[0].mxu0
        %1141 = vmatprep.mubr.bf16.mxu0 0
        %1142 = vmatmul.mubr.bf16.gmra.mrb[0].mxu0 %v763
        %v1143 = vpop.f32.mrb[0].mxu0
        %v1144 = vadd.f32 0.0, %v1143
        %v1145 = vpop.f32.mrb[0].mxu0
        %v1146 = vpop.f32.mrb[0].mxu0
        %v1147 = vadd.f32 0.0, %v1146
        %v1148 = vpop.f32.mrb[0].mxu0
        %1149 = vmatprep.mubr.bf16.mxu0 0
        %1150 = vmatmul.mubr.bf16.gmra.mrb[0].mxu0 %v766
        %v1151 = vpop.f32.mrb[0].mxu0
        %v1152 = vadd.f32 0.0, %v1151
        %v1153 = vpop.f32.mrb[0].mxu0
        %v1154 = vpop.f32.mrb[0].mxu0
        %v1155 = vadd.f32 0.0, %v1154
        %v1156 = vpop.f32.mrb[0].mxu0
        %1157 = vmatprep.mubr.bf16.mxu0 0
        %1158 = vmatmul.mubr.bf16.gmra.mrb[0].mxu0 %v769
        %v1159 = vpop.f32.mrb[0].mxu0
        %v1160 = vadd.f32 0.0, %v1159
        %v1161 = vpop.f32.mrb[0].mxu0
        %v1162 = vpop.f32.mrb[0].mxu0
        %v1163 = vadd.f32 0.0, %v1162
        %v1164 = vpop.f32.mrb[0].mxu0
        %1165 = vmatprep.mubr.bf16.mxu0 0
        %1166 = vmatmul.mubr.bf16.gmra.mrb[0].mxu0 %v772
        %v1167 = vpop.f32.mrb[0].mxu0
        %v1168 = vadd.f32 0.0, %v1167
        %v1169 = vpop.f32.mrb[0].mxu0
        %v1170 = vpop.f32.mrb[0].mxu0
        %v1171 = vadd.f32 0.0, %v1170
        %v1172 = vpop.f32.mrb[0].mxu0
        %1173 = vmatprep.mubr.bf16.mxu0 0
        %1174 = vmatmul.mubr.bf16.gmra.mrb[0].mxu0 %v775
        %v1175 = vpop.f32.mrb[0].mxu0
        %v1176 = vadd.f32 0.0, %v1175
        %v1177 = vpop.f32.mrb[0].mxu0
        %v1178 = vpop.f32.mrb[0].mxu0
        %v1179 = vadd.f32 0.0, %v1178
        %v1180 = vpop.f32.mrb[0].mxu0
        %1181 = vmatprep.mubr.bf16.mxu0 0
        %1182 = vmatmul.mubr.bf16.gmra.mrb[0].mxu0 %v778
        %v1183 = vpop.f32.mrb[0].mxu0
        %v1184 = vadd.f32 0.0, %v1183
        %v1185 = vpop.f32.mrb[0].mxu0
        %v1186 = vpop.f32.mrb[0].mxu0
        %v1187 = vadd.f32 0.0, %v1186
        %v1188 = vpop.f32.mrb[0].mxu0
        %1189 = vmatprep.mubr.bf16.mxu0 0
        %1190 = vmatmul.mubr.bf16.gmra.mrb[0].mxu0 %v781
        %v1191 = vpop.f32.mrb[0].mxu0
        %v1192 = vadd.f32 0.0, %v1191
        %v1193 = vpop.f32.mrb[0].mxu0
        %v1194 = vpop.f32.mrb[0].mxu0
        %v1195 = vadd.f32 0.0, %v1194
        %v1196 = vpop.f32.mrb[0].mxu0
        %1197 = vmatprep.mubr.bf16.mxu0 0
        %1198 = vmatmul.mubr.bf16.gmra.mrb[0].mxu0 %v784
        %v1199 = vpop.f32.mrb[0].mxu0
        %v1200 = vadd.f32 0.0, %v1199
        %v1201 = vpop.f32.mrb[0].mxu0
        %v1202 = vpop.f32.mrb[0].mxu0
        %v1203 = vadd.f32 0.0, %v1202
        %v1204 = vpop.f32.mrb[0].mxu0
        %1205 = vmatprep.mubr.bf16.mxu0 0
        %1206 = vmatmul.mubr.bf16.gmra.mrb[0].mxu0 %v787
        %v1207 = vpop.f32.mrb[0].mxu0
        %v1208 = vadd.f32 0.0, %v1207
        %v1209 = vpop.f32.mrb[0].mxu0
        %v1210 = vpop.f32.mrb[0].mxu0
        %v1211 = vadd.f32 0.0, %v1210
        %v1212 = vpop.f32.mrb[0].mxu0
        %1213 = vmatprep.mubr.bf16.mxu0 0
        %1214 = vmatmul.mubr.bf16.gmra.mrb[0].mxu0 %v790
        %v1215 = vpop.f32.mrb[0].mxu0
        %v1216 = vadd.f32 0.0, %v1215
        %v1217 = vpop.f32.mrb[0].mxu0
        %v1218 = vpop.f32.mrb[0].mxu0
        %v1219 = vadd.f32 0.0, %v1218
        %v1220 = vpop.f32.mrb[0].mxu0
        %1221 = vmatprep.mubr.bf16.mxu0 0
        %1222 = vmatmul.mubr.bf16.gmra.mrb[0].mxu0 %v793
        %v1223 = vpop.f32.mrb[0].mxu0
        %v1224 = vadd.f32 0.0, %v1223
        %v1225 = vpop.f32.mrb[0].mxu0
        %v1226 = vpop.f32.mrb[0].mxu0
        %v1227 = vadd.f32 0.0, %v1226
        %v1228 = vpop.f32.mrb[0].mxu0
        %1229 = vmatprep.mubr.bf16.mxu0 0
        %1230 = vmatmul.mubr.bf16.gmra.mrb[0].mxu0 %v796
        %v1231 = vpop.f32.mrb[0].mxu0
        %v1232 = vadd.f32 0.0, %v1231
        %v1233 = vpop.f32.mrb[0].mxu0
        %v1234 = vpop.f32.mrb[0].mxu0
        %v1235 = vadd.f32 0.0, %v1234
        %v1236 = vpop.f32.mrb[0].mxu0
        %1237 = vmatprep.mubr.bf16.mxu0 0
        %1238 = vmatmul.mubr.bf16.gmra.mrb[0].mxu0 %v799
        %v1239 = vpop.f32.mrb[0].mxu0
        %v1240 = vadd.f32 0.0, %v1239
        %v1241 = vpop.f32.mrb[0].mxu0
        %v1242 = vpop.f32.mrb[0].mxu0
        %v1243 = vadd.f32 0.0, %v1242
        %v1244 = vpop.f32.mrb[0].mxu0
        %1245 = vmatprep.mubr.bf16.mxu0 0
        %1246 = vmatmul.mubr.bf16.gmra.mrb[0].mxu0 %v802
        %v1247 = vpop.f32.mrb[0].mxu0
        %v1248 = vadd.f32 0.0, %v1247
        %v1249 = vpop.f32.mrb[0].mxu0
        %v1250 = vpop.f32.mrb[0].mxu0
        %v1251 = vadd.f32 0.0, %v1250
        %v1252 = vpop.f32.mrb[0].mxu0
        %1253 = vmatprep.mubr.bf16.mxu0 0
        %1254 = vmatmul.mubr.bf16.gmra.mrb[0].mxu0 %v805
        %v1255 = vpop.f32.mrb[0].mxu0
        %v1256 = vadd.f32 0.0, %v1255
        %v1257 = vpop.f32.mrb[0].mxu0
        %v1258 = vpop.f32.mrb[0].mxu0
        %v1259 = vadd.f32 0.0, %v1258
        %v1260 = vpop.f32.mrb[0].mxu0
        %1261 = vmatprep.mubr.bf16.mxu0 0
        %1262 = vmatmul.mubr.bf16.gmra.mrb[0].mxu0 %v808
        %v1263 = vpop.f32.mrb[0].mxu0
        %v1264 = vadd.f32 0.0, %v1263
        %v1265 = vpop.f32.mrb[0].mxu0
        %v1266 = vpop.f32.mrb[0].mxu0
        %v1267 = vadd.f32 0.0, %v1266
        %v1268 = vpop.f32.mrb[0].mxu0
        %1269 = vmatprep.mubr.bf16.mxu0 0
        %1270 = vmatmul.mubr.bf16.gmra.mrb[0].mxu0 %v811
        %v1271 = vpop.f32.mrb[0].mxu0
        %v1272 = vadd.f32 0.0, %v1271
        %v1273 = vpop.f32.mrb[0].mxu0
        %v1274 = vpop.f32.mrb[0].mxu0
        %v1275 = vadd.f32 0.0, %v1274
        %v1276 = vpop.f32.mrb[0].mxu0
        %1277 = vmatprep.mubr.bf16.mxu0 0
        %1278 = vmatmul.mubr.bf16.gmra.mrb[0].mxu0 %v814
        %v1279 = vpop.f32.mrb[0].mxu0
        %v1280 = vadd.f32 0.0, %v1279
        %v1281 = vpop.f32.mrb[0].mxu0
        %v1282 = vpop.f32.mrb[0].mxu0
        %v1283 = vadd.f32 0.0, %v1282
        %v1284 = vpop.f32.mrb[0].mxu0
        %1285 = vmatprep.mubr.bf16.mxu0 0
        %1286 = vmatmul.mubr.bf16.gmra.mrb[0].mxu0 %v817
        %v1287 = vpop.f32.mrb[0].mxu0
        %v1288 = vadd.f32 0.0, %v1287
        %v1289 = vpop.f32.mrb[0].mxu0
        %v1290 = vpop.f32.mrb[0].mxu0
        %v1291 = vadd.f32 0.0, %v1290
        %v1292 = vpop.f32.mrb[0].mxu0
        %1293 = vmatprep.mubr.bf16.mxu0 0
        %1294 = vmatmul.mubr.bf16.gmra.mrb[0].mxu0 %v820
        %v1295 = vpop.f32.mrb[0].mxu0
        %v1296 = vadd.f32 0.0, %v1295
        %v1297 = vpop.f32.mrb[0].mxu0
        %v1298 = vpop.f32.mrb[0].mxu0
        %v1299 = vadd.f32 0.0, %v1298
        %v1300 = vpop.f32.mrb[0].mxu0
        %1301 = vmatprep.mubr.bf16.mxu0 0
        %1302 = vmatmul.mubr.bf16.gmra.mrb[0].mxu0 %v823
        %v1303 = vpop.f32.mrb[0].mxu0
        %v1304 = vadd.f32 0.0, %v1303
        %v1305 = vpop.f32.mrb[0].mxu0
        %v1306 = vpop.f32.mrb[0].mxu0
        %v1307 = vadd.f32 0.0, %v1306
        %v1308 = vpop.f32.mrb[0].mxu0
        %1309 = vmatprep.mubr.bf16.mxu0 0
        %1310 = vmatmul.mubr.bf16.gmra.mrb[0].mxu0 %v826
        %v1311 = vpop.f32.mrb[0].mxu0
        %v1312 = vadd.f32 0.0, %v1311
        %v1313 = vpop.f32.mrb[0].mxu0
        %v1314 = vpop.f32.mrb[0].mxu0
        %v1315 = vadd.f32 0.0, %v1314
        %v1316 = vpop.f32.mrb[0].mxu0
        %1317 = vmatprep.mubr.bf16.mxu0 0
        %1318 = vmatmul.mubr.bf16.gmra.mrb[0].mxu0 %v829
        %v1319 = vpop.f32.mrb[0].mxu0
        %v1320 = vadd.f32 0.0, %v1319
        %v1321 = vpop.f32.mrb[0].mxu0
        %v1322 = vpop.f32.mrb[0].mxu0
        %v1323 = vadd.f32 0.0, %v1322
        %v1324 = vpop.f32.mrb[0].mxu0
        %1325 = vmatprep.mubr.bf16.mxu0 0
        %1326 = vmatmul.mubr.bf16.gmra.mrb[0].mxu0 %v832
        %v1327 = vpop.f32.mrb[0].mxu0
        %v1328 = vadd.f32 0.0, %v1327
        %v1329 = vpop.f32.mrb[0].mxu0
        %v1330 = vpop.f32.mrb[0].mxu0
        %v1331 = vadd.f32 0.0, %v1330
        %v1332 = vpop.f32.mrb[0].mxu0
        %1333 = vmatprep.mubr.bf16.mxu0 0
        %1334 = vmatmul.mubr.bf16.gmra.mrb[0].mxu0 %v835
        %v1335 = vpop.f32.mrb[0].mxu0
        %v1336 = vadd.f32 0.0, %v1335
        %v1337 = vpop.f32.mrb[0].mxu0
        %v1338 = vpop.f32.mrb[0].mxu0
        %v1339 = vadd.f32 0.0, %v1338
        %v1340 = vpop.f32.mrb[0].mxu0
        %1341 = vmatprep.mubr.bf16.mxu0 0
        %1342 = vmatmul.mubr.bf16.gmra.mrb[0].mxu0 %v838
        %v1343 = vpop.f32.mrb[0].mxu0
        %v1344 = vadd.f32 0.0, %v1343
        %v1345 = vpop.f32.mrb[0].mxu0
        %v1346 = vpop.f32.mrb[0].mxu0
        %v1347 = vadd.f32 0.0, %v1346
        %v1348 = vpop.f32.mrb[0].mxu0
        %1349 = vmatprep.mubr.bf16.mxu0 0
        %1350 = vmatmul.mubr.bf16.gmra.mrb[0].mxu0 %v841
        %v1351 = vpop.f32.mrb[0].mxu0
        %v1352 = vadd.f32 0.0, %v1351
        %v1353 = vpop.f32.mrb[0].mxu0
        %v1354 = vpop.f32.mrb[0].mxu0
        %v1355 = vadd.f32 0.0, %v1354
        %v1356 = vpop.f32.mrb[0].mxu0
        %1357 = vmatprep.mubr.bf16.mxu0 0
        %1358 = vmatmul.mubr.bf16.gmra.mrb[0].mxu0 %v844
        %v1359 = vpop.f32.mrb[0].mxu0
        %v1360 = vadd.f32 0.0, %v1359
        %v1361 = vpop.f32.mrb[0].mxu0
        %v1362 = vpop.f32.mrb[0].mxu0
        %v1363 = vadd.f32 0.0, %v1362
        %v1364 = vpop.f32.mrb[0].mxu0
        %1365 = vmatprep.mubr.bf16.mxu0 0
        %1366 = vmatmul.mubr.bf16.gmra.mrb[0].mxu0 %v847
        %v1367 = vpop.f32.mrb[0].mxu0
        %v1368 = vadd.f32 0.0, %v1367
        %v1369 = vpop.f32.mrb[0].mxu0
        %v1370 = vpop.f32.mrb[0].mxu0
        %v1371 = vadd.f32 0.0, %v1370
        %v1372 = vpop.f32.mrb[0].mxu0
        %1373 = vmatprep.mubr.bf16.mxu0 0
        %1374 = vmatmul.mubr.bf16.gmra.mrb[0].mxu0 %v850
        %v1375 = vpop.f32.mrb[0].mxu0
        %v1376 = vadd.f32 0.0, %v1375
        %v1377 = vpop.f32.mrb[0].mxu0
        %v1378 = vpop.f32.mrb[0].mxu0
        %v1379 = vadd.f32 0.0, %v1378
        %v1380 = vpop.f32.mrb[0].mxu0
        %1381 = vmatprep.mubr.bf16.mxu0 0
        %1382 = vmatmul.mubr.bf16.gmra.mrb[0].mxu0 %v853
        %v1383 = vpop.f32.mrb[0].mxu0
        %v1384 = vadd.f32 0.0, %v1383
        %v1385 = vpop.f32.mrb[0].mxu0
        %v1386 = vpop.f32.mrb[0].mxu0
        %v1387 = vadd.f32 0.0, %v1386
        %v1388 = vpop.f32.mrb[0].mxu0
        %1389 = vmatprep.mubr.bf16.mxu0 0
        %1390 = vmatmul.mubr.bf16.gmra.mrb[0].mxu0 %v856
        %v1391 = vpop.f32.mrb[0].mxu0
        %v1392 = vadd.f32 0.0, %v1391
        %v1393 = vpop.f32.mrb[0].mxu0
        %v1394 = vpop.f32.mrb[0].mxu0
        %v1395 = vadd.f32 0.0, %v1394
        %v1396 = vpop.f32.mrb[0].mxu0
        %1397 = vmatprep.mubr.bf16.mxu0 0
        %1398 = vmatmul.mubr.bf16.gmra.mrb[0].mxu0 %v859
        %v1399 = vpop.f32.mrb[0].mxu0
        %v1400 = vadd.f32 0.0, %v1399
        %v1401 = vpop.f32.mrb[0].mxu0
        %v1402 = vpop.f32.mrb[0].mxu0
        %v1403 = vadd.f32 0.0, %v1402
        %v1404 = vpop.f32.mrb[0].mxu0
        %1405 = vdwg.mxu0
        %v1406 = vpack.c.bf16 %v899, %v896
        %v1407 = vpack.c.bf16 %v907, %v904
        %v1408 = vpack.c.bf16 %v915, %v912
        %v1409 = vpack.c.bf16 %v923, %v920
        %v1410 = vpack.c.bf16 %v931, %v928
        %v1411 = vpack.c.bf16 %v939, %v936
        %v1412 = vpack.c.bf16 %v947, %v944
        %v1413 = vpack.c.bf16 %v955, %v952
        %v1414 = vpack.c.bf16 %v963, %v960
        %v1415 = vpack.c.bf16 %v971, %v968
        %v1416 = vpack.c.bf16 %v979, %v976
        %v1417 = vpack.c.bf16 %v987, %v984
        %v1418 = vpack.c.bf16 %v995, %v992
        %v1419 = vpack.c.bf16 %v1003, %v1000
        %v1420 = vpack.c.bf16 %v1011, %v1008
        %v1421 = vpack.c.bf16 %v1019, %v1016
        %v1422 = vpack.c.bf16 %v1027, %v1024
        %v1423 = vpack.c.bf16 %v1035, %v1032
        %v1424 = vpack.c.bf16 %v1043, %v1040
        %v1425 = vpack.c.bf16 %v1051, %v1048
        %v1426 = vpack.c.bf16 %v1059, %v1056
        %v1427 = vpack.c.bf16 %v1067, %v1064
        %v1428 = vpack.c.bf16 %v1075, %v1072
        %v1429 = vpack.c.bf16 %v1083, %v1080
        %v1430 = vpack.c.bf16 %v1091, %v1088
        %v1431 = vpack.c.bf16 %v1099, %v1096
        %v1432 = vpack.c.bf16 %v1107, %v1104
        %v1433 = vpack.c.bf16 %v1115, %v1112
        %v1434 = vpack.c.bf16 %v1123, %v1120
        %v1435 = vpack.c.bf16 %v1131, %v1128
        %v1436 = vpack.c.bf16 %v1139, %v1136
        %v1437 = vpack.c.bf16 %v1147, %v1144
        %v1438 = vpack.c.bf16 %v1155, %v1152
        %v1439 = vpack.c.bf16 %v1163, %v1160
        %v1440 = vpack.c.bf16 %v1171, %v1168
        %v1441 = vpack.c.bf16 %v1179, %v1176
        %v1442 = vpack.c.bf16 %v1187, %v1184
        %v1443 = vpack.c.bf16 %v1195, %v1192
        %v1444 = vpack.c.bf16 %v1203, %v1200
        %v1445 = vpack.c.bf16 %v1211, %v1208
        %v1446 = vpack.c.bf16 %v1219, %v1216
        %v1447 = vpack.c.bf16 %v1227, %v1224
        %v1448 = vpack.c.bf16 %v1235, %v1232
        %v1449 = vpack.c.bf16 %v1243, %v1240
        %v1450 = vpack.c.bf16 %v1251, %v1248
        %v1451 = vpack.c.bf16 %v1259, %v1256
        %v1452 = vpack.c.bf16 %v1267, %v1264
        %v1453 = vpack.c.bf16 %v1275, %v1272
        %v1454 = vpack.c.bf16 %v1283, %v1280
        %v1455 = vpack.c.bf16 %v1291, %v1288
        %v1456 = vpack.c.bf16 %v1299, %v1296
        %v1457 = vpack.c.bf16 %v1307, %v1304
        %v1458 = vpack.c.bf16 %v1315, %v1312
        %v1459 = vpack.c.bf16 %v1323, %v1320
        %v1460 = vpack.c.bf16 %v1331, %v1328
        %v1461 = vpack.c.bf16 %v1339, %v1336
        %v1462 = vpack.c.bf16 %v1347, %v1344
        %v1463 = vpack.c.bf16 %v1355, %v1352
        %v1464 = vpack.c.bf16 %v1363, %v1360
        %v1465 = vpack.c.bf16 %v1371, %v1368
        %v1466 = vpack.c.bf16 %v1379, %v1376
        %v1467 = vpack.c.bf16 %v1387, %v1384
        %v1468 = vpack.c.bf16 %v1395, %v1392
        %v1469 = vpack.c.bf16 %v1403, %v1400
        %v1534 = vunpack.c.l.b16 %v1406
        %v1535 = vunpack.c.h.b16 %v1406
        %v1536 = vunpack.c.l.b16 %v1407
        %v1537 = vunpack.c.h.b16 %v1407
        %v1538 = vunpack.c.l.b16 %v1408
        %v1539 = vunpack.c.h.b16 %v1408
        %v1540 = vunpack.c.l.b16 %v1409
        %v1541 = vunpack.c.h.b16 %v1409
        %v1542 = vunpack.c.l.b16 %v1410
        %v1543 = vunpack.c.h.b16 %v1410
        %v1544 = vunpack.c.l.b16 %v1411
        %v1545 = vunpack.c.h.b16 %v1411
        %v1546 = vunpack.c.l.b16 %v1412
        %v1547 = vunpack.c.h.b16 %v1412
        %v1548 = vunpack.c.l.b16 %v1413
        %v1549 = vunpack.c.h.b16 %v1413
        %v1550 = vunpack.c.l.b16 %v1414
        %v1551 = vunpack.c.h.b16 %v1414
        %v1552 = vunpack.c.l.b16 %v1415
        %v1553 = vunpack.c.h.b16 %v1415
        %v1554 = vunpack.c.l.b16 %v1416
        %v1555 = vunpack.c.h.b16 %v1416
        %v1556 = vunpack.c.l.b16 %v1417
        %v1557 = vunpack.c.h.b16 %v1417
        %v1558 = vunpack.c.l.b16 %v1418
        %v1559 = vunpack.c.h.b16 %v1418
        %v1560 = vunpack.c.l.b16 %v1419
        %v1561 = vunpack.c.h.b16 %v1419
        %v1562 = vunpack.c.l.b16 %v1420
        %v1563 = vunpack.c.h.b16 %v1420
        %v1564 = vunpack.c.l.b16 %v1421
        %v1565 = vunpack.c.h.b16 %v1421
        %v1566 = vunpack.c.l.b16 %v1422
        %v1567 = vunpack.c.h.b16 %v1422
        %v1568 = vunpack.c.l.b16 %v1423
        %v1569 = vunpack.c.h.b16 %v1423
        %v1570 = vunpack.c.l.b16 %v1424
        %v1571 = vunpack.c.h.b16 %v1424
        %v1572 = vunpack.c.l.b16 %v1425
        %v1573 = vunpack.c.h.b16 %v1425
        %v1574 = vunpack.c.l.b16 %v1426
        %v1575 = vunpack.c.h.b16 %v1426
        %v1576 = vunpack.c.l.b16 %v1427
        %v1577 = vunpack.c.h.b16 %v1427
        %v1578 = vunpack.c.l.b16 %v1428
        %v1579 = vunpack.c.h.b16 %v1428
        %v1580 = vunpack.c.l.b16 %v1429
        %v1581 = vunpack.c.h.b16 %v1429
        %v1582 = vunpack.c.l.b16 %v1430
        %v1583 = vunpack.c.h.b16 %v1430
        %v1584 = vunpack.c.l.b16 %v1431
        %v1585 = vunpack.c.h.b16 %v1431
        %v1586 = vunpack.c.l.b16 %v1432
        %v1587 = vunpack.c.h.b16 %v1432
        %v1588 = vunpack.c.l.b16 %v1433
        %v1589 = vunpack.c.h.b16 %v1433
        %v1590 = vunpack.c.l.b16 %v1434
        %v1591 = vunpack.c.h.b16 %v1434
        %v1592 = vunpack.c.l.b16 %v1435
        %v1593 = vunpack.c.h.b16 %v1435
        %v1594 = vunpack.c.l.b16 %v1436
        %v1595 = vunpack.c.h.b16 %v1436
        %v1596 = vunpack.c.l.b16 %v1437
        %v1597 = vunpack.c.h.b16 %v1437
        %v1598 = vunpack.c.l.b16 %v1438
        %v1599 = vunpack.c.h.b16 %v1438
        %v1600 = vunpack.c.l.b16 %v1439
        %v1601 = vunpack.c.h.b16 %v1439
        %v1602 = vunpack.c.l.b16 %v1440
        %v1603 = vunpack.c.h.b16 %v1440
        %v1604 = vunpack.c.l.b16 %v1441
        %v1605 = vunpack.c.h.b16 %v1441
        %v1606 = vunpack.c.l.b16 %v1442
        %v1607 = vunpack.c.h.b16 %v1442
        %v1608 = vunpack.c.l.b16 %v1443
        %v1609 = vunpack.c.h.b16 %v1443
        %v1610 = vunpack.c.l.b16 %v1444
        %v1611 = vunpack.c.h.b16 %v1444
        %v1612 = vunpack.c.l.b16 %v1445
        %v1613 = vunpack.c.h.b16 %v1445
        %v1614 = vunpack.c.l.b16 %v1446
        %v1615 = vunpack.c.h.b16 %v1446
        %v1616 = vunpack.c.l.b16 %v1447
        %v1617 = vunpack.c.h.b16 %v1447
        %v1618 = vunpack.c.l.b16 %v1448
        %v1619 = vunpack.c.h.b16 %v1448
        %v1620 = vunpack.c.l.b16 %v1449
        %v1621 = vunpack.c.h.b16 %v1449
        %v1622 = vunpack.c.l.b16 %v1450
        %v1623 = vunpack.c.h.b16 %v1450
        %v1624 = vunpack.c.l.b16 %v1451
        %v1625 = vunpack.c.h.b16 %v1451
        %v1626 = vunpack.c.l.b16 %v1452
        %v1627 = vunpack.c.h.b16 %v1452
        %v1628 = vunpack.c.l.b16 %v1453
        %v1629 = vunpack.c.h.b16 %v1453
        %v1630 = vunpack.c.l.b16 %v1454
        %v1631 = vunpack.c.h.b16 %v1454
        %v1632 = vunpack.c.l.b16 %v1455
        %v1633 = vunpack.c.h.b16 %v1455
        %v1634 = vunpack.c.l.b16 %v1456
        %v1635 = vunpack.c.h.b16 %v1456
        %v1636 = vunpack.c.l.b16 %v1457
        %v1637 = vunpack.c.h.b16 %v1457
        %v1638 = vunpack.c.l.b16 %v1458
        %v1639 = vunpack.c.h.b16 %v1458
        %v1640 = vunpack.c.l.b16 %v1459
        %v1641 = vunpack.c.h.b16 %v1459
        %v1642 = vunpack.c.l.b16 %v1460
        %v1643 = vunpack.c.h.b16 %v1460
        %v1644 = vunpack.c.l.b16 %v1461
        %v1645 = vunpack.c.h.b16 %v1461
        %v1646 = vunpack.c.l.b16 %v1462
        %v1647 = vunpack.c.h.b16 %v1462
        %v1648 = vunpack.c.l.b16 %v1463
        %v1649 = vunpack.c.h.b16 %v1463
        %v1650 = vunpack.c.l.b16 %v1464
        %v1651 = vunpack.c.h.b16 %v1464
        %v1652 = vunpack.c.l.b16 %v1465
        %v1653 = vunpack.c.h.b16 %v1465
        %v1654 = vunpack.c.l.b16 %v1466
        %v1655 = vunpack.c.h.b16 %v1466
        %v1656 = vunpack.c.l.b16 %v1467
        %v1657 = vunpack.c.h.b16 %v1467
        %v1658 = vunpack.c.l.b16 %v1468
        %v1659 = vunpack.c.h.b16 %v1468
        %v1660 = vunpack.c.l.b16 %v1469
        %v1661 = vunpack.c.h.b16 %v1469
        %v1662 = vpack.c.b16 %v1534, %v1534
        %v1663 = vpack.c.b16 %v1535, %v1535
        %v1664 = vpack.c.b16 %v1536, %v1536
        %v1665 = vpack.c.b16 %v1537, %v1537
        %v1666 = vpack.c.b16 %v1538, %v1538
        %v1667 = vpack.c.b16 %v1539, %v1539
        %v1668 = vpack.c.b16 %v1540, %v1540
        %v1669 = vpack.c.b16 %v1541, %v1541
        %v1670 = vpack.c.b16 %v1542, %v1542
        %v1671 = vpack.c.b16 %v1543, %v1543
        %v1672 = vpack.c.b16 %v1544, %v1544
        %v1673 = vpack.c.b16 %v1545, %v1545
        %v1674 = vpack.c.b16 %v1546, %v1546
        %v1675 = vpack.c.b16 %v1547, %v1547
        %v1676 = vpack.c.b16 %v1548, %v1548
        %v1677 = vpack.c.b16 %v1549, %v1549
        %v1678 = vpack.c.b16 %v1550, %v1550
        %v1679 = vpack.c.b16 %v1551, %v1551
        %v1680 = vpack.c.b16 %v1552, %v1552
        %v1681 = vpack.c.b16 %v1553, %v1553
        %v1682 = vpack.c.b16 %v1554, %v1554
        %v1683 = vpack.c.b16 %v1555, %v1555
        %v1684 = vpack.c.b16 %v1556, %v1556
        %v1685 = vpack.c.b16 %v1557, %v1557
        %v1686 = vpack.c.b16 %v1558, %v1558
        %v1687 = vpack.c.b16 %v1559, %v1559
        %v1688 = vpack.c.b16 %v1560, %v1560
        %v1689 = vpack.c.b16 %v1561, %v1561
        %v1690 = vpack.c.b16 %v1562, %v1562
        %v1691 = vpack.c.b16 %v1563, %v1563
        %v1692 = vpack.c.b16 %v1564, %v1564
        %v1693 = vpack.c.b16 %v1565, %v1565
        %v1694 = vpack.c.b16 %v1566, %v1566
        %v1695 = vpack.c.b16 %v1567, %v1567
        %v1696 = vpack.c.b16 %v1568, %v1568
        %v1697 = vpack.c.b16 %v1569, %v1569
        %v1698 = vpack.c.b16 %v1570, %v1570
        %v1699 = vpack.c.b16 %v1571, %v1571
        %v1700 = vpack.c.b16 %v1572, %v1572
        %v1701 = vpack.c.b16 %v1573, %v1573
        %v1702 = vpack.c.b16 %v1574, %v1574
        %v1703 = vpack.c.b16 %v1575, %v1575
        %v1704 = vpack.c.b16 %v1576, %v1576
        %v1705 = vpack.c.b16 %v1577, %v1577
        %v1706 = vpack.c.b16 %v1578, %v1578
        %v1707 = vpack.c.b16 %v1579, %v1579
        %v1708 = vpack.c.b16 %v1580, %v1580
        %v1709 = vpack.c.b16 %v1581, %v1581
        %v1710 = vpack.c.b16 %v1582, %v1582
        %v1711 = vpack.c.b16 %v1583, %v1583
        %v1712 = vpack.c.b16 %v1584, %v1584
        %v1713 = vpack.c.b16 %v1585, %v1585
        %v1714 = vpack.c.b16 %v1586, %v1586
        %v1715 = vpack.c.b16 %v1587, %v1587
        %v1716 = vpack.c.b16 %v1588, %v1588
        %v1717 = vpack.c.b16 %v1589, %v1589
        %v1718 = vpack.c.b16 %v1590, %v1590
        %v1719 = vpack.c.b16 %v1591, %v1591
        %v1720 = vpack.c.b16 %v1592, %v1592
        %v1721 = vpack.c.b16 %v1593, %v1593
        %v1722 = vpack.c.b16 %v1594, %v1594
        %v1723 = vpack.c.b16 %v1595, %v1595
        %v1724 = vpack.c.b16 %v1596, %v1596
        %v1725 = vpack.c.b16 %v1597, %v1597
        %v1726 = vpack.c.b16 %v1598, %v1598
        %v1727 = vpack.c.b16 %v1599, %v1599
        %v1728 = vpack.c.b16 %v1600, %v1600
        %v1729 = vpack.c.b16 %v1601, %v1601
        %v1730 = vpack.c.b16 %v1602, %v1602
        %v1731 = vpack.c.b16 %v1603, %v1603
        %v1732 = vpack.c.b16 %v1604, %v1604
        %v1733 = vpack.c.b16 %v1605, %v1605
        %v1734 = vpack.c.b16 %v1606, %v1606
        %v1735 = vpack.c.b16 %v1607, %v1607
        %v1736 = vpack.c.b16 %v1608, %v1608
        %v1737 = vpack.c.b16 %v1609, %v1609
        %v1738 = vpack.c.b16 %v1610, %v1610
        %v1739 = vpack.c.b16 %v1611, %v1611
        %v1740 = vpack.c.b16 %v1612, %v1612
        %v1741 = vpack.c.b16 %v1613, %v1613
        %v1742 = vpack.c.b16 %v1614, %v1614
        %v1743 = vpack.c.b16 %v1615, %v1615
        %v1744 = vpack.c.b16 %v1616, %v1616
        %v1745 = vpack.c.b16 %v1617, %v1617
        %v1746 = vpack.c.b16 %v1618, %v1618
        %v1747 = vpack.c.b16 %v1619, %v1619
        %v1748 = vpack.c.b16 %v1620, %v1620
        %v1749 = vpack.c.b16 %v1621, %v1621
        %v1750 = vpack.c.b16 %v1622, %v1622
        %v1751 = vpack.c.b16 %v1623, %v1623
        %v1752 = vpack.c.b16 %v1624, %v1624
        %v1753 = vpack.c.b16 %v1625, %v1625
        %v1754 = vpack.c.b16 %v1626, %v1626
        %v1755 = vpack.c.b16 %v1627, %v1627
        %v1756 = vpack.c.b16 %v1628, %v1628
        %v1757 = vpack.c.b16 %v1629, %v1629
        %v1758 = vpack.c.b16 %v1630, %v1630
        %v1759 = vpack.c.b16 %v1631, %v1631
        %v1760 = vpack.c.b16 %v1632, %v1632
        %v1761 = vpack.c.b16 %v1633, %v1633
        %v1762 = vpack.c.b16 %v1634, %v1634
        %v1763 = vpack.c.b16 %v1635, %v1635
        %v1764 = vpack.c.b16 %v1636, %v1636
        %v1765 = vpack.c.b16 %v1637, %v1637
        %v1766 = vpack.c.b16 %v1638, %v1638
        %v1767 = vpack.c.b16 %v1639, %v1639
        %v1768 = vpack.c.b16 %v1640, %v1640
        %v1769 = vpack.c.b16 %v1641, %v1641
        %v1770 = vpack.c.b16 %v1642, %v1642
        %v1771 = vpack.c.b16 %v1643, %v1643
        %v1772 = vpack.c.b16 %v1644, %v1644
        %v1773 = vpack.c.b16 %v1645, %v1645
        %v1774 = vpack.c.b16 %v1646, %v1646
        %v1775 = vpack.c.b16 %v1647, %v1647
        %v1776 = vpack.c.b16 %v1648, %v1648
        %v1777 = vpack.c.b16 %v1649, %v1649
        %v1778 = vpack.c.b16 %v1650, %v1650
        %v1779 = vpack.c.b16 %v1651, %v1651
        %v1780 = vpack.c.b16 %v1652, %v1652
        %v1781 = vpack.c.b16 %v1653, %v1653
        %v1782 = vpack.c.b16 %v1654, %v1654
        %v1783 = vpack.c.b16 %v1655, %v1655
        %v1784 = vpack.c.b16 %v1656, %v1656
        %v1785 = vpack.c.b16 %v1657, %v1657
        %v1786 = vpack.c.b16 %v1658, %v1658
        %v1787 = vpack.c.b16 %v1659, %v1659
        %v1788 = vpack.c.b16 %v1660, %v1660
        %v1789 = vpack.c.b16 %v1661, %v1661
        %vm1918 = vcmask 125952
        %1919 = vst.msk [vmem:[%s209] sm:$0xf] %vm1918, %v1662
        %1920 = vst.msk [vmem:[%s209 + $0x4] sm:$0xf] %vm1918, %v1663
        %1921 = vst.msk [vmem:[%s209 + $0x8] sm:$0xf] %vm1918, %v1664
        %1922 = vst.msk [vmem:[%s209 + $0xc] sm:$0xf] %vm1918, %v1665
        %1923 = vst.msk [vmem:[%s209 + $0x10] sm:$0xf] %vm1918, %v1666
        %1924 = vst.msk [vmem:[%s209 + $0x14] sm:$0xf] %vm1918, %v1667
        %1925 = vst.msk [vmem:[%s209 + $0x18] sm:$0xf] %vm1918, %v1668
        %1926 = vst.msk [vmem:[%s209 + $0x1c] sm:$0xf] %vm1918, %v1669
        %1927 = vst.msk [vmem:[%s209 + $0x20] sm:$0xf] %vm1918, %v1670
        %1928 = vst.msk [vmem:[%s209 + $0x24] sm:$0xf] %vm1918, %v1671
        %1929 = vst.msk [vmem:[%s209 + $0x28] sm:$0xf] %vm1918, %v1672
        %1930 = vst.msk [vmem:[%s209 + $0x2c] sm:$0xf] %vm1918, %v1673
        %1931 = vst.msk [vmem:[%s209 + $0x30] sm:$0xf] %vm1918, %v1674
        %1932 = vst.msk [vmem:[%s209 + $0x34] sm:$0xf] %vm1918, %v1675
        %1933 = vst.msk [vmem:[%s209 + $0x38] sm:$0xf] %vm1918, %v1676
        %1934 = vst.msk [vmem:[%s209 + $0x3c] sm:$0xf] %vm1918, %v1677
        %1935 = vst.msk [vmem:[%s209 + $0x40] sm:$0xf] %vm1918, %v1678
        %1936 = vst.msk [vmem:[%s209 + $0x44] sm:$0xf] %vm1918, %v1679
        %1937 = vst.msk [vmem:[%s209 + $0x48] sm:$0xf] %vm1918, %v1680
        %1938 = vst.msk [vmem:[%s209 + $0x4c] sm:$0xf] %vm1918, %v1681
        %1939 = vst.msk [vmem:[%s209 + $0x50] sm:$0xf] %vm1918, %v1682
        %1940 = vst.msk [vmem:[%s209 + $0x54] sm:$0xf] %vm1918, %v1683
        %1941 = vst.msk [vmem:[%s209 + $0x58] sm:$0xf] %vm1918, %v1684
        %1942 = vst.msk [vmem:[%s209 + $0x5c] sm:$0xf] %vm1918, %v1685
        %1943 = vst.msk [vmem:[%s209 + $0x60] sm:$0xf] %vm1918, %v1686
        %1944 = vst.msk [vmem:[%s209 + $0x64] sm:$0xf] %vm1918, %v1687
        %1945 = vst.msk [vmem:[%s209 + $0x68] sm:$0xf] %vm1918, %v1688
        %1946 = vst.msk [vmem:[%s209 + $0x6c] sm:$0xf] %vm1918, %v1689
        %1947 = vst.msk [vmem:[%s209 + $0x70] sm:$0xf] %vm1918, %v1690
        %1948 = vst.msk [vmem:[%s209 + $0x74] sm:$0xf] %vm1918, %v1691
        %1949 = vst.msk [vmem:[%s209 + $0x78] sm:$0xf] %vm1918, %v1692
        %1950 = vst.msk [vmem:[%s209 + $0x7c] sm:$0xf] %vm1918, %v1693
        %1951 = vst.msk [vmem:[%s209 + $0x80] sm:$0xf] %vm1918, %v1694
        %1952 = vst.msk [vmem:[%s209 + $0x84] sm:$0xf] %vm1918, %v1695
        %1953 = vst.msk [vmem:[%s209 + $0x88] sm:$0xf] %vm1918, %v1696
        %1954 = vst.msk [vmem:[%s209 + $0x8c] sm:$0xf] %vm1918, %v1697
        %1955 = vst.msk [vmem:[%s209 + $0x90] sm:$0xf] %vm1918, %v1698
        %1956 = vst.msk [vmem:[%s209 + $0x94] sm:$0xf] %vm1918, %v1699
        %1957 = vst.msk [vmem:[%s209 + $0x98] sm:$0xf] %vm1918, %v1700
        %1958 = vst.msk [vmem:[%s209 + $0x9c] sm:$0xf] %vm1918, %v1701
        %1959 = vst.msk [vmem:[%s209 + $0xa0] sm:$0xf] %vm1918, %v1702
        %1960 = vst.msk [vmem:[%s209 + $0xa4] sm:$0xf] %vm1918, %v1703
        %1961 = vst.msk [vmem:[%s209 + $0xa8] sm:$0xf] %vm1918, %v1704
        %1962 = vst.msk [vmem:[%s209 + $0xac] sm:$0xf] %vm1918, %v1705
        %1963 = vst.msk [vmem:[%s209 + $0xb0] sm:$0xf] %vm1918, %v1706
        %1964 = vst.msk [vmem:[%s209 + $0xb4] sm:$0xf] %vm1918, %v1707
        %1965 = vst.msk [vmem:[%s209 + $0xb8] sm:$0xf] %vm1918, %v1708
        %1966 = vst.msk [vmem:[%s209 + $0xbc] sm:$0xf] %vm1918, %v1709
        %1967 = vst.msk [vmem:[%s209 + $0xc0] sm:$0xf] %vm1918, %v1710
        %1968 = vst.msk [vmem:[%s209 + $0xc4] sm:$0xf] %vm1918, %v1711
        %1969 = vst.msk [vmem:[%s209 + $0xc8] sm:$0xf] %vm1918, %v1712
        %1970 = vst.msk [vmem:[%s209 + $0xcc] sm:$0xf] %vm1918, %v1713
        %1971 = vst.msk [vmem:[%s209 + $0xd0] sm:$0xf] %vm1918, %v1714
        %1972 = vst.msk [vmem:[%s209 + $0xd4] sm:$0xf] %vm1918, %v1715
        %1973 = vst.msk [vmem:[%s209 + $0xd8] sm:$0xf] %vm1918, %v1716
        %1974 = vst.msk [vmem:[%s209 + $0xdc] sm:$0xf] %vm1918, %v1717
        %1975 = vst.msk [vmem:[%s209 + $0xe0] sm:$0xf] %vm1918, %v1718
        %1976 = vst.msk [vmem:[%s209 + $0xe4] sm:$0xf] %vm1918, %v1719
        %1977 = vst.msk [vmem:[%s209 + $0xe8] sm:$0xf] %vm1918, %v1720
        %1978 = vst.msk [vmem:[%s209 + $0xec] sm:$0xf] %vm1918, %v1721
        %1979 = vst.msk [vmem:[%s209 + $0xf0] sm:$0xf] %vm1918, %v1722
        %1980 = vst.msk [vmem:[%s209 + $0xf4] sm:$0xf] %vm1918, %v1723
        %1981 = vst.msk [vmem:[%s209 + $0xf8] sm:$0xf] %vm1918, %v1724
        %1982 = vst.msk [vmem:[%s209 + $0xfc] sm:$0xf] %vm1918, %v1725
        %1983 = vst.msk [vmem:[%s209 + $0x100] sm:$0xf] %vm1918, %v1726
        %1984 = vst.msk [vmem:[%s209 + $0x104] sm:$0xf] %vm1918, %v1727
        %1985 = vst.msk [vmem:[%s209 + $0x108] sm:$0xf] %vm1918, %v1728
        %1986 = vst.msk [vmem:[%s209 + $0x10c] sm:$0xf] %vm1918, %v1729
        %1987 = vst.msk [vmem:[%s209 + $0x110] sm:$0xf] %vm1918, %v1730
        %1988 = vst.msk [vmem:[%s209 + $0x114] sm:$0xf] %vm1918, %v1731
        %1989 = vst.msk [vmem:[%s209 + $0x118] sm:$0xf] %vm1918, %v1732
        %1990 = vst.msk [vmem:[%s209 + $0x11c] sm:$0xf] %vm1918, %v1733
        %1991 = vst.msk [vmem:[%s209 + $0x120] sm:$0xf] %vm1918, %v1734
        %1992 = vst.msk [vmem:[%s209 + $0x124] sm:$0xf] %vm1918, %v1735
        %1993 = vst.msk [vmem:[%s209 + $0x128] sm:$0xf] %vm1918, %v1736
        %1994 = vst.msk [vmem:[%s209 + $0x12c] sm:$0xf] %vm1918, %v1737
        %1995 = vst.msk [vmem:[%s209 + $0x130] sm:$0xf] %vm1918, %v1738
        %1996 = vst.msk [vmem:[%s209 + $0x134] sm:$0xf] %vm1918, %v1739
        %1997 = vst.msk [vmem:[%s209 + $0x138] sm:$0xf] %vm1918, %v1740
        %1998 = vst.msk [vmem:[%s209 + $0x13c] sm:$0xf] %vm1918, %v1741
        %1999 = vst.msk [vmem:[%s209 + $0x140] sm:$0xf] %vm1918, %v1742
        %2000 = vst.msk [vmem:[%s209 + $0x144] sm:$0xf] %vm1918, %v1743
        %2001 = vst.msk [vmem:[%s209 + $0x148] sm:$0xf] %vm1918, %v1744
        %2002 = vst.msk [vmem:[%s209 + $0x14c] sm:$0xf] %vm1918, %v1745
        %2003 = vst.msk [vmem:[%s209 + $0x150] sm:$0xf] %vm1918, %v1746
        %2004 = vst.msk [vmem:[%s209 + $0x154] sm:$0xf] %vm1918, %v1747
        %2005 = vst.msk [vmem:[%s209 + $0x158] sm:$0xf] %vm1918, %v1748
        %2006 = vst.msk [vmem:[%s209 + $0x15c] sm:$0xf] %vm1918, %v1749
        %2007 = vst.msk [vmem:[%s209 + $0x160] sm:$0xf] %vm1918, %v1750
        %2008 = vst.msk [vmem:[%s209 + $0x164] sm:$0xf] %vm1918, %v1751
        %2009 = vst.msk [vmem:[%s209 + $0x168] sm:$0xf] %vm1918, %v1752
        %2010 = vst.msk [vmem:[%s209 + $0x16c] sm:$0xf] %vm1918, %v1753
        %2011 = vst.msk [vmem:[%s209 + $0x170] sm:$0xf] %vm1918, %v1754
        %2012 = vst.msk [vmem:[%s209 + $0x174] sm:$0xf] %vm1918, %v1755
        %2013 = vst.msk [vmem:[%s209 + $0x178] sm:$0xf] %vm1918, %v1756
        %2014 = vst.msk [vmem:[%s209 + $0x17c] sm:$0xf] %vm1918, %v1757
        %2015 = vst.msk [vmem:[%s209 + $0x180] sm:$0xf] %vm1918, %v1758
        %2016 = vst.msk [vmem:[%s209 + $0x184] sm:$0xf] %vm1918, %v1759
        %2017 = vst.msk [vmem:[%s209 + $0x188] sm:$0xf] %vm1918, %v1760
        %2018 = vst.msk [vmem:[%s209 + $0x18c] sm:$0xf] %vm1918, %v1761
        %2019 = vst.msk [vmem:[%s209 + $0x190] sm:$0xf] %vm1918, %v1762
        %2020 = vst.msk [vmem:[%s209 + $0x194] sm:$0xf] %vm1918, %v1763
        %2021 = vst.msk [vmem:[%s209 + $0x198] sm:$0xf] %vm1918, %v1764
        %2022 = vst.msk [vmem:[%s209 + $0x19c] sm:$0xf] %vm1918, %v1765
        %2023 = vst.msk [vmem:[%s209 + $0x1a0] sm:$0xf] %vm1918, %v1766
        %2024 = vst.msk [vmem:[%s209 + $0x1a4] sm:$0xf] %vm1918, %v1767
        %2025 = vst.msk [vmem:[%s209 + $0x1a8] sm:$0xf] %vm1918, %v1768
        %2026 = vst.msk [vmem:[%s209 + $0x1ac] sm:$0xf] %vm1918, %v1769
        %2027 = vst.msk [vmem:[%s209 + $0x1b0] sm:$0xf] %vm1918, %v1770
        %2028 = vst.msk [vmem:[%s209 + $0x1b4] sm:$0xf] %vm1918, %v1771
        %2029 = vst.msk [vmem:[%s209 + $0x1b8] sm:$0xf] %vm1918, %v1772
        %2030 = vst.msk [vmem:[%s209 + $0x1bc] sm:$0xf] %vm1918, %v1773
        %2031 = vst.msk [vmem:[%s209 + $0x1c0] sm:$0xf] %vm1918, %v1774
        %2032 = vst.msk [vmem:[%s209 + $0x1c4] sm:$0xf] %vm1918, %v1775
        %2033 = vst.msk [vmem:[%s209 + $0x1c8] sm:$0xf] %vm1918, %v1776
        %2034 = vst.msk [vmem:[%s209 + $0x1cc] sm:$0xf] %vm1918, %v1777
        %2035 = vst.msk [vmem:[%s209 + $0x1d0] sm:$0xf] %vm1918, %v1778
        %2036 = vst.msk [vmem:[%s209 + $0x1d4] sm:$0xf] %vm1918, %v1779
        %2037 = vst.msk [vmem:[%s209 + $0x1d8] sm:$0xf] %vm1918, %v1780
        %2038 = vst.msk [vmem:[%s209 + $0x1dc] sm:$0xf] %vm1918, %v1781
        %2039 = vst.msk [vmem:[%s209 + $0x1e0] sm:$0xf] %vm1918, %v1782
        %2040 = vst.msk [vmem:[%s209 + $0x1e4] sm:$0xf] %vm1918, %v1783
        %2041 = vst.msk [vmem:[%s209 + $0x1e8] sm:$0xf] %vm1918, %v1784
        %2042 = vst.msk [vmem:[%s209 + $0x1ec] sm:$0xf] %vm1918, %v1785
        %2043 = vst.msk [vmem:[%s209 + $0x1f0] sm:$0xf] %vm1918, %v1786
        %2044 = vst.msk [vmem:[%s209 + $0x1f4] sm:$0xf] %vm1918, %v1787
        %2045 = vst.msk [vmem:[%s209 + $0x1f8] sm:$0xf] %vm1918, %v1788
        %2046 = vst.msk [vmem:[%s209 + $0x1fc] sm:$0xf] %vm1918, %v1789
        %2047 = vmatprep.subr.mxu0 0.0
        %2048 = vmatpush1.msra.mxu0 %v896
        %2049 = vmatprep.subr.mxu0 0.0
        %2050 = vmatpush1.msra.mxu0 %v899
        %2051 = vmatprep.subr.mxu0 0.0
        %2052 = vmatpush1.msra.mxu0 %v904
        %2053 = vmatprep.subr.mxu0 0.0
        %2054 = vmatpush1.msra.mxu0 %v907
        %2055 = vmatprep.subr.mxu0 0.0
        %2056 = vmatpush1.msra.mxu0 %v912
        %2057 = vmatprep.subr.mxu0 0.0
        %2058 = vmatpush1.msra.mxu0 %v915
        %2059 = vmatprep.subr.mxu0 0.0
        %2060 = vmatpush1.msra.mxu0 %v920
        %2061 = vmatprep.subr.mxu0 0.0
        %2062 = vmatpush1.msra.mxu0 %v923
        %2063 = vmatprep.subr.mxu0 0.0
        %2064 = vmatpush1.msra.mxu0 %v928
        %2065 = vmatprep.subr.mxu0 0.0
        %2066 = vmatpush1.msra.mxu0 %v931
        %2067 = vmatprep.subr.mxu0 0.0
        %2068 = vmatpush1.msra.mxu0 %v936
        %2069 = vmatprep.subr.mxu0 0.0
        %2070 = vmatpush1.msra.mxu0 %v939
        %2071 = vmatprep.subr.mxu0 0.0
        %2072 = vmatpush1.msra.mxu0 %v944
        %2073 = vmatprep.subr.mxu0 0.0
        %2074 = vmatpush1.msra.mxu0 %v947
        %2075 = vmatprep.subr.mxu0 0.0
        %2076 = vmatpush1.msra.mxu0 %v952
        %2077 = vmatprep.subr.mxu0 0.0
        %2078 = vmatpush1.msra.mxu0 %v955
        %2079 = vmatprep.subr.mxu0 0.0
        %2080 = vmatpush1.msra.mxu0 %v960
        %2081 = vmatprep.subr.mxu0 0.0
        %2082 = vmatpush1.msra.mxu0 %v963
        %2083 = vmatprep.subr.mxu0 0.0
        %2084 = vmatpush1.msra.mxu0 %v968
        %2085 = vmatprep.subr.mxu0 0.0
        %2086 = vmatpush1.msra.mxu0 %v971
        %2087 = vmatprep.subr.mxu0 0.0
        %2088 = vmatpush1.msra.mxu0 %v976
        %2089 = vmatprep.subr.mxu0 0.0
        %2090 = vmatpush1.msra.mxu0 %v979
        %2091 = vmatprep.subr.mxu0 0.0
        %2092 = vmatpush1.msra.mxu0 %v984
        %2093 = vmatprep.subr.mxu0 0.0
        %2094 = vmatpush1.msra.mxu0 %v987
        %2095 = vmatprep.subr.mxu0 0.0
        %2096 = vmatpush1.msra.mxu0 %v992
        %2097 = vmatprep.subr.mxu0 0.0
        %2098 = vmatpush1.msra.mxu0 %v995
        %2099 = vmatprep.subr.mxu0 0.0
        %2100 = vmatpush1.msra.mxu0 %v1000
        %2101 = vmatprep.subr.mxu0 0.0
        %2102 = vmatpush1.msra.mxu0 %v1003
        %2103 = vmatprep.subr.mxu0 0.0
        %2104 = vmatpush1.msra.mxu0 %v1008
        %2105 = vmatprep.subr.mxu0 0.0
        %2106 = vmatpush1.msra.mxu0 %v1011
        %2107 = vmatprep.subr.mxu0 0.0
        %2108 = vmatpush1.msra.mxu0 %v1016
        %2109 = vmatprep.subr.mxu0 0.0
        %2110 = vmatpush1.msra.mxu0 %v1019
        %2111 = vmatprep.mubr.f32.mxu0 1.0
        %2112 = vmatmul.mubr.f32.gmra.mrb[0].mxu0 1.0
        %v2113 = vpop.f32.mrb[0].mxu0
        %v2114 = vadd.f32 0.0, %v2113
        %v2115 = vpop.f32.mrb[0].mxu0
        %2116 = vdwg.mxu0
        %2117 = vmatprep.subr.mxu0 0.0
        %2118 = vmatpush1.msra.mxu0 %v1024
        %2119 = vmatprep.subr.mxu0 0.0
        %2120 = vmatpush1.msra.mxu0 %v1027
        %2121 = vmatprep.subr.mxu0 0.0
        %2122 = vmatpush1.msra.mxu0 %v1032
        %2123 = vmatprep.subr.mxu0 0.0
        %2124 = vmatpush1.msra.mxu0 %v1035
        %2125 = vmatprep.subr.mxu0 0.0
        %2126 = vmatpush1.msra.mxu0 %v1040
        %2127 = vmatprep.subr.mxu0 0.0
        %2128 = vmatpush1.msra.mxu0 %v1043
        %2129 = vmatprep.subr.mxu0 0.0
        %2130 = vmatpush1.msra.mxu0 %v1048
        %2131 = vmatprep.subr.mxu0 0.0
        %2132 = vmatpush1.msra.mxu0 %v1051
        %2133 = vmatprep.subr.mxu0 0.0
        %2134 = vmatpush1.msra.mxu0 %v1056
        %2135 = vmatprep.subr.mxu0 0.0
        %2136 = vmatpush1.msra.mxu0 %v1059
        %2137 = vmatprep.subr.mxu0 0.0
        %2138 = vmatpush1.msra.mxu0 %v1064
        %2139 = vmatprep.subr.mxu0 0.0
        %2140 = vmatpush1.msra.mxu0 %v1067
        %2141 = vmatprep.subr.mxu0 0.0
        %2142 = vmatpush1.msra.mxu0 %v1072
        %2143 = vmatprep.subr.mxu0 0.0
        %2144 = vmatpush1.msra.mxu0 %v1075
        %2145 = vmatprep.subr.mxu0 0.0
        %2146 = vmatpush1.msra.mxu0 %v1080
        %2147 = vmatprep.subr.mxu0 0.0
        %2148 = vmatpush1.msra.mxu0 %v1083
        %2149 = vmatprep.subr.mxu0 0.0
        %2150 = vmatpush1.msra.mxu0 %v1088
        %2151 = vmatprep.subr.mxu0 0.0
        %2152 = vmatpush1.msra.mxu0 %v1091
        %2153 = vmatprep.subr.mxu0 0.0
        %2154 = vmatpush1.msra.mxu0 %v1096
        %2155 = vmatprep.subr.mxu0 0.0
        %2156 = vmatpush1.msra.mxu0 %v1099
        %2157 = vmatprep.subr.mxu0 0.0
        %2158 = vmatpush1.msra.mxu0 %v1104
        %2159 = vmatprep.subr.mxu0 0.0
        %2160 = vmatpush1.msra.mxu0 %v1107
        %2161 = vmatprep.subr.mxu0 0.0
        %2162 = vmatpush1.msra.mxu0 %v1112
        %2163 = vmatprep.subr.mxu0 0.0
        %2164 = vmatpush1.msra.mxu0 %v1115
        %2165 = vmatprep.subr.mxu0 0.0
        %2166 = vmatpush1.msra.mxu0 %v1120
        %2167 = vmatprep.subr.mxu0 0.0
        %2168 = vmatpush1.msra.mxu0 %v1123
        %2169 = vmatprep.subr.mxu0 0.0
        %2170 = vmatpush1.msra.mxu0 %v1128
        %2171 = vmatprep.subr.mxu0 0.0
        %2172 = vmatpush1.msra.mxu0 %v1131
        %2173 = vmatprep.subr.mxu0 0.0
        %2174 = vmatpush1.msra.mxu0 %v1136
        %2175 = vmatprep.subr.mxu0 0.0
        %2176 = vmatpush1.msra.mxu0 %v1139
        %2177 = vmatprep.subr.mxu0 0.0
        %2178 = vmatpush1.msra.mxu0 %v1144
        %2179 = vmatprep.subr.mxu0 0.0
        %2180 = vmatpush1.msra.mxu0 %v1147
        %2181 = vmatprep.mubr.f32.mxu0 1.0
        %2182 = vmatmul.mubr.f32.gmra.mrb[0].mxu0 1.0
        %v2183 = vpop.f32.mrb[0].mxu0
        %v2184 = vadd.f32 %v2114, %v2183
        %v2185 = vpop.f32.mrb[0].mxu0
        %2186 = vdwg.mxu0
        %2187 = vmatprep.subr.mxu0 0.0
        %2188 = vmatpush1.msra.mxu0 %v1152
        %2189 = vmatprep.subr.mxu0 0.0
        %2190 = vmatpush1.msra.mxu0 %v1155
        %2191 = vmatprep.subr.mxu0 0.0
        %2192 = vmatpush1.msra.mxu0 %v1160
        %2193 = vmatprep.subr.mxu0 0.0
        %2194 = vmatpush1.msra.mxu0 %v1163
        %2195 = vmatprep.subr.mxu0 0.0
        %2196 = vmatpush1.msra.mxu0 %v1168
        %2197 = vmatprep.subr.mxu0 0.0
        %2198 = vmatpush1.msra.mxu0 %v1171
        %2199 = vmatprep.subr.mxu0 0.0
        %2200 = vmatpush1.msra.mxu0 %v1176
        %2201 = vmatprep.subr.mxu0 0.0
        %2202 = vmatpush1.msra.mxu0 %v1179
        %2203 = vmatprep.subr.mxu0 0.0
        %2204 = vmatpush1.msra.mxu0 %v1184
        %2205 = vmatprep.subr.mxu0 0.0
        %2206 = vmatpush1.msra.mxu0 %v1187
        %2207 = vmatprep.subr.mxu0 0.0
        %2208 = vmatpush1.msra.mxu0 %v1192
        %2209 = vmatprep.subr.mxu0 0.0
        %2210 = vmatpush1.msra.mxu0 %v1195
        %2211 = vmatprep.subr.mxu0 0.0
        %2212 = vmatpush1.msra.mxu0 %v1200
        %2213 = vmatprep.subr.mxu0 0.0
        %2214 = vmatpush1.msra.mxu0 %v1203
        %2215 = vmatprep.subr.mxu0 0.0
        %2216 = vmatpush1.msra.mxu0 %v1208
        %2217 = vmatprep.subr.mxu0 0.0
        %2218 = vmatpush1.msra.mxu0 %v1211
        %2219 = vmatprep.subr.mxu0 0.0
        %2220 = vmatpush1.msra.mxu0 %v1216
        %2221 = vmatprep.subr.mxu0 0.0
        %2222 = vmatpush1.msra.mxu0 %v1219
        %2223 = vmatprep.subr.mxu0 0.0
        %2224 = vmatpush1.msra.mxu0 %v1224
        %2225 = vmatprep.subr.mxu0 0.0
        %2226 = vmatpush1.msra.mxu0 %v1227
        %2227 = vmatprep.subr.mxu0 0.0
        %2228 = vmatpush1.msra.mxu0 %v1232
        %2229 = vmatprep.subr.mxu0 0.0
        %2230 = vmatpush1.msra.mxu0 %v1235
        %2231 = vmatprep.subr.mxu0 0.0
        %2232 = vmatpush1.msra.mxu0 %v1240
        %2233 = vmatprep.subr.mxu0 0.0
        %2234 = vmatpush1.msra.mxu0 %v1243
        %2235 = vmatprep.subr.mxu0 0.0
        %2236 = vmatpush1.msra.mxu0 %v1248
        %2237 = vmatprep.subr.mxu0 0.0
        %2238 = vmatpush1.msra.mxu0 %v1251
        %2239 = vmatprep.subr.mxu0 0.0
        %2240 = vmatpush1.msra.mxu0 %v1256
        %2241 = vmatprep.subr.mxu0 0.0
        %2242 = vmatpush1.msra.mxu0 %v1259
        %2243 = vmatprep.subr.mxu0 0.0
        %2244 = vmatpush1.msra.mxu0 %v1264
        %2245 = vmatprep.subr.mxu0 0.0
        %2246 = vmatpush1.msra.mxu0 %v1267
        %2247 = vmatprep.subr.mxu0 0.0
        %2248 = vmatpush1.msra.mxu0 %v1272
        %2249 = vmatprep.subr.mxu0 0.0
        %2250 = vmatpush1.msra.mxu0 %v1275
        %2251 = vmatprep.mubr.f32.mxu0 1.0
        %2252 = vmatmul.mubr.f32.gmra.mrb[0].mxu0 1.0
        %v2253 = vpop.f32.mrb[0].mxu0
        %v2254 = vadd.f32 %v2184, %v2253
        %v2255 = vpop.f32.mrb[0].mxu0
        %2256 = vdwg.mxu0
        %2257 = vmatprep.subr.mxu0 0.0
        %2258 = vmatpush1.msra.mxu0 %v1280
        %2259 = vmatprep.subr.mxu0 0.0
        %2260 = vmatpush1.msra.mxu0 %v1283
        %2261 = vmatprep.subr.mxu0 0.0
        %2262 = vmatpush1.msra.mxu0 %v1288
        %2263 = vmatprep.subr.mxu0 0.0
        %2264 = vmatpush1.msra.mxu0 %v1291
        %2265 = vmatprep.subr.mxu0 0.0
        %2266 = vmatpush1.msra.mxu0 %v1296
        %2267 = vmatprep.subr.mxu0 0.0
        %2268 = vmatpush1.msra.mxu0 %v1299
        %2269 = vmatprep.subr.mxu0 0.0
        %2270 = vmatpush1.msra.mxu0 %v1304
        %2271 = vmatprep.subr.mxu0 0.0
        %2272 = vmatpush1.msra.mxu0 %v1307
        %2273 = vmatprep.subr.mxu0 0.0
        %2274 = vmatpush1.msra.mxu0 %v1312
        %2275 = vmatprep.subr.mxu0 0.0
        %2276 = vmatpush1.msra.mxu0 %v1315
        %2277 = vmatprep.subr.mxu0 0.0
        %2278 = vmatpush1.msra.mxu0 %v1320
        %2279 = vmatprep.subr.mxu0 0.0
        %2280 = vmatpush1.msra.mxu0 %v1323
        %2281 = vmatprep.subr.mxu0 0.0
        %2282 = vmatpush1.msra.mxu0 %v1328
        %2283 = vmatprep.subr.mxu0 0.0
        %2284 = vmatpush1.msra.mxu0 %v1331
        %2285 = vmatprep.subr.mxu0 0.0
        %2286 = vmatpush1.msra.mxu0 %v1336
        %2287 = vmatprep.subr.mxu0 0.0
        %2288 = vmatpush1.msra.mxu0 %v1339
        %2289 = vmatprep.subr.mxu0 0.0
        %2290 = vmatpush1.msra.mxu0 %v1344
        %2291 = vmatprep.subr.mxu0 0.0
        %2292 = vmatpush1.msra.mxu0 %v1347
        %2293 = vmatprep.subr.mxu0 0.0
        %2294 = vmatpush1.msra.mxu0 %v1352
        %2295 = vmatprep.subr.mxu0 0.0
        %2296 = vmatpush1.msra.mxu0 %v1355
        %2297 = vmatprep.subr.mxu0 0.0
        %2298 = vmatpush1.msra.mxu0 %v1360
        %2299 = vmatprep.subr.mxu0 0.0
        %2300 = vmatpush1.msra.mxu0 %v1363
        %2301 = vmatprep.subr.mxu0 0.0
        %2302 = vmatpush1.msra.mxu0 %v1368
        %2303 = vmatprep.subr.mxu0 0.0
        %2304 = vmatpush1.msra.mxu0 %v1371
        %2305 = vmatprep.subr.mxu0 0.0
        %2306 = vmatpush1.msra.mxu0 %v1376
        %2307 = vmatprep.subr.mxu0 0.0
        %2308 = vmatpush1.msra.mxu0 %v1379
        %2309 = vmatprep.subr.mxu0 0.0
        %2310 = vmatpush1.msra.mxu0 %v1384
        %2311 = vmatprep.subr.mxu0 0.0
        %2312 = vmatpush1.msra.mxu0 %v1387
        %2313 = vmatprep.subr.mxu0 0.0
        %2314 = vmatpush1.msra.mxu0 %v1392
        %2315 = vmatprep.subr.mxu0 0.0
        %2316 = vmatpush1.msra.mxu0 %v1395
        %2317 = vmatprep.subr.mxu0 0.0
        %2318 = vmatpush1.msra.mxu0 %v1400
        %2319 = vmatprep.subr.mxu0 0.0
        %2320 = vmatpush1.msra.mxu0 %v1403
        %2321 = vmatprep.mubr.f32.mxu0 1.0
        %2322 = vmatmul.mubr.f32.gmra.mrb[0].mxu0 1.0
        %v2323 = vpop.f32.mrb[0].mxu0
        %v2324 = vadd.f32 %v2254, %v2323
        %v2325 = vpop.f32.mrb[0].mxu0
        %2326 = vdwg.mxu0
        %v2327 = vmul.f32 %v896, %v896
        %v2328 = vmul.f32 %v899, %v899
        %v2329 = vmul.f32 %v904, %v904
        %v2330 = vmul.f32 %v907, %v907
        %v2331 = vmul.f32 %v912, %v912
        %v2332 = vmul.f32 %v915, %v915
        %v2333 = vmul.f32 %v920, %v920
        %v2334 = vmul.f32 %v923, %v923
        %v2335 = vmul.f32 %v928, %v928
        %v2336 = vmul.f32 %v931, %v931
        %v2337 = vmul.f32 %v936, %v936
        %v2338 = vmul.f32 %v939, %v939
        %v2339 = vmul.f32 %v944, %v944
        %v2340 = vmul.f32 %v947, %v947
        %v2341 = vmul.f32 %v952, %v952
        %v2342 = vmul.f32 %v955, %v955
        %v2343 = vmul.f32 %v960, %v960
        %v2344 = vmul.f32 %v963, %v963
        %v2345 = vmul.f32 %v968, %v968
        %v2346 = vmul.f32 %v971, %v971
        %v2347 = vmul.f32 %v976, %v976
        %v2348 = vmul.f32 %v979, %v979
        %v2349 = vmul.f32 %v984, %v984
        %v2350 = vmul.f32 %v987, %v987
        %v2351 = vmul.f32 %v992, %v992
        %v2352 = vmul.f32 %v995, %v995
        %v2353 = vmul.f32 %v1000, %v1000
        %v2354 = vmul.f32 %v1003, %v1003
        %v2355 = vmul.f32 %v1008, %v1008
        %v2356 = vmul.f32 %v1011, %v1011
        %v2357 = vmul.f32 %v1016, %v1016
        %v2358 = vmul.f32 %v1019, %v1019
        %v2359 = vmul.f32 %v1024, %v1024
        %v2360 = vmul.f32 %v1027, %v1027
        %v2361 = vmul.f32 %v1032, %v1032
        %v2362 = vmul.f32 %v1035, %v1035
        %v2363 = vmul.f32 %v1040, %v1040
        %v2364 = vmul.f32 %v1043, %v1043
        %v2365 = vmul.f32 %v1048, %v1048
        %v2366 = vmul.f32 %v1051, %v1051
        %v2367 = vmul.f32 %v1056, %v1056
        %v2368 = vmul.f32 %v1059, %v1059
        %v2369 = vmul.f32 %v1064, %v1064
        %v2370 = vmul.f32 %v1067, %v1067
        %v2371 = vmul.f32 %v1072, %v1072
        %v2372 = vmul.f32 %v1075, %v1075
        %v2373 = vmul.f32 %v1080, %v1080
        %v2374 = vmul.f32 %v1083, %v1083
        %v2375 = vmul.f32 %v1088, %v1088
        %v2376 = vmul.f32 %v1091, %v1091
        %v2377 = vmul.f32 %v1096, %v1096
        %v2378 = vmul.f32 %v1099, %v1099
        %v2379 = vmul.f32 %v1104, %v1104
        %v2380 = vmul.f32 %v1107, %v1107
        %v2381 = vmul.f32 %v1112, %v1112
        %v2382 = vmul.f32 %v1115, %v1115
        %v2383 = vmul.f32 %v1120, %v1120
        %v2384 = vmul.f32 %v1123, %v1123
        %v2385 = vmul.f32 %v1128, %v1128
        %v2386 = vmul.f32 %v1131, %v1131
        %v2387 = vmul.f32 %v1136, %v1136
        %v2388 = vmul.f32 %v1139, %v1139
        %v2389 = vmul.f32 %v1144, %v1144
        %v2390 = vmul.f32 %v1147, %v1147
        %v2391 = vmul.f32 %v1152, %v1152
        %v2392 = vmul.f32 %v1155, %v1155
        %v2393 = vmul.f32 %v1160, %v1160
        %v2394 = vmul.f32 %v1163, %v1163
        %v2395 = vmul.f32 %v1168, %v1168
        %v2396 = vmul.f32 %v1171, %v1171
        %v2397 = vmul.f32 %v1176, %v1176
        %v2398 = vmul.f32 %v1179, %v1179
        %v2399 = vmul.f32 %v1184, %v1184
        %v2400 = vmul.f32 %v1187, %v1187
        %v2401 = vmul.f32 %v1192, %v1192
        %v2402 = vmul.f32 %v1195, %v1195
        %v2403 = vmul.f32 %v1200, %v1200
        %v2404 = vmul.f32 %v1203, %v1203
        %v2405 = vmul.f32 %v1208, %v1208
        %v2406 = vmul.f32 %v1211, %v1211
        %v2407 = vmul.f32 %v1216, %v1216
        %v2408 = vmul.f32 %v1219, %v1219
        %v2409 = vmul.f32 %v1224, %v1224
        %v2410 = vmul.f32 %v1227, %v1227
        %v2411 = vmul.f32 %v1232, %v1232
        %v2412 = vmul.f32 %v1235, %v1235
        %v2413 = vmul.f32 %v1240, %v1240
        %v2414 = vmul.f32 %v1243, %v1243
        %v2415 = vmul.f32 %v1248, %v1248
        %v2416 = vmul.f32 %v1251, %v1251
        %v2417 = vmul.f32 %v1256, %v1256
        %v2418 = vmul.f32 %v1259, %v1259
        %v2419 = vmul.f32 %v1264, %v1264
        %v2420 = vmul.f32 %v1267, %v1267
        %v2421 = vmul.f32 %v1272, %v1272
        %v2422 = vmul.f32 %v1275, %v1275
        %v2423 = vmul.f32 %v1280, %v1280
        %v2424 = vmul.f32 %v1283, %v1283
        %v2425 = vmul.f32 %v1288, %v1288
        %v2426 = vmul.f32 %v1291, %v1291
        %v2427 = vmul.f32 %v1296, %v1296
        %v2428 = vmul.f32 %v1299, %v1299
        %v2429 = vmul.f32 %v1304, %v1304
        %v2430 = vmul.f32 %v1307, %v1307
        %v2431 = vmul.f32 %v1312, %v1312
        %v2432 = vmul.f32 %v1315, %v1315
        %v2433 = vmul.f32 %v1320, %v1320
        %v2434 = vmul.f32 %v1323, %v1323
        %v2435 = vmul.f32 %v1328, %v1328
        %v2436 = vmul.f32 %v1331, %v1331
        %v2437 = vmul.f32 %v1336, %v1336
        %v2438 = vmul.f32 %v1339, %v1339
        %v2439 = vmul.f32 %v1344, %v1344
        %v2440 = vmul.f32 %v1347, %v1347
        %v2441 = vmul.f32 %v1352, %v1352
        %v2442 = vmul.f32 %v1355, %v1355
        %v2443 = vmul.f32 %v1360, %v1360
        %v2444 = vmul.f32 %v1363, %v1363
        %v2445 = vmul.f32 %v1368, %v1368
        %v2446 = vmul.f32 %v1371, %v1371
        %v2447 = vmul.f32 %v1376, %v1376
        %v2448 = vmul.f32 %v1379, %v1379
        %v2449 = vmul.f32 %v1384, %v1384
        %v2450 = vmul.f32 %v1387, %v1387
        %v2451 = vmul.f32 %v1392, %v1392
        %v2452 = vmul.f32 %v1395, %v1395
        %v2453 = vmul.f32 %v1400, %v1400
        %v2454 = vmul.f32 %v1403, %v1403
        %2455 = vmatprep.subr.mxu0 0.0
        %2456 = vmatpush1.msra.mxu0 %v2327
        %2457 = vmatprep.subr.mxu0 0.0
        %2458 = vmatpush1.msra.mxu0 %v2328
        %2459 = vmatprep.subr.mxu0 0.0
        %2460 = vmatpush1.msra.mxu0 %v2329
        %2461 = vmatprep.subr.mxu0 0.0
        %2462 = vmatpush1.msra.mxu0 %v2330
        %2463 = vmatprep.subr.mxu0 0.0
        %2464 = vmatpush1.msra.mxu0 %v2331
        %2465 = vmatprep.subr.mxu0 0.0
        %2466 = vmatpush1.msra.mxu0 %v2332
        %2467 = vmatprep.subr.mxu0 0.0
        %2468 = vmatpush1.msra.mxu0 %v2333
        %2469 = vmatprep.subr.mxu0 0.0
        %2470 = vmatpush1.msra.mxu0 %v2334
        %2471 = vmatprep.subr.mxu0 0.0
        %2472 = vmatpush1.msra.mxu0 %v2335
        %2473 = vmatprep.subr.mxu0 0.0
        %2474 = vmatpush1.msra.mxu0 %v2336
        %2475 = vmatprep.subr.mxu0 0.0
        %2476 = vmatpush1.msra.mxu0 %v2337
        %2477 = vmatprep.subr.mxu0 0.0
        %2478 = vmatpush1.msra.mxu0 %v2338
        %2479 = vmatprep.subr.mxu0 0.0
        %2480 = vmatpush1.msra.mxu0 %v2339
        %2481 = vmatprep.subr.mxu0 0.0
        %2482 = vmatpush1.msra.mxu0 %v2340
        %2483 = vmatprep.subr.mxu0 0.0
        %2484 = vmatpush1.msra.mxu0 %v2341
        %2485 = vmatprep.subr.mxu0 0.0
        %2486 = vmatpush1.msra.mxu0 %v2342
        %2487 = vmatprep.subr.mxu0 0.0
        %2488 = vmatpush1.msra.mxu0 %v2343
        %2489 = vmatprep.subr.mxu0 0.0
        %2490 = vmatpush1.msra.mxu0 %v2344
        %2491 = vmatprep.subr.mxu0 0.0
        %2492 = vmatpush1.msra.mxu0 %v2345
        %2493 = vmatprep.subr.mxu0 0.0
        %2494 = vmatpush1.msra.mxu0 %v2346
        %2495 = vmatprep.subr.mxu0 0.0
        %2496 = vmatpush1.msra.mxu0 %v2347
        %2497 = vmatprep.subr.mxu0 0.0
        %2498 = vmatpush1.msra.mxu0 %v2348
        %2499 = vmatprep.subr.mxu0 0.0
        %2500 = vmatpush1.msra.mxu0 %v2349
        %2501 = vmatprep.subr.mxu0 0.0
        %2502 = vmatpush1.msra.mxu0 %v2350
        %2503 = vmatprep.subr.mxu0 0.0
        %2504 = vmatpush1.msra.mxu0 %v2351
        %2505 = vmatprep.subr.mxu0 0.0
        %2506 = vmatpush1.msra.mxu0 %v2352
        %2507 = vmatprep.subr.mxu0 0.0
        %2508 = vmatpush1.msra.mxu0 %v2353
        %2509 = vmatprep.subr.mxu0 0.0
        %2510 = vmatpush1.msra.mxu0 %v2354
        %2511 = vmatprep.subr.mxu0 0.0
        %2512 = vmatpush1.msra.mxu0 %v2355
        %2513 = vmatprep.subr.mxu0 0.0
        %2514 = vmatpush1.msra.mxu0 %v2356
        %2515 = vmatprep.subr.mxu0 0.0
        %2516 = vmatpush1.msra.mxu0 %v2357
        %2517 = vmatprep.subr.mxu0 0.0
        %2518 = vmatpush1.msra.mxu0 %v2358
        %2519 = vmatprep.mubr.f32.mxu0 1.0
        %2520 = vmatmul.mubr.f32.gmra.mrb[0].mxu0 1.0
        %v2521 = vpop.f32.mrb[0].mxu0
        %v2522 = vadd.f32 0.0, %v2521
        %v2523 = vpop.f32.mrb[0].mxu0
        %2524 = vdwg.mxu0
        %2525 = vmatprep.subr.mxu0 0.0
        %2526 = vmatpush1.msra.mxu0 %v2359
        %2527 = vmatprep.subr.mxu0 0.0
        %2528 = vmatpush1.msra.mxu0 %v2360
        %2529 = vmatprep.subr.mxu0 0.0
        %2530 = vmatpush1.msra.mxu0 %v2361
        %2531 = vmatprep.subr.mxu0 0.0
        %2532 = vmatpush1.msra.mxu0 %v2362
        %2533 = vmatprep.subr.mxu0 0.0
        %2534 = vmatpush1.msra.mxu0 %v2363
        %2535 = vmatprep.subr.mxu0 0.0
        %2536 = vmatpush1.msra.mxu0 %v2364
        %2537 = vmatprep.subr.mxu0 0.0
        %2538 = vmatpush1.msra.mxu0 %v2365
        %2539 = vmatprep.subr.mxu0 0.0
        %2540 = vmatpush1.msra.mxu0 %v2366
        %2541 = vmatprep.subr.mxu0 0.0
        %2542 = vmatpush1.msra.mxu0 %v2367
        %2543 = vmatprep.subr.mxu0 0.0
        %2544 = vmatpush1.msra.mxu0 %v2368
        %2545 = vmatprep.subr.mxu0 0.0
        %2546 = vmatpush1.msra.mxu0 %v2369
        %2547 = vmatprep.subr.mxu0 0.0
        %2548 = vmatpush1.msra.mxu0 %v2370
        %2549 = vmatprep.subr.mxu0 0.0
        %2550 = vmatpush1.msra.mxu0 %v2371
        %2551 = vmatprep.subr.mxu0 0.0
        %2552 = vmatpush1.msra.mxu0 %v2372
        %2553 = vmatprep.subr.mxu0 0.0
        %2554 = vmatpush1.msra.mxu0 %v2373
        %2555 = vmatprep.subr.mxu0 0.0
        %2556 = vmatpush1.msra.mxu0 %v2374
        %2557 = vmatprep.subr.mxu0 0.0
        %2558 = vmatpush1.msra.mxu0 %v2375
        %2559 = vmatprep.subr.mxu0 0.0
        %2560 = vmatpush1.msra.mxu0 %v2376
        %2561 = vmatprep.subr.mxu0 0.0
        %2562 = vmatpush1.msra.mxu0 %v2377
        %2563 = vmatprep.subr.mxu0 0.0
        %2564 = vmatpush1.msra.mxu0 %v2378
        %2565 = vmatprep.subr.mxu0 0.0
        %2566 = vmatpush1.msra.mxu0 %v2379
        %2567 = vmatprep.subr.mxu0 0.0
        %2568 = vmatpush1.msra.mxu0 %v2380
        %2569 = vmatprep.subr.mxu0 0.0
        %2570 = vmatpush1.msra.mxu0 %v2381
        %2571 = vmatprep.subr.mxu0 0.0
        %2572 = vmatpush1.msra.mxu0 %v2382
        %2573 = vmatprep.subr.mxu0 0.0
        %2574 = vmatpush1.msra.mxu0 %v2383
        %2575 = vmatprep.subr.mxu0 0.0
        %2576 = vmatpush1.msra.mxu0 %v2384
        %2577 = vmatprep.subr.mxu0 0.0
        %2578 = vmatpush1.msra.mxu0 %v2385
        %2579 = vmatprep.subr.mxu0 0.0
        %2580 = vmatpush1.msra.mxu0 %v2386
        %2581 = vmatprep.subr.mxu0 0.0
        %2582 = vmatpush1.msra.mxu0 %v2387
        %2583 = vmatprep.subr.mxu0 0.0
        %2584 = vmatpush1.msra.mxu0 %v2388
        %2585 = vmatprep.subr.mxu0 0.0
        %2586 = vmatpush1.msra.mxu0 %v2389
        %2587 = vmatprep.subr.mxu0 0.0
        %2588 = vmatpush1.msra.mxu0 %v2390
        %2589 = vmatprep.mubr.f32.mxu0 1.0
        %2590 = vmatmul.mubr.f32.gmra.mrb[0].mxu0 1.0
        %v2591 = vpop.f32.mrb[0].mxu0
        %v2592 = vadd.f32 %v2522, %v2591
        %v2593 = vpop.f32.mrb[0].mxu0
        %2594 = vdwg.mxu0
        %2595 = vmatprep.subr.mxu0 0.0
        %2596 = vmatpush1.msra.mxu0 %v2391
        %2597 = vmatprep.subr.mxu0 0.0
        %2598 = vmatpush1.msra.mxu0 %v2392
        %2599 = vmatprep.subr.mxu0 0.0
        %2600 = vmatpush1.msra.mxu0 %v2393
        %2601 = vmatprep.subr.mxu0 0.0
        %2602 = vmatpush1.msra.mxu0 %v2394
        %2603 = vmatprep.subr.mxu0 0.0
        %2604 = vmatpush1.msra.mxu0 %v2395
        %2605 = vmatprep.subr.mxu0 0.0
        %2606 = vmatpush1.msra.mxu0 %v2396
        %2607 = vmatprep.subr.mxu0 0.0
        %2608 = vmatpush1.msra.mxu0 %v2397
        %2609 = vmatprep.subr.mxu0 0.0
        %2610 = vmatpush1.msra.mxu0 %v2398
        %2611 = vmatprep.subr.mxu0 0.0
        %2612 = vmatpush1.msra.mxu0 %v2399
        %2613 = vmatprep.subr.mxu0 0.0
        %2614 = vmatpush1.msra.mxu0 %v2400
        %2615 = vmatprep.subr.mxu0 0.0
        %2616 = vmatpush1.msra.mxu0 %v2401
        %2617 = vmatprep.subr.mxu0 0.0
        %2618 = vmatpush1.msra.mxu0 %v2402
        %2619 = vmatprep.subr.mxu0 0.0
        %2620 = vmatpush1.msra.mxu0 %v2403
        %2621 = vmatprep.subr.mxu0 0.0
        %2622 = vmatpush1.msra.mxu0 %v2404
        %2623 = vmatprep.subr.mxu0 0.0
        %2624 = vmatpush1.msra.mxu0 %v2405
        %2625 = vmatprep.subr.mxu0 0.0
        %2626 = vmatpush1.msra.mxu0 %v2406
        %2627 = vmatprep.subr.mxu0 0.0
        %2628 = vmatpush1.msra.mxu0 %v2407
        %2629 = vmatprep.subr.mxu0 0.0
        %2630 = vmatpush1.msra.mxu0 %v2408
        %2631 = vmatprep.subr.mxu0 0.0
        %2632 = vmatpush1.msra.mxu0 %v2409
        %2633 = vmatprep.subr.mxu0 0.0
        %2634 = vmatpush1.msra.mxu0 %v2410
        %2635 = vmatprep.subr.mxu0 0.0
        %2636 = vmatpush1.msra.mxu0 %v2411
        %2637 = vmatprep.subr.mxu0 0.0
        %2638 = vmatpush1.msra.mxu0 %v2412
        %2639 = vmatprep.subr.mxu0 0.0
        %2640 = vmatpush1.msra.mxu0 %v2413
        %2641 = vmatprep.subr.mxu0 0.0
        %2642 = vmatpush1.msra.mxu0 %v2414
        %2643 = vmatprep.subr.mxu0 0.0
        %2644 = vmatpush1.msra.mxu0 %v2415
        %2645 = vmatprep.subr.mxu0 0.0
        %2646 = vmatpush1.msra.mxu0 %v2416
        %2647 = vmatprep.subr.mxu0 0.0
        %2648 = vmatpush1.msra.mxu0 %v2417
        %2649 = vmatprep.subr.mxu0 0.0
        %2650 = vmatpush1.msra.mxu0 %v2418
        %2651 = vmatprep.subr.mxu0 0.0
        %2652 = vmatpush1.msra.mxu0 %v2419
        %2653 = vmatprep.subr.mxu0 0.0
        %2654 = vmatpush1.msra.mxu0 %v2420
        %2655 = vmatprep.subr.mxu0 0.0
        %2656 = vmatpush1.msra.mxu0 %v2421
        %2657 = vmatprep.subr.mxu0 0.0
        %2658 = vmatpush1.msra.mxu0 %v2422
        %2659 = vmatprep.mubr.f32.mxu0 1.0
        %2660 = vmatmul.mubr.f32.gmra.mrb[0].mxu0 1.0
        %v2661 = vpop.f32.mrb[0].mxu0
        %v2662 = vadd.f32 %v2592, %v2661
        %v2663 = vpop.f32.mrb[0].mxu0
        %2664 = vdwg.mxu0
        %2665 = vmatprep.subr.mxu0 0.0
        %2666 = vmatpush1.msra.mxu0 %v2423
        %2667 = vmatprep.subr.mxu0 0.0
        %2668 = vmatpush1.msra.mxu0 %v2424
        %2669 = vmatprep.subr.mxu0 0.0
        %2670 = vmatpush1.msra.mxu0 %v2425
        %2671 = vmatprep.subr.mxu0 0.0
        %2672 = vmatpush1.msra.mxu0 %v2426
        %2673 = vmatprep.subr.mxu0 0.0
        %2674 = vmatpush1.msra.mxu0 %v2427
        %2675 = vmatprep.subr.mxu0 0.0
        %2676 = vmatpush1.msra.mxu0 %v2428
        %2677 = vmatprep.subr.mxu0 0.0
        %2678 = vmatpush1.msra.mxu0 %v2429
        %2679 = vmatprep.subr.mxu0 0.0
        %2680 = vmatpush1.msra.mxu0 %v2430
        %2681 = vmatprep.subr.mxu0 0.0
        %2682 = vmatpush1.msra.mxu0 %v2431
        %2683 = vmatprep.subr.mxu0 0.0
        %2684 = vmatpush1.msra.mxu0 %v2432
        %2685 = vmatprep.subr.mxu0 0.0
        %2686 = vmatpush1.msra.mxu0 %v2433
        %2687 = vmatprep.subr.mxu0 0.0
        %2688 = vmatpush1.msra.mxu0 %v2434
        %2689 = vmatprep.subr.mxu0 0.0
        %2690 = vmatpush1.msra.mxu0 %v2435
        %2691 = vmatprep.subr.mxu0 0.0
        %2692 = vmatpush1.msra.mxu0 %v2436
        %2693 = vmatprep.subr.mxu0 0.0
        %2694 = vmatpush1.msra.mxu0 %v2437
        %2695 = vmatprep.subr.mxu0 0.0
        %2696 = vmatpush1.msra.mxu0 %v2438
        %2697 = vmatprep.subr.mxu0 0.0
        %2698 = vmatpush1.msra.mxu0 %v2439
        %2699 = vmatprep.subr.mxu0 0.0
        %2700 = vmatpush1.msra.mxu0 %v2440
        %2701 = vmatprep.subr.mxu0 0.0
        %2702 = vmatpush1.msra.mxu0 %v2441
        %2703 = vmatprep.subr.mxu0 0.0
        %2704 = vmatpush1.msra.mxu0 %v2442
        %2705 = vmatprep.subr.mxu0 0.0
        %2706 = vmatpush1.msra.mxu0 %v2443
        %2707 = vmatprep.subr.mxu0 0.0
        %2708 = vmatpush1.msra.mxu0 %v2444
        %2709 = vmatprep.subr.mxu0 0.0
        %2710 = vmatpush1.msra.mxu0 %v2445
        %2711 = vmatprep.subr.mxu0 0.0
        %2712 = vmatpush1.msra.mxu0 %v2446
        %2713 = vmatprep.subr.mxu0 0.0
        %2714 = vmatpush1.msra.mxu0 %v2447
        %2715 = vmatprep.subr.mxu0 0.0
        %2716 = vmatpush1.msra.mxu0 %v2448
        %2717 = vmatprep.subr.mxu0 0.0
        %2718 = vmatpush1.msra.mxu0 %v2449
        %2719 = vmatprep.subr.mxu0 0.0
        %2720 = vmatpush1.msra.mxu0 %v2450
        %2721 = vmatprep.subr.mxu0 0.0
        %2722 = vmatpush1.msra.mxu0 %v2451
        %2723 = vmatprep.subr.mxu0 0.0
        %2724 = vmatpush1.msra.mxu0 %v2452
        %2725 = vmatprep.subr.mxu0 0.0
        %2726 = vmatpush1.msra.mxu0 %v2453
        %2727 = vmatprep.subr.mxu0 0.0
        %2728 = vmatpush1.msra.mxu0 %v2454
        %2729 = vmatprep.mubr.f32.mxu0 1.0
        %2730 = vmatmul.mubr.f32.gmra.mrb[0].mxu0 1.0
        %v2731 = vpop.f32.mrb[0].mxu0
        %v2732 = vadd.f32 %v2662, %v2731
        %v2733 = vpop.f32.mrb[0].mxu0
        %2734 = vdwg.mxu0
        %p2735 = scmp.eq.s32.totalorder %s17, 0
        // Predicated region
        $region33: #{discriminator_forward.6} parent=27 // pred_check
          %p2736 = pneg %p2735
        $region34: #{discriminator_forward.6} parent=27 // pred_check_branch
          %2738 = sbr.rel (%p2736) target = $region36
        $region35: #{discriminator_forward.6} parent=27 // pred_region
          %2739 = vst.msk [vmem:[%s3] sm:$0xff] %vm668, 0.0
          %2740 = vst.msk [vmem:[%s4] sm:$0xff] %vm668, 0.0
        $region36: #{discriminator_forward.6} parent=27 // pred_fallthru
          _
        %v2741 = vld [vmem:[%s3] sm:$0xff]
        %v2742 = vadd.f32 %v2741, %v2324
        %2743 = vst.msk [vmem:[%s3] sm:$0xff] %vm668, %v2742
        %v2744 = vld [vmem:[%s4] sm:$0xff]
        %v2745 = vadd.f32 %v2744, %v2732
        %2746 = vst.msk [vmem:[%s4] sm:$0xff] %vm668, %v2745
        %s2747 = smul.u32 128, %s17
        %p2748 = scmp.lt.s32.totalorder %s2747, 255
        %s2749 = scalar_select %p2748, %s2747, 255
        %s2750 = smul.addr %s2749, 4
        %s2751 = scalar_lea.vmem %s2, %s2750
        // Predicated region
        $region37: #{discriminator_forward.6} parent=27 // pred_check
          %p2752 = pneg %p82
        $region38: #{discriminator_forward.6} parent=27 // pred_check_branch
          %2754 = sbr.rel (%p2752) target = $region40
        $region39: #{discriminator_forward.6} parent=27 // pred_region
          %s2755 = smul.u32 128, %s17
        $region40: #{discriminator_forward.6} parent=27 // pred_fallthru
          _
        // Predicated region
        $region41: #{discriminator_forward.6} parent=27 // pred_check
          %p2756 = pneg %p103
        $region42: #{discriminator_forward.6} parent=27 // pred_check_branch
          %2758 = sbr.rel (%p2756) target = $region44
        $region43: #{discriminator_forward.6} parent=27 // pred_region
          _
        $region44: #{discriminator_forward.6} parent=27 // pred_fallthru
          _
        // Predicated region
        $region45: #{discriminator_forward.6} parent=27 // pred_check
          %p2759 = pneg %p124
        $region46: #{discriminator_forward.6} parent=27 // pred_check_branch
          %2761 = sbr.rel (%p2759) target = $region48
        $region47: #{discriminator_forward.6} parent=27 // pred_region
          _
        $region48: #{discriminator_forward.6} parent=27 // pred_fallthru
          _
        // Predicated region
        $region49: #{discriminator_forward.6} parent=27 // pred_check
          %p2762 = pneg %p103
        $region50: #{discriminator_forward.6} parent=27 // pred_check_branch
          %2764 = sbr.rel (%p2762) target = $region52
        $region51: #{discriminator_forward.6} parent=27 // pred_region
          _
        $region52: #{discriminator_forward.6} parent=27 // pred_fallthru
          _
        // Predicated region
        $region53: #{discriminator_forward.6} parent=27 // pred_check
          %p2765 = pneg %p124
        $region54: #{discriminator_forward.6} parent=27 // pred_check_branch
          %2767 = sbr.rel (%p2765) target = $region56
        $region55: #{discriminator_forward.6} parent=27 // pred_region
          _
        $region56: #{discriminator_forward.6} parent=27 // pred_fallthru
          _
      $region28: #{discriminator_forward.6} parent=5 // pred_fallthru
        _
      %p2768 = scmp.le.s32.totalorder 2, %s12
      // Predicated region
      $region57: #{discriminator_forward.6} parent=5 // pred_check
        %p2769 = pneg %p2768
      $region58: #{discriminator_forward.6} parent=5 // pred_check_branch
        %2771 = sbr.rel (%p2769) target = $region60
      $region59: #{discriminator_forward.6} parent=5 // pred_region
        %s2772 = ssub.s32 %s12, 2
        // Predicated region
        $region61: #{discriminator_forward.6} parent=59 // pred_check
          %p2773 = pneg %p88
        $region62: #{discriminator_forward.6} parent=59 // pred_check_branch
          %2775 = sbr.rel (%p2773) target = $region64
        $region63: #{discriminator_forward.6} parent=59 // pred_region
          %s2776 = smul.u32 128, %s18
          %p2777 = scmp.lt.s32.totalorder %s2776, 255
          %s2778 = scalar_select %p2777, %s2776, 255
          %s2779 = smul.addr %s2778, 4
          %s2780 = scalar_lea.vmem %s2, %s2779
        $region64: #{discriminator_forward.6} parent=59 // pred_fallthru
          _
      $region60: #{discriminator_forward.6} parent=5 // pred_fallthru
        _
    $region6: #{discriminator_forward.6} parent=1 // loop_footer
      %s16 = sadd.s32 1, %s12
    $region7: #{discriminator_forward.6} parent=1 // loop_footer_branch
      %11 = sbr.rel target = $region3
    $region8: #{discriminator_forward.6} parent=1 // loop_exit
      _
    %2781 = vsyncpa [#allocation3], 1
    %s2782 = scalar_lea.sflag [#allocation3], 1
    %2783 = vsyncpa %s2782, 1

// kernel: discriminator_forward.8
$region0: #{discriminator_forward.8}
  #allocation0 [shape = 'u32[]', space=smem, size = 0x4, offset = 0x4, fixed_abs, tag = 'smem constant byte address 0x4 - core index']
  #allocation1 [shape = 'u32[144,128]{1,0:T(1,128)}', space=vmem, size = 0x12000, scoped, tag = 'internal scratch']
  %s0 = inlined_call_operand.vmem [shape: bf16[512,256], index: 0, kind: input, shape index: {}]
  %s1 = inlined_call_operand.vmem [shape: bf16[256,32], index: 1, kind: input, shape index: {}]
  %s2 = inlined_call_operand.vmem [shape: f32[1,32], index: 2, kind: input, shape index: {}]
  %s3 = inlined_call_operand.vmem [shape: f32[1,32], index: 3, kind: input, shape index: {}]
  %s4 = inlined_call_operand.vmem [shape: bf16[512,32], index: 4, kind: output, shape index: {}]
  %s5 = sld [smem:[#allocation0]]
  $region26: #{discriminator_forward.8} parent=0
    _
  %s7 = ssub.s32 1, %s5
  %s8 = scalar_select 0, %s7, %s5
  // Predicated region
  $region2: #{discriminator_forward.8} parent=0 // pred_check
    _
  $region3: #{discriminator_forward.8} parent=0 // pred_check_branch
    %10 = sbr.rel (0) target = $region5
  $region4: #{discriminator_forward.8} parent=0 // pred_region
    _
  $region5: #{discriminator_forward.8} parent=0 // pred_fallthru
    _
  // Predicated region
  $region6: #{discriminator_forward.8} parent=0 // pred_check
    _
  $region7: #{discriminator_forward.8} parent=0 // pred_check_branch
    %12 = sbr.rel (0) target = $region9
  $region8: #{discriminator_forward.8} parent=0 // pred_region
    _
  $region9: #{discriminator_forward.8} parent=0 // pred_fallthru
    _
  // Predicated region
  $region10: #{discriminator_forward.8} parent=0 // pred_check
    _
  $region11: #{discriminator_forward.8} parent=0 // pred_check_branch
    %14 = sbr.rel (0) target = $region13
  $region12: #{discriminator_forward.8} parent=0 // pred_region
    _
  $region13: #{discriminator_forward.8} parent=0 // pred_fallthru
    _
  // Predicated region
  $region14: #{discriminator_forward.8} parent=0 // pred_check
    _
  $region15: #{discriminator_forward.8} parent=0 // pred_check_branch
    %16 = sbr.rel (0) target = $region17
  $region16: #{discriminator_forward.8} parent=0 // pred_region
    _
  $region17: #{discriminator_forward.8} parent=0 // pred_fallthru
    _
  %v18 = vld [vmem:[%s0] sm:$0xff]
  %v19 = vld [vmem:[%s0 + $0x8] sm:$0xff]
  %v20 = vld [vmem:[%s0 + $0x10] sm:$0xff]
  %v21 = vld [vmem:[%s0 + $0x18] sm:$0xff]
  %v22 = vld [vmem:[%s0 + $0x20] sm:$0xff]
  %v23 = vld [vmem:[%s0 + $0x28] sm:$0xff]
  %v24 = vld [vmem:[%s0 + $0x30] sm:$0xff]
  %v25 = vld [vmem:[%s0 + $0x38] sm:$0xff]
  %v26 = vld [vmem:[%s0 + $0x40] sm:$0xff]
  %v27 = vld [vmem:[%s0 + $0x48] sm:$0xff]
  %v28 = vld [vmem:[%s0 + $0x50] sm:$0xff]
  %v29 = vld [vmem:[%s0 + $0x58] sm:$0xff]
  %v30 = vld [vmem:[%s0 + $0x60] sm:$0xff]
  %v31 = vld [vmem:[%s0 + $0x68] sm:$0xff]
  %v32 = vld [vmem:[%s0 + $0x70] sm:$0xff]
  %v33 = vld [vmem:[%s0 + $0x78] sm:$0xff]
  %v34 = vld [vmem:[%s0 + $0x80] sm:$0xff]
  %v35 = vld [vmem:[%s0 + $0x88] sm:$0xff]
  %v36 = vld [vmem:[%s0 + $0x90] sm:$0xff]
  %v37 = vld [vmem:[%s0 + $0x98] sm:$0xff]
  %v38 = vld [vmem:[%s0 + $0xa0] sm:$0xff]
  %v39 = vld [vmem:[%s0 + $0xa8] sm:$0xff]
  %v40 = vld [vmem:[%s0 + $0xb0] sm:$0xff]
  %v41 = vld [vmem:[%s0 + $0xb8] sm:$0xff]
  %v42 = vld [vmem:[%s0 + $0xc0] sm:$0xff]
  %v43 = vld [vmem:[%s0 + $0xc8] sm:$0xff]
  %v44 = vld [vmem:[%s0 + $0xd0] sm:$0xff]
  %v45 = vld [vmem:[%s0 + $0xd8] sm:$0xff]
  %v46 = vld [vmem:[%s0 + $0xe0] sm:$0xff]
  %v47 = vld [vmem:[%s0 + $0xe8] sm:$0xff]
  %v48 = vld [vmem:[%s0 + $0xf0] sm:$0xff]
  %v49 = vld [vmem:[%s0 + $0xf8] sm:$0xff]
  %v50 = vld [vmem:[%s0 + $0x100] sm:$0xff]
  %v51 = vld [vmem:[%s0 + $0x108] sm:$0xff]
  %v52 = vld [vmem:[%s0 + $0x110] sm:$0xff]
  %v53 = vld [vmem:[%s0 + $0x118] sm:$0xff]
  %v54 = vld [vmem:[%s0 + $0x120] sm:$0xff]
  %v55 = vld [vmem:[%s0 + $0x128] sm:$0xff]
  %v56 = vld [vmem:[%s0 + $0x130] sm:$0xff]
  %v57 = vld [vmem:[%s0 + $0x138] sm:$0xff]
  %v58 = vld [vmem:[%s0 + $0x140] sm:$0xff]
  %v59 = vld [vmem:[%s0 + $0x148] sm:$0xff]
  %v60 = vld [vmem:[%s0 + $0x150] sm:$0xff]
  %v61 = vld [vmem:[%s0 + $0x158] sm:$0xff]
  %v62 = vld [vmem:[%s0 + $0x160] sm:$0xff]
  %v63 = vld [vmem:[%s0 + $0x168] sm:$0xff]
  %v64 = vld [vmem:[%s0 + $0x170] sm:$0xff]
  %v65 = vld [vmem:[%s0 + $0x178] sm:$0xff]
  %v66 = vld [vmem:[%s0 + $0x180] sm:$0xff]
  %v67 = vld [vmem:[%s0 + $0x188] sm:$0xff]
  %v68 = vld [vmem:[%s0 + $0x190] sm:$0xff]
  %v69 = vld [vmem:[%s0 + $0x198] sm:$0xff]
  %v70 = vld [vmem:[%s0 + $0x1a0] sm:$0xff]
  %v71 = vld [vmem:[%s0 + $0x1a8] sm:$0xff]
  %v72 = vld [vmem:[%s0 + $0x1b0] sm:$0xff]
  %v73 = vld [vmem:[%s0 + $0x1b8] sm:$0xff]
  %v74 = vld [vmem:[%s0 + $0x1c0] sm:$0xff]
  %v75 = vld [vmem:[%s0 + $0x1c8] sm:$0xff]
  %v76 = vld [vmem:[%s0 + $0x1d0] sm:$0xff]
  %v77 = vld [vmem:[%s0 + $0x1d8] sm:$0xff]
  %v78 = vld [vmem:[%s0 + $0x1e0] sm:$0xff]
  %v79 = vld [vmem:[%s0 + $0x1e8] sm:$0xff]
  %v80 = vld [vmem:[%s0 + $0x1f0] sm:$0xff]
  %v81 = vld [vmem:[%s0 + $0x1f8] sm:$0xff]
  %v82 = vld [vmem:[%s1] sm:$0xf]
  %v83 = vld [vmem:[%s1 + $0x4] sm:$0xf]
  %v84 = vld [vmem:[%s1 + $0x8] sm:$0xf]
  %v85 = vld [vmem:[%s1 + $0xc] sm:$0xf]
  %v86 = vld [vmem:[%s1 + $0x10] sm:$0xf]
  %v87 = vld [vmem:[%s1 + $0x14] sm:$0xf]
  %v88 = vld [vmem:[%s1 + $0x18] sm:$0xf]
  %v89 = vld [vmem:[%s1 + $0x1c] sm:$0xf]
  %v90 = vld [vmem:[%s1 + $0x20] sm:$0xf]
  %v91 = vld [vmem:[%s1 + $0x24] sm:$0xf]
  %v92 = vld [vmem:[%s1 + $0x28] sm:$0xf]
  %v93 = vld [vmem:[%s1 + $0x2c] sm:$0xf]
  %v94 = vld [vmem:[%s1 + $0x30] sm:$0xf]
  %v95 = vld [vmem:[%s1 + $0x34] sm:$0xf]
  %v96 = vld [vmem:[%s1 + $0x38] sm:$0xf]
  %v97 = vld [vmem:[%s1 + $0x3c] sm:$0xf]
  %v98 = vld [vmem:[%s1 + $0x40] sm:$0xf]
  %v99 = vld [vmem:[%s1 + $0x44] sm:$0xf]
  %v100 = vld [vmem:[%s1 + $0x48] sm:$0xf]
  %v101 = vld [vmem:[%s1 + $0x4c] sm:$0xf]
  %v102 = vld [vmem:[%s1 + $0x50] sm:$0xf]
  %v103 = vld [vmem:[%s1 + $0x54] sm:$0xf]
  %v104 = vld [vmem:[%s1 + $0x58] sm:$0xf]
  %v105 = vld [vmem:[%s1 + $0x5c] sm:$0xf]
  %v106 = vld [vmem:[%s1 + $0x60] sm:$0xf]
  %v107 = vld [vmem:[%s1 + $0x64] sm:$0xf]
  %v108 = vld [vmem:[%s1 + $0x68] sm:$0xf]
  %v109 = vld [vmem:[%s1 + $0x6c] sm:$0xf]
  %v110 = vld [vmem:[%s1 + $0x70] sm:$0xf]
  %v111 = vld [vmem:[%s1 + $0x74] sm:$0xf]
  %v112 = vld [vmem:[%s1 + $0x78] sm:$0xf]
  %v113 = vld [vmem:[%s1 + $0x7c] sm:$0xf]
  %v178 = vunpack.c.l.b16 %v18
  %v179 = vunpack.c.h.b16 %v18
  %v180 = vunpack.c.l.b16 %v19
  %v181 = vunpack.c.h.b16 %v19
  %v182 = vunpack.c.l.b16 %v20
  %v183 = vunpack.c.h.b16 %v20
  %v184 = vunpack.c.l.b16 %v21
  %v185 = vunpack.c.h.b16 %v21
  %v186 = vunpack.c.l.b16 %v22
  %v187 = vunpack.c.h.b16 %v22
  %v188 = vunpack.c.l.b16 %v23
  %v189 = vunpack.c.h.b16 %v23
  %v190 = vunpack.c.l.b16 %v24
  %v191 = vunpack.c.h.b16 %v24
  %v192 = vunpack.c.l.b16 %v25
  %v193 = vunpack.c.h.b16 %v25
  %v194 = vunpack.c.l.b16 %v26
  %v195 = vunpack.c.h.b16 %v26
  %v196 = vunpack.c.l.b16 %v27
  %v197 = vunpack.c.h.b16 %v27
  %v198 = vunpack.c.l.b16 %v28
  %v199 = vunpack.c.h.b16 %v28
  %v200 = vunpack.c.l.b16 %v29
  %v201 = vunpack.c.h.b16 %v29
  %v202 = vunpack.c.l.b16 %v30
  %v203 = vunpack.c.h.b16 %v30
  %v204 = vunpack.c.l.b16 %v31
  %v205 = vunpack.c.h.b16 %v31
  %v206 = vunpack.c.l.b16 %v32
  %v207 = vunpack.c.h.b16 %v32
  %v208 = vunpack.c.l.b16 %v33
  %v209 = vunpack.c.h.b16 %v33
  %v210 = vunpack.c.l.b16 %v34
  %v211 = vunpack.c.h.b16 %v34
  %v212 = vunpack.c.l.b16 %v35
  %v213 = vunpack.c.h.b16 %v35
  %v214 = vunpack.c.l.b16 %v36
  %v215 = vunpack.c.h.b16 %v36
  %v216 = vunpack.c.l.b16 %v37
  %v217 = vunpack.c.h.b16 %v37
  %v218 = vunpack.c.l.b16 %v38
  %v219 = vunpack.c.h.b16 %v38
  %v220 = vunpack.c.l.b16 %v39
  %v221 = vunpack.c.h.b16 %v39
  %v222 = vunpack.c.l.b16 %v40
  %v223 = vunpack.c.h.b16 %v40
  %v224 = vunpack.c.l.b16 %v41
  %v225 = vunpack.c.h.b16 %v41
  %v226 = vunpack.c.l.b16 %v42
  %v227 = vunpack.c.h.b16 %v42
  %v228 = vunpack.c.l.b16 %v43
  %v229 = vunpack.c.h.b16 %v43
  %v230 = vunpack.c.l.b16 %v44
  %v231 = vunpack.c.h.b16 %v44
  %v232 = vunpack.c.l.b16 %v45
  %v233 = vunpack.c.h.b16 %v45
  %v234 = vunpack.c.l.b16 %v46
  %v235 = vunpack.c.h.b16 %v46
  %v236 = vunpack.c.l.b16 %v47
  %v237 = vunpack.c.h.b16 %v47
  %v238 = vunpack.c.l.b16 %v48
  %v239 = vunpack.c.h.b16 %v48
  %v240 = vunpack.c.l.b16 %v49
  %v241 = vunpack.c.h.b16 %v49
  %v242 = vunpack.c.l.b16 %v50
  %v243 = vunpack.c.h.b16 %v50
  %v244 = vunpack.c.l.b16 %v51
  %v245 = vunpack.c.h.b16 %v51
  %v246 = vunpack.c.l.b16 %v52
  %v247 = vunpack.c.h.b16 %v52
  %v248 = vunpack.c.l.b16 %v53
  %v249 = vunpack.c.h.b16 %v53
  %v250 = vunpack.c.l.b16 %v54
  %v251 = vunpack.c.h.b16 %v54
  %v252 = vunpack.c.l.b16 %v55
  %v253 = vunpack.c.h.b16 %v55
  %v254 = vunpack.c.l.b16 %v56
  %v255 = vunpack.c.h.b16 %v56
  %v256 = vunpack.c.l.b16 %v57
  %v257 = vunpack.c.h.b16 %v57
  %v258 = vunpack.c.l.b16 %v58
  %v259 = vunpack.c.h.b16 %v58
  %v260 = vunpack.c.l.b16 %v59
  %v261 = vunpack.c.h.b16 %v59
  %v262 = vunpack.c.l.b16 %v60
  %v263 = vunpack.c.h.b16 %v60
  %v264 = vunpack.c.l.b16 %v61
  %v265 = vunpack.c.h.b16 %v61
  %v266 = vunpack.c.l.b16 %v62
  %v267 = vunpack.c.h.b16 %v62
  %v268 = vunpack.c.l.b16 %v63
  %v269 = vunpack.c.h.b16 %v63
  %v270 = vunpack.c.l.b16 %v64
  %v271 = vunpack.c.h.b16 %v64
  %v272 = vunpack.c.l.b16 %v65
  %v273 = vunpack.c.h.b16 %v65
  %v274 = vunpack.c.l.b16 %v66
  %v275 = vunpack.c.h.b16 %v66
  %v276 = vunpack.c.l.b16 %v67
  %v277 = vunpack.c.h.b16 %v67
  %v278 = vunpack.c.l.b16 %v68
  %v279 = vunpack.c.h.b16 %v68
  %v280 = vunpack.c.l.b16 %v69
  %v281 = vunpack.c.h.b16 %v69
  %v282 = vunpack.c.l.b16 %v70
  %v283 = vunpack.c.h.b16 %v70
  %v284 = vunpack.c.l.b16 %v71
  %v285 = vunpack.c.h.b16 %v71
  %v286 = vunpack.c.l.b16 %v72
  %v287 = vunpack.c.h.b16 %v72
  %v288 = vunpack.c.l.b16 %v73
  %v289 = vunpack.c.h.b16 %v73
  %v290 = vunpack.c.l.b16 %v74
  %v291 = vunpack.c.h.b16 %v74
  %v292 = vunpack.c.l.b16 %v75
  %v293 = vunpack.c.h.b16 %v75
  %v294 = vunpack.c.l.b16 %v76
  %v295 = vunpack.c.h.b16 %v76
  %v296 = vunpack.c.l.b16 %v77
  %v297 = vunpack.c.h.b16 %v77
  %v298 = vunpack.c.l.b16 %v78
  %v299 = vunpack.c.h.b16 %v78
  %v300 = vunpack.c.l.b16 %v79
  %v301 = vunpack.c.h.b16 %v79
  %v302 = vunpack.c.l.b16 %v80
  %v303 = vunpack.c.h.b16 %v80
  %v304 = vunpack.c.l.b16 %v81
  %v305 = vunpack.c.h.b16 %v81
  %v306 = vpack.c.b16 %v180, %v178
  %v307 = vpack.c.b16 %v181, %v179
  %v308 = vpack.c.b16 %v184, %v182
  %v309 = vpack.c.b16 %v185, %v183
  %v310 = vpack.c.b16 %v188, %v186
  %v311 = vpack.c.b16 %v189, %v187
  %v312 = vpack.c.b16 %v192, %v190
  %v313 = vpack.c.b16 %v193, %v191
  %v314 = vpack.c.b16 %v196, %v194
  %v315 = vpack.c.b16 %v197, %v195
  %v316 = vpack.c.b16 %v200, %v198
  %v317 = vpack.c.b16 %v201, %v199
  %v318 = vpack.c.b16 %v204, %v202
  %v319 = vpack.c.b16 %v205, %v203
  %v320 = vpack.c.b16 %v208, %v206
  %v321 = vpack.c.b16 %v209, %v207
  %v322 = vpack.c.b16 %v212, %v210
  %v323 = vpack.c.b16 %v213, %v211
  %v324 = vpack.c.b16 %v216, %v214
  %v325 = vpack.c.b16 %v217, %v215
  %v326 = vpack.c.b16 %v220, %v218
  %v327 = vpack.c.b16 %v221, %v219
  %v328 = vpack.c.b16 %v224, %v222
  %v329 = vpack.c.b16 %v225, %v223
  %v330 = vpack.c.b16 %v228, %v226
  %v331 = vpack.c.b16 %v229, %v227
  %v332 = vpack.c.b16 %v232, %v230
  %v333 = vpack.c.b16 %v233, %v231
  %v334 = vpack.c.b16 %v236, %v234
  %v335 = vpack.c.b16 %v237, %v235
  %v336 = vpack.c.b16 %v240, %v238
  %v337 = vpack.c.b16 %v241, %v239
  %v338 = vpack.c.b16 %v244, %v242
  %v339 = vpack.c.b16 %v245, %v243
  %v340 = vpack.c.b16 %v248, %v246
  %v341 = vpack.c.b16 %v249, %v247
  %v342 = vpack.c.b16 %v252, %v250
  %v343 = vpack.c.b16 %v253, %v251
  %v344 = vpack.c.b16 %v256, %v254
  %v345 = vpack.c.b16 %v257, %v255
  %v346 = vpack.c.b16 %v260, %v258
  %v347 = vpack.c.b16 %v261, %v259
  %v348 = vpack.c.b16 %v264, %v262
  %v349 = vpack.c.b16 %v265, %v263
  %v350 = vpack.c.b16 %v268, %v266
  %v351 = vpack.c.b16 %v269, %v267
  %v352 = vpack.c.b16 %v272, %v270
  %v353 = vpack.c.b16 %v273, %v271
  %v354 = vpack.c.b16 %v276, %v274
  %v355 = vpack.c.b16 %v277, %v275
  %v356 = vpack.c.b16 %v280, %v278
  %v357 = vpack.c.b16 %v281, %v279
  %v358 = vpack.c.b16 %v284, %v282
  %v359 = vpack.c.b16 %v285, %v283
  %v360 = vpack.c.b16 %v288, %v286
  %v361 = vpack.c.b16 %v289, %v287
  %v362 = vpack.c.b16 %v292, %v290
  %v363 = vpack.c.b16 %v293, %v291
  %v364 = vpack.c.b16 %v296, %v294
  %v365 = vpack.c.b16 %v297, %v295
  %v366 = vpack.c.b16 %v300, %v298
  %v367 = vpack.c.b16 %v301, %v299
  %v368 = vpack.c.b16 %v304, %v302
  %v369 = vpack.c.b16 %v305, %v303
  %v466 = vunpack.c.l.b16 %v82
  %v467 = vunpack.c.l.b16 %v83
  %v468 = vunpack.c.l.b16 %v84
  %v469 = vunpack.c.l.b16 %v85
  %v470 = vunpack.c.l.b16 %v86
  %v471 = vunpack.c.l.b16 %v87
  %v472 = vunpack.c.l.b16 %v88
  %v473 = vunpack.c.l.b16 %v89
  %v474 = vunpack.c.l.b16 %v90
  %v475 = vunpack.c.l.b16 %v91
  %v476 = vunpack.c.l.b16 %v92
  %v477 = vunpack.c.l.b16 %v93
  %v478 = vunpack.c.l.b16 %v94
  %v479 = vunpack.c.l.b16 %v95
  %v480 = vunpack.c.l.b16 %v96
  %v481 = vunpack.c.l.b16 %v97
  %v482 = vunpack.c.l.b16 %v98
  %v483 = vunpack.c.l.b16 %v99
  %v484 = vunpack.c.l.b16 %v100
  %v485 = vunpack.c.l.b16 %v101
  %v486 = vunpack.c.l.b16 %v102
  %v487 = vunpack.c.l.b16 %v103
  %v488 = vunpack.c.l.b16 %v104
  %v489 = vunpack.c.l.b16 %v105
  %v490 = vunpack.c.l.b16 %v106
  %v491 = vunpack.c.l.b16 %v107
  %v492 = vunpack.c.l.b16 %v108
  %v493 = vunpack.c.l.b16 %v109
  %v494 = vunpack.c.l.b16 %v110
  %v495 = vunpack.c.l.b16 %v111
  %v496 = vunpack.c.l.b16 %v112
  %v497 = vunpack.c.l.b16 %v113
  %v498 = vpack.c.b16 %v467, %v466
  %v499 = vpack.c.b16 %v469, %v468
  %v500 = vpack.c.b16 %v471, %v470
  %v501 = vpack.c.b16 %v473, %v472
  %v502 = vpack.c.b16 %v475, %v474
  %v503 = vpack.c.b16 %v477, %v476
  %v504 = vpack.c.b16 %v479, %v478
  %v505 = vpack.c.b16 %v481, %v480
  %v506 = vpack.c.b16 %v483, %v482
  %v507 = vpack.c.b16 %v485, %v484
  %v508 = vpack.c.b16 %v487, %v486
  %v509 = vpack.c.b16 %v489, %v488
  %v510 = vpack.c.b16 %v491, %v490
  %v511 = vpack.c.b16 %v493, %v492
  %v512 = vpack.c.b16 %v495, %v494
  %v513 = vpack.c.b16 %v497, %v496
  %530 = vmatprep.subr.bf16.mxu0 0
  %531 = vmatpush1.bf16.msra.mxu0 %v498
  %532 = vmatprep.subr.bf16.mxu0 0
  %533 = vmatpush1.bf16.msra.mxu0 %v499
  %534 = vmatprep.subr.bf16.mxu0 0
  %535 = vmatpush1.bf16.msra.mxu0 %v500
  %536 = vmatprep.subr.bf16.mxu0 0
  %537 = vmatpush1.bf16.msra.mxu0 %v501
  %538 = vmatprep.subr.bf16.mxu0 0
  %539 = vmatpush1.bf16.msra.mxu0 %v502
  %540 = vmatprep.subr.bf16.mxu0 0
  %541 = vmatpush1.bf16.msra.mxu0 %v503
  %542 = vmatprep.subr.bf16.mxu0 0
  %543 = vmatpush1.bf16.msra.mxu0 %v504
  %544 = vmatprep.subr.bf16.mxu0 0
  %545 = vmatpush1.bf16.msra.mxu0 %v505
  %546 = vmatprep.subr.bf16.mxu0 0
  %547 = vmatpush1.bf16.msra.mxu0 %v506
  %548 = vmatprep.subr.bf16.mxu0 0
  %549 = vmatpush1.bf16.msra.mxu0 %v507
  %550 = vmatprep.subr.bf16.mxu0 0
  %551 = vmatpush1.bf16.msra.mxu0 %v508
  %552 = vmatprep.subr.bf16.mxu0 0
  %553 = vmatpush1.bf16.msra.mxu0 %v509
  %554 = vmatprep.subr.bf16.mxu0 0
  %555 = vmatpush1.bf16.msra.mxu0 %v510
  %556 = vmatprep.subr.bf16.mxu0 0
  %557 = vmatpush1.bf16.msra.mxu0 %v511
  %558 = vmatprep.subr.bf16.mxu0 0
  %559 = vmatpush1.bf16.msra.mxu0 %v512
  %560 = vmatprep.subr.bf16.mxu0 0
  %561 = vmatpush1.bf16.msra.mxu0 %v513
  %562 = vmatprep.mubr.bf16.mxu0 %v307
  %563 = vmatmul.mubr.bf16.gmra.mrb[0].mxu0 %v306
  %v564 = vpop.f32.mrb[0].mxu0
  %v565 = vadd.f32 0.0, %v564
  %v566 = vpop.f32.mrb[0].mxu0
  %v567 = vpop.f32.mrb[0].mxu0
  %v568 = vadd.f32 0.0, %v567
  %v569 = vpop.f32.mrb[0].mxu0
  %570 = vmatprep.mubr.bf16.mxu0 %v309
  %571 = vmatmul.mubr.bf16.gmra.mrb[0].mxu0 %v308
  %v572 = vpop.f32.mrb[0].mxu0
  %v573 = vadd.f32 0.0, %v572
  %v574 = vpop.f32.mrb[0].mxu0
  %v575 = vpop.f32.mrb[0].mxu0
  %v576 = vadd.f32 0.0, %v575
  %v577 = vpop.f32.mrb[0].mxu0
  %578 = vmatprep.mubr.bf16.mxu0 %v311
  %579 = vmatmul.mubr.bf16.gmra.mrb[0].mxu0 %v310
  %v580 = vpop.f32.mrb[0].mxu0
  %v581 = vadd.f32 0.0, %v580
  %v582 = vpop.f32.mrb[0].mxu0
  %v583 = vpop.f32.mrb[0].mxu0
  %v584 = vadd.f32 0.0, %v583
  %v585 = vpop.f32.mrb[0].mxu0
  %586 = vmatprep.mubr.bf16.mxu0 %v313
  %587 = vmatmul.mubr.bf16.gmra.mrb[0].mxu0 %v312
  %v588 = vpop.f32.mrb[0].mxu0
  %v589 = vadd.f32 0.0, %v588
  %v590 = vpop.f32.mrb[0].mxu0
  %v591 = vpop.f32.mrb[0].mxu0
  %v592 = vadd.f32 0.0, %v591
  %v593 = vpop.f32.mrb[0].mxu0
  %594 = vmatprep.mubr.bf16.mxu0 %v315
  %595 = vmatmul.mubr.bf16.gmra.mrb[0].mxu0 %v314
  %v596 = vpop.f32.mrb[0].mxu0
  %v597 = vadd.f32 0.0, %v596
  %v598 = vpop.f32.mrb[0].mxu0
  %v599 = vpop.f32.mrb[0].mxu0
  %v600 = vadd.f32 0.0, %v599
  %v601 = vpop.f32.mrb[0].mxu0
  %602 = vmatprep.mubr.bf16.mxu0 %v317
  %603 = vmatmul.mubr.bf16.gmra.mrb[0].mxu0 %v316
  %v604 = vpop.f32.mrb[0].mxu0
  %v605 = vadd.f32 0.0, %v604
  %v606 = vpop.f32.mrb[0].mxu0
  %v607 = vpop.f32.mrb[0].mxu0
  %v608 = vadd.f32 0.0, %v607
  %v609 = vpop.f32.mrb[0].mxu0
  %610 = vmatprep.mubr.bf16.mxu0 %v319
  %611 = vmatmul.mubr.bf16.gmra.mrb[0].mxu0 %v318
  %v612 = vpop.f32.mrb[0].mxu0
  %v613 = vadd.f32 0.0, %v612
  %v614 = vpop.f32.mrb[0].mxu0
  %v615 = vpop.f32.mrb[0].mxu0
  %v616 = vadd.f32 0.0, %v615
  %v617 = vpop.f32.mrb[0].mxu0
  %618 = vmatprep.mubr.bf16.mxu0 %v321
  %619 = vmatmul.mubr.bf16.gmra.mrb[0].mxu0 %v320
  %v620 = vpop.f32.mrb[0].mxu0
  %v621 = vadd.f32 0.0, %v620
  %v622 = vpop.f32.mrb[0].mxu0
  %v623 = vpop.f32.mrb[0].mxu0
  %v624 = vadd.f32 0.0, %v623
  %v625 = vpop.f32.mrb[0].mxu0
  %626 = vmatprep.mubr.bf16.mxu0 %v323
  %627 = vmatmul.mubr.bf16.gmra.mrb[0].mxu0 %v322
  %v628 = vpop.f32.mrb[0].mxu0
  %v629 = vadd.f32 0.0, %v628
  %v630 = vpop.f32.mrb[0].mxu0
  %v631 = vpop.f32.mrb[0].mxu0
  %v632 = vadd.f32 0.0, %v631
  %v633 = vpop.f32.mrb[0].mxu0
  %634 = vmatprep.mubr.bf16.mxu0 %v325
  %635 = vmatmul.mubr.bf16.gmra.mrb[0].mxu0 %v324
  %v636 = vpop.f32.mrb[0].mxu0
  %v637 = vadd.f32 0.0, %v636
  %v638 = vpop.f32.mrb[0].mxu0
  %v639 = vpop.f32.mrb[0].mxu0
  %v640 = vadd.f32 0.0, %v639
  %v641 = vpop.f32.mrb[0].mxu0
  %642 = vmatprep.mubr.bf16.mxu0 %v327
  %643 = vmatmul.mubr.bf16.gmra.mrb[0].mxu0 %v326
  %v644 = vpop.f32.mrb[0].mxu0
  %v645 = vadd.f32 0.0, %v644
  %v646 = vpop.f32.mrb[0].mxu0
  %v647 = vpop.f32.mrb[0].mxu0
  %v648 = vadd.f32 0.0, %v647
  %v649 = vpop.f32.mrb[0].mxu0
  %650 = vmatprep.mubr.bf16.mxu0 %v329
  %651 = vmatmul.mubr.bf16.gmra.mrb[0].mxu0 %v328
  %v652 = vpop.f32.mrb[0].mxu0
  %v653 = vadd.f32 0.0, %v652
  %v654 = vpop.f32.mrb[0].mxu0
  %v655 = vpop.f32.mrb[0].mxu0
  %v656 = vadd.f32 0.0, %v655
  %v657 = vpop.f32.mrb[0].mxu0
  %658 = vmatprep.mubr.bf16.mxu0 %v331
  %659 = vmatmul.mubr.bf16.gmra.mrb[0].mxu0 %v330
  %v660 = vpop.f32.mrb[0].mxu0
  %v661 = vadd.f32 0.0, %v660
  %v662 = vpop.f32.mrb[0].mxu0
  %v663 = vpop.f32.mrb[0].mxu0
  %v664 = vadd.f32 0.0, %v663
  %v665 = vpop.f32.mrb[0].mxu0
  %666 = vmatprep.mubr.bf16.mxu0 %v333
  %667 = vmatmul.mubr.bf16.gmra.mrb[0].mxu0 %v332
  %v668 = vpop.f32.mrb[0].mxu0
  %v669 = vadd.f32 0.0, %v668
  %v670 = vpop.f32.mrb[0].mxu0
  %v671 = vpop.f32.mrb[0].mxu0
  %v672 = vadd.f32 0.0, %v671
  %v673 = vpop.f32.mrb[0].mxu0
  %674 = vmatprep.mubr.bf16.mxu0 %v335
  %675 = vmatmul.mubr.bf16.gmra.mrb[0].mxu0 %v334
  %v676 = vpop.f32.mrb[0].mxu0
  %v677 = vadd.f32 0.0, %v676
  %v678 = vpop.f32.mrb[0].mxu0
  %v679 = vpop.f32.mrb[0].mxu0
  %v680 = vadd.f32 0.0, %v679
  %v681 = vpop.f32.mrb[0].mxu0
  %682 = vmatprep.mubr.bf16.mxu0 %v337
  %683 = vmatmul.mubr.bf16.gmra.mrb[0].mxu0 %v336
  %v684 = vpop.f32.mrb[0].mxu0
  %v685 = vadd.f32 0.0, %v684
  %v686 = vpop.f32.mrb[0].mxu0
  %v687 = vpop.f32.mrb[0].mxu0
  %v688 = vadd.f32 0.0, %v687
  %v689 = vpop.f32.mrb[0].mxu0
  %690 = vmatprep.mubr.bf16.mxu0 %v339
  %691 = vmatmul.mubr.bf16.gmra.mrb[0].mxu0 %v338
  %v692 = vpop.f32.mrb[0].mxu0
  %v693 = vadd.f32 0.0, %v692
  %v694 = vpop.f32.mrb[0].mxu0
  %v695 = vpop.f32.mrb[0].mxu0
  %v696 = vadd.f32 0.0, %v695
  %v697 = vpop.f32.mrb[0].mxu0
  %698 = vmatprep.mubr.bf16.mxu0 %v341
  %699 = vmatmul.mubr.bf16.gmra.mrb[0].mxu0 %v340
  %v700 = vpop.f32.mrb[0].mxu0
  %v701 = vadd.f32 0.0, %v700
  %v702 = vpop.f32.mrb[0].mxu0
  %v703 = vpop.f32.mrb[0].mxu0
  %v704 = vadd.f32 0.0, %v703
  %v705 = vpop.f32.mrb[0].mxu0
  %706 = vmatprep.mubr.bf16.mxu0 %v343
  %707 = vmatmul.mubr.bf16.gmra.mrb[0].mxu0 %v342
  %v708 = vpop.f32.mrb[0].mxu0
  %v709 = vadd.f32 0.0, %v708
  %v710 = vpop.f32.mrb[0].mxu0
  %v711 = vpop.f32.mrb[0].mxu0
  %v712 = vadd.f32 0.0, %v711
  %v713 = vpop.f32.mrb[0].mxu0
  %714 = vmatprep.mubr.bf16.mxu0 %v345
  %715 = vmatmul.mubr.bf16.gmra.mrb[0].mxu0 %v344
  %v716 = vpop.f32.mrb[0].mxu0
  %v717 = vadd.f32 0.0, %v716
  %v718 = vpop.f32.mrb[0].mxu0
  %v719 = vpop.f32.mrb[0].mxu0
  %v720 = vadd.f32 0.0, %v719
  %v721 = vpop.f32.mrb[0].mxu0
  %722 = vmatprep.mubr.bf16.mxu0 %v347
  %723 = vmatmul.mubr.bf16.gmra.mrb[0].mxu0 %v346
  %v724 = vpop.f32.mrb[0].mxu0
  %v725 = vadd.f32 0.0, %v724
  %v726 = vpop.f32.mrb[0].mxu0
  %v727 = vpop.f32.mrb[0].mxu0
  %v728 = vadd.f32 0.0, %v727
  %v729 = vpop.f32.mrb[0].mxu0
  %730 = vmatprep.mubr.bf16.mxu0 %v349
  %731 = vmatmul.mubr.bf16.gmra.mrb[0].mxu0 %v348
  %v732 = vpop.f32.mrb[0].mxu0
  %v733 = vadd.f32 0.0, %v732
  %v734 = vpop.f32.mrb[0].mxu0
  %v735 = vpop.f32.mrb[0].mxu0
  %v736 = vadd.f32 0.0, %v735
  %v737 = vpop.f32.mrb[0].mxu0
  %738 = vmatprep.mubr.bf16.mxu0 %v351
  %739 = vmatmul.mubr.bf16.gmra.mrb[0].mxu0 %v350
  %v740 = vpop.f32.mrb[0].mxu0
  %v741 = vadd.f32 0.0, %v740
  %v742 = vpop.f32.mrb[0].mxu0
  %v743 = vpop.f32.mrb[0].mxu0
  %v744 = vadd.f32 0.0, %v743
  %v745 = vpop.f32.mrb[0].mxu0
  %746 = vmatprep.mubr.bf16.mxu0 %v353
  %747 = vmatmul.mubr.bf16.gmra.mrb[0].mxu0 %v352
  %v748 = vpop.f32.mrb[0].mxu0
  %v749 = vadd.f32 0.0, %v748
  %v750 = vpop.f32.mrb[0].mxu0
  %v751 = vpop.f32.mrb[0].mxu0
  %v752 = vadd.f32 0.0, %v751
  %v753 = vpop.f32.mrb[0].mxu0
  %754 = vmatprep.mubr.bf16.mxu0 %v355
  %755 = vmatmul.mubr.bf16.gmra.mrb[0].mxu0 %v354
  %v756 = vpop.f32.mrb[0].mxu0
  %v757 = vadd.f32 0.0, %v756
  %v758 = vpop.f32.mrb[0].mxu0
  %v759 = vpop.f32.mrb[0].mxu0
  %v760 = vadd.f32 0.0, %v759
  %v761 = vpop.f32.mrb[0].mxu0
  %762 = vmatprep.mubr.bf16.mxu0 %v357
  %763 = vmatmul.mubr.bf16.gmra.mrb[0].mxu0 %v356
  %v764 = vpop.f32.mrb[0].mxu0
  %v765 = vadd.f32 0.0, %v764
  %v766 = vpop.f32.mrb[0].mxu0
  %v767 = vpop.f32.mrb[0].mxu0
  %v768 = vadd.f32 0.0, %v767
  %v769 = vpop.f32.mrb[0].mxu0
  %770 = vmatprep.mubr.bf16.mxu0 %v359
  %771 = vmatmul.mubr.bf16.gmra.mrb[0].mxu0 %v358
  %v772 = vpop.f32.mrb[0].mxu0
  %v773 = vadd.f32 0.0, %v772
  %v774 = vpop.f32.mrb[0].mxu0
  %v775 = vpop.f32.mrb[0].mxu0
  %v776 = vadd.f32 0.0, %v775
  %v777 = vpop.f32.mrb[0].mxu0
  %778 = vmatprep.mubr.bf16.mxu0 %v361
  %779 = vmatmul.mubr.bf16.gmra.mrb[0].mxu0 %v360
  %v780 = vpop.f32.mrb[0].mxu0
  %v781 = vadd.f32 0.0, %v780
  %v782 = vpop.f32.mrb[0].mxu0
  %v783 = vpop.f32.mrb[0].mxu0
  %v784 = vadd.f32 0.0, %v783
  %v785 = vpop.f32.mrb[0].mxu0
  %786 = vmatprep.mubr.bf16.mxu0 %v363
  %787 = vmatmul.mubr.bf16.gmra.mrb[0].mxu0 %v362
  %v788 = vpop.f32.mrb[0].mxu0
  %v789 = vadd.f32 0.0, %v788
  %v790 = vpop.f32.mrb[0].mxu0
  %v791 = vpop.f32.mrb[0].mxu0
  %v792 = vadd.f32 0.0, %v791
  %v793 = vpop.f32.mrb[0].mxu0
  %794 = vmatprep.mubr.bf16.mxu0 %v365
  %795 = vmatmul.mubr.bf16.gmra.mrb[0].mxu0 %v364
  %v796 = vpop.f32.mrb[0].mxu0
  %v797 = vadd.f32 0.0, %v796
  %v798 = vpop.f32.mrb[0].mxu0
  %v799 = vpop.f32.mrb[0].mxu0
  %v800 = vadd.f32 0.0, %v799
  %v801 = vpop.f32.mrb[0].mxu0
  %802 = vmatprep.mubr.bf16.mxu0 %v367
  %803 = vmatmul.mubr.bf16.gmra.mrb[0].mxu0 %v366
  %v804 = vpop.f32.mrb[0].mxu0
  %v805 = vadd.f32 0.0, %v804
  %v806 = vpop.f32.mrb[0].mxu0
  %v807 = vpop.f32.mrb[0].mxu0
  %v808 = vadd.f32 0.0, %v807
  %v809 = vpop.f32.mrb[0].mxu0
  %810 = vmatprep.mubr.bf16.mxu0 %v369
  %811 = vmatmul.mubr.bf16.gmra.mrb[0].mxu0 %v368
  %v812 = vpop.f32.mrb[0].mxu0
  %v813 = vadd.f32 0.0, %v812
  %v814 = vpop.f32.mrb[0].mxu0
  %v815 = vpop.f32.mrb[0].mxu0
  %v816 = vadd.f32 0.0, %v815
  %v817 = vpop.f32.mrb[0].mxu0
  %818 = vdwg.mxu0
  %819 = vmatprep.subr.mxu0 0.0
  %820 = vmatpush1.msra.mxu0 %v565
  %821 = vmatprep.subr.mxu0 0.0
  %822 = vmatpush1.msra.mxu0 %v568
  %823 = vmatprep.subr.mxu0 0.0
  %824 = vmatpush1.msra.mxu0 %v573
  %825 = vmatprep.subr.mxu0 0.0
  %826 = vmatpush1.msra.mxu0 %v576
  %827 = vmatprep.subr.mxu0 0.0
  %828 = vmatpush1.msra.mxu0 %v581
  %829 = vmatprep.subr.mxu0 0.0
  %830 = vmatpush1.msra.mxu0 %v584
  %831 = vmatprep.subr.mxu0 0.0
  %832 = vmatpush1.msra.mxu0 %v589
  %833 = vmatprep.subr.mxu0 0.0
  %834 = vmatpush1.msra.mxu0 %v592
  %835 = vmatprep.subr.mxu0 0.0
  %836 = vmatpush1.msra.mxu0 %v597
  %837 = vmatprep.subr.mxu0 0.0
  %838 = vmatpush1.msra.mxu0 %v600
  %839 = vmatprep.subr.mxu0 0.0
  %840 = vmatpush1.msra.mxu0 %v605
  %841 = vmatprep.subr.mxu0 0.0
  %842 = vmatpush1.msra.mxu0 %v608
  %843 = vmatprep.subr.mxu0 0.0
  %844 = vmatpush1.msra.mxu0 %v613
  %845 = vmatprep.subr.mxu0 0.0
  %846 = vmatpush1.msra.mxu0 %v616
  %847 = vmatprep.subr.mxu0 0.0
  %848 = vmatpush1.msra.mxu0 %v621
  %849 = vmatprep.subr.mxu0 0.0
  %850 = vmatpush1.msra.mxu0 %v624
  %851 = vmatprep.subr.mxu0 0.0
  %852 = vmatpush1.msra.mxu0 %v629
  %853 = vmatprep.subr.mxu0 0.0
  %854 = vmatpush1.msra.mxu0 %v632
  %855 = vmatprep.subr.mxu0 0.0
  %856 = vmatpush1.msra.mxu0 %v637
  %857 = vmatprep.subr.mxu0 0.0
  %858 = vmatpush1.msra.mxu0 %v640
  %859 = vmatprep.subr.mxu0 0.0
  %860 = vmatpush1.msra.mxu0 %v645
  %861 = vmatprep.subr.mxu0 0.0
  %862 = vmatpush1.msra.mxu0 %v648
  %863 = vmatprep.subr.mxu0 0.0
  %864 = vmatpush1.msra.mxu0 %v653
  %865 = vmatprep.subr.mxu0 0.0
  %866 = vmatpush1.msra.mxu0 %v656
  %867 = vmatprep.subr.mxu0 0.0
  %868 = vmatpush1.msra.mxu0 %v661
  %869 = vmatprep.subr.mxu0 0.0
  %870 = vmatpush1.msra.mxu0 %v664
  %871 = vmatprep.subr.mxu0 0.0
  %872 = vmatpush1.msra.mxu0 %v669
  %873 = vmatprep.subr.mxu0 0.0
  %874 = vmatpush1.msra.mxu0 %v672
  %875 = vmatprep.subr.mxu0 0.0
  %876 = vmatpush1.msra.mxu0 %v677
  %877 = vmatprep.subr.mxu0 0.0
  %878 = vmatpush1.msra.mxu0 %v680
  %879 = vmatprep.subr.mxu0 0.0
  %880 = vmatpush1.msra.mxu0 %v685
  %881 = vmatprep.subr.mxu0 0.0
  %882 = vmatpush1.msra.mxu0 %v688
  %883 = vmatprep.mubr.f32.mxu0 1.0
  %884 = vmatmul.mubr.f32.gmra.mrb[0].mxu0 1.0
  %v885 = vpop.f32.mrb[0].mxu0
  %v886 = vadd.f32 0.0, %v885
  %v887 = vpop.f32.mrb[0].mxu0
  %888 = vdwg.mxu0
  %889 = vmatprep.subr.mxu0 0.0
  %890 = vmatpush1.msra.mxu0 %v693
  %891 = vmatprep.subr.mxu0 0.0
  %892 = vmatpush1.msra.mxu0 %v696
  %893 = vmatprep.subr.mxu0 0.0
  %894 = vmatpush1.msra.mxu0 %v701
  %895 = vmatprep.subr.mxu0 0.0
  %896 = vmatpush1.msra.mxu0 %v704
  %897 = vmatprep.subr.mxu0 0.0
  %898 = vmatpush1.msra.mxu0 %v709
  %899 = vmatprep.subr.mxu0 0.0
  %900 = vmatpush1.msra.mxu0 %v712
  %901 = vmatprep.subr.mxu0 0.0
  %902 = vmatpush1.msra.mxu0 %v717
  %903 = vmatprep.subr.mxu0 0.0
  %904 = vmatpush1.msra.mxu0 %v720
  %905 = vmatprep.subr.mxu0 0.0
  %906 = vmatpush1.msra.mxu0 %v725
  %907 = vmatprep.subr.mxu0 0.0
  %908 = vmatpush1.msra.mxu0 %v728
  %909 = vmatprep.subr.mxu0 0.0
  %910 = vmatpush1.msra.mxu0 %v733
  %911 = vmatprep.subr.mxu0 0.0
  %912 = vmatpush1.msra.mxu0 %v736
  %913 = vmatprep.subr.mxu0 0.0
  %914 = vmatpush1.msra.mxu0 %v741
  %915 = vmatprep.subr.mxu0 0.0
  %916 = vmatpush1.msra.mxu0 %v744
  %917 = vmatprep.subr.mxu0 0.0
  %918 = vmatpush1.msra.mxu0 %v749
  %919 = vmatprep.subr.mxu0 0.0
  %920 = vmatpush1.msra.mxu0 %v752
  %921 = vmatprep.subr.mxu0 0.0
  %922 = vmatpush1.msra.mxu0 %v757
  %923 = vmatprep.subr.mxu0 0.0
  %924 = vmatpush1.msra.mxu0 %v760
  %925 = vmatprep.subr.mxu0 0.0
  %926 = vmatpush1.msra.mxu0 %v765
  %927 = vmatprep.subr.mxu0 0.0
  %928 = vmatpush1.msra.mxu0 %v768
  %929 = vmatprep.subr.mxu0 0.0
  %930 = vmatpush1.msra.mxu0 %v773
  %931 = vmatprep.subr.mxu0 0.0
  %932 = vmatpush1.msra.mxu0 %v776
  %933 = vmatprep.subr.mxu0 0.0
  %934 = vmatpush1.msra.mxu0 %v781
  %935 = vmatprep.subr.mxu0 0.0
  %936 = vmatpush1.msra.mxu0 %v784
  %937 = vmatprep.subr.mxu0 0.0
  %938 = vmatpush1.msra.mxu0 %v789
  %939 = vmatprep.subr.mxu0 0.0
  %940 = vmatpush1.msra.mxu0 %v792
  %941 = vmatprep.subr.mxu0 0.0
  %942 = vmatpush1.msra.mxu0 %v797
  %943 = vmatprep.subr.mxu0 0.0
  %944 = vmatpush1.msra.mxu0 %v800
  %945 = vmatprep.subr.mxu0 0.0
  %946 = vmatpush1.msra.mxu0 %v805
  %947 = vmatprep.subr.mxu0 0.0
  %948 = vmatpush1.msra.mxu0 %v808
  %949 = vmatprep.subr.mxu0 0.0
  %950 = vmatpush1.msra.mxu0 %v813
  %951 = vmatprep.subr.mxu0 0.0
  %952 = vmatpush1.msra.mxu0 %v816
  %953 = vmatprep.mubr.f32.mxu0 1.0
  %954 = vmatmul.mubr.f32.gmra.mrb[0].mxu0 1.0
  %v955 = vpop.f32.mrb[0].mxu0
  %v956 = vadd.f32 %v886, %v955
  %v957 = vpop.f32.mrb[0].mxu0
  %958 = vdwg.mxu0
  %v959 = vmul.f32 %v565, %v565
  %v960 = vmul.f32 %v568, %v568
  %v961 = vmul.f32 %v573, %v573
  %v962 = vmul.f32 %v576, %v576
  %v963 = vmul.f32 %v581, %v581
  %v964 = vmul.f32 %v584, %v584
  %v965 = vmul.f32 %v589, %v589
  %v966 = vmul.f32 %v592, %v592
  %v967 = vmul.f32 %v597, %v597
  %v968 = vmul.f32 %v600, %v600
  %v969 = vmul.f32 %v605, %v605
  %v970 = vmul.f32 %v608, %v608
  %v971 = vmul.f32 %v613, %v613
  %v972 = vmul.f32 %v616, %v616
  %v973 = vmul.f32 %v621, %v621
  %v974 = vmul.f32 %v624, %v624
  %v975 = vmul.f32 %v629, %v629
  %v976 = vmul.f32 %v632, %v632
  %v977 = vmul.f32 %v637, %v637
  %v978 = vmul.f32 %v640, %v640
  %v979 = vmul.f32 %v645, %v645
  %v980 = vmul.f32 %v648, %v648
  %v981 = vmul.f32 %v653, %v653
  %v982 = vmul.f32 %v656, %v656
  %v983 = vmul.f32 %v661, %v661
  %v984 = vmul.f32 %v664, %v664
  %v985 = vmul.f32 %v669, %v669
  %v986 = vmul.f32 %v672, %v672
  %v987 = vmul.f32 %v677, %v677
  %v988 = vmul.f32 %v680, %v680
  %v989 = vmul.f32 %v685, %v685
  %v990 = vmul.f32 %v688, %v688
  %v991 = vmul.f32 %v693, %v693
  %v992 = vmul.f32 %v696, %v696
  %v993 = vmul.f32 %v701, %v701
  %v994 = vmul.f32 %v704, %v704
  %v995 = vmul.f32 %v709, %v709
  %v996 = vmul.f32 %v712, %v712
  %v997 = vmul.f32 %v717, %v717
  %v998 = vmul.f32 %v720, %v720
  %v999 = vmul.f32 %v725, %v725
  %v1000 = vmul.f32 %v728, %v728
  %v1001 = vmul.f32 %v733, %v733
  %v1002 = vmul.f32 %v736, %v736
  %v1003 = vmul.f32 %v741, %v741
  %v1004 = vmul.f32 %v744, %v744
  %v1005 = vmul.f32 %v749, %v749
  %v1006 = vmul.f32 %v752, %v752
  %v1007 = vmul.f32 %v757, %v757
  %v1008 = vmul.f32 %v760, %v760
  %v1009 = vmul.f32 %v765, %v765
  %v1010 = vmul.f32 %v768, %v768
  %v1011 = vmul.f32 %v773, %v773
  %v1012 = vmul.f32 %v776, %v776
  %v1013 = vmul.f32 %v781, %v781
  %v1014 = vmul.f32 %v784, %v784
  %v1015 = vmul.f32 %v789, %v789
  %v1016 = vmul.f32 %v792, %v792
  %v1017 = vmul.f32 %v797, %v797
  %v1018 = vmul.f32 %v800, %v800
  %v1019 = vmul.f32 %v805, %v805
  %v1020 = vmul.f32 %v808, %v808
  %v1021 = vmul.f32 %v813, %v813
  %v1022 = vmul.f32 %v816, %v816
  %1023 = vmatprep.subr.mxu0 0.0
  %1024 = vmatpush1.msra.mxu0 %v959
  %1025 = vmatprep.subr.mxu0 0.0
  %1026 = vmatpush1.msra.mxu0 %v960
  %1027 = vmatprep.subr.mxu0 0.0
  %1028 = vmatpush1.msra.mxu0 %v961
  %1029 = vmatprep.subr.mxu0 0.0
  %1030 = vmatpush1.msra.mxu0 %v962
  %1031 = vmatprep.subr.mxu0 0.0
  %1032 = vmatpush1.msra.mxu0 %v963
  %1033 = vmatprep.subr.mxu0 0.0
  %1034 = vmatpush1.msra.mxu0 %v964
  %1035 = vmatprep.subr.mxu0 0.0
  %1036 = vmatpush1.msra.mxu0 %v965
  %1037 = vmatprep.subr.mxu0 0.0
  %1038 = vmatpush1.msra.mxu0 %v966
  %1039 = vmatprep.subr.mxu0 0.0
  %1040 = vmatpush1.msra.mxu0 %v967
  %1041 = vmatprep.subr.mxu0 0.0
  %1042 = vmatpush1.msra.mxu0 %v968
  %1043 = vmatprep.subr.mxu0 0.0
  %1044 = vmatpush1.msra.mxu0 %v969
  %1045 = vmatprep.subr.mxu0 0.0
  %1046 = vmatpush1.msra.mxu0 %v970
  %1047 = vmatprep.subr.mxu0 0.0
  %1048 = vmatpush1.msra.mxu0 %v971
  %1049 = vmatprep.subr.mxu0 0.0
  %1050 = vmatpush1.msra.mxu0 %v972
  %1051 = vmatprep.subr.mxu0 0.0
  %1052 = vmatpush1.msra.mxu0 %v973
  %1053 = vmatprep.subr.mxu0 0.0
  %1054 = vmatpush1.msra.mxu0 %v974
  %1055 = vmatprep.subr.mxu0 0.0
  %1056 = vmatpush1.msra.mxu0 %v975
  %1057 = vmatprep.subr.mxu0 0.0
  %1058 = vmatpush1.msra.mxu0 %v976
  %1059 = vmatprep.subr.mxu0 0.0
  %1060 = vmatpush1.msra.mxu0 %v977
  %1061 = vmatprep.subr.mxu0 0.0
  %1062 = vmatpush1.msra.mxu0 %v978
  %1063 = vmatprep.subr.mxu0 0.0
  %1064 = vmatpush1.msra.mxu0 %v979
  %1065 = vmatprep.subr.mxu0 0.0
  %1066 = vmatpush1.msra.mxu0 %v980
  %1067 = vmatprep.subr.mxu0 0.0
  %1068 = vmatpush1.msra.mxu0 %v981
  %1069 = vmatprep.subr.mxu0 0.0
  %1070 = vmatpush1.msra.mxu0 %v982
  %1071 = vmatprep.subr.mxu0 0.0
  %1072 = vmatpush1.msra.mxu0 %v983
  %1073 = vmatprep.subr.mxu0 0.0
  %1074 = vmatpush1.msra.mxu0 %v984
  %1075 = vmatprep.subr.mxu0 0.0
  %1076 = vmatpush1.msra.mxu0 %v985
  %1077 = vmatprep.subr.mxu0 0.0
  %1078 = vmatpush1.msra.mxu0 %v986
  %1079 = vmatprep.subr.mxu0 0.0
  %1080 = vmatpush1.msra.mxu0 %v987
  %1081 = vmatprep.subr.mxu0 0.0
  %1082 = vmatpush1.msra.mxu0 %v988
  %1083 = vmatprep.subr.mxu0 0.0
  %1084 = vmatpush1.msra.mxu0 %v989
  %1085 = vmatprep.subr.mxu0 0.0
  %1086 = vmatpush1.msra.mxu0 %v990
  %1087 = vmatprep.mubr.f32.mxu0 1.0
  %1088 = vmatmul.mubr.f32.gmra.mrb[0].mxu0 1.0
  %v1089 = vpop.f32.mrb[0].mxu0
  %v1090 = vadd.f32 0.0, %v1089
  %v1091 = vpop.f32.mrb[0].mxu0
  %1092 = vdwg.mxu0
  %1093 = vmatprep.subr.mxu0 0.0
  %1094 = vmatpush1.msra.mxu0 %v991
  %1095 = vmatprep.subr.mxu0 0.0
  %1096 = vmatpush1.msra.mxu0 %v992
  %1097 = vmatprep.subr.mxu0 0.0
  %1098 = vmatpush1.msra.mxu0 %v993
  %1099 = vmatprep.subr.mxu0 0.0
  %1100 = vmatpush1.msra.mxu0 %v994
  %1101 = vmatprep.subr.mxu0 0.0
  %1102 = vmatpush1.msra.mxu0 %v995
  %1103 = vmatprep.subr.mxu0 0.0
  %1104 = vmatpush1.msra.mxu0 %v996
  %1105 = vmatprep.subr.mxu0 0.0
  %1106 = vmatpush1.msra.mxu0 %v997
  %1107 = vmatprep.subr.mxu0 0.0
  %1108 = vmatpush1.msra.mxu0 %v998
  %1109 = vmatprep.subr.mxu0 0.0
  %1110 = vmatpush1.msra.mxu0 %v999
  %1111 = vmatprep.subr.mxu0 0.0
  %1112 = vmatpush1.msra.mxu0 %v1000
  %1113 = vmatprep.subr.mxu0 0.0
  %1114 = vmatpush1.msra.mxu0 %v1001
  %1115 = vmatprep.subr.mxu0 0.0
  %1116 = vmatpush1.msra.mxu0 %v1002
  %1117 = vmatprep.subr.mxu0 0.0
  %1118 = vmatpush1.msra.mxu0 %v1003
  %1119 = vmatprep.subr.mxu0 0.0
  %1120 = vmatpush1.msra.mxu0 %v1004
  %1121 = vmatprep.subr.mxu0 0.0
  %1122 = vmatpush1.msra.mxu0 %v1005
  %1123 = vmatprep.subr.mxu0 0.0
  %1124 = vmatpush1.msra.mxu0 %v1006
  %1125 = vmatprep.subr.mxu0 0.0
  %1126 = vmatpush1.msra.mxu0 %v1007
  %1127 = vmatprep.subr.mxu0 0.0
  %1128 = vmatpush1.msra.mxu0 %v1008
  %1129 = vmatprep.subr.mxu0 0.0
  %1130 = vmatpush1.msra.mxu0 %v1009
  %1131 = vmatprep.subr.mxu0 0.0
  %1132 = vmatpush1.msra.mxu0 %v1010
  %1133 = vmatprep.subr.mxu0 0.0
  %1134 = vmatpush1.msra.mxu0 %v1011
  %1135 = vmatprep.subr.mxu0 0.0
  %1136 = vmatpush1.msra.mxu0 %v1012
  %1137 = vmatprep.subr.mxu0 0.0
  %1138 = vmatpush1.msra.mxu0 %v1013
  %1139 = vmatprep.subr.mxu0 0.0
  %1140 = vmatpush1.msra.mxu0 %v1014
  %1141 = vmatprep.subr.mxu0 0.0
  %1142 = vmatpush1.msra.mxu0 %v1015
  %1143 = vmatprep.subr.mxu0 0.0
  %1144 = vmatpush1.msra.mxu0 %v1016
  %1145 = vmatprep.subr.mxu0 0.0
  %1146 = vmatpush1.msra.mxu0 %v1017
  %1147 = vmatprep.subr.mxu0 0.0
  %1148 = vmatpush1.msra.mxu0 %v1018
  %1149 = vmatprep.subr.mxu0 0.0
  %1150 = vmatpush1.msra.mxu0 %v1019
  %1151 = vmatprep.subr.mxu0 0.0
  %1152 = vmatpush1.msra.mxu0 %v1020
  %1153 = vmatprep.subr.mxu0 0.0
  %1154 = vmatpush1.msra.mxu0 %v1021
  %1155 = vmatprep.subr.mxu0 0.0
  %1156 = vmatpush1.msra.mxu0 %v1022
  %1157 = vmatprep.mubr.f32.mxu0 1.0
  %1158 = vmatmul.mubr.f32.gmra.mrb[0].mxu0 1.0
  %v1159 = vpop.f32.mrb[0].mxu0
  %v1160 = vadd.f32 %v1090, %v1159
  %v1161 = vpop.f32.mrb[0].mxu0
  %1162 = vdwg.mxu0
  %v1163 = vmul.f32 %v956, 0.001953125
  %v1164 = vmul.f32 %v1160, 0.001953125
  %v1165 = vmul.f32 %v1163, %v1163
  %v1166 = vsub.f32 %v1164, %v1165
  %v1167 = vadd.f32 %v1166, 1e-05
  %v1168 = vrsqrt.pop %v1167
  %v1169 = vld [vmem:[%s2] sm:$0x1]
  %v1170 = vmul.f32 %v1168, %v1169
  %v1171 = vld [vmem:[%s3] sm:$0x1]
  %v1172 = vmul.f32 %v1163, %v1170
  %v1173 = vsub.f32 %v1171, %v1172
  %v1174 = vlaneseq
  %v1175 = vshrl.u32 %v1174, 7
  %v1176 = vsub.s32 0, %v1175
  %v1177 = vrot.slane %v1170, %v1176
  %v1178 = vmul.f32 %v565, %v1177
  %v1179 = vmul.f32 %v568, %v1177
  %v1180 = vmul.f32 %v573, %v1177
  %v1181 = vmul.f32 %v576, %v1177
  %v1182 = vmul.f32 %v581, %v1177
  %v1183 = vmul.f32 %v584, %v1177
  %v1184 = vmul.f32 %v589, %v1177
  %v1185 = vmul.f32 %v592, %v1177
  %v1186 = vmul.f32 %v597, %v1177
  %v1187 = vmul.f32 %v600, %v1177
  %v1188 = vmul.f32 %v605, %v1177
  %v1189 = vmul.f32 %v608, %v1177
  %v1190 = vmul.f32 %v613, %v1177
  %v1191 = vmul.f32 %v616, %v1177
  %v1192 = vmul.f32 %v621, %v1177
  %v1193 = vmul.f32 %v624, %v1177
  %v1194 = vmul.f32 %v629, %v1177
  %v1195 = vmul.f32 %v632, %v1177
  %v1196 = vmul.f32 %v637, %v1177
  %v1197 = vmul.f32 %v640, %v1177
  %v1198 = vmul.f32 %v645, %v1177
  %v1199 = vmul.f32 %v648, %v1177
  %v1200 = vmul.f32 %v653, %v1177
  %v1201 = vmul.f32 %v656, %v1177
  %v1202 = vmul.f32 %v661, %v1177
  %v1203 = vmul.f32 %v664, %v1177
  %v1204 = vmul.f32 %v669, %v1177
  %v1205 = vmul.f32 %v672, %v1177
  %v1206 = vmul.f32 %v677, %v1177
  %v1207 = vmul.f32 %v680, %v1177
  %v1208 = vmul.f32 %v685, %v1177
  %v1209 = vmul.f32 %v688, %v1177
  %v1210 = vmul.f32 %v693, %v1177
  %v1211 = vmul.f32 %v696, %v1177
  %v1212 = vmul.f32 %v701, %v1177
  %v1213 = vmul.f32 %v704, %v1177
  %v1214 = vmul.f32 %v709, %v1177
  %v1215 = vmul.f32 %v712, %v1177
  %v1216 = vmul.f32 %v717, %v1177
  %v1217 = vmul.f32 %v720, %v1177
  %v1218 = vmul.f32 %v725, %v1177
  %v1219 = vmul.f32 %v728, %v1177
  %v1220 = vmul.f32 %v733, %v1177
  %v1221 = vmul.f32 %v736, %v1177
  %v1222 = vmul.f32 %v741, %v1177
  %v1223 = vmul.f32 %v744, %v1177
  %v1224 = vmul.f32 %v749, %v1177
  %v1225 = vmul.f32 %v752, %v1177
  %v1226 = vmul.f32 %v757, %v1177
  %v1227 = vmul.f32 %v760, %v1177
  %v1228 = vmul.f32 %v765, %v1177
  %v1229 = vmul.f32 %v768, %v1177
  %v1230 = vmul.f32 %v773, %v1177
  %v1231 = vmul.f32 %v776, %v1177
  %v1232 = vmul.f32 %v781, %v1177
  %v1233 = vmul.f32 %v784, %v1177
  %v1234 = vmul.f32 %v789, %v1177
  %v1235 = vmul.f32 %v792, %v1177
  %v1236 = vmul.f32 %v797, %v1177
  %v1237 = vmul.f32 %v800, %v1177
  %v1238 = vmul.f32 %v805, %v1177
  %v1239 = vmul.f32 %v808, %v1177
  %v1240 = vmul.f32 %v813, %v1177
  %v1241 = vmul.f32 %v816, %v1177
  %v1243 = vlaneseq
  %v1244 = vshrl.u32 %v1243, 7
  %v1245 = vsub.s32 0, %v1244
  %v1246 = vrot.slane %v1173, %v1245
  %v1248 = vadd.f32 %v1178, %v1246
  %v1249 = vadd.f32 %v1179, %v1246
  %v1250 = vadd.f32 %v1180, %v1246
  %v1251 = vadd.f32 %v1181, %v1246
  %v1252 = vadd.f32 %v1182, %v1246
  %v1253 = vadd.f32 %v1183, %v1246
  %v1254 = vadd.f32 %v1184, %v1246
  %v1255 = vadd.f32 %v1185, %v1246
  %v1256 = vadd.f32 %v1186, %v1246
  %v1257 = vadd.f32 %v1187, %v1246
  %v1258 = vadd.f32 %v1188, %v1246
  %v1259 = vadd.f32 %v1189, %v1246
  %v1260 = vadd.f32 %v1190, %v1246
  %v1261 = vadd.f32 %v1191, %v1246
  %v1262 = vadd.f32 %v1192, %v1246
  %v1263 = vadd.f32 %v1193, %v1246
  %v1264 = vadd.f32 %v1194, %v1246
  %v1265 = vadd.f32 %v1195, %v1246
  %v1266 = vadd.f32 %v1196, %v1246
  %v1267 = vadd.f32 %v1197, %v1246
  %v1268 = vadd.f32 %v1198, %v1246
  %v1269 = vadd.f32 %v1199, %v1246
  %v1270 = vadd.f32 %v1200, %v1246
  %v1271 = vadd.f32 %v1201, %v1246
  %v1272 = vadd.f32 %v1202, %v1246
  %v1273 = vadd.f32 %v1203, %v1246
  %v1274 = vadd.f32 %v1204, %v1246
  %v1275 = vadd.f32 %v1205, %v1246
  %v1276 = vadd.f32 %v1206, %v1246
  %v1277 = vadd.f32 %v1207, %v1246
  %v1278 = vadd.f32 %v1208, %v1246
  %v1279 = vadd.f32 %v1209, %v1246
  %v1280 = vadd.f32 %v1210, %v1246
  %v1281 = vadd.f32 %v1211, %v1246
  %v1282 = vadd.f32 %v1212, %v1246
  %v1283 = vadd.f32 %v1213, %v1246
  %v1284 = vadd.f32 %v1214, %v1246
  %v1285 = vadd.f32 %v1215, %v1246
  %v1286 = vadd.f32 %v1216, %v1246
  %v1287 = vadd.f32 %v1217, %v1246
  %v1288 = vadd.f32 %v1218, %v1246
  %v1289 = vadd.f32 %v1219, %v1246
  %v1290 = vadd.f32 %v1220, %v1246
  %v1291 = vadd.f32 %v1221, %v1246
  %v1292 = vadd.f32 %v1222, %v1246
  %v1293 = vadd.f32 %v1223, %v1246
  %v1294 = vadd.f32 %v1224, %v1246
  %v1295 = vadd.f32 %v1225, %v1246
  %v1296 = vadd.f32 %v1226, %v1246
  %v1297 = vadd.f32 %v1227, %v1246
  %v1298 = vadd.f32 %v1228, %v1246
  %v1299 = vadd.f32 %v1229, %v1246
  %v1300 = vadd.f32 %v1230, %v1246
  %v1301 = vadd.f32 %v1231, %v1246
  %v1302 = vadd.f32 %v1232, %v1246
  %v1303 = vadd.f32 %v1233, %v1246
  %v1304 = vadd.f32 %v1234, %v1246
  %v1305 = vadd.f32 %v1235, %v1246
  %v1306 = vadd.f32 %v1236, %v1246
  %v1307 = vadd.f32 %v1237, %v1246
  %v1308 = vadd.f32 %v1238, %v1246
  %v1309 = vadd.f32 %v1239, %v1246
  %v1310 = vadd.f32 %v1240, %v1246
  %v1311 = vadd.f32 %v1241, %v1246
  %vm1312 = vcmp.ge.f32.partialorder %v1248, 0.0
  %vm1313 = vcmp.ge.f32.partialorder %v1249, 0.0
  %vm1314 = vcmp.ge.f32.partialorder %v1250, 0.0
  %vm1315 = vcmp.ge.f32.partialorder %v1251, 0.0
  %vm1316 = vcmp.ge.f32.partialorder %v1252, 0.0
  %vm1317 = vcmp.ge.f32.partialorder %v1253, 0.0
  %vm1318 = vcmp.ge.f32.partialorder %v1254, 0.0
  %vm1319 = vcmp.ge.f32.partialorder %v1255, 0.0
  %vm1320 = vcmp.ge.f32.partialorder %v1256, 0.0
  %vm1321 = vcmp.ge.f32.partialorder %v1257, 0.0
  %vm1322 = vcmp.ge.f32.partialorder %v1258, 0.0
  %vm1323 = vcmp.ge.f32.partialorder %v1259, 0.0
  %vm1324 = vcmp.ge.f32.partialorder %v1260, 0.0
  %vm1325 = vcmp.ge.f32.partialorder %v1261, 0.0
  %vm1326 = vcmp.ge.f32.partialorder %v1262, 0.0
  %vm1327 = vcmp.ge.f32.partialorder %v1263, 0.0
  %vm1328 = vcmp.ge.f32.partialorder %v1264, 0.0
  %vm1329 = vcmp.ge.f32.partialorder %v1265, 0.0
  %vm1330 = vcmp.ge.f32.partialorder %v1266, 0.0
  %vm1331 = vcmp.ge.f32.partialorder %v1267, 0.0
  %vm1332 = vcmp.ge.f32.partialorder %v1268, 0.0
  %vm1333 = vcmp.ge.f32.partialorder %v1269, 0.0
  %vm1334 = vcmp.ge.f32.partialorder %v1270, 0.0
  %vm1335 = vcmp.ge.f32.partialorder %v1271, 0.0
  %vm1336 = vcmp.ge.f32.partialorder %v1272, 0.0
  %vm1337 = vcmp.ge.f32.partialorder %v1273, 0.0
  %vm1338 = vcmp.ge.f32.partialorder %v1274, 0.0
  %vm1339 = vcmp.ge.f32.partialorder %v1275, 0.0
  %vm1340 = vcmp.ge.f32.partialorder %v1276, 0.0
  %vm1341 = vcmp.ge.f32.partialorder %v1277, 0.0
  %vm1342 = vcmp.ge.f32.partialorder %v1278, 0.0
  %vm1343 = vcmp.ge.f32.partialorder %v1279, 0.0
  %vm1344 = vcmp.ge.f32.partialorder %v1280, 0.0
  %vm1345 = vcmp.ge.f32.partialorder %v1281, 0.0
  %vm1346 = vcmp.ge.f32.partialorder %v1282, 0.0
  %vm1347 = vcmp.ge.f32.partialorder %v1283, 0.0
  %vm1348 = vcmp.ge.f32.partialorder %v1284, 0.0
  %vm1349 = vcmp.ge.f32.partialorder %v1285, 0.0
  %vm1350 = vcmp.ge.f32.partialorder %v1286, 0.0
  %vm1351 = vcmp.ge.f32.partialorder %v1287, 0.0
  %vm1352 = vcmp.ge.f32.partialorder %v1288, 0.0
  %vm1353 = vcmp.ge.f32.partialorder %v1289, 0.0
  %vm1354 = vcmp.ge.f32.partialorder %v1290, 0.0
  %vm1355 = vcmp.ge.f32.partialorder %v1291, 0.0
  %vm1356 = vcmp.ge.f32.partialorder %v1292, 0.0
  %vm1357 = vcmp.ge.f32.partialorder %v1293, 0.0
  %vm1358 = vcmp.ge.f32.partialorder %v1294, 0.0
  %vm1359 = vcmp.ge.f32.partialorder %v1295, 0.0
  %vm1360 = vcmp.ge.f32.partialorder %v1296, 0.0
  %vm1361 = vcmp.ge.f32.partialorder %v1297, 0.0
  %vm1362 = vcmp.ge.f32.partialorder %v1298, 0.0
  %vm1363 = vcmp.ge.f32.partialorder %v1299, 0.0
  %vm1364 = vcmp.ge.f32.partialorder %v1300, 0.0
  %vm1365 = vcmp.ge.f32.partialorder %v1301, 0.0
  %vm1366 = vcmp.ge.f32.partialorder %v1302, 0.0
  %vm1367 = vcmp.ge.f32.partialorder %v1303, 0.0
  %vm1368 = vcmp.ge.f32.partialorder %v1304, 0.0
  %vm1369 = vcmp.ge.f32.partialorder %v1305, 0.0
  %vm1370 = vcmp.ge.f32.partialorder %v1306, 0.0
  %vm1371 = vcmp.ge.f32.partialorder %v1307, 0.0
  %vm1372 = vcmp.ge.f32.partialorder %v1308, 0.0
  %vm1373 = vcmp.ge.f32.partialorder %v1309, 0.0
  %vm1374 = vcmp.ge.f32.partialorder %v1310, 0.0
  %vm1375 = vcmp.ge.f32.partialorder %v1311, 0.0
  %v1376 = vmul.f32 %v1248, 0.2
  %v1377 = vmul.f32 %v1249, 0.2
  %v1378 = vmul.f32 %v1250, 0.2
  %v1379 = vmul.f32 %v1251, 0.2
  %v1380 = vmul.f32 %v1252, 0.2
  %v1381 = vmul.f32 %v1253, 0.2
  %v1382 = vmul.f32 %v1254, 0.2
  %v1383 = vmul.f32 %v1255, 0.2
  %v1384 = vmul.f32 %v1256, 0.2
  %v1385 = vmul.f32 %v1257, 0.2
  %v1386 = vmul.f32 %v1258, 0.2
  %v1387 = vmul.f32 %v1259, 0.2
  %v1388 = vmul.f32 %v1260, 0.2
  %v1389 = vmul.f32 %v1261, 0.2
  %v1390 = vmul.f32 %v1262, 0.2
  %v1391 = vmul.f32 %v1263, 0.2
  %v1392 = vmul.f32 %v1264, 0.2
  %v1393 = vmul.f32 %v1265, 0.2
  %v1394 = vmul.f32 %v1266, 0.2
  %v1395 = vmul.f32 %v1267, 0.2
  %v1396 = vmul.f32 %v1268, 0.2
  %v1397 = vmul.f32 %v1269, 0.2
  %v1398 = vmul.f32 %v1270, 0.2
  %v1399 = vmul.f32 %v1271, 0.2
  %v1400 = vmul.f32 %v1272, 0.2
  %v1401 = vmul.f32 %v1273, 0.2
  %v1402 = vmul.f32 %v1274, 0.2
  %v1403 = vmul.f32 %v1275, 0.2
  %v1404 = vmul.f32 %v1276, 0.2
  %v1405 = vmul.f32 %v1277, 0.2
  %v1406 = vmul.f32 %v1278, 0.2
  %v1407 = vmul.f32 %v1279, 0.2
  %v1408 = vmul.f32 %v1280, 0.2
  %v1409 = vmul.f32 %v1281, 0.2
  %v1410 = vmul.f32 %v1282, 0.2
  %v1411 = vmul.f32 %v1283, 0.2
  %v1412 = vmul.f32 %v1284, 0.2
  %v1413 = vmul.f32 %v1285, 0.2
  %v1414 = vmul.f32 %v1286, 0.2
  %v1415 = vmul.f32 %v1287, 0.2
  %v1416 = vmul.f32 %v1288, 0.2
  %v1417 = vmul.f32 %v1289, 0.2
  %v1418 = vmul.f32 %v1290, 0.2
  %v1419 = vmul.f32 %v1291, 0.2
  %v1420 = vmul.f32 %v1292, 0.2
  %v1421 = vmul.f32 %v1293, 0.2
  %v1422 = vmul.f32 %v1294, 0.2
  %v1423 = vmul.f32 %v1295, 0.2
  %v1424 = vmul.f32 %v1296, 0.2
  %v1425 = vmul.f32 %v1297, 0.2
  %v1426 = vmul.f32 %v1298, 0.2
  %v1427 = vmul.f32 %v1299, 0.2
  %v1428 = vmul.f32 %v1300, 0.2
  %v1429 = vmul.f32 %v1301, 0.2
  %v1430 = vmul.f32 %v1302, 0.2
  %v1431 = vmul.f32 %v1303, 0.2
  %v1432 = vmul.f32 %v1304, 0.2
  %v1433 = vmul.f32 %v1305, 0.2
  %v1434 = vmul.f32 %v1306, 0.2
  %v1435 = vmul.f32 %v1307, 0.2
  %v1436 = vmul.f32 %v1308, 0.2
  %v1437 = vmul.f32 %v1309, 0.2
  %v1438 = vmul.f32 %v1310, 0.2
  %v1439 = vmul.f32 %v1311, 0.2
  %v1440 = vsel %vm1312, %v1248, %v1376
  %v1441 = vsel %vm1313, %v1249, %v1377
  %v1442 = vsel %vm1314, %v1250, %v1378
  %v1443 = vsel %vm1315, %v1251, %v1379
  %v1444 = vsel %vm1316, %v1252, %v1380
  %v1445 = vsel %vm1317, %v1253, %v1381
  %v1446 = vsel %vm1318, %v1254, %v1382
  %v1447 = vsel %vm1319, %v1255, %v1383
  %v1448 = vsel %vm1320, %v1256, %v1384
  %v1449 = vsel %vm1321, %v1257, %v1385
  %v1450 = vsel %vm1322, %v1258, %v1386
  %v1451 = vsel %vm1323, %v1259, %v1387
  %v1452 = vsel %vm1324, %v1260, %v1388
  %v1453 = vsel %vm1325, %v1261, %v1389
  %v1454 = vsel %vm1326, %v1262, %v1390
  %v1455 = vsel %vm1327, %v1263, %v1391
  %v1456 = vsel %vm1328, %v1264, %v1392
  %v1457 = vsel %vm1329, %v1265, %v1393
  %v1458 = vsel %vm1330, %v1266, %v1394
  %v1459 = vsel %vm1331, %v1267, %v1395
  %v1460 = vsel %vm1332, %v1268, %v1396
  %v1461 = vsel %vm1333, %v1269, %v1397
  %v1462 = vsel %vm1334, %v1270, %v1398
  %v1463 = vsel %vm1335, %v1271, %v1399
  %v1464 = vsel %vm1336, %v1272, %v1400
  %v1465 = vsel %vm1337, %v1273, %v1401
  %v1466 = vsel %vm1338, %v1274, %v1402
  %v1467 = vsel %vm1339, %v1275, %v1403
  %v1468 = vsel %vm1340, %v1276, %v1404
  %v1469 = vsel %vm1341, %v1277, %v1405
  %v1470 = vsel %vm1342, %v1278, %v1406
  %v1471 = vsel %vm1343, %v1279, %v1407
  %v1472 = vsel %vm1344, %v1280, %v1408
  %v1473 = vsel %vm1345, %v1281, %v1409
  %v1474 = vsel %vm1346, %v1282, %v1410
  %v1475 = vsel %vm1347, %v1283, %v1411
  %v1476 = vsel %vm1348, %v1284, %v1412
  %v1477 = vsel %vm1349, %v1285, %v1413
  %v1478 = vsel %vm1350, %v1286, %v1414
  %v1479 = vsel %vm1351, %v1287, %v1415
  %v1480 = vsel %vm1352, %v1288, %v1416
  %v1481 = vsel %vm1353, %v1289, %v1417
  %v1482 = vsel %vm1354, %v1290, %v1418
  %v1483 = vsel %vm1355, %v1291, %v1419
  %v1484 = vsel %vm1356, %v1292, %v1420
  %v1485 = vsel %vm1357, %v1293, %v1421
  %v1486 = vsel %vm1358, %v1294, %v1422
  %v1487 = vsel %vm1359, %v1295, %v1423
  %v1488 = vsel %vm1360, %v1296, %v1424
  %v1489 = vsel %vm1361, %v1297, %v1425
  %v1490 = vsel %vm1362, %v1298, %v1426
  %v1491 = vsel %vm1363, %v1299, %v1427
  %v1492 = vsel %vm1364, %v1300, %v1428
  %v1493 = vsel %vm1365, %v1301, %v1429
  %v1494 = vsel %vm1366, %v1302, %v1430
  %v1495 = vsel %vm1367, %v1303, %v1431
  %v1496 = vsel %vm1368, %v1304, %v1432
  %v1497 = vsel %vm1369, %v1305, %v1433
  %v1498 = vsel %vm1370, %v1306, %v1434
  %v1499 = vsel %vm1371, %v1307, %v1435
  %v1500 = vsel %vm1372, %v1308, %v1436
  %v1501 = vsel %vm1373, %v1309, %v1437
  %v1502 = vsel %vm1374, %v1310, %v1438
  %v1503 = vsel %vm1375, %v1311, %v1439
  %v1504 = vpack.c.bf16 %v1441, %v1440
  %v1505 = vpack.c.bf16 %v1443, %v1442
  %v1506 = vpack.c.bf16 %v1445, %v1444
  %v1507 = vpack.c.bf16 %v1447, %v1446
  %v1508 = vpack.c.bf16 %v1449, %v1448
  %v1509 = vpack.c.bf16 %v1451, %v1450
  %v1510 = vpack.c.bf16 %v1453, %v1452
  %v1511 = vpack.c.bf16 %v1455, %v1454
  %v1512 = vpack.c.bf16 %v1457, %v1456
  %v1513 = vpack.c.bf16 %v1459, %v1458
  %v1514 = vpack.c.bf16 %v1461, %v1460
  %v1515 = vpack.c.bf16 %v1463, %v1462
  %v1516 = vpack.c.bf16 %v1465, %v1464
  %v1517 = vpack.c.bf16 %v1467, %v1466
  %v1518 = vpack.c.bf16 %v1469, %v1468
  %v1519 = vpack.c.bf16 %v1471, %v1470
  %v1520 = vpack.c.bf16 %v1473, %v1472
  %v1521 = vpack.c.bf16 %v1475, %v1474
  %v1522 = vpack.c.bf16 %v1477, %v1476
  %v1523 = vpack.c.bf16 %v1479, %v1478
  %v1524 = vpack.c.bf16 %v1481, %v1480
  %v1525 = vpack.c.bf16 %v1483, %v1482
  %v1526 = vpack.c.bf16 %v1485, %v1484
  %v1527 = vpack.c.bf16 %v1487, %v1486
  %v1528 = vpack.c.bf16 %v1489, %v1488
  %v1529 = vpack.c.bf16 %v1491, %v1490
  %v1530 = vpack.c.bf16 %v1493, %v1492
  %v1531 = vpack.c.bf16 %v1495, %v1494
  %v1532 = vpack.c.bf16 %v1497, %v1496
  %v1533 = vpack.c.bf16 %v1499, %v1498
  %v1534 = vpack.c.bf16 %v1501, %v1500
  %v1535 = vpack.c.bf16 %v1503, %v1502
  %v1568 = vunpack.c.l.b16 %v1504
  %v1569 = vunpack.c.h.b16 %v1504
  %v1570 = vunpack.c.l.b16 %v1505
  %v1571 = vunpack.c.h.b16 %v1505
  %v1572 = vunpack.c.l.b16 %v1506
  %v1573 = vunpack.c.h.b16 %v1506
  %v1574 = vunpack.c.l.b16 %v1507
  %v1575 = vunpack.c.h.b16 %v1507
  %v1576 = vunpack.c.l.b16 %v1508
  %v1577 = vunpack.c.h.b16 %v1508
  %v1578 = vunpack.c.l.b16 %v1509
  %v1579 = vunpack.c.h.b16 %v1509
  %v1580 = vunpack.c.l.b16 %v1510
  %v1581 = vunpack.c.h.b16 %v1510
  %v1582 = vunpack.c.l.b16 %v1511
  %v1583 = vunpack.c.h.b16 %v1511
  %v1584 = vunpack.c.l.b16 %v1512
  %v1585 = vunpack.c.h.b16 %v1512
  %v1586 = vunpack.c.l.b16 %v1513
  %v1587 = vunpack.c.h.b16 %v1513
  %v1588 = vunpack.c.l.b16 %v1514
  %v1589 = vunpack.c.h.b16 %v1514
  %v1590 = vunpack.c.l.b16 %v1515
  %v1591 = vunpack.c.h.b16 %v1515
  %v1592 = vunpack.c.l.b16 %v1516
  %v1593 = vunpack.c.h.b16 %v1516
  %v1594 = vunpack.c.l.b16 %v1517
  %v1595 = vunpack.c.h.b16 %v1517
  %v1596 = vunpack.c.l.b16 %v1518
  %v1597 = vunpack.c.h.b16 %v1518
  %v1598 = vunpack.c.l.b16 %v1519
  %v1599 = vunpack.c.h.b16 %v1519
  %v1600 = vunpack.c.l.b16 %v1520
  %v1601 = vunpack.c.h.b16 %v1520
  %v1602 = vunpack.c.l.b16 %v1521
  %v1603 = vunpack.c.h.b16 %v1521
  %v1604 = vunpack.c.l.b16 %v1522
  %v1605 = vunpack.c.h.b16 %v1522
  %v1606 = vunpack.c.l.b16 %v1523
  %v1607 = vunpack.c.h.b16 %v1523
  %v1608 = vunpack.c.l.b16 %v1524
  %v1609 = vunpack.c.h.b16 %v1524
  %v1610 = vunpack.c.l.b16 %v1525
  %v1611 = vunpack.c.h.b16 %v1525
  %v1612 = vunpack.c.l.b16 %v1526
  %v1613 = vunpack.c.h.b16 %v1526
  %v1614 = vunpack.c.l.b16 %v1527
  %v1615 = vunpack.c.h.b16 %v1527
  %v1616 = vunpack.c.l.b16 %v1528
  %v1617 = vunpack.c.h.b16 %v1528
  %v1618 = vunpack.c.l.b16 %v1529
  %v1619 = vunpack.c.h.b16 %v1529
  %v1620 = vunpack.c.l.b16 %v1530
  %v1621 = vunpack.c.h.b16 %v1530
  %v1622 = vunpack.c.l.b16 %v1531
  %v1623 = vunpack.c.h.b16 %v1531
  %v1624 = vunpack.c.l.b16 %v1532
  %v1625 = vunpack.c.h.b16 %v1532
  %v1626 = vunpack.c.l.b16 %v1533
  %v1627 = vunpack.c.h.b16 %v1533
  %v1628 = vunpack.c.l.b16 %v1534
  %v1629 = vunpack.c.h.b16 %v1534
  %v1630 = vunpack.c.l.b16 %v1535
  %v1631 = vunpack.c.h.b16 %v1535
  %v1632 = vpack.c.b16 %v1568, %v1568
  %v1633 = vpack.c.b16 %v1569, %v1569
  %v1634 = vpack.c.b16 %v1570, %v1570
  %v1635 = vpack.c.b16 %v1571, %v1571
  %v1636 = vpack.c.b16 %v1572, %v1572
  %v1637 = vpack.c.b16 %v1573, %v1573
  %v1638 = vpack.c.b16 %v1574, %v1574
  %v1639 = vpack.c.b16 %v1575, %v1575
  %v1640 = vpack.c.b16 %v1576, %v1576
  %v1641 = vpack.c.b16 %v1577, %v1577
  %v1642 = vpack.c.b16 %v1578, %v1578
  %v1643 = vpack.c.b16 %v1579, %v1579
  %v1644 = vpack.c.b16 %v1580, %v1580
  %v1645 = vpack.c.b16 %v1581, %v1581
  %v1646 = vpack.c.b16 %v1582, %v1582
  %v1647 = vpack.c.b16 %v1583, %v1583
  %v1648 = vpack.c.b16 %v1584, %v1584
  %v1649 = vpack.c.b16 %v1585, %v1585
  %v1650 = vpack.c.b16 %v1586, %v1586
  %v1651 = vpack.c.b16 %v1587, %v1587
  %v1652 = vpack.c.b16 %v1588, %v1588
  %v1653 = vpack.c.b16 %v1589, %v1589
  %v1654 = vpack.c.b16 %v1590, %v1590
  %v1655 = vpack.c.b16 %v1591, %v1591
  %v1656 = vpack.c.b16 %v1592, %v1592
  %v1657 = vpack.c.b16 %v1593, %v1593
  %v1658 = vpack.c.b16 %v1594, %v1594
  %v1659 = vpack.c.b16 %v1595, %v1595
  %v1660 = vpack.c.b16 %v1596, %v1596
  %v1661 = vpack.c.b16 %v1597, %v1597
  %v1662 = vpack.c.b16 %v1598, %v1598
  %v1663 = vpack.c.b16 %v1599, %v1599
  %v1664 = vpack.c.b16 %v1600, %v1600
  %v1665 = vpack.c.b16 %v1601, %v1601
  %v1666 = vpack.c.b16 %v1602, %v1602
  %v1667 = vpack.c.b16 %v1603, %v1603
  %v1668 = vpack.c.b16 %v1604, %v1604
  %v1669 = vpack.c.b16 %v1605, %v1605
  %v1670 = vpack.c.b16 %v1606, %v1606
  %v1671 = vpack.c.b16 %v1607, %v1607
  %v1672 = vpack.c.b16 %v1608, %v1608
  %v1673 = vpack.c.b16 %v1609, %v1609
  %v1674 = vpack.c.b16 %v1610, %v1610
  %v1675 = vpack.c.b16 %v1611, %v1611
  %v1676 = vpack.c.b16 %v1612, %v1612
  %v1677 = vpack.c.b16 %v1613, %v1613
  %v1678 = vpack.c.b16 %v1614, %v1614
  %v1679 = vpack.c.b16 %v1615, %v1615
  %v1680 = vpack.c.b16 %v1616, %v1616
  %v1681 = vpack.c.b16 %v1617, %v1617
  %v1682 = vpack.c.b16 %v1618, %v1618
  %v1683 = vpack.c.b16 %v1619, %v1619
  %v1684 = vpack.c.b16 %v1620, %v1620
  %v1685 = vpack.c.b16 %v1621, %v1621
  %v1686 = vpack.c.b16 %v1622, %v1622
  %v1687 = vpack.c.b16 %v1623, %v1623
  %v1688 = vpack.c.b16 %v1624, %v1624
  %v1689 = vpack.c.b16 %v1625, %v1625
  %v1690 = vpack.c.b16 %v1626, %v1626
  %v1691 = vpack.c.b16 %v1627, %v1627
  %v1692 = vpack.c.b16 %v1628, %v1628
  %v1693 = vpack.c.b16 %v1629, %v1629
  %v1694 = vpack.c.b16 %v1630, %v1630
  %v1695 = vpack.c.b16 %v1631, %v1631
  %vm1760 = vcmask 257024
  %1761 = vst.msk [vmem:[%s4] sm:$0xf] %vm1760, %v1632
  %1762 = vst.msk [vmem:[%s4 + $0x4] sm:$0xf] %vm1760, %v1633
  %1763 = vst.msk [vmem:[%s4 + $0x8] sm:$0xf] %vm1760, %v1634
  %1764 = vst.msk [vmem:[%s4 + $0xc] sm:$0xf] %vm1760, %v1635
  %1765 = vst.msk [vmem:[%s4 + $0x10] sm:$0xf] %vm1760, %v1636
  %1766 = vst.msk [vmem:[%s4 + $0x14] sm:$0xf] %vm1760, %v1637
  %1767 = vst.msk [vmem:[%s4 + $0x18] sm:$0xf] %vm1760, %v1638
  %1768 = vst.msk [vmem:[%s4 + $0x1c] sm:$0xf] %vm1760, %v1639
  %1769 = vst.msk [vmem:[%s4 + $0x20] sm:$0xf] %vm1760, %v1640
  %1770 = vst.msk [vmem:[%s4 + $0x24] sm:$0xf] %vm1760, %v1641
  %1771 = vst.msk [vmem:[%s4 + $0x28] sm:$0xf] %vm1760, %v1642
  %1772 = vst.msk [vmem:[%s4 + $0x2c] sm:$0xf] %vm1760, %v1643
  %1773 = vst.msk [vmem:[%s4 + $0x30] sm:$0xf] %vm1760, %v1644
  %1774 = vst.msk [vmem:[%s4 + $0x34] sm:$0xf] %vm1760, %v1645
  %1775 = vst.msk [vmem:[%s4 + $0x38] sm:$0xf] %vm1760, %v1646
  %1776 = vst.msk [vmem:[%s4 + $0x3c] sm:$0xf] %vm1760, %v1647
  %1777 = vst.msk [vmem:[%s4 + $0x40] sm:$0xf] %vm1760, %v1648
  %1778 = vst.msk [vmem:[%s4 + $0x44] sm:$0xf] %vm1760, %v1649
  %1779 = vst.msk [vmem:[%s4 + $0x48] sm:$0xf] %vm1760, %v1650
  %1780 = vst.msk [vmem:[%s4 + $0x4c] sm:$0xf] %vm1760, %v1651
  %1781 = vst.msk [vmem:[%s4 + $0x50] sm:$0xf] %vm1760, %v1652
  %1782 = vst.msk [vmem:[%s4 + $0x54] sm:$0xf] %vm1760, %v1653
  %1783 = vst.msk [vmem:[%s4 + $0x58] sm:$0xf] %vm1760, %v1654
  %1784 = vst.msk [vmem:[%s4 + $0x5c] sm:$0xf] %vm1760, %v1655
  %1785 = vst.msk [vmem:[%s4 + $0x60] sm:$0xf] %vm1760, %v1656
  %1786 = vst.msk [vmem:[%s4 + $0x64] sm:$0xf] %vm1760, %v1657
  %1787 = vst.msk [vmem:[%s4 + $0x68] sm:$0xf] %vm1760, %v1658
  %1788 = vst.msk [vmem:[%s4 + $0x6c] sm:$0xf] %vm1760, %v1659
  %1789 = vst.msk [vmem:[%s4 + $0x70] sm:$0xf] %vm1760, %v1660
  %1790 = vst.msk [vmem:[%s4 + $0x74] sm:$0xf] %vm1760, %v1661
  %1791 = vst.msk [vmem:[%s4 + $0x78] sm:$0xf] %vm1760, %v1662
  %1792 = vst.msk [vmem:[%s4 + $0x7c] sm:$0xf] %vm1760, %v1663
  %1793 = vst.msk [vmem:[%s4 + $0x80] sm:$0xf] %vm1760, %v1664
  %1794 = vst.msk [vmem:[%s4 + $0x84] sm:$0xf] %vm1760, %v1665
  %1795 = vst.msk [vmem:[%s4 + $0x88] sm:$0xf] %vm1760, %v1666
  %1796 = vst.msk [vmem:[%s4 + $0x8c] sm:$0xf] %vm1760, %v1667
  %1797 = vst.msk [vmem:[%s4 + $0x90] sm:$0xf] %vm1760, %v1668
  %1798 = vst.msk [vmem:[%s4 + $0x94] sm:$0xf] %vm1760, %v1669
  %1799 = vst.msk [vmem:[%s4 + $0x98] sm:$0xf] %vm1760, %v1670
  %1800 = vst.msk [vmem:[%s4 + $0x9c] sm:$0xf] %vm1760, %v1671
  %1801 = vst.msk [vmem:[%s4 + $0xa0] sm:$0xf] %vm1760, %v1672
  %1802 = vst.msk [vmem:[%s4 + $0xa4] sm:$0xf] %vm1760, %v1673
  %1803 = vst.msk [vmem:[%s4 + $0xa8] sm:$0xf] %vm1760, %v1674
  %1804 = vst.msk [vmem:[%s4 + $0xac] sm:$0xf] %vm1760, %v1675
  %1805 = vst.msk [vmem:[%s4 + $0xb0] sm:$0xf] %vm1760, %v1676
  %1806 = vst.msk [vmem:[%s4 + $0xb4] sm:$0xf] %vm1760, %v1677
  %1807 = vst.msk [vmem:[%s4 + $0xb8] sm:$0xf] %vm1760, %v1678
  %1808 = vst.msk [vmem:[%s4 + $0xbc] sm:$0xf] %vm1760, %v1679
  %1809 = vst.msk [vmem:[%s4 + $0xc0] sm:$0xf] %vm1760, %v1680
  %1810 = vst.msk [vmem:[%s4 + $0xc4] sm:$0xf] %vm1760, %v1681
  %1811 = vst.msk [vmem:[%s4 + $0xc8] sm:$0xf] %vm1760, %v1682
  %1812 = vst.msk [vmem:[%s4 + $0xcc] sm:$0xf] %vm1760, %v1683
  %1813 = vst.msk [vmem:[%s4 + $0xd0] sm:$0xf] %vm1760, %v1684
  %1814 = vst.msk [vmem:[%s4 + $0xd4] sm:$0xf] %vm1760, %v1685
  %1815 = vst.msk [vmem:[%s4 + $0xd8] sm:$0xf] %vm1760, %v1686
  %1816 = vst.msk [vmem:[%s4 + $0xdc] sm:$0xf] %vm1760, %v1687
  %1817 = vst.msk [vmem:[%s4 + $0xe0] sm:$0xf] %vm1760, %v1688
  %1818 = vst.msk [vmem:[%s4 + $0xe4] sm:$0xf] %vm1760, %v1689
  %1819 = vst.msk [vmem:[%s4 + $0xe8] sm:$0xf] %vm1760, %v1690
  %1820 = vst.msk [vmem:[%s4 + $0xec] sm:$0xf] %vm1760, %v1691
  %1821 = vst.msk [vmem:[%s4 + $0xf0] sm:$0xf] %vm1760, %v1692
  %1822 = vst.msk [vmem:[%s4 + $0xf4] sm:$0xf] %vm1760, %v1693
  %1823 = vst.msk [vmem:[%s4 + $0xf8] sm:$0xf] %vm1760, %v1694
  %1824 = vst.msk [vmem:[%s4 + $0xfc] sm:$0xf] %vm1760, %v1695
  // Predicated region
  $region18: #{discriminator_forward.8} parent=0 // pred_check
    _
  $region19: #{discriminator_forward.8} parent=0 // pred_check_branch
    %1826 = sbr.rel (0) target = $region21
  $region20: #{discriminator_forward.8} parent=0 // pred_region
    _
  $region21: #{discriminator_forward.8} parent=0 // pred_fallthru
    _
  // Predicated region
  $region22: #{discriminator_forward.8} parent=0 // pred_check
    _
  $region23: #{discriminator_forward.8} parent=0 // pred_check_branch
    %1828 = sbr.rel (0) target = $region25
  $region24: #{discriminator_forward.8} parent=0 // pred_region
    _
  $region25: #{discriminator_forward.8} parent=0 // pred_fallthru
    _

// kernel: discriminator_forward.9
$region0: #{discriminator_forward.9}
  #allocation0 [shape = 'u32[]', space=smem, size = 0x4, offset = 0x4, fixed_abs, tag = 'smem constant byte address 0x4 - core index']
  #allocation1 [shape = 'u32[144,128]{1,0:T(1,128)}', space=vmem, size = 0x12000, scoped, tag = 'internal scratch']
  %s0 = inlined_call_operand.vmem [shape: bf16[128,512], index: 0, kind: input, shape index: {}]
  %s1 = inlined_call_operand.vmem [shape: bf16[512,64], index: 1, kind: input, shape index: {}]
  %s2 = inlined_call_operand.vmem [shape: f32[1,64], index: 2, kind: input, shape index: {}]
  %s3 = inlined_call_operand.vmem [shape: f32[1,64], index: 3, kind: input, shape index: {}]
  %s4 = inlined_call_operand.vmem [shape: bf16[128,64], index: 4, kind: output, shape index: {}]
  %s5 = sld [smem:[#allocation0]]
  $region26: #{discriminator_forward.9} parent=0
    _
  %s7 = ssub.s32 1, %s5
  %s8 = scalar_select 0, %s7, %s5
  // Predicated region
  $region2: #{discriminator_forward.9} parent=0 // pred_check
    _
  $region3: #{discriminator_forward.9} parent=0 // pred_check_branch
    %10 = sbr.rel (0) target = $region5
  $region4: #{discriminator_forward.9} parent=0 // pred_region
    _
  $region5: #{discriminator_forward.9} parent=0 // pred_fallthru
    _
  // Predicated region
  $region6: #{discriminator_forward.9} parent=0 // pred_check
    _
  $region7: #{discriminator_forward.9} parent=0 // pred_check_branch
    %12 = sbr.rel (0) target = $region9
  $region8: #{discriminator_forward.9} parent=0 // pred_region
    _
  $region9: #{discriminator_forward.9} parent=0 // pred_fallthru
    _
  // Predicated region
  $region10: #{discriminator_forward.9} parent=0 // pred_check
    _
  $region11: #{discriminator_forward.9} parent=0 // pred_check_branch
    %14 = sbr.rel (0) target = $region13
  $region12: #{discriminator_forward.9} parent=0 // pred_region
    _
  $region13: #{discriminator_forward.9} parent=0 // pred_fallthru
    _
  // Predicated region
  $region14: #{discriminator_forward.9} parent=0 // pred_check
    _
  $region15: #{discriminator_forward.9} parent=0 // pred_check_branch
    %16 = sbr.rel (0) target = $region17
  $region16: #{discriminator_forward.9} parent=0 // pred_region
    _
  $region17: #{discriminator_forward.9} parent=0 // pred_fallthru
    _
  %v18 = vld [vmem:[%s0] sm:$0xff]
  %v19 = vld [vmem:[%s0 + $0x8] sm:$0xff]
  %v20 = vld [vmem:[%s0 + $0x10] sm:$0xff]
  %v21 = vld [vmem:[%s0 + $0x18] sm:$0xff]
  %v22 = vld [vmem:[%s0 + $0x20] sm:$0xff]
  %v23 = vld [vmem:[%s0 + $0x28] sm:$0xff]
  %v24 = vld [vmem:[%s0 + $0x30] sm:$0xff]
  %v25 = vld [vmem:[%s0 + $0x38] sm:$0xff]
  %v26 = vld [vmem:[%s0 + $0x40] sm:$0xff]
  %v27 = vld [vmem:[%s0 + $0x48] sm:$0xff]
  %v28 = vld [vmem:[%s0 + $0x50] sm:$0xff]
  %v29 = vld [vmem:[%s0 + $0x58] sm:$0xff]
  %v30 = vld [vmem:[%s0 + $0x60] sm:$0xff]
  %v31 = vld [vmem:[%s0 + $0x68] sm:$0xff]
  %v32 = vld [vmem:[%s0 + $0x70] sm:$0xff]
  %v33 = vld [vmem:[%s0 + $0x78] sm:$0xff]
  %v34 = vld [vmem:[%s0 + $0x80] sm:$0xff]
  %v35 = vld [vmem:[%s0 + $0x88] sm:$0xff]
  %v36 = vld [vmem:[%s0 + $0x90] sm:$0xff]
  %v37 = vld [vmem:[%s0 + $0x98] sm:$0xff]
  %v38 = vld [vmem:[%s0 + $0xa0] sm:$0xff]
  %v39 = vld [vmem:[%s0 + $0xa8] sm:$0xff]
  %v40 = vld [vmem:[%s0 + $0xb0] sm:$0xff]
  %v41 = vld [vmem:[%s0 + $0xb8] sm:$0xff]
  %v42 = vld [vmem:[%s0 + $0xc0] sm:$0xff]
  %v43 = vld [vmem:[%s0 + $0xc8] sm:$0xff]
  %v44 = vld [vmem:[%s0 + $0xd0] sm:$0xff]
  %v45 = vld [vmem:[%s0 + $0xd8] sm:$0xff]
  %v46 = vld [vmem:[%s0 + $0xe0] sm:$0xff]
  %v47 = vld [vmem:[%s0 + $0xe8] sm:$0xff]
  %v48 = vld [vmem:[%s0 + $0xf0] sm:$0xff]
  %v49 = vld [vmem:[%s0 + $0xf8] sm:$0xff]
  %v50 = vld [vmem:[%s1] sm:$0xf]
  %v51 = vld [vmem:[%s1 + $0x4] sm:$0xf]
  %v52 = vld [vmem:[%s1 + $0x8] sm:$0xf]
  %v53 = vld [vmem:[%s1 + $0xc] sm:$0xf]
  %v54 = vld [vmem:[%s1 + $0x10] sm:$0xf]
  %v55 = vld [vmem:[%s1 + $0x14] sm:$0xf]
  %v56 = vld [vmem:[%s1 + $0x18] sm:$0xf]
  %v57 = vld [vmem:[%s1 + $0x1c] sm:$0xf]
  %v58 = vld [vmem:[%s1 + $0x20] sm:$0xf]
  %v59 = vld [vmem:[%s1 + $0x24] sm:$0xf]
  %v60 = vld [vmem:[%s1 + $0x28] sm:$0xf]
  %v61 = vld [vmem:[%s1 + $0x2c] sm:$0xf]
  %v62 = vld [vmem:[%s1 + $0x30] sm:$0xf]
  %v63 = vld [vmem:[%s1 + $0x34] sm:$0xf]
  %v64 = vld [vmem:[%s1 + $0x38] sm:$0xf]
  %v65 = vld [vmem:[%s1 + $0x3c] sm:$0xf]
  %v66 = vld [vmem:[%s1 + $0x40] sm:$0xf]
  %v67 = vld [vmem:[%s1 + $0x44] sm:$0xf]
  %v68 = vld [vmem:[%s1 + $0x48] sm:$0xf]
  %v69 = vld [vmem:[%s1 + $0x4c] sm:$0xf]
  %v70 = vld [vmem:[%s1 + $0x50] sm:$0xf]
  %v71 = vld [vmem:[%s1 + $0x54] sm:$0xf]
  %v72 = vld [vmem:[%s1 + $0x58] sm:$0xf]
  %v73 = vld [vmem:[%s1 + $0x5c] sm:$0xf]
  %v74 = vld [vmem:[%s1 + $0x60] sm:$0xf]
  %v75 = vld [vmem:[%s1 + $0x64] sm:$0xf]
  %v76 = vld [vmem:[%s1 + $0x68] sm:$0xf]
  %v77 = vld [vmem:[%s1 + $0x6c] sm:$0xf]
  %v78 = vld [vmem:[%s1 + $0x70] sm:$0xf]
  %v79 = vld [vmem:[%s1 + $0x74] sm:$0xf]
  %v80 = vld [vmem:[%s1 + $0x78] sm:$0xf]
  %v81 = vld [vmem:[%s1 + $0x7c] sm:$0xf]
  %v82 = vld [vmem:[%s1 + $0x80] sm:$0xf]
  %v83 = vld [vmem:[%s1 + $0x84] sm:$0xf]
  %v84 = vld [vmem:[%s1 + $0x88] sm:$0xf]
  %v85 = vld [vmem:[%s1 + $0x8c] sm:$0xf]
  %v86 = vld [vmem:[%s1 + $0x90] sm:$0xf]
  %v87 = vld [vmem:[%s1 + $0x94] sm:$0xf]
  %v88 = vld [vmem:[%s1 + $0x98] sm:$0xf]
  %v89 = vld [vmem:[%s1 + $0x9c] sm:$0xf]
  %v90 = vld [vmem:[%s1 + $0xa0] sm:$0xf]
  %v91 = vld [vmem:[%s1 + $0xa4] sm:$0xf]
  %v92 = vld [vmem:[%s1 + $0xa8] sm:$0xf]
  %v93 = vld [vmem:[%s1 + $0xac] sm:$0xf]
  %v94 = vld [vmem:[%s1 + $0xb0] sm:$0xf]
  %v95 = vld [vmem:[%s1 + $0xb4] sm:$0xf]
  %v96 = vld [vmem:[%s1 + $0xb8] sm:$0xf]
  %v97 = vld [vmem:[%s1 + $0xbc] sm:$0xf]
  %v98 = vld [vmem:[%s1 + $0xc0] sm:$0xf]
  %v99 = vld [vmem:[%s1 + $0xc4] sm:$0xf]
  %v100 = vld [vmem:[%s1 + $0xc8] sm:$0xf]
  %v101 = vld [vmem:[%s1 + $0xcc] sm:$0xf]
  %v102 = vld [vmem:[%s1 + $0xd0] sm:$0xf]
  %v103 = vld [vmem:[%s1 + $0xd4] sm:$0xf]
  %v104 = vld [vmem:[%s1 + $0xd8] sm:$0xf]
  %v105 = vld [vmem:[%s1 + $0xdc] sm:$0xf]
  %v106 = vld [vmem:[%s1 + $0xe0] sm:$0xf]
  %v107 = vld [vmem:[%s1 + $0xe4] sm:$0xf]
  %v108 = vld [vmem:[%s1 + $0xe8] sm:$0xf]
  %v109 = vld [vmem:[%s1 + $0xec] sm:$0xf]
  %v110 = vld [vmem:[%s1 + $0xf0] sm:$0xf]
  %v111 = vld [vmem:[%s1 + $0xf4] sm:$0xf]
  %v112 = vld [vmem:[%s1 + $0xf8] sm:$0xf]
  %v113 = vld [vmem:[%s1 + $0xfc] sm:$0xf]
  %v146 = vunpack.c.l.b16 %v18
  %v147 = vunpack.c.h.b16 %v18
  %v148 = vunpack.c.l.b16 %v19
  %v149 = vunpack.c.h.b16 %v19
  %v150 = vunpack.c.l.b16 %v20
  %v151 = vunpack.c.h.b16 %v20
  %v152 = vunpack.c.l.b16 %v21
  %v153 = vunpack.c.h.b16 %v21
  %v154 = vunpack.c.l.b16 %v22
  %v155 = vunpack.c.h.b16 %v22
  %v156 = vunpack.c.l.b16 %v23
  %v157 = vunpack.c.h.b16 %v23
  %v158 = vunpack.c.l.b16 %v24
  %v159 = vunpack.c.h.b16 %v24
  %v160 = vunpack.c.l.b16 %v25
  %v161 = vunpack.c.h.b16 %v25
  %v162 = vunpack.c.l.b16 %v26
  %v163 = vunpack.c.h.b16 %v26
  %v164 = vunpack.c.l.b16 %v27
  %v165 = vunpack.c.h.b16 %v27
  %v166 = vunpack.c.l.b16 %v28
  %v167 = vunpack.c.h.b16 %v28
  %v168 = vunpack.c.l.b16 %v29
  %v169 = vunpack.c.h.b16 %v29
  %v170 = vunpack.c.l.b16 %v30
  %v171 = vunpack.c.h.b16 %v30
  %v172 = vunpack.c.l.b16 %v31
  %v173 = vunpack.c.h.b16 %v31
  %v174 = vunpack.c.l.b16 %v32
  %v175 = vunpack.c.h.b16 %v32
  %v176 = vunpack.c.l.b16 %v33
  %v177 = vunpack.c.h.b16 %v33
  %v178 = vunpack.c.l.b16 %v34
  %v179 = vunpack.c.h.b16 %v34
  %v180 = vunpack.c.l.b16 %v35
  %v181 = vunpack.c.h.b16 %v35
  %v182 = vunpack.c.l.b16 %v36
  %v183 = vunpack.c.h.b16 %v36
  %v184 = vunpack.c.l.b16 %v37
  %v185 = vunpack.c.h.b16 %v37
  %v186 = vunpack.c.l.b16 %v38
  %v187 = vunpack.c.h.b16 %v38
  %v188 = vunpack.c.l.b16 %v39
  %v189 = vunpack.c.h.b16 %v39
  %v190 = vunpack.c.l.b16 %v40
  %v191 = vunpack.c.h.b16 %v40
  %v192 = vunpack.c.l.b16 %v41
  %v193 = vunpack.c.h.b16 %v41
  %v194 = vunpack.c.l.b16 %v42
  %v195 = vunpack.c.h.b16 %v42
  %v196 = vunpack.c.l.b16 %v43
  %v197 = vunpack.c.h.b16 %v43
  %v198 = vunpack.c.l.b16 %v44
  %v199 = vunpack.c.h.b16 %v44
  %v200 = vunpack.c.l.b16 %v45
  %v201 = vunpack.c.h.b16 %v45
  %v202 = vunpack.c.l.b16 %v46
  %v203 = vunpack.c.h.b16 %v46
  %v204 = vunpack.c.l.b16 %v47
  %v205 = vunpack.c.h.b16 %v47
  %v206 = vunpack.c.l.b16 %v48
  %v207 = vunpack.c.h.b16 %v48
  %v208 = vunpack.c.l.b16 %v49
  %v209 = vunpack.c.h.b16 %v49
  %v210 = vpack.c.b16 %v150, %v146
  %v211 = vpack.c.b16 %v151, %v147
  %v212 = vpack.c.b16 %v152, %v148
  %v213 = vpack.c.b16 %v153, %v149
  %v214 = vpack.c.b16 %v158, %v154
  %v215 = vpack.c.b16 %v159, %v155
  %v216 = vpack.c.b16 %v160, %v156
  %v217 = vpack.c.b16 %v161, %v157
  %v218 = vpack.c.b16 %v166, %v162
  %v219 = vpack.c.b16 %v167, %v163
  %v220 = vpack.c.b16 %v168, %v164
  %v221 = vpack.c.b16 %v169, %v165
  %v222 = vpack.c.b16 %v174, %v170
  %v223 = vpack.c.b16 %v175, %v171
  %v224 = vpack.c.b16 %v176, %v172
  %v225 = vpack.c.b16 %v177, %v173
  %v226 = vpack.c.b16 %v182, %v178
  %v227 = vpack.c.b16 %v183, %v179
  %v228 = vpack.c.b16 %v184, %v180
  %v229 = vpack.c.b16 %v185, %v181
  %v230 = vpack.c.b16 %v190, %v186
  %v231 = vpack.c.b16 %v191, %v187
  %v232 = vpack.c.b16 %v192, %v188
  %v233 = vpack.c.b16 %v193, %v189
  %v234 = vpack.c.b16 %v198, %v194
  %v235 = vpack.c.b16 %v199, %v195
  %v236 = vpack.c.b16 %v200, %v196
  %v237 = vpack.c.b16 %v201, %v197
  %v238 = vpack.c.b16 %v206, %v202
  %v239 = vpack.c.b16 %v207, %v203
  %v240 = vpack.c.b16 %v208, %v204
  %v241 = vpack.c.b16 %v209, %v205
  %v338 = vunpack.c.l.b16 %v50
  %v339 = vunpack.c.l.b16 %v51
  %v340 = vunpack.c.l.b16 %v52
  %v341 = vunpack.c.l.b16 %v53
  %v342 = vunpack.c.l.b16 %v54
  %v343 = vunpack.c.l.b16 %v55
  %v344 = vunpack.c.l.b16 %v56
  %v345 = vunpack.c.l.b16 %v57
  %v346 = vunpack.c.l.b16 %v58
  %v347 = vunpack.c.l.b16 %v59
  %v348 = vunpack.c.l.b16 %v60
  %v349 = vunpack.c.l.b16 %v61
  %v350 = vunpack.c.l.b16 %v62
  %v351 = vunpack.c.l.b16 %v63
  %v352 = vunpack.c.l.b16 %v64
  %v353 = vunpack.c.l.b16 %v65
  %v354 = vunpack.c.l.b16 %v66
  %v355 = vunpack.c.l.b16 %v67
  %v356 = vunpack.c.l.b16 %v68
  %v357 = vunpack.c.l.b16 %v69
  %v358 = vunpack.c.l.b16 %v70
  %v359 = vunpack.c.l.b16 %v71
  %v360 = vunpack.c.l.b16 %v72
  %v361 = vunpack.c.l.b16 %v73
  %v362 = vunpack.c.l.b16 %v74
  %v363 = vunpack.c.l.b16 %v75
  %v364 = vunpack.c.l.b16 %v76
  %v365 = vunpack.c.l.b16 %v77
  %v366 = vunpack.c.l.b16 %v78
  %v367 = vunpack.c.l.b16 %v79
  %v368 = vunpack.c.l.b16 %v80
  %v369 = vunpack.c.l.b16 %v81
  %v370 = vunpack.c.l.b16 %v82
  %v371 = vunpack.c.l.b16 %v83
  %v372 = vunpack.c.l.b16 %v84
  %v373 = vunpack.c.l.b16 %v85
  %v374 = vunpack.c.l.b16 %v86
  %v375 = vunpack.c.l.b16 %v87
  %v376 = vunpack.c.l.b16 %v88
  %v377 = vunpack.c.l.b16 %v89
  %v378 = vunpack.c.l.b16 %v90
  %v379 = vunpack.c.l.b16 %v91
  %v380 = vunpack.c.l.b16 %v92
  %v381 = vunpack.c.l.b16 %v93
  %v382 = vunpack.c.l.b16 %v94
  %v383 = vunpack.c.l.b16 %v95
  %v384 = vunpack.c.l.b16 %v96
  %v385 = vunpack.c.l.b16 %v97
  %v386 = vunpack.c.l.b16 %v98
  %v387 = vunpack.c.l.b16 %v99
  %v388 = vunpack.c.l.b16 %v100
  %v389 = vunpack.c.l.b16 %v101
  %v390 = vunpack.c.l.b16 %v102
  %v391 = vunpack.c.l.b16 %v103
  %v392 = vunpack.c.l.b16 %v104
  %v393 = vunpack.c.l.b16 %v105
  %v394 = vunpack.c.l.b16 %v106
  %v395 = vunpack.c.l.b16 %v107
  %v396 = vunpack.c.l.b16 %v108
  %v397 = vunpack.c.l.b16 %v109
  %v398 = vunpack.c.l.b16 %v110
  %v399 = vunpack.c.l.b16 %v111
  %v400 = vunpack.c.l.b16 %v112
  %v401 = vunpack.c.l.b16 %v113
  %v402 = vpack.c.b16 %v339, %v338
  %v403 = vpack.c.b16 %v341, %v340
  %v404 = vpack.c.b16 %v343, %v342
  %v405 = vpack.c.b16 %v345, %v344
  %v406 = vpack.c.b16 %v347, %v346
  %v407 = vpack.c.b16 %v349, %v348
  %v408 = vpack.c.b16 %v351, %v350
  %v409 = vpack.c.b16 %v353, %v352
  %v410 = vpack.c.b16 %v355, %v354
  %v411 = vpack.c.b16 %v357, %v356
  %v412 = vpack.c.b16 %v359, %v358
  %v413 = vpack.c.b16 %v361, %v360
  %v414 = vpack.c.b16 %v363, %v362
  %v415 = vpack.c.b16 %v365, %v364
  %v416 = vpack.c.b16 %v367, %v366
  %v417 = vpack.c.b16 %v369, %v368
  %v418 = vpack.c.b16 %v371, %v370
  %v419 = vpack.c.b16 %v373, %v372
  %v420 = vpack.c.b16 %v375, %v374
  %v421 = vpack.c.b16 %v377, %v376
  %v422 = vpack.c.b16 %v379, %v378
  %v423 = vpack.c.b16 %v381, %v380
  %v424 = vpack.c.b16 %v383, %v382
  %v425 = vpack.c.b16 %v385, %v384
  %v426 = vpack.c.b16 %v387, %v386
  %v427 = vpack.c.b16 %v389, %v388
  %v428 = vpack.c.b16 %v391, %v390
  %v429 = vpack.c.b16 %v393, %v392
  %v430 = vpack.c.b16 %v395, %v394
  %v431 = vpack.c.b16 %v397, %v396
  %v432 = vpack.c.b16 %v399, %v398
  %v433 = vpack.c.b16 %v401, %v400
  %466 = vmatprep.subr.bf16.mxu0 0
  %467 = vmatpush1.bf16.msra.mxu0 %v402
  %468 = vmatprep.subr.bf16.mxu0 0
  %469 = vmatpush1.bf16.msra.mxu0 %v403
  %470 = vmatprep.subr.bf16.mxu0 0
  %471 = vmatpush1.bf16.msra.mxu0 %v404
  %472 = vmatprep.subr.bf16.mxu0 0
  %473 = vmatpush1.bf16.msra.mxu0 %v405
  %474 = vmatprep.subr.bf16.mxu0 0
  %475 = vmatpush1.bf16.msra.mxu0 %v406
  %476 = vmatprep.subr.bf16.mxu0 0
  %477 = vmatpush1.bf16.msra.mxu0 %v407
  %478 = vmatprep.subr.bf16.mxu0 0
  %479 = vmatpush1.bf16.msra.mxu0 %v408
  %480 = vmatprep.subr.bf16.mxu0 0
  %481 = vmatpush1.bf16.msra.mxu0 %v409
  %482 = vmatprep.subr.bf16.mxu0 0
  %483 = vmatpush1.bf16.msra.mxu0 %v410
  %484 = vmatprep.subr.bf16.mxu0 0
  %485 = vmatpush1.bf16.msra.mxu0 %v411
  %486 = vmatprep.subr.bf16.mxu0 0
  %487 = vmatpush1.bf16.msra.mxu0 %v412
  %488 = vmatprep.subr.bf16.mxu0 0
  %489 = vmatpush1.bf16.msra.mxu0 %v413
  %490 = vmatprep.subr.bf16.mxu0 0
  %491 = vmatpush1.bf16.msra.mxu0 %v414
  %492 = vmatprep.subr.bf16.mxu0 0
  %493 = vmatpush1.bf16.msra.mxu0 %v415
  %494 = vmatprep.subr.bf16.mxu0 0
  %495 = vmatpush1.bf16.msra.mxu0 %v416
  %496 = vmatprep.subr.bf16.mxu0 0
  %497 = vmatpush1.bf16.msra.mxu0 %v417
  %498 = vmatprep.mubr.bf16.mxu0 %v211
  %499 = vmatmul.mubr.bf16.gmra.mrb[0].mxu0 %v210
  %v500 = vpop.f32.mrb[0].mxu0
  %v501 = vadd.f32 0.0, %v500
  %v502 = vpop.f32.mrb[0].mxu0
  %v503 = vpop.f32.mrb[0].mxu0
  %v504 = vadd.f32 0.0, %v503
  %v505 = vpop.f32.mrb[0].mxu0
  %506 = vmatprep.mubr.bf16.mxu0 %v215
  %507 = vmatmul.mubr.bf16.gmra.mrb[0].mxu0 %v214
  %v508 = vpop.f32.mrb[0].mxu0
  %v509 = vadd.f32 0.0, %v508
  %v510 = vpop.f32.mrb[0].mxu0
  %v511 = vpop.f32.mrb[0].mxu0
  %v512 = vadd.f32 0.0, %v511
  %v513 = vpop.f32.mrb[0].mxu0
  %514 = vmatprep.mubr.bf16.mxu0 %v219
  %515 = vmatmul.mubr.bf16.gmra.mrb[0].mxu0 %v218
  %v516 = vpop.f32.mrb[0].mxu0
  %v517 = vadd.f32 0.0, %v516
  %v518 = vpop.f32.mrb[0].mxu0
  %v519 = vpop.f32.mrb[0].mxu0
  %v520 = vadd.f32 0.0, %v519
  %v521 = vpop.f32.mrb[0].mxu0
  %522 = vmatprep.mubr.bf16.mxu0 %v223
  %523 = vmatmul.mubr.bf16.gmra.mrb[0].mxu0 %v222
  %v524 = vpop.f32.mrb[0].mxu0
  %v525 = vadd.f32 0.0, %v524
  %v526 = vpop.f32.mrb[0].mxu0
  %v527 = vpop.f32.mrb[0].mxu0
  %v528 = vadd.f32 0.0, %v527
  %v529 = vpop.f32.mrb[0].mxu0
  %530 = vmatprep.mubr.bf16.mxu0 %v227
  %531 = vmatmul.mubr.bf16.gmra.mrb[0].mxu0 %v226
  %v532 = vpop.f32.mrb[0].mxu0
  %v533 = vadd.f32 0.0, %v532
  %v534 = vpop.f32.mrb[0].mxu0
  %v535 = vpop.f32.mrb[0].mxu0
  %v536 = vadd.f32 0.0, %v535
  %v537 = vpop.f32.mrb[0].mxu0
  %538 = vmatprep.mubr.bf16.mxu0 %v231
  %539 = vmatmul.mubr.bf16.gmra.mrb[0].mxu0 %v230
  %v540 = vpop.f32.mrb[0].mxu0
  %v541 = vadd.f32 0.0, %v540
  %v542 = vpop.f32.mrb[0].mxu0
  %v543 = vpop.f32.mrb[0].mxu0
  %v544 = vadd.f32 0.0, %v543
  %v545 = vpop.f32.mrb[0].mxu0
  %546 = vmatprep.mubr.bf16.mxu0 %v235
  %547 = vmatmul.mubr.bf16.gmra.mrb[0].mxu0 %v234
  %v548 = vpop.f32.mrb[0].mxu0
  %v549 = vadd.f32 0.0, %v548
  %v550 = vpop.f32.mrb[0].mxu0
  %v551 = vpop.f32.mrb[0].mxu0
  %v552 = vadd.f32 0.0, %v551
  %v553 = vpop.f32.mrb[0].mxu0
  %554 = vmatprep.mubr.bf16.mxu0 %v239
  %555 = vmatmul.mubr.bf16.gmra.mrb[0].mxu0 %v238
  %v556 = vpop.f32.mrb[0].mxu0
  %v557 = vadd.f32 0.0, %v556
  %v558 = vpop.f32.mrb[0].mxu0
  %v559 = vpop.f32.mrb[0].mxu0
  %v560 = vadd.f32 0.0, %v559
  %v561 = vpop.f32.mrb[0].mxu0
  %562 = vdwg.mxu0
  %563 = vmatprep.subr.bf16.mxu0 0
  %564 = vmatpush1.bf16.msra.mxu0 %v418
  %565 = vmatprep.subr.bf16.mxu0 0
  %566 = vmatpush1.bf16.msra.mxu0 %v419
  %567 = vmatprep.subr.bf16.mxu0 0
  %568 = vmatpush1.bf16.msra.mxu0 %v420
  %569 = vmatprep.subr.bf16.mxu0 0
  %570 = vmatpush1.bf16.msra.mxu0 %v421
  %571 = vmatprep.subr.bf16.mxu0 0
  %572 = vmatpush1.bf16.msra.mxu0 %v422
  %573 = vmatprep.subr.bf16.mxu0 0
  %574 = vmatpush1.bf16.msra.mxu0 %v423
  %575 = vmatprep.subr.bf16.mxu0 0
  %576 = vmatpush1.bf16.msra.mxu0 %v424
  %577 = vmatprep.subr.bf16.mxu0 0
  %578 = vmatpush1.bf16.msra.mxu0 %v425
  %579 = vmatprep.subr.bf16.mxu0 0
  %580 = vmatpush1.bf16.msra.mxu0 %v426
  %581 = vmatprep.subr.bf16.mxu0 0
  %582 = vmatpush1.bf16.msra.mxu0 %v427
  %583 = vmatprep.subr.bf16.mxu0 0
  %584 = vmatpush1.bf16.msra.mxu0 %v428
  %585 = vmatprep.subr.bf16.mxu0 0
  %586 = vmatpush1.bf16.msra.mxu0 %v429
  %587 = vmatprep.subr.bf16.mxu0 0
  %588 = vmatpush1.bf16.msra.mxu0 %v430
  %589 = vmatprep.subr.bf16.mxu0 0
  %590 = vmatpush1.bf16.msra.mxu0 %v431
  %591 = vmatprep.subr.bf16.mxu0 0
  %592 = vmatpush1.bf16.msra.mxu0 %v432
  %593 = vmatprep.subr.bf16.mxu0 0
  %594 = vmatpush1.bf16.msra.mxu0 %v433
  %595 = vmatprep.mubr.bf16.mxu0 %v213
  %596 = vmatmul.mubr.bf16.gmra.mrb[0].mxu0 %v212
  %v597 = vpop.f32.mrb[0].mxu0
  %v598 = vadd.f32 %v501, %v597
  %v599 = vpop.f32.mrb[0].mxu0
  %v600 = vpop.f32.mrb[0].mxu0
  %v601 = vadd.f32 %v504, %v600
  %v602 = vpop.f32.mrb[0].mxu0
  %603 = vmatprep.mubr.bf16.mxu0 %v217
  %604 = vmatmul.mubr.bf16.gmra.mrb[0].mxu0 %v216
  %v605 = vpop.f32.mrb[0].mxu0
  %v606 = vadd.f32 %v509, %v605
  %v607 = vpop.f32.mrb[0].mxu0
  %v608 = vpop.f32.mrb[0].mxu0
  %v609 = vadd.f32 %v512, %v608
  %v610 = vpop.f32.mrb[0].mxu0
  %611 = vmatprep.mubr.bf16.mxu0 %v221
  %612 = vmatmul.mubr.bf16.gmra.mrb[0].mxu0 %v220
  %v613 = vpop.f32.mrb[0].mxu0
  %v614 = vadd.f32 %v517, %v613
  %v615 = vpop.f32.mrb[0].mxu0
  %v616 = vpop.f32.mrb[0].mxu0
  %v617 = vadd.f32 %v520, %v616
  %v618 = vpop.f32.mrb[0].mxu0
  %619 = vmatprep.mubr.bf16.mxu0 %v225
  %620 = vmatmul.mubr.bf16.gmra.mrb[0].mxu0 %v224
  %v621 = vpop.f32.mrb[0].mxu0
  %v622 = vadd.f32 %v525, %v621
  %v623 = vpop.f32.mrb[0].mxu0
  %v624 = vpop.f32.mrb[0].mxu0
  %v625 = vadd.f32 %v528, %v624
  %v626 = vpop.f32.mrb[0].mxu0
  %627 = vmatprep.mubr.bf16.mxu0 %v229
  %628 = vmatmul.mubr.bf16.gmra.mrb[0].mxu0 %v228
  %v629 = vpop.f32.mrb[0].mxu0
  %v630 = vadd.f32 %v533, %v629
  %v631 = vpop.f32.mrb[0].mxu0
  %v632 = vpop.f32.mrb[0].mxu0
  %v633 = vadd.f32 %v536, %v632
  %v634 = vpop.f32.mrb[0].mxu0
  %635 = vmatprep.mubr.bf16.mxu0 %v233
  %636 = vmatmul.mubr.bf16.gmra.mrb[0].mxu0 %v232
  %v637 = vpop.f32.mrb[0].mxu0
  %v638 = vadd.f32 %v541, %v637
  %v639 = vpop.f32.mrb[0].mxu0
  %v640 = vpop.f32.mrb[0].mxu0
  %v641 = vadd.f32 %v544, %v640
  %v642 = vpop.f32.mrb[0].mxu0
  %643 = vmatprep.mubr.bf16.mxu0 %v237
  %644 = vmatmul.mubr.bf16.gmra.mrb[0].mxu0 %v236
  %v645 = vpop.f32.mrb[0].mxu0
  %v646 = vadd.f32 %v549, %v645
  %v647 = vpop.f32.mrb[0].mxu0
  %v648 = vpop.f32.mrb[0].mxu0
  %v649 = vadd.f32 %v552, %v648
  %v650 = vpop.f32.mrb[0].mxu0
  %651 = vmatprep.mubr.bf16.mxu0 %v241
  %652 = vmatmul.mubr.bf16.gmra.mrb[0].mxu0 %v240
  %v653 = vpop.f32.mrb[0].mxu0
  %v654 = vadd.f32 %v557, %v653
  %v655 = vpop.f32.mrb[0].mxu0
  %v656 = vpop.f32.mrb[0].mxu0
  %v657 = vadd.f32 %v560, %v656
  %v658 = vpop.f32.mrb[0].mxu0
  %659 = vdwg.mxu0
  %660 = vmatprep.subr.mxu0 0.0
  %661 = vmatpush1.msra.mxu0 %v598
  %662 = vmatprep.subr.mxu0 0.0
  %663 = vmatpush1.msra.mxu0 %v601
  %664 = vmatprep.subr.mxu0 0.0
  %665 = vmatpush1.msra.mxu0 %v606
  %666 = vmatprep.subr.mxu0 0.0
  %667 = vmatpush1.msra.mxu0 %v609
  %668 = vmatprep.subr.mxu0 0.0
  %669 = vmatpush1.msra.mxu0 %v614
  %670 = vmatprep.subr.mxu0 0.0
  %671 = vmatpush1.msra.mxu0 %v617
  %672 = vmatprep.subr.mxu0 0.0
  %673 = vmatpush1.msra.mxu0 %v622
  %674 = vmatprep.subr.mxu0 0.0
  %675 = vmatpush1.msra.mxu0 %v625
  %676 = vmatprep.subr.mxu0 0.0
  %677 = vmatpush1.msra.mxu0 %v630
  %678 = vmatprep.subr.mxu0 0.0
  %679 = vmatpush1.msra.mxu0 %v633
  %680 = vmatprep.subr.mxu0 0.0
  %681 = vmatpush1.msra.mxu0 %v638
  %682 = vmatprep.subr.mxu0 0.0
  %683 = vmatpush1.msra.mxu0 %v641
  %684 = vmatprep.subr.mxu0 0.0
  %685 = vmatpush1.msra.mxu0 %v646
  %686 = vmatprep.subr.mxu0 0.0
  %687 = vmatpush1.msra.mxu0 %v649
  %688 = vmatprep.subr.mxu0 0.0
  %689 = vmatpush1.msra.mxu0 %v654
  %690 = vmatprep.subr.mxu0 0.0
  %691 = vmatpush1.msra.mxu0 %v657
  %692 = vmatprep.subr.mxu0 0.0
  %693 = vmatpush1.msra.mxu0 0.0
  %694 = vmatprep.subr.mxu0 0.0
  %695 = vmatpush1.msra.mxu0 0.0
  %696 = vmatprep.subr.mxu0 0.0
  %697 = vmatpush1.msra.mxu0 0.0
  %698 = vmatprep.subr.mxu0 0.0
  %699 = vmatpush1.msra.mxu0 0.0
  %700 = vmatprep.subr.mxu0 0.0
  %701 = vmatpush1.msra.mxu0 0.0
  %702 = vmatprep.subr.mxu0 0.0
  %703 = vmatpush1.msra.mxu0 0.0
  %704 = vmatprep.subr.mxu0 0.0
  %705 = vmatpush1.msra.mxu0 0.0
  %706 = vmatprep.subr.mxu0 0.0
  %707 = vmatpush1.msra.mxu0 0.0
  %708 = vmatprep.subr.mxu0 0.0
  %709 = vmatpush1.msra.mxu0 0.0
  %710 = vmatprep.subr.mxu0 0.0
  %711 = vmatpush1.msra.mxu0 0.0
  %712 = vmatprep.subr.mxu0 0.0
  %713 = vmatpush1.msra.mxu0 0.0
  %714 = vmatprep.subr.mxu0 0.0
  %715 = vmatpush1.msra.mxu0 0.0
  %716 = vmatprep.subr.mxu0 0.0
  %717 = vmatpush1.msra.mxu0 0.0
  %718 = vmatprep.subr.mxu0 0.0
  %719 = vmatpush1.msra.mxu0 0.0
  %720 = vmatprep.subr.mxu0 0.0
  %721 = vmatpush1.msra.mxu0 0.0
  %722 = vmatprep.subr.mxu0 0.0
  %723 = vmatpush1.msra.mxu0 0.0
  %724 = vmatprep.mubr.f32.mxu0 0.0
  %725 = vmatmul.mubr.f32.gmra.mrb[0].mxu0 1.0
  %v726 = vpop.f32.mrb[0].mxu0
  %v727 = vadd.f32 0.0, %v726
  %v728 = vpop.f32.mrb[0].mxu0
  %729 = vdwg.mxu0
  %v730 = vmul.f32 %v598, %v598
  %v731 = vmul.f32 %v601, %v601
  %v732 = vmul.f32 %v606, %v606
  %v733 = vmul.f32 %v609, %v609
  %v734 = vmul.f32 %v614, %v614
  %v735 = vmul.f32 %v617, %v617
  %v736 = vmul.f32 %v622, %v622
  %v737 = vmul.f32 %v625, %v625
  %v738 = vmul.f32 %v630, %v630
  %v739 = vmul.f32 %v633, %v633
  %v740 = vmul.f32 %v638, %v638
  %v741 = vmul.f32 %v641, %v641
  %v742 = vmul.f32 %v646, %v646
  %v743 = vmul.f32 %v649, %v649
  %v744 = vmul.f32 %v654, %v654
  %v745 = vmul.f32 %v657, %v657
  %746 = vmatprep.subr.mxu0 0.0
  %747 = vmatpush1.msra.mxu0 %v730
  %748 = vmatprep.subr.mxu0 0.0
  %749 = vmatpush1.msra.mxu0 %v731
  %750 = vmatprep.subr.mxu0 0.0
  %751 = vmatpush1.msra.mxu0 %v732
  %752 = vmatprep.subr.mxu0 0.0
  %753 = vmatpush1.msra.mxu0 %v733
  %754 = vmatprep.subr.mxu0 0.0
  %755 = vmatpush1.msra.mxu0 %v734
  %756 = vmatprep.subr.mxu0 0.0
  %757 = vmatpush1.msra.mxu0 %v735
  %758 = vmatprep.subr.mxu0 0.0
  %759 = vmatpush1.msra.mxu0 %v736
  %760 = vmatprep.subr.mxu0 0.0
  %761 = vmatpush1.msra.mxu0 %v737
  %762 = vmatprep.subr.mxu0 0.0
  %763 = vmatpush1.msra.mxu0 %v738
  %764 = vmatprep.subr.mxu0 0.0
  %765 = vmatpush1.msra.mxu0 %v739
  %766 = vmatprep.subr.mxu0 0.0
  %767 = vmatpush1.msra.mxu0 %v740
  %768 = vmatprep.subr.mxu0 0.0
  %769 = vmatpush1.msra.mxu0 %v741
  %770 = vmatprep.subr.mxu0 0.0
  %771 = vmatpush1.msra.mxu0 %v742
  %772 = vmatprep.subr.mxu0 0.0
  %773 = vmatpush1.msra.mxu0 %v743
  %774 = vmatprep.subr.mxu0 0.0
  %775 = vmatpush1.msra.mxu0 %v744
  %776 = vmatprep.subr.mxu0 0.0
  %777 = vmatpush1.msra.mxu0 %v745
  %778 = vmatprep.subr.mxu0 0.0
  %779 = vmatpush1.msra.mxu0 0.0
  %780 = vmatprep.subr.mxu0 0.0
  %781 = vmatpush1.msra.mxu0 0.0
  %782 = vmatprep.subr.mxu0 0.0
  %783 = vmatpush1.msra.mxu0 0.0
  %784 = vmatprep.subr.mxu0 0.0
  %785 = vmatpush1.msra.mxu0 0.0
  %786 = vmatprep.subr.mxu0 0.0
  %787 = vmatpush1.msra.mxu0 0.0
  %788 = vmatprep.subr.mxu0 0.0
  %789 = vmatpush1.msra.mxu0 0.0
  %790 = vmatprep.subr.mxu0 0.0
  %791 = vmatpush1.msra.mxu0 0.0
  %792 = vmatprep.subr.mxu0 0.0
  %793 = vmatpush1.msra.mxu0 0.0
  %794 = vmatprep.subr.mxu0 0.0
  %795 = vmatpush1.msra.mxu0 0.0
  %796 = vmatprep.subr.mxu0 0.0
  %797 = vmatpush1.msra.mxu0 0.0
  %798 = vmatprep.subr.mxu0 0.0
  %799 = vmatpush1.msra.mxu0 0.0
  %800 = vmatprep.subr.mxu0 0.0
  %801 = vmatpush1.msra.mxu0 0.0
  %802 = vmatprep.subr.mxu0 0.0
  %803 = vmatpush1.msra.mxu0 0.0
  %804 = vmatprep.subr.mxu0 0.0
  %805 = vmatpush1.msra.mxu0 0.0
  %806 = vmatprep.subr.mxu0 0.0
  %807 = vmatpush1.msra.mxu0 0.0
  %808 = vmatprep.subr.mxu0 0.0
  %809 = vmatpush1.msra.mxu0 0.0
  %810 = vmatprep.mubr.f32.mxu0 0.0
  %811 = vmatmul.mubr.f32.gmra.mrb[0].mxu0 1.0
  %v812 = vpop.f32.mrb[0].mxu0
  %v813 = vadd.f32 0.0, %v812
  %v814 = vpop.f32.mrb[0].mxu0
  %815 = vdwg.mxu0
  %v816 = vmul.f32 %v727, 0.0078125
  %v817 = vmul.f32 %v813, 0.0078125
  %v818 = vmul.f32 %v816, %v816
  %v819 = vsub.f32 %v817, %v818
  %v820 = vadd.f32 %v819, 1e-05
  %v821 = vrsqrt.pop %v820
  %v822 = vld [vmem:[%s2] sm:$0x1]
  %v823 = vmul.f32 %v821, %v822
  %v824 = vld [vmem:[%s3] sm:$0x1]
  %v825 = vmul.f32 %v816, %v823
  %v826 = vsub.f32 %v824, %v825
  %v827 = vlaneseq
  %v828 = vshrl.u32 %v827, 7
  %v829 = vsub.s32 0, %v828
  %v830 = vrot.slane %v823, %v829
  %v831 = vmul.f32 %v598, %v830
  %v832 = vmul.f32 %v601, %v830
  %v833 = vmul.f32 %v606, %v830
  %v834 = vmul.f32 %v609, %v830
  %v835 = vmul.f32 %v614, %v830
  %v836 = vmul.f32 %v617, %v830
  %v837 = vmul.f32 %v622, %v830
  %v838 = vmul.f32 %v625, %v830
  %v839 = vmul.f32 %v630, %v830
  %v840 = vmul.f32 %v633, %v830
  %v841 = vmul.f32 %v638, %v830
  %v842 = vmul.f32 %v641, %v830
  %v843 = vmul.f32 %v646, %v830
  %v844 = vmul.f32 %v649, %v830
  %v845 = vmul.f32 %v654, %v830
  %v846 = vmul.f32 %v657, %v830
  %v848 = vlaneseq
  %v849 = vshrl.u32 %v848, 7
  %v850 = vsub.s32 0, %v849
  %v851 = vrot.slane %v826, %v850
  %v853 = vadd.f32 %v831, %v851
  %v854 = vadd.f32 %v832, %v851
  %v855 = vadd.f32 %v833, %v851
  %v856 = vadd.f32 %v834, %v851
  %v857 = vadd.f32 %v835, %v851
  %v858 = vadd.f32 %v836, %v851
  %v859 = vadd.f32 %v837, %v851
  %v860 = vadd.f32 %v838, %v851
  %v861 = vadd.f32 %v839, %v851
  %v862 = vadd.f32 %v840, %v851
  %v863 = vadd.f32 %v841, %v851
  %v864 = vadd.f32 %v842, %v851
  %v865 = vadd.f32 %v843, %v851
  %v866 = vadd.f32 %v844, %v851
  %v867 = vadd.f32 %v845, %v851
  %v868 = vadd.f32 %v846, %v851
  %vm869 = vcmp.ge.f32.partialorder %v853, 0.0
  %vm870 = vcmp.ge.f32.partialorder %v854, 0.0
  %vm871 = vcmp.ge.f32.partialorder %v855, 0.0
  %vm872 = vcmp.ge.f32.partialorder %v856, 0.0
  %vm873 = vcmp.ge.f32.partialorder %v857, 0.0
  %vm874 = vcmp.ge.f32.partialorder %v858, 0.0
  %vm875 = vcmp.ge.f32.partialorder %v859, 0.0
  %vm876 = vcmp.ge.f32.partialorder %v860, 0.0
  %vm877 = vcmp.ge.f32.partialorder %v861, 0.0
  %vm878 = vcmp.ge.f32.partialorder %v862, 0.0
  %vm879 = vcmp.ge.f32.partialorder %v863, 0.0
  %vm880 = vcmp.ge.f32.partialorder %v864, 0.0
  %vm881 = vcmp.ge.f32.partialorder %v865, 0.0
  %vm882 = vcmp.ge.f32.partialorder %v866, 0.0
  %vm883 = vcmp.ge.f32.partialorder %v867, 0.0
  %vm884 = vcmp.ge.f32.partialorder %v868, 0.0
  %v885 = vmul.f32 %v853, 0.2
  %v886 = vmul.f32 %v854, 0.2
  %v887 = vmul.f32 %v855, 0.2
  %v888 = vmul.f32 %v856, 0.2
  %v889 = vmul.f32 %v857, 0.2
  %v890 = vmul.f32 %v858, 0.2
  %v891 = vmul.f32 %v859, 0.2
  %v892 = vmul.f32 %v860, 0.2
  %v893 = vmul.f32 %v861, 0.2
  %v894 = vmul.f32 %v862, 0.2
  %v895 = vmul.f32 %v863, 0.2
  %v896 = vmul.f32 %v864, 0.2
  %v897 = vmul.f32 %v865, 0.2
  %v898 = vmul.f32 %v866, 0.2
  %v899 = vmul.f32 %v867, 0.2
  %v900 = vmul.f32 %v868, 0.2
  %v901 = vsel %vm869, %v853, %v885
  %v902 = vsel %vm870, %v854, %v886
  %v903 = vsel %vm871, %v855, %v887
  %v904 = vsel %vm872, %v856, %v888
  %v905 = vsel %vm873, %v857, %v889
  %v906 = vsel %vm874, %v858, %v890
  %v907 = vsel %vm875, %v859, %v891
  %v908 = vsel %vm876, %v860, %v892
  %v909 = vsel %vm877, %v861, %v893
  %v910 = vsel %vm878, %v862, %v894
  %v911 = vsel %vm879, %v863, %v895
  %v912 = vsel %vm880, %v864, %v896
  %v913 = vsel %vm881, %v865, %v897
  %v914 = vsel %vm882, %v866, %v898
  %v915 = vsel %vm883, %v867, %v899
  %v916 = vsel %vm884, %v868, %v900
  %v917 = vpack.c.bf16 %v902, %v901
  %v918 = vpack.c.bf16 %v904, %v903
  %v919 = vpack.c.bf16 %v906, %v905
  %v920 = vpack.c.bf16 %v908, %v907
  %v921 = vpack.c.bf16 %v910, %v909
  %v922 = vpack.c.bf16 %v912, %v911
  %v923 = vpack.c.bf16 %v914, %v913
  %v924 = vpack.c.bf16 %v916, %v915
  %v933 = vunpack.c.l.b16 %v917
  %v934 = vunpack.c.h.b16 %v917
  %v935 = vunpack.c.l.b16 %v918
  %v936 = vunpack.c.h.b16 %v918
  %v937 = vunpack.c.l.b16 %v919
  %v938 = vunpack.c.h.b16 %v919
  %v939 = vunpack.c.l.b16 %v920
  %v940 = vunpack.c.h.b16 %v920
  %v941 = vunpack.c.l.b16 %v921
  %v942 = vunpack.c.h.b16 %v921
  %v943 = vunpack.c.l.b16 %v922
  %v944 = vunpack.c.h.b16 %v922
  %v945 = vunpack.c.l.b16 %v923
  %v946 = vunpack.c.h.b16 %v923
  %v947 = vunpack.c.l.b16 %v924
  %v948 = vunpack.c.h.b16 %v924
  %v949 = vpack.c.b16 %v933, %v933
  %v950 = vpack.c.b16 %v934, %v934
  %v951 = vpack.c.b16 %v935, %v935
  %v952 = vpack.c.b16 %v936, %v936
  %v953 = vpack.c.b16 %v937, %v937
  %v954 = vpack.c.b16 %v938, %v938
  %v955 = vpack.c.b16 %v939, %v939
  %v956 = vpack.c.b16 %v940, %v940
  %v957 = vpack.c.b16 %v941, %v941
  %v958 = vpack.c.b16 %v942, %v942
  %v959 = vpack.c.b16 %v943, %v943
  %v960 = vpack.c.b16 %v944, %v944
  %v961 = vpack.c.b16 %v945, %v945
  %v962 = vpack.c.b16 %v946, %v946
  %v963 = vpack.c.b16 %v947, %v947
  %v964 = vpack.c.b16 %v948, %v948
  %vm981 = vcmask 519168
  %982 = vst.msk [vmem:[%s4] sm:$0xf] %vm981, %v949
  %983 = vst.msk [vmem:[%s4 + $0x4] sm:$0xf] %vm981, %v950
  %984 = vst.msk [vmem:[%s4 + $0x8] sm:$0xf] %vm981, %v951
  %985 = vst.msk [vmem:[%s4 + $0xc] sm:$0xf] %vm981, %v952
  %986 = vst.msk [vmem:[%s4 + $0x10] sm:$0xf] %vm981, %v953
  %987 = vst.msk [vmem:[%s4 + $0x14] sm:$0xf] %vm981, %v954
  %988 = vst.msk [vmem:[%s4 + $0x18] sm:$0xf] %vm981, %v955
  %989 = vst.msk [vmem:[%s4 + $0x1c] sm:$0xf] %vm981, %v956
  %990 = vst.msk [vmem:[%s4 + $0x20] sm:$0xf] %vm981, %v957
  %991 = vst.msk [vmem:[%s4 + $0x24] sm:$0xf] %vm981, %v958
  %992 = vst.msk [vmem:[%s4 + $0x28] sm:$0xf] %vm981, %v959
  %993 = vst.msk [vmem:[%s4 + $0x2c] sm:$0xf] %vm981, %v960
  %994 = vst.msk [vmem:[%s4 + $0x30] sm:$0xf] %vm981, %v961
  %995 = vst.msk [vmem:[%s4 + $0x34] sm:$0xf] %vm981, %v962
  %996 = vst.msk [vmem:[%s4 + $0x38] sm:$0xf] %vm981, %v963
  %997 = vst.msk [vmem:[%s4 + $0x3c] sm:$0xf] %vm981, %v964
  // Predicated region
  $region18: #{discriminator_forward.9} parent=0 // pred_check
    _
  $region19: #{discriminator_forward.9} parent=0 // pred_check_branch
    %999 = sbr.rel (0) target = $region21
  $region20: #{discriminator_forward.9} parent=0 // pred_region
    _
  $region21: #{discriminator_forward.9} parent=0 // pred_fallthru
    _
  // Predicated region
  $region22: #{discriminator_forward.9} parent=0 // pred_check
    _
  $region23: #{discriminator_forward.9} parent=0 // pred_check_branch
    %1001 = sbr.rel (0) target = $region25
  $region24: #{discriminator_forward.9} parent=0 // pred_region
    _
  $region25: #{discriminator_forward.9} parent=0 // pred_fallthru
    _

// kernel: discriminator_forward.10
$region0: #{discriminator_forward.10}
  #allocation0 [shape = 'u32[]', space=smem, size = 0x4, offset = 0x4, fixed_abs, tag = 'smem constant byte address 0x4 - core index']
  #allocation1 [shape = 'u32[144,128]{1,0:T(1,128)}', space=vmem, size = 0x12000, scoped, tag = 'internal scratch']
  %s0 = inlined_call_operand.vmem [shape: bf16[32,1024], index: 0, kind: input, shape index: {}]
  %s1 = inlined_call_operand.vmem [shape: bf16[1024,128], index: 1, kind: input, shape index: {}]
  %s2 = inlined_call_operand.vmem [shape: f32[1,128], index: 2, kind: input, shape index: {}]
  %s3 = inlined_call_operand.vmem [shape: f32[1,128], index: 3, kind: input, shape index: {}]
  %s4 = inlined_call_operand.vmem [shape: bf16[32,128], index: 4, kind: output, shape index: {}]
  %s5 = sld [smem:[#allocation0]]
  $region26: #{discriminator_forward.10} parent=0
    _
  %s7 = ssub.s32 1, %s5
  %s8 = scalar_select 0, %s7, %s5
  // Predicated region
  $region2: #{discriminator_forward.10} parent=0 // pred_check
    _
  $region3: #{discriminator_forward.10} parent=0 // pred_check_branch
    %10 = sbr.rel (0) target = $region5
  $region4: #{discriminator_forward.10} parent=0 // pred_region
    _
  $region5: #{discriminator_forward.10} parent=0 // pred_fallthru
    _
  // Predicated region
  $region6: #{discriminator_forward.10} parent=0 // pred_check
    _
  $region7: #{discriminator_forward.10} parent=0 // pred_check_branch
    %12 = sbr.rel (0) target = $region9
  $region8: #{discriminator_forward.10} parent=0 // pred_region
    _
  $region9: #{discriminator_forward.10} parent=0 // pred_fallthru
    _
  // Predicated region
  $region10: #{discriminator_forward.10} parent=0 // pred_check
    _
  $region11: #{discriminator_forward.10} parent=0 // pred_check_branch
    %14 = sbr.rel (0) target = $region13
  $region12: #{discriminator_forward.10} parent=0 // pred_region
    _
  $region13: #{discriminator_forward.10} parent=0 // pred_fallthru
    _
  // Predicated region
  $region14: #{discriminator_forward.10} parent=0 // pred_check
    _
  $region15: #{discriminator_forward.10} parent=0 // pred_check_branch
    %16 = sbr.rel (0) target = $region17
  $region16: #{discriminator_forward.10} parent=0 // pred_region
    _
  $region17: #{discriminator_forward.10} parent=0 // pred_fallthru
    _
  %v18 = vld [vmem:[%s0] sm:$0xff]
  %v19 = vld [vmem:[%s0 + $0x8] sm:$0xff]
  %v20 = vld [vmem:[%s0 + $0x10] sm:$0xff]
  %v21 = vld [vmem:[%s0 + $0x18] sm:$0xff]
  %v22 = vld [vmem:[%s0 + $0x20] sm:$0xff]
  %v23 = vld [vmem:[%s0 + $0x28] sm:$0xff]
  %v24 = vld [vmem:[%s0 + $0x30] sm:$0xff]
  %v25 = vld [vmem:[%s0 + $0x38] sm:$0xff]
  %v26 = vld [vmem:[%s0 + $0x40] sm:$0xff]
  %v27 = vld [vmem:[%s0 + $0x48] sm:$0xff]
  %v28 = vld [vmem:[%s0 + $0x50] sm:$0xff]
  %v29 = vld [vmem:[%s0 + $0x58] sm:$0xff]
  %v30 = vld [vmem:[%s0 + $0x60] sm:$0xff]
  %v31 = vld [vmem:[%s0 + $0x68] sm:$0xff]
  %v32 = vld [vmem:[%s0 + $0x70] sm:$0xff]
  %v33 = vld [vmem:[%s0 + $0x78] sm:$0xff]
  %v34 = vld [vmem:[%s1] sm:$0xf]
  %v35 = vld [vmem:[%s1 + $0x4] sm:$0xf]
  %v36 = vld [vmem:[%s1 + $0x8] sm:$0xf]
  %v37 = vld [vmem:[%s1 + $0xc] sm:$0xf]
  %v38 = vld [vmem:[%s1 + $0x10] sm:$0xf]
  %v39 = vld [vmem:[%s1 + $0x14] sm:$0xf]
  %v40 = vld [vmem:[%s1 + $0x18] sm:$0xf]
  %v41 = vld [vmem:[%s1 + $0x1c] sm:$0xf]
  %v42 = vld [vmem:[%s1 + $0x20] sm:$0xf]
  %v43 = vld [vmem:[%s1 + $0x24] sm:$0xf]
  %v44 = vld [vmem:[%s1 + $0x28] sm:$0xf]
  %v45 = vld [vmem:[%s1 + $0x2c] sm:$0xf]
  %v46 = vld [vmem:[%s1 + $0x30] sm:$0xf]
  %v47 = vld [vmem:[%s1 + $0x34] sm:$0xf]
  %v48 = vld [vmem:[%s1 + $0x38] sm:$0xf]
  %v49 = vld [vmem:[%s1 + $0x3c] sm:$0xf]
  %v50 = vld [vmem:[%s1 + $0x40] sm:$0xf]
  %v51 = vld [vmem:[%s1 + $0x44] sm:$0xf]
  %v52 = vld [vmem:[%s1 + $0x48] sm:$0xf]
  %v53 = vld [vmem:[%s1 + $0x4c] sm:$0xf]
  %v54 = vld [vmem:[%s1 + $0x50] sm:$0xf]
  %v55 = vld [vmem:[%s1 + $0x54] sm:$0xf]
  %v56 = vld [vmem:[%s1 + $0x58] sm:$0xf]
  %v57 = vld [vmem:[%s1 + $0x5c] sm:$0xf]
  %v58 = vld [vmem:[%s1 + $0x60] sm:$0xf]
  %v59 = vld [vmem:[%s1 + $0x64] sm:$0xf]
  %v60 = vld [vmem:[%s1 + $0x68] sm:$0xf]
  %v61 = vld [vmem:[%s1 + $0x6c] sm:$0xf]
  %v62 = vld [vmem:[%s1 + $0x70] sm:$0xf]
  %v63 = vld [vmem:[%s1 + $0x74] sm:$0xf]
  %v64 = vld [vmem:[%s1 + $0x78] sm:$0xf]
  %v65 = vld [vmem:[%s1 + $0x7c] sm:$0xf]
  %v66 = vld [vmem:[%s1 + $0x80] sm:$0xf]
  %v67 = vld [vmem:[%s1 + $0x84] sm:$0xf]
  %v68 = vld [vmem:[%s1 + $0x88] sm:$0xf]
  %v69 = vld [vmem:[%s1 + $0x8c] sm:$0xf]
  %v70 = vld [vmem:[%s1 + $0x90] sm:$0xf]
  %v71 = vld [vmem:[%s1 + $0x94] sm:$0xf]
  %v72 = vld [vmem:[%s1 + $0x98] sm:$0xf]
  %v73 = vld [vmem:[%s1 + $0x9c] sm:$0xf]
  %v74 = vld [vmem:[%s1 + $0xa0] sm:$0xf]
  %v75 = vld [vmem:[%s1 + $0xa4] sm:$0xf]
  %v76 = vld [vmem:[%s1 + $0xa8] sm:$0xf]
  %v77 = vld [vmem:[%s1 + $0xac] sm:$0xf]
  %v78 = vld [vmem:[%s1 + $0xb0] sm:$0xf]
  %v79 = vld [vmem:[%s1 + $0xb4] sm:$0xf]
  %v80 = vld [vmem:[%s1 + $0xb8] sm:$0xf]
  %v81 = vld [vmem:[%s1 + $0xbc] sm:$0xf]
  %v82 = vld [vmem:[%s1 + $0xc0] sm:$0xf]
  %v83 = vld [vmem:[%s1 + $0xc4] sm:$0xf]
  %v84 = vld [vmem:[%s1 + $0xc8] sm:$0xf]
  %v85 = vld [vmem:[%s1 + $0xcc] sm:$0xf]
  %v86 = vld [vmem:[%s1 + $0xd0] sm:$0xf]
  %v87 = vld [vmem:[%s1 + $0xd4] sm:$0xf]
  %v88 = vld [vmem:[%s1 + $0xd8] sm:$0xf]
  %v89 = vld [vmem:[%s1 + $0xdc] sm:$0xf]
  %v90 = vld [vmem:[%s1 + $0xe0] sm:$0xf]
  %v91 = vld [vmem:[%s1 + $0xe4] sm:$0xf]
  %v92 = vld [vmem:[%s1 + $0xe8] sm:$0xf]
  %v93 = vld [vmem:[%s1 + $0xec] sm:$0xf]
  %v94 = vld [vmem:[%s1 + $0xf0] sm:$0xf]
  %v95 = vld [vmem:[%s1 + $0xf4] sm:$0xf]
  %v96 = vld [vmem:[%s1 + $0xf8] sm:$0xf]
  %v97 = vld [vmem:[%s1 + $0xfc] sm:$0xf]
  %v98 = vld [vmem:[%s1 + $0x100] sm:$0xf]
  %v99 = vld [vmem:[%s1 + $0x104] sm:$0xf]
  %v100 = vld [vmem:[%s1 + $0x108] sm:$0xf]
  %v101 = vld [vmem:[%s1 + $0x10c] sm:$0xf]
  %v102 = vld [vmem:[%s1 + $0x110] sm:$0xf]
  %v103 = vld [vmem:[%s1 + $0x114] sm:$0xf]
  %v104 = vld [vmem:[%s1 + $0x118] sm:$0xf]
  %v105 = vld [vmem:[%s1 + $0x11c] sm:$0xf]
  %v106 = vld [vmem:[%s1 + $0x120] sm:$0xf]
  %v107 = vld [vmem:[%s1 + $0x124] sm:$0xf]
  %v108 = vld [vmem:[%s1 + $0x128] sm:$0xf]
  %v109 = vld [vmem:[%s1 + $0x12c] sm:$0xf]
  %v110 = vld [vmem:[%s1 + $0x130] sm:$0xf]
  %v111 = vld [vmem:[%s1 + $0x134] sm:$0xf]
  %v112 = vld [vmem:[%s1 + $0x138] sm:$0xf]
  %v113 = vld [vmem:[%s1 + $0x13c] sm:$0xf]
  %v114 = vld [vmem:[%s1 + $0x140] sm:$0xf]
  %v115 = vld [vmem:[%s1 + $0x144] sm:$0xf]
  %v116 = vld [vmem:[%s1 + $0x148] sm:$0xf]
  %v117 = vld [vmem:[%s1 + $0x14c] sm:$0xf]
  %v118 = vld [vmem:[%s1 + $0x150] sm:$0xf]
  %v119 = vld [vmem:[%s1 + $0x154] sm:$0xf]
  %v120 = vld [vmem:[%s1 + $0x158] sm:$0xf]
  %v121 = vld [vmem:[%s1 + $0x15c] sm:$0xf]
  %v122 = vld [vmem:[%s1 + $0x160] sm:$0xf]
  %v123 = vld [vmem:[%s1 + $0x164] sm:$0xf]
  %v124 = vld [vmem:[%s1 + $0x168] sm:$0xf]
  %v125 = vld [vmem:[%s1 + $0x16c] sm:$0xf]
  %v126 = vld [vmem:[%s1 + $0x170] sm:$0xf]
  %v127 = vld [vmem:[%s1 + $0x174] sm:$0xf]
  %v128 = vld [vmem:[%s1 + $0x178] sm:$0xf]
  %v129 = vld [vmem:[%s1 + $0x17c] sm:$0xf]
  %v130 = vld [vmem:[%s1 + $0x180] sm:$0xf]
  %v131 = vld [vmem:[%s1 + $0x184] sm:$0xf]
  %v132 = vld [vmem:[%s1 + $0x188] sm:$0xf]
  %v133 = vld [vmem:[%s1 + $0x18c] sm:$0xf]
  %v134 = vld [vmem:[%s1 + $0x190] sm:$0xf]
  %v135 = vld [vmem:[%s1 + $0x194] sm:$0xf]
  %v136 = vld [vmem:[%s1 + $0x198] sm:$0xf]
  %v137 = vld [vmem:[%s1 + $0x19c] sm:$0xf]
  %v138 = vld [vmem:[%s1 + $0x1a0] sm:$0xf]
  %v139 = vld [vmem:[%s1 + $0x1a4] sm:$0xf]
  %v140 = vld [vmem:[%s1 + $0x1a8] sm:$0xf]
  %v141 = vld [vmem:[%s1 + $0x1ac] sm:$0xf]
  %v142 = vld [vmem:[%s1 + $0x1b0] sm:$0xf]
  %v143 = vld [vmem:[%s1 + $0x1b4] sm:$0xf]
  %v144 = vld [vmem:[%s1 + $0x1b8] sm:$0xf]
  %v145 = vld [vmem:[%s1 + $0x1bc] sm:$0xf]
  %v146 = vld [vmem:[%s1 + $0x1c0] sm:$0xf]
  %v147 = vld [vmem:[%s1 + $0x1c4] sm:$0xf]
  %v148 = vld [vmem:[%s1 + $0x1c8] sm:$0xf]
  %v149 = vld [vmem:[%s1 + $0x1cc] sm:$0xf]
  %v150 = vld [vmem:[%s1 + $0x1d0] sm:$0xf]
  %v151 = vld [vmem:[%s1 + $0x1d4] sm:$0xf]
  %v152 = vld [vmem:[%s1 + $0x1d8] sm:$0xf]
  %v153 = vld [vmem:[%s1 + $0x1dc] sm:$0xf]
  %v154 = vld [vmem:[%s1 + $0x1e0] sm:$0xf]
  %v155 = vld [vmem:[%s1 + $0x1e4] sm:$0xf]
  %v156 = vld [vmem:[%s1 + $0x1e8] sm:$0xf]
  %v157 = vld [vmem:[%s1 + $0x1ec] sm:$0xf]
  %v158 = vld [vmem:[%s1 + $0x1f0] sm:$0xf]
  %v159 = vld [vmem:[%s1 + $0x1f4] sm:$0xf]
  %v160 = vld [vmem:[%s1 + $0x1f8] sm:$0xf]
  %v161 = vld [vmem:[%s1 + $0x1fc] sm:$0xf]
  %v178 = vunpack.c.l.b16 %v18
  %v179 = vunpack.c.h.b16 %v18
  %v180 = vunpack.c.l.b16 %v19
  %v181 = vunpack.c.h.b16 %v19
  %v182 = vunpack.c.l.b16 %v20
  %v183 = vunpack.c.h.b16 %v20
  %v184 = vunpack.c.l.b16 %v21
  %v185 = vunpack.c.h.b16 %v21
  %v186 = vunpack.c.l.b16 %v22
  %v187 = vunpack.c.h.b16 %v22
  %v188 = vunpack.c.l.b16 %v23
  %v189 = vunpack.c.h.b16 %v23
  %v190 = vunpack.c.l.b16 %v24
  %v191 = vunpack.c.h.b16 %v24
  %v192 = vunpack.c.l.b16 %v25
  %v193 = vunpack.c.h.b16 %v25
  %v194 = vunpack.c.l.b16 %v26
  %v195 = vunpack.c.h.b16 %v26
  %v196 = vunpack.c.l.b16 %v27
  %v197 = vunpack.c.h.b16 %v27
  %v198 = vunpack.c.l.b16 %v28
  %v199 = vunpack.c.h.b16 %v28
  %v200 = vunpack.c.l.b16 %v29
  %v201 = vunpack.c.h.b16 %v29
  %v202 = vunpack.c.l.b16 %v30
  %v203 = vunpack.c.h.b16 %v30
  %v204 = vunpack.c.l.b16 %v31
  %v205 = vunpack.c.h.b16 %v31
  %v206 = vunpack.c.l.b16 %v32
  %v207 = vunpack.c.h.b16 %v32
  %v208 = vunpack.c.l.b16 %v33
  %v209 = vunpack.c.h.b16 %v33
  %v210 = vpack.c.b16 %v186, %v178
  %v211 = vpack.c.b16 %v187, %v179
  %v212 = vpack.c.b16 %v188, %v180
  %v213 = vpack.c.b16 %v189, %v181
  %v214 = vpack.c.b16 %v190, %v182
  %v215 = vpack.c.b16 %v191, %v183
  %v216 = vpack.c.b16 %v192, %v184
  %v217 = vpack.c.b16 %v193, %v185
  %v218 = vpack.c.b16 %v202, %v194
  %v219 = vpack.c.b16 %v203, %v195
  %v220 = vpack.c.b16 %v204, %v196
  %v221 = vpack.c.b16 %v205, %v197
  %v222 = vpack.c.b16 %v206, %v198
  %v223 = vpack.c.b16 %v207, %v199
  %v224 = vpack.c.b16 %v208, %v200
  %v225 = vpack.c.b16 %v209, %v201
  %v370 = vunpack.c.l.b16 %v34
  %v371 = vunpack.c.l.b16 %v35
  %v372 = vunpack.c.l.b16 %v36
  %v373 = vunpack.c.l.b16 %v37
  %v374 = vunpack.c.l.b16 %v38
  %v375 = vunpack.c.l.b16 %v39
  %v376 = vunpack.c.l.b16 %v40
  %v377 = vunpack.c.l.b16 %v41
  %v378 = vunpack.c.l.b16 %v42
  %v379 = vunpack.c.l.b16 %v43
  %v380 = vunpack.c.l.b16 %v44
  %v381 = vunpack.c.l.b16 %v45
  %v382 = vunpack.c.l.b16 %v46
  %v383 = vunpack.c.l.b16 %v47
  %v384 = vunpack.c.l.b16 %v48
  %v385 = vunpack.c.l.b16 %v49
  %v386 = vunpack.c.l.b16 %v50
  %v387 = vunpack.c.l.b16 %v51
  %v388 = vunpack.c.l.b16 %v52
  %v389 = vunpack.c.l.b16 %v53
  %v390 = vunpack.c.l.b16 %v54
  %v391 = vunpack.c.l.b16 %v55
  %v392 = vunpack.c.l.b16 %v56
  %v393 = vunpack.c.l.b16 %v57
  %v394 = vunpack.c.l.b16 %v58
  %v395 = vunpack.c.l.b16 %v59
  %v396 = vunpack.c.l.b16 %v60
  %v397 = vunpack.c.l.b16 %v61
  %v398 = vunpack.c.l.b16 %v62
  %v399 = vunpack.c.l.b16 %v63
  %v400 = vunpack.c.l.b16 %v64
  %v401 = vunpack.c.l.b16 %v65
  %v402 = vunpack.c.l.b16 %v66
  %v403 = vunpack.c.l.b16 %v67
  %v404 = vunpack.c.l.b16 %v68
  %v405 = vunpack.c.l.b16 %v69
  %v406 = vunpack.c.l.b16 %v70
  %v407 = vunpack.c.l.b16 %v71
  %v408 = vunpack.c.l.b16 %v72
  %v409 = vunpack.c.l.b16 %v73
  %v410 = vunpack.c.l.b16 %v74
  %v411 = vunpack.c.l.b16 %v75
  %v412 = vunpack.c.l.b16 %v76
  %v413 = vunpack.c.l.b16 %v77
  %v414 = vunpack.c.l.b16 %v78
  %v415 = vunpack.c.l.b16 %v79
  %v416 = vunpack.c.l.b16 %v80
  %v417 = vunpack.c.l.b16 %v81
  %v418 = vunpack.c.l.b16 %v82
  %v419 = vunpack.c.l.b16 %v83
  %v420 = vunpack.c.l.b16 %v84
  %v421 = vunpack.c.l.b16 %v85
  %v422 = vunpack.c.l.b16 %v86
  %v423 = vunpack.c.l.b16 %v87
  %v424 = vunpack.c.l.b16 %v88
  %v425 = vunpack.c.l.b16 %v89
  %v426 = vunpack.c.l.b16 %v90
  %v427 = vunpack.c.l.b16 %v91
  %v428 = vunpack.c.l.b16 %v92
  %v429 = vunpack.c.l.b16 %v93
  %v430 = vunpack.c.l.b16 %v94
  %v431 = vunpack.c.l.b16 %v95
  %v432 = vunpack.c.l.b16 %v96
  %v433 = vunpack.c.l.b16 %v97
  %v434 = vunpack.c.l.b16 %v98
  %v435 = vunpack.c.l.b16 %v99
  %v436 = vunpack.c.l.b16 %v100
  %v437 = vunpack.c.l.b16 %v101
  %v438 = vunpack.c.l.b16 %v102
  %v439 = vunpack.c.l.b16 %v103
  %v440 = vunpack.c.l.b16 %v104
  %v441 = vunpack.c.l.b16 %v105
  %v442 = vunpack.c.l.b16 %v106
  %v443 = vunpack.c.l.b16 %v107
  %v444 = vunpack.c.l.b16 %v108
  %v445 = vunpack.c.l.b16 %v109
  %v446 = vunpack.c.l.b16 %v110
  %v447 = vunpack.c.l.b16 %v111
  %v448 = vunpack.c.l.b16 %v112
  %v449 = vunpack.c.l.b16 %v113
  %v450 = vunpack.c.l.b16 %v114
  %v451 = vunpack.c.l.b16 %v115
  %v452 = vunpack.c.l.b16 %v116
  %v453 = vunpack.c.l.b16 %v117
  %v454 = vunpack.c.l.b16 %v118
  %v455 = vunpack.c.l.b16 %v119
  %v456 = vunpack.c.l.b16 %v120
  %v457 = vunpack.c.l.b16 %v121
  %v458 = vunpack.c.l.b16 %v122
  %v459 = vunpack.c.l.b16 %v123
  %v460 = vunpack.c.l.b16 %v124
  %v461 = vunpack.c.l.b16 %v125
  %v462 = vunpack.c.l.b16 %v126
  %v463 = vunpack.c.l.b16 %v127
  %v464 = vunpack.c.l.b16 %v128
  %v465 = vunpack.c.l.b16 %v129
  %v466 = vunpack.c.l.b16 %v130
  %v467 = vunpack.c.l.b16 %v131
  %v468 = vunpack.c.l.b16 %v132
  %v469 = vunpack.c.l.b16 %v133
  %v470 = vunpack.c.l.b16 %v134
  %v471 = vunpack.c.l.b16 %v135
  %v472 = vunpack.c.l.b16 %v136
  %v473 = vunpack.c.l.b16 %v137
  %v474 = vunpack.c.l.b16 %v138
  %v475 = vunpack.c.l.b16 %v139
  %v476 = vunpack.c.l.b16 %v140
  %v477 = vunpack.c.l.b16 %v141
  %v478 = vunpack.c.l.b16 %v142
  %v479 = vunpack.c.l.b16 %v143
  %v480 = vunpack.c.l.b16 %v144
  %v481 = vunpack.c.l.b16 %v145
  %v482 = vunpack.c.l.b16 %v146
  %v483 = vunpack.c.l.b16 %v147
  %v484 = vunpack.c.l.b16 %v148
  %v485 = vunpack.c.l.b16 %v149
  %v486 = vunpack.c.l.b16 %v150
  %v487 = vunpack.c.l.b16 %v151
  %v488 = vunpack.c.l.b16 %v152
  %v489 = vunpack.c.l.b16 %v153
  %v490 = vunpack.c.l.b16 %v154
  %v491 = vunpack.c.l.b16 %v155
  %v492 = vunpack.c.l.b16 %v156
  %v493 = vunpack.c.l.b16 %v157
  %v494 = vunpack.c.l.b16 %v158
  %v495 = vunpack.c.l.b16 %v159
  %v496 = vunpack.c.l.b16 %v160
  %v497 = vunpack.c.l.b16 %v161
  %v498 = vpack.c.b16 %v371, %v370
  %v499 = vpack.c.b16 %v373, %v372
  %v500 = vpack.c.b16 %v375, %v374
  %v501 = vpack.c.b16 %v377, %v376
  %v502 = vpack.c.b16 %v379, %v378
  %v503 = vpack.c.b16 %v381, %v380
  %v504 = vpack.c.b16 %v383, %v382
  %v505 = vpack.c.b16 %v385, %v384
  %v506 = vpack.c.b16 %v387, %v386
  %v507 = vpack.c.b16 %v389, %v388
  %v508 = vpack.c.b16 %v391, %v390
  %v509 = vpack.c.b16 %v393, %v392
  %v510 = vpack.c.b16 %v395, %v394
  %v511 = vpack.c.b16 %v397, %v396
  %v512 = vpack.c.b16 %v399, %v398
  %v513 = vpack.c.b16 %v401, %v400
  %v514 = vpack.c.b16 %v403, %v402
  %v515 = vpack.c.b16 %v405, %v404
  %v516 = vpack.c.b16 %v407, %v406
  %v517 = vpack.c.b16 %v409, %v408
  %v518 = vpack.c.b16 %v411, %v410
  %v519 = vpack.c.b16 %v413, %v412
  %v520 = vpack.c.b16 %v415, %v414
  %v521 = vpack.c.b16 %v417, %v416
  %v522 = vpack.c.b16 %v419, %v418
  %v523 = vpack.c.b16 %v421, %v420
  %v524 = vpack.c.b16 %v423, %v422
  %v525 = vpack.c.b16 %v425, %v424
  %v526 = vpack.c.b16 %v427, %v426
  %v527 = vpack.c.b16 %v429, %v428
  %v528 = vpack.c.b16 %v431, %v430
  %v529 = vpack.c.b16 %v433, %v432
  %v530 = vpack.c.b16 %v435, %v434
  %v531 = vpack.c.b16 %v437, %v436
  %v532 = vpack.c.b16 %v439, %v438
  %v533 = vpack.c.b16 %v441, %v440
  %v534 = vpack.c.b16 %v443, %v442
  %v535 = vpack.c.b16 %v445, %v444
  %v536 = vpack.c.b16 %v447, %v446
  %v537 = vpack.c.b16 %v449, %v448
  %v538 = vpack.c.b16 %v451, %v450
  %v539 = vpack.c.b16 %v453, %v452
  %v540 = vpack.c.b16 %v455, %v454
  %v541 = vpack.c.b16 %v457, %v456
  %v542 = vpack.c.b16 %v459, %v458
  %v543 = vpack.c.b16 %v461, %v460
  %v544 = vpack.c.b16 %v463, %v462
  %v545 = vpack.c.b16 %v465, %v464
  %v546 = vpack.c.b16 %v467, %v466
  %v547 = vpack.c.b16 %v469, %v468
  %v548 = vpack.c.b16 %v471, %v470
  %v549 = vpack.c.b16 %v473, %v472
  %v550 = vpack.c.b16 %v475, %v474
  %v551 = vpack.c.b16 %v477, %v476
  %v552 = vpack.c.b16 %v479, %v478
  %v553 = vpack.c.b16 %v481, %v480
  %v554 = vpack.c.b16 %v483, %v482
  %v555 = vpack.c.b16 %v485, %v484
  %v556 = vpack.c.b16 %v487, %v486
  %v557 = vpack.c.b16 %v489, %v488
  %v558 = vpack.c.b16 %v491, %v490
  %v559 = vpack.c.b16 %v493, %v492
  %v560 = vpack.c.b16 %v495, %v494
  %v561 = vpack.c.b16 %v497, %v496
  %626 = vmatprep.subr.bf16.mxu0 0
  %627 = vmatpush1.bf16.msra.mxu0 %v498
  %628 = vmatprep.subr.bf16.mxu0 0
  %629 = vmatpush1.bf16.msra.mxu0 %v499
  %630 = vmatprep.subr.bf16.mxu0 0
  %631 = vmatpush1.bf16.msra.mxu0 %v500
  %632 = vmatprep.subr.bf16.mxu0 0
  %633 = vmatpush1.bf16.msra.mxu0 %v501
  %634 = vmatprep.subr.bf16.mxu0 0
  %635 = vmatpush1.bf16.msra.mxu0 %v502
  %636 = vmatprep.subr.bf16.mxu0 0
  %637 = vmatpush1.bf16.msra.mxu0 %v503
  %638 = vmatprep.subr.bf16.mxu0 0
  %639 = vmatpush1.bf16.msra.mxu0 %v504
  %640 = vmatprep.subr.bf16.mxu0 0
  %641 = vmatpush1.bf16.msra.mxu0 %v505
  %642 = vmatprep.subr.bf16.mxu0 0
  %643 = vmatpush1.bf16.msra.mxu0 %v506
  %644 = vmatprep.subr.bf16.mxu0 0
  %645 = vmatpush1.bf16.msra.mxu0 %v507
  %646 = vmatprep.subr.bf16.mxu0 0
  %647 = vmatpush1.bf16.msra.mxu0 %v508
  %648 = vmatprep.subr.bf16.mxu0 0
  %649 = vmatpush1.bf16.msra.mxu0 %v509
  %650 = vmatprep.subr.bf16.mxu0 0
  %651 = vmatpush1.bf16.msra.mxu0 %v510
  %652 = vmatprep.subr.bf16.mxu0 0
  %653 = vmatpush1.bf16.msra.mxu0 %v511
  %654 = vmatprep.subr.bf16.mxu0 0
  %655 = vmatpush1.bf16.msra.mxu0 %v512
  %656 = vmatprep.subr.bf16.mxu0 0
  %657 = vmatpush1.bf16.msra.mxu0 %v513
  %658 = vmatprep.mubr.bf16.mxu0 %v211
  %659 = vmatmul.mubr.bf16.gmra.mrb[0].mxu0 %v210
  %v660 = vpop.f32.mrb[0].mxu0
  %v661 = vadd.f32 0.0, %v660
  %v662 = vpop.f32.mrb[0].mxu0
  %v663 = vpop.f32.mrb[0].mxu0
  %v664 = vadd.f32 0.0, %v663
  %v665 = vpop.f32.mrb[0].mxu0
  %666 = vmatprep.mubr.bf16.mxu0 %v219
  %667 = vmatmul.mubr.bf16.gmra.mrb[0].mxu0 %v218
  %v668 = vpop.f32.mrb[0].mxu0
  %v669 = vadd.f32 0.0, %v668
  %v670 = vpop.f32.mrb[0].mxu0
  %v671 = vpop.f32.mrb[0].mxu0
  %v672 = vadd.f32 0.0, %v671
  %v673 = vpop.f32.mrb[0].mxu0
  %674 = vdwg.mxu0
  %675 = vmatprep.subr.bf16.mxu0 0
  %676 = vmatpush1.bf16.msra.mxu0 %v514
  %677 = vmatprep.subr.bf16.mxu0 0
  %678 = vmatpush1.bf16.msra.mxu0 %v515
  %679 = vmatprep.subr.bf16.mxu0 0
  %680 = vmatpush1.bf16.msra.mxu0 %v516
  %681 = vmatprep.subr.bf16.mxu0 0
  %682 = vmatpush1.bf16.msra.mxu0 %v517
  %683 = vmatprep.subr.bf16.mxu0 0
  %684 = vmatpush1.bf16.msra.mxu0 %v518
  %685 = vmatprep.subr.bf16.mxu0 0
  %686 = vmatpush1.bf16.msra.mxu0 %v519
  %687 = vmatprep.subr.bf16.mxu0 0
  %688 = vmatpush1.bf16.msra.mxu0 %v520
  %689 = vmatprep.subr.bf16.mxu0 0
  %690 = vmatpush1.bf16.msra.mxu0 %v521
  %691 = vmatprep.subr.bf16.mxu0 0
  %692 = vmatpush1.bf16.msra.mxu0 %v522
  %693 = vmatprep.subr.bf16.mxu0 0
  %694 = vmatpush1.bf16.msra.mxu0 %v523
  %695 = vmatprep.subr.bf16.mxu0 0
  %696 = vmatpush1.bf16.msra.mxu0 %v524
  %697 = vmatprep.subr.bf16.mxu0 0
  %698 = vmatpush1.bf16.msra.mxu0 %v525
  %699 = vmatprep.subr.bf16.mxu0 0
  %700 = vmatpush1.bf16.msra.mxu0 %v526
  %701 = vmatprep.subr.bf16.mxu0 0
  %702 = vmatpush1.bf16.msra.mxu0 %v527
  %703 = vmatprep.subr.bf16.mxu0 0
  %704 = vmatpush1.bf16.msra.mxu0 %v528
  %705 = vmatprep.subr.bf16.mxu0 0
  %706 = vmatpush1.bf16.msra.mxu0 %v529
  %707 = vmatprep.mubr.bf16.mxu0 %v213
  %708 = vmatmul.mubr.bf16.gmra.mrb[0].mxu0 %v212
  %v709 = vpop.f32.mrb[0].mxu0
  %v710 = vadd.f32 %v661, %v709
  %v711 = vpop.f32.mrb[0].mxu0
  %v712 = vpop.f32.mrb[0].mxu0
  %v713 = vadd.f32 %v664, %v712
  %v714 = vpop.f32.mrb[0].mxu0
  %715 = vmatprep.mubr.bf16.mxu0 %v221
  %716 = vmatmul.mubr.bf16.gmra.mrb[0].mxu0 %v220
  %v717 = vpop.f32.mrb[0].mxu0
  %v718 = vadd.f32 %v669, %v717
  %v719 = vpop.f32.mrb[0].mxu0
  %v720 = vpop.f32.mrb[0].mxu0
  %v721 = vadd.f32 %v672, %v720
  %v722 = vpop.f32.mrb[0].mxu0
  %723 = vdwg.mxu0
  %724 = vmatprep.subr.bf16.mxu0 0
  %725 = vmatpush1.bf16.msra.mxu0 %v530
  %726 = vmatprep.subr.bf16.mxu0 0
  %727 = vmatpush1.bf16.msra.mxu0 %v531
  %728 = vmatprep.subr.bf16.mxu0 0
  %729 = vmatpush1.bf16.msra.mxu0 %v532
  %730 = vmatprep.subr.bf16.mxu0 0
  %731 = vmatpush1.bf16.msra.mxu0 %v533
  %732 = vmatprep.subr.bf16.mxu0 0
  %733 = vmatpush1.bf16.msra.mxu0 %v534
  %734 = vmatprep.subr.bf16.mxu0 0
  %735 = vmatpush1.bf16.msra.mxu0 %v535
  %736 = vmatprep.subr.bf16.mxu0 0
  %737 = vmatpush1.bf16.msra.mxu0 %v536
  %738 = vmatprep.subr.bf16.mxu0 0
  %739 = vmatpush1.bf16.msra.mxu0 %v537
  %740 = vmatprep.subr.bf16.mxu0 0
  %741 = vmatpush1.bf16.msra.mxu0 %v538
  %742 = vmatprep.subr.bf16.mxu0 0
  %743 = vmatpush1.bf16.msra.mxu0 %v539
  %744 = vmatprep.subr.bf16.mxu0 0
  %745 = vmatpush1.bf16.msra.mxu0 %v540
  %746 = vmatprep.subr.bf16.mxu0 0
  %747 = vmatpush1.bf16.msra.mxu0 %v541
  %748 = vmatprep.subr.bf16.mxu0 0
  %749 = vmatpush1.bf16.msra.mxu0 %v542
  %750 = vmatprep.subr.bf16.mxu0 0
  %751 = vmatpush1.bf16.msra.mxu0 %v543
  %752 = vmatprep.subr.bf16.mxu0 0
  %753 = vmatpush1.bf16.msra.mxu0 %v544
  %754 = vmatprep.subr.bf16.mxu0 0
  %755 = vmatpush1.bf16.msra.mxu0 %v545
  %756 = vmatprep.mubr.bf16.mxu0 %v215
  %757 = vmatmul.mubr.bf16.gmra.mrb[0].mxu0 %v214
  %v758 = vpop.f32.mrb[0].mxu0
  %v759 = vadd.f32 %v710, %v758
  %v760 = vpop.f32.mrb[0].mxu0
  %v761 = vpop.f32.mrb[0].mxu0
  %v762 = vadd.f32 %v713, %v761
  %v763 = vpop.f32.mrb[0].mxu0
  %764 = vmatprep.mubr.bf16.mxu0 %v223
  %765 = vmatmul.mubr.bf16.gmra.mrb[0].mxu0 %v222
  %v766 = vpop.f32.mrb[0].mxu0
  %v767 = vadd.f32 %v718, %v766
  %v768 = vpop.f32.mrb[0].mxu0
  %v769 = vpop.f32.mrb[0].mxu0
  %v770 = vadd.f32 %v721, %v769
  %v771 = vpop.f32.mrb[0].mxu0
  %772 = vdwg.mxu0
  %773 = vmatprep.subr.bf16.mxu0 0
  %774 = vmatpush1.bf16.msra.mxu0 %v546
  %775 = vmatprep.subr.bf16.mxu0 0
  %776 = vmatpush1.bf16.msra.mxu0 %v547
  %777 = vmatprep.subr.bf16.mxu0 0
  %778 = vmatpush1.bf16.msra.mxu0 %v548
  %779 = vmatprep.subr.bf16.mxu0 0
  %780 = vmatpush1.bf16.msra.mxu0 %v549
  %781 = vmatprep.subr.bf16.mxu0 0
  %782 = vmatpush1.bf16.msra.mxu0 %v550
  %783 = vmatprep.subr.bf16.mxu0 0
  %784 = vmatpush1.bf16.msra.mxu0 %v551
  %785 = vmatprep.subr.bf16.mxu0 0
  %786 = vmatpush1.bf16.msra.mxu0 %v552
  %787 = vmatprep.subr.bf16.mxu0 0
  %788 = vmatpush1.bf16.msra.mxu0 %v553
  %789 = vmatprep.subr.bf16.mxu0 0
  %790 = vmatpush1.bf16.msra.mxu0 %v554
  %791 = vmatprep.subr.bf16.mxu0 0
  %792 = vmatpush1.bf16.msra.mxu0 %v555
  %793 = vmatprep.subr.bf16.mxu0 0
  %794 = vmatpush1.bf16.msra.mxu0 %v556
  %795 = vmatprep.subr.bf16.mxu0 0
  %796 = vmatpush1.bf16.msra.mxu0 %v557
  %797 = vmatprep.subr.bf16.mxu0 0
  %798 = vmatpush1.bf16.msra.mxu0 %v558
  %799 = vmatprep.subr.bf16.mxu0 0
  %800 = vmatpush1.bf16.msra.mxu0 %v559
  %801 = vmatprep.subr.bf16.mxu0 0
  %802 = vmatpush1.bf16.msra.mxu0 %v560
  %803 = vmatprep.subr.bf16.mxu0 0
  %804 = vmatpush1.bf16.msra.mxu0 %v561
  %805 = vmatprep.mubr.bf16.mxu0 %v217
  %806 = vmatmul.mubr.bf16.gmra.mrb[0].mxu0 %v216
  %v807 = vpop.f32.mrb[0].mxu0
  %v808 = vadd.f32 %v759, %v807
  %v809 = vpop.f32.mrb[0].mxu0
  %v810 = vpop.f32.mrb[0].mxu0
  %v811 = vadd.f32 %v762, %v810
  %v812 = vpop.f32.mrb[0].mxu0
  %813 = vmatprep.mubr.bf16.mxu0 %v225
  %814 = vmatmul.mubr.bf16.gmra.mrb[0].mxu0 %v224
  %v815 = vpop.f32.mrb[0].mxu0
  %v816 = vadd.f32 %v767, %v815
  %v817 = vpop.f32.mrb[0].mxu0
  %v818 = vpop.f32.mrb[0].mxu0
  %v819 = vadd.f32 %v770, %v818
  %v820 = vpop.f32.mrb[0].mxu0
  %821 = vdwg.mxu0
  %vm822 = vcmask 261120
  %v824 = vsel %vm822, 1.0, 0
  %826 = vmatprep.subr.mxu0 0.0
  %827 = vmatpush1.msra.mxu0 %v808
  %828 = vmatprep.subr.mxu0 0.0
  %829 = vmatpush1.msra.mxu0 %v811
  %830 = vmatprep.subr.mxu0 0.0
  %831 = vmatpush1.msra.mxu0 %v816
  %832 = vmatprep.subr.mxu0 0.0
  %833 = vmatpush1.msra.mxu0 %v819
  %834 = vmatprep.subr.mxu0 0.0
  %835 = vmatpush1.msra.mxu0 0.0
  %836 = vmatprep.subr.mxu0 0.0
  %837 = vmatpush1.msra.mxu0 0.0
  %838 = vmatprep.subr.mxu0 0.0
  %839 = vmatpush1.msra.mxu0 0.0
  %840 = vmatprep.subr.mxu0 0.0
  %841 = vmatpush1.msra.mxu0 0.0
  %842 = vmatprep.subr.mxu0 0.0
  %843 = vmatpush1.msra.mxu0 0.0
  %844 = vmatprep.subr.mxu0 0.0
  %845 = vmatpush1.msra.mxu0 0.0
  %846 = vmatprep.subr.mxu0 0.0
  %847 = vmatpush1.msra.mxu0 0.0
  %848 = vmatprep.subr.mxu0 0.0
  %849 = vmatpush1.msra.mxu0 0.0
  %850 = vmatprep.subr.mxu0 0.0
  %851 = vmatpush1.msra.mxu0 0.0
  %852 = vmatprep.subr.mxu0 0.0
  %853 = vmatpush1.msra.mxu0 0.0
  %854 = vmatprep.subr.mxu0 0.0
  %855 = vmatpush1.msra.mxu0 0.0
  %856 = vmatprep.subr.mxu0 0.0
  %857 = vmatpush1.msra.mxu0 0.0
  %858 = vmatprep.subr.mxu0 0.0
  %859 = vmatpush1.msra.mxu0 0.0
  %860 = vmatprep.subr.mxu0 0.0
  %861 = vmatpush1.msra.mxu0 0.0
  %862 = vmatprep.subr.mxu0 0.0
  %863 = vmatpush1.msra.mxu0 0.0
  %864 = vmatprep.subr.mxu0 0.0
  %865 = vmatpush1.msra.mxu0 0.0
  %866 = vmatprep.subr.mxu0 0.0
  %867 = vmatpush1.msra.mxu0 0.0
  %868 = vmatprep.subr.mxu0 0.0
  %869 = vmatpush1.msra.mxu0 0.0
  %870 = vmatprep.subr.mxu0 0.0
  %871 = vmatpush1.msra.mxu0 0.0
  %872 = vmatprep.subr.mxu0 0.0
  %873 = vmatpush1.msra.mxu0 0.0
  %874 = vmatprep.subr.mxu0 0.0
  %875 = vmatpush1.msra.mxu0 0.0
  %876 = vmatprep.subr.mxu0 0.0
  %877 = vmatpush1.msra.mxu0 0.0
  %878 = vmatprep.subr.mxu0 0.0
  %879 = vmatpush1.msra.mxu0 0.0
  %880 = vmatprep.subr.mxu0 0.0
  %881 = vmatpush1.msra.mxu0 0.0
  %882 = vmatprep.subr.mxu0 0.0
  %883 = vmatpush1.msra.mxu0 0.0
  %884 = vmatprep.subr.mxu0 0.0
  %885 = vmatpush1.msra.mxu0 0.0
  %886 = vmatprep.subr.mxu0 0.0
  %887 = vmatpush1.msra.mxu0 0.0
  %888 = vmatprep.subr.mxu0 0.0
  %889 = vmatpush1.msra.mxu0 0.0
  %890 = vmatprep.mubr.f32.mxu0 0.0
  %891 = vmatmul.mubr.f32.gmra.mrb[0].mxu0 %v824
  %v892 = vpop.f32.mrb[0].mxu0
  %v893 = vadd.f32 0.0, %v892
  %v894 = vpop.f32.mrb[0].mxu0
  %895 = vdwg.mxu0
  %v896 = vmul.f32 %v808, %v808
  %v897 = vmul.f32 %v811, %v811
  %v898 = vmul.f32 %v816, %v816
  %v899 = vmul.f32 %v819, %v819
  %900 = vmatprep.subr.mxu0 0.0
  %901 = vmatpush1.msra.mxu0 %v896
  %902 = vmatprep.subr.mxu0 0.0
  %903 = vmatpush1.msra.mxu0 %v897
  %904 = vmatprep.subr.mxu0 0.0
  %905 = vmatpush1.msra.mxu0 %v898
  %906 = vmatprep.subr.mxu0 0.0
  %907 = vmatpush1.msra.mxu0 %v899
  %908 = vmatprep.subr.mxu0 0.0
  %909 = vmatpush1.msra.mxu0 0.0
  %910 = vmatprep.subr.mxu0 0.0
  %911 = vmatpush1.msra.mxu0 0.0
  %912 = vmatprep.subr.mxu0 0.0
  %913 = vmatpush1.msra.mxu0 0.0
  %914 = vmatprep.subr.mxu0 0.0
  %915 = vmatpush1.msra.mxu0 0.0
  %916 = vmatprep.subr.mxu0 0.0
  %917 = vmatpush1.msra.mxu0 0.0
  %918 = vmatprep.subr.mxu0 0.0
  %919 = vmatpush1.msra.mxu0 0.0
  %920 = vmatprep.subr.mxu0 0.0
  %921 = vmatpush1.msra.mxu0 0.0
  %922 = vmatprep.subr.mxu0 0.0
  %923 = vmatpush1.msra.mxu0 0.0
  %924 = vmatprep.subr.mxu0 0.0
  %925 = vmatpush1.msra.mxu0 0.0
  %926 = vmatprep.subr.mxu0 0.0
  %927 = vmatpush1.msra.mxu0 0.0
  %928 = vmatprep.subr.mxu0 0.0
  %929 = vmatpush1.msra.mxu0 0.0
  %930 = vmatprep.subr.mxu0 0.0
  %931 = vmatpush1.msra.mxu0 0.0
  %932 = vmatprep.subr.mxu0 0.0
  %933 = vmatpush1.msra.mxu0 0.0
  %934 = vmatprep.subr.mxu0 0.0
  %935 = vmatpush1.msra.mxu0 0.0
  %936 = vmatprep.subr.mxu0 0.0
  %937 = vmatpush1.msra.mxu0 0.0
  %938 = vmatprep.subr.mxu0 0.0
  %939 = vmatpush1.msra.mxu0 0.0
  %940 = vmatprep.subr.mxu0 0.0
  %941 = vmatpush1.msra.mxu0 0.0
  %942 = vmatprep.subr.mxu0 0.0
  %943 = vmatpush1.msra.mxu0 0.0
  %944 = vmatprep.subr.mxu0 0.0
  %945 = vmatpush1.msra.mxu0 0.0
  %946 = vmatprep.subr.mxu0 0.0
  %947 = vmatpush1.msra.mxu0 0.0
  %948 = vmatprep.subr.mxu0 0.0
  %949 = vmatpush1.msra.mxu0 0.0
  %950 = vmatprep.subr.mxu0 0.0
  %951 = vmatpush1.msra.mxu0 0.0
  %952 = vmatprep.subr.mxu0 0.0
  %953 = vmatpush1.msra.mxu0 0.0
  %954 = vmatprep.subr.mxu0 0.0
  %955 = vmatpush1.msra.mxu0 0.0
  %956 = vmatprep.subr.mxu0 0.0
  %957 = vmatpush1.msra.mxu0 0.0
  %958 = vmatprep.subr.mxu0 0.0
  %959 = vmatpush1.msra.mxu0 0.0
  %960 = vmatprep.subr.mxu0 0.0
  %961 = vmatpush1.msra.mxu0 0.0
  %962 = vmatprep.subr.mxu0 0.0
  %963 = vmatpush1.msra.mxu0 0.0
  %964 = vmatprep.mubr.f32.mxu0 0.0
  %965 = vmatmul.mubr.f32.gmra.mrb[0].mxu0 %v824
  %v966 = vpop.f32.mrb[0].mxu0
  %v967 = vadd.f32 0.0, %v966
  %v968 = vpop.f32.mrb[0].mxu0
  %969 = vdwg.mxu0
  %v970 = vmul.f32 %v893, 0.03125
  %v971 = vmul.f32 %v967, 0.03125
  %v972 = vmul.f32 %v970, %v970
  %v973 = vsub.f32 %v971, %v972
  %v974 = vadd.f32 %v973, 1e-05
  %v975 = vrsqrt.pop %v974
  %v976 = vld [vmem:[%s2] sm:$0x1]
  %v977 = vmul.f32 %v975, %v976
  %v978 = vld [vmem:[%s3] sm:$0x1]
  %v979 = vmul.f32 %v970, %v977
  %v980 = vsub.f32 %v978, %v979
  %v981 = vlaneseq
  %v982 = vshrl.u32 %v981, 7
  %v983 = vsub.s32 0, %v982
  %v984 = vrot.slane %v977, %v983
  %v985 = vmul.f32 %v808, %v984
  %v986 = vmul.f32 %v811, %v984
  %v987 = vmul.f32 %v816, %v984
  %v988 = vmul.f32 %v819, %v984
  %v990 = vlaneseq
  %v991 = vshrl.u32 %v990, 7
  %v992 = vsub.s32 0, %v991
  %v993 = vrot.slane %v980, %v992
  %v995 = vadd.f32 %v985, %v993
  %v996 = vadd.f32 %v986, %v993
  %v997 = vadd.f32 %v987, %v993
  %v998 = vadd.f32 %v988, %v993
  %vm999 = vcmp.ge.f32.partialorder %v995, 0.0
  %vm1000 = vcmp.ge.f32.partialorder %v996, 0.0
  %vm1001 = vcmp.ge.f32.partialorder %v997, 0.0
  %vm1002 = vcmp.ge.f32.partialorder %v998, 0.0
  %v1003 = vmul.f32 %v995, 0.2
  %v1004 = vmul.f32 %v996, 0.2
  %v1005 = vmul.f32 %v997, 0.2
  %v1006 = vmul.f32 %v998, 0.2
  %v1007 = vsel %vm999, %v995, %v1003
  %v1008 = vsel %vm1000, %v996, %v1004
  %v1009 = vsel %vm1001, %v997, %v1005
  %v1010 = vsel %vm1002, %v998, %v1006
  %v1011 = vpack.c.bf16 %v1008, %v1007
  %v1012 = vpack.c.bf16 %v1010, %v1009
  %v1015 = vunpack.c.l.b16 %v1011
  %v1016 = vunpack.c.h.b16 %v1011
  %v1017 = vunpack.c.l.b16 %v1012
  %v1018 = vunpack.c.h.b16 %v1012
  %v1019 = vpack.c.b16 %v1015, %v1015
  %v1020 = vpack.c.b16 %v1016, %v1016
  %v1021 = vpack.c.b16 %v1017, %v1017
  %v1022 = vpack.c.b16 %v1018, %v1018
  %1027 = vst [vmem:[%s4] sm:$0xf] %v1019
  %1028 = vst [vmem:[%s4 + $0x4] sm:$0xf] %v1020
  %1029 = vst [vmem:[%s4 + $0x8] sm:$0xf] %v1021
  %1030 = vst [vmem:[%s4 + $0xc] sm:$0xf] %v1022
  // Predicated region
  $region18: #{discriminator_forward.10} parent=0 // pred_check
    _
  $region19: #{discriminator_forward.10} parent=0 // pred_check_branch
    %1032 = sbr.rel (0) target = $region21
  $region20: #{discriminator_forward.10} parent=0 // pred_region
    _
  $region21: #{discriminator_forward.10} parent=0 // pred_fallthru
    _
  // Predicated region
  $region22: #{discriminator_forward.10} parent=0 // pred_check
    _
  $region23: #{discriminator_forward.10} parent=0 // pred_check_branch
    %1034 = sbr.rel (0) target = $region25
  $region24: #{discriminator_forward.10} parent=0 // pred_region
    _
  $region25: #{discriminator_forward.10} parent=0 // pred_fallthru
    _

// kernel: discriminator_forward.11
$region0: #{discriminator_forward.11}
  #allocation0 [shape = 'u32[]', space=smem, size = 0x4, offset = 0x4, fixed_abs, tag = 'smem constant byte address 0x4 - core index']
  #allocation1 [shape = 'u32[144,128]{1,0:T(1,128)}', space=vmem, size = 0x12000, scoped, tag = 'internal scratch']
  #allocation2 [shape = 'f32[1,1]{1,0:T(1,128)S(1)}', space=vmem, size = 0x200, scoped, tag = 'scoped memory for discriminator_forward.11']
  %s0 = inlined_call_operand.vmem [shape: bf16[2,2048], index: 0, kind: input, shape index: {}]
  %s1 = inlined_call_operand.vmem [shape: bf16[2048,1], index: 1, kind: input, shape index: {}]
  %s2 = inlined_call_operand.<no memory space> [shape: f32[1,1], index: 2, kind: input, shape index: {}]
  %s3 = inlined_call_operand.vmem [shape: f32[2,1], index: 3, kind: output, shape index: {}]
  %s4 = sld [smem:[#allocation0]]
  $region22: #{discriminator_forward.11} parent=0
    _
  %s6 = ssub.s32 1, %s4
  %s7 = scalar_select 0, %s6, %s4
  %v8 = vstv %s2
  %9 = vst [vmem:[#allocation2] sm:$0x1] %v8
  // Predicated region
  $region2: #{discriminator_forward.11} parent=0 // pred_check
    _
  $region3: #{discriminator_forward.11} parent=0 // pred_check_branch
    %11 = sbr.rel (0) target = $region5
  $region4: #{discriminator_forward.11} parent=0 // pred_region
    _
  $region5: #{discriminator_forward.11} parent=0 // pred_fallthru
    _
  // Predicated region
  $region6: #{discriminator_forward.11} parent=0 // pred_check
    _
  $region7: #{discriminator_forward.11} parent=0 // pred_check_branch
    %13 = sbr.rel (0) target = $region9
  $region8: #{discriminator_forward.11} parent=0 // pred_region
    _
  $region9: #{discriminator_forward.11} parent=0 // pred_fallthru
    _
  // Predicated region
  $region10: #{discriminator_forward.11} parent=0 // pred_check
    _
  $region11: #{discriminator_forward.11} parent=0 // pred_check_branch
    %15 = sbr.rel (0) target = $region13
  $region12: #{discriminator_forward.11} parent=0 // pred_region
    _
  $region13: #{discriminator_forward.11} parent=0 // pred_fallthru
    _
  %v17 = vld [vmem:[%s0] sm:$0xff]
  %v18 = vld [vmem:[%s0 + $0x8] sm:$0xff]
  %v19 = vld [vmem:[%s1] sm:$0xf]
  %v20 = vld [vmem:[%s1 + $0x4] sm:$0xf]
  %v21 = vld [vmem:[%s1 + $0x8] sm:$0xf]
  %v22 = vld [vmem:[%s1 + $0xc] sm:$0xf]
  %v23 = vld [vmem:[%s1 + $0x10] sm:$0xf]
  %v24 = vld [vmem:[%s1 + $0x14] sm:$0xf]
  %v25 = vld [vmem:[%s1 + $0x18] sm:$0xf]
  %v26 = vld [vmem:[%s1 + $0x1c] sm:$0xf]
  %v27 = vld [vmem:[%s1 + $0x20] sm:$0xf]
  %v28 = vld [vmem:[%s1 + $0x24] sm:$0xf]
  %v29 = vld [vmem:[%s1 + $0x28] sm:$0xf]
  %v30 = vld [vmem:[%s1 + $0x2c] sm:$0xf]
  %v31 = vld [vmem:[%s1 + $0x30] sm:$0xf]
  %v32 = vld [vmem:[%s1 + $0x34] sm:$0xf]
  %v33 = vld [vmem:[%s1 + $0x38] sm:$0xf]
  %v34 = vld [vmem:[%s1 + $0x3c] sm:$0xf]
  %v35 = vld [vmem:[%s1 + $0x40] sm:$0xf]
  %v36 = vld [vmem:[%s1 + $0x44] sm:$0xf]
  %v37 = vld [vmem:[%s1 + $0x48] sm:$0xf]
  %v38 = vld [vmem:[%s1 + $0x4c] sm:$0xf]
  %v39 = vld [vmem:[%s1 + $0x50] sm:$0xf]
  %v40 = vld [vmem:[%s1 + $0x54] sm:$0xf]
  %v41 = vld [vmem:[%s1 + $0x58] sm:$0xf]
  %v42 = vld [vmem:[%s1 + $0x5c] sm:$0xf]
  %v43 = vld [vmem:[%s1 + $0x60] sm:$0xf]
  %v44 = vld [vmem:[%s1 + $0x64] sm:$0xf]
  %v45 = vld [vmem:[%s1 + $0x68] sm:$0xf]
  %v46 = vld [vmem:[%s1 + $0x6c] sm:$0xf]
  %v47 = vld [vmem:[%s1 + $0x70] sm:$0xf]
  %v48 = vld [vmem:[%s1 + $0x74] sm:$0xf]
  %v49 = vld [vmem:[%s1 + $0x78] sm:$0xf]
  %v50 = vld [vmem:[%s1 + $0x7c] sm:$0xf]
  %v51 = vld [vmem:[%s1 + $0x80] sm:$0xf]
  %v52 = vld [vmem:[%s1 + $0x84] sm:$0xf]
  %v53 = vld [vmem:[%s1 + $0x88] sm:$0xf]
  %v54 = vld [vmem:[%s1 + $0x8c] sm:$0xf]
  %v55 = vld [vmem:[%s1 + $0x90] sm:$0xf]
  %v56 = vld [vmem:[%s1 + $0x94] sm:$0xf]
  %v57 = vld [vmem:[%s1 + $0x98] sm:$0xf]
  %v58 = vld [vmem:[%s1 + $0x9c] sm:$0xf]
  %v59 = vld [vmem:[%s1 + $0xa0] sm:$0xf]
  %v60 = vld [vmem:[%s1 + $0xa4] sm:$0xf]
  %v61 = vld [vmem:[%s1 + $0xa8] sm:$0xf]
  %v62 = vld [vmem:[%s1 + $0xac] sm:$0xf]
  %v63 = vld [vmem:[%s1 + $0xb0] sm:$0xf]
  %v64 = vld [vmem:[%s1 + $0xb4] sm:$0xf]
  %v65 = vld [vmem:[%s1 + $0xb8] sm:$0xf]
  %v66 = vld [vmem:[%s1 + $0xbc] sm:$0xf]
  %v67 = vld [vmem:[%s1 + $0xc0] sm:$0xf]
  %v68 = vld [vmem:[%s1 + $0xc4] sm:$0xf]
  %v69 = vld [vmem:[%s1 + $0xc8] sm:$0xf]
  %v70 = vld [vmem:[%s1 + $0xcc] sm:$0xf]
  %v71 = vld [vmem:[%s1 + $0xd0] sm:$0xf]
  %v72 = vld [vmem:[%s1 + $0xd4] sm:$0xf]
  %v73 = vld [vmem:[%s1 + $0xd8] sm:$0xf]
  %v74 = vld [vmem:[%s1 + $0xdc] sm:$0xf]
  %v75 = vld [vmem:[%s1 + $0xe0] sm:$0xf]
  %v76 = vld [vmem:[%s1 + $0xe4] sm:$0xf]
  %v77 = vld [vmem:[%s1 + $0xe8] sm:$0xf]
  %v78 = vld [vmem:[%s1 + $0xec] sm:$0xf]
  %v79 = vld [vmem:[%s1 + $0xf0] sm:$0xf]
  %v80 = vld [vmem:[%s1 + $0xf4] sm:$0xf]
  %v81 = vld [vmem:[%s1 + $0xf8] sm:$0xf]
  %v82 = vld [vmem:[%s1 + $0xfc] sm:$0xf]
  %v83 = vld [vmem:[%s1 + $0x100] sm:$0xf]
  %v84 = vld [vmem:[%s1 + $0x104] sm:$0xf]
  %v85 = vld [vmem:[%s1 + $0x108] sm:$0xf]
  %v86 = vld [vmem:[%s1 + $0x10c] sm:$0xf]
  %v87 = vld [vmem:[%s1 + $0x110] sm:$0xf]
  %v88 = vld [vmem:[%s1 + $0x114] sm:$0xf]
  %v89 = vld [vmem:[%s1 + $0x118] sm:$0xf]
  %v90 = vld [vmem:[%s1 + $0x11c] sm:$0xf]
  %v91 = vld [vmem:[%s1 + $0x120] sm:$0xf]
  %v92 = vld [vmem:[%s1 + $0x124] sm:$0xf]
  %v93 = vld [vmem:[%s1 + $0x128] sm:$0xf]
  %v94 = vld [vmem:[%s1 + $0x12c] sm:$0xf]
  %v95 = vld [vmem:[%s1 + $0x130] sm:$0xf]
  %v96 = vld [vmem:[%s1 + $0x134] sm:$0xf]
  %v97 = vld [vmem:[%s1 + $0x138] sm:$0xf]
  %v98 = vld [vmem:[%s1 + $0x13c] sm:$0xf]
  %v99 = vld [vmem:[%s1 + $0x140] sm:$0xf]
  %v100 = vld [vmem:[%s1 + $0x144] sm:$0xf]
  %v101 = vld [vmem:[%s1 + $0x148] sm:$0xf]
  %v102 = vld [vmem:[%s1 + $0x14c] sm:$0xf]
  %v103 = vld [vmem:[%s1 + $0x150] sm:$0xf]
  %v104 = vld [vmem:[%s1 + $0x154] sm:$0xf]
  %v105 = vld [vmem:[%s1 + $0x158] sm:$0xf]
  %v106 = vld [vmem:[%s1 + $0x15c] sm:$0xf]
  %v107 = vld [vmem:[%s1 + $0x160] sm:$0xf]
  %v108 = vld [vmem:[%s1 + $0x164] sm:$0xf]
  %v109 = vld [vmem:[%s1 + $0x168] sm:$0xf]
  %v110 = vld [vmem:[%s1 + $0x16c] sm:$0xf]
  %v111 = vld [vmem:[%s1 + $0x170] sm:$0xf]
  %v112 = vld [vmem:[%s1 + $0x174] sm:$0xf]
  %v113 = vld [vmem:[%s1 + $0x178] sm:$0xf]
  %v114 = vld [vmem:[%s1 + $0x17c] sm:$0xf]
  %v115 = vld [vmem:[%s1 + $0x180] sm:$0xf]
  %v116 = vld [vmem:[%s1 + $0x184] sm:$0xf]
  %v117 = vld [vmem:[%s1 + $0x188] sm:$0xf]
  %v118 = vld [vmem:[%s1 + $0x18c] sm:$0xf]
  %v119 = vld [vmem:[%s1 + $0x190] sm:$0xf]
  %v120 = vld [vmem:[%s1 + $0x194] sm:$0xf]
  %v121 = vld [vmem:[%s1 + $0x198] sm:$0xf]
  %v122 = vld [vmem:[%s1 + $0x19c] sm:$0xf]
  %v123 = vld [vmem:[%s1 + $0x1a0] sm:$0xf]
  %v124 = vld [vmem:[%s1 + $0x1a4] sm:$0xf]
  %v125 = vld [vmem:[%s1 + $0x1a8] sm:$0xf]
  %v126 = vld [vmem:[%s1 + $0x1ac] sm:$0xf]
  %v127 = vld [vmem:[%s1 + $0x1b0] sm:$0xf]
  %v128 = vld [vmem:[%s1 + $0x1b4] sm:$0xf]
  %v129 = vld [vmem:[%s1 + $0x1b8] sm:$0xf]
  %v130 = vld [vmem:[%s1 + $0x1bc] sm:$0xf]
  %v131 = vld [vmem:[%s1 + $0x1c0] sm:$0xf]
  %v132 = vld [vmem:[%s1 + $0x1c4] sm:$0xf]
  %v133 = vld [vmem:[%s1 + $0x1c8] sm:$0xf]
  %v134 = vld [vmem:[%s1 + $0x1cc] sm:$0xf]
  %v135 = vld [vmem:[%s1 + $0x1d0] sm:$0xf]
  %v136 = vld [vmem:[%s1 + $0x1d4] sm:$0xf]
  %v137 = vld [vmem:[%s1 + $0x1d8] sm:$0xf]
  %v138 = vld [vmem:[%s1 + $0x1dc] sm:$0xf]
  %v139 = vld [vmem:[%s1 + $0x1e0] sm:$0xf]
  %v140 = vld [vmem:[%s1 + $0x1e4] sm:$0xf]
  %v141 = vld [vmem:[%s1 + $0x1e8] sm:$0xf]
  %v142 = vld [vmem:[%s1 + $0x1ec] sm:$0xf]
  %v143 = vld [vmem:[%s1 + $0x1f0] sm:$0xf]
  %v144 = vld [vmem:[%s1 + $0x1f4] sm:$0xf]
  %v145 = vld [vmem:[%s1 + $0x1f8] sm:$0xf]
  %v146 = vld [vmem:[%s1 + $0x1fc] sm:$0xf]
  %v147 = vld [vmem:[%s1 + $0x200] sm:$0xf]
  %v148 = vld [vmem:[%s1 + $0x204] sm:$0xf]
  %v149 = vld [vmem:[%s1 + $0x208] sm:$0xf]
  %v150 = vld [vmem:[%s1 + $0x20c] sm:$0xf]
  %v151 = vld [vmem:[%s1 + $0x210] sm:$0xf]
  %v152 = vld [vmem:[%s1 + $0x214] sm:$0xf]
  %v153 = vld [vmem:[%s1 + $0x218] sm:$0xf]
  %v154 = vld [vmem:[%s1 + $0x21c] sm:$0xf]
  %v155 = vld [vmem:[%s1 + $0x220] sm:$0xf]
  %v156 = vld [vmem:[%s1 + $0x224] sm:$0xf]
  %v157 = vld [vmem:[%s1 + $0x228] sm:$0xf]
  %v158 = vld [vmem:[%s1 + $0x22c] sm:$0xf]
  %v159 = vld [vmem:[%s1 + $0x230] sm:$0xf]
  %v160 = vld [vmem:[%s1 + $0x234] sm:$0xf]
  %v161 = vld [vmem:[%s1 + $0x238] sm:$0xf]
  %v162 = vld [vmem:[%s1 + $0x23c] sm:$0xf]
  %v163 = vld [vmem:[%s1 + $0x240] sm:$0xf]
  %v164 = vld [vmem:[%s1 + $0x244] sm:$0xf]
  %v165 = vld [vmem:[%s1 + $0x248] sm:$0xf]
  %v166 = vld [vmem:[%s1 + $0x24c] sm:$0xf]
  %v167 = vld [vmem:[%s1 + $0x250] sm:$0xf]
  %v168 = vld [vmem:[%s1 + $0x254] sm:$0xf]
  %v169 = vld [vmem:[%s1 + $0x258] sm:$0xf]
  %v170 = vld [vmem:[%s1 + $0x25c] sm:$0xf]
  %v171 = vld [vmem:[%s1 + $0x260] sm:$0xf]
  %v172 = vld [vmem:[%s1 + $0x264] sm:$0xf]
  %v173 = vld [vmem:[%s1 + $0x268] sm:$0xf]
  %v174 = vld [vmem:[%s1 + $0x26c] sm:$0xf]
  %v175 = vld [vmem:[%s1 + $0x270] sm:$0xf]
  %v176 = vld [vmem:[%s1 + $0x274] sm:$0xf]
  %v177 = vld [vmem:[%s1 + $0x278] sm:$0xf]
  %v178 = vld [vmem:[%s1 + $0x27c] sm:$0xf]
  %v179 = vld [vmem:[%s1 + $0x280] sm:$0xf]
  %v180 = vld [vmem:[%s1 + $0x284] sm:$0xf]
  %v181 = vld [vmem:[%s1 + $0x288] sm:$0xf]
  %v182 = vld [vmem:[%s1 + $0x28c] sm:$0xf]
  %v183 = vld [vmem:[%s1 + $0x290] sm:$0xf]
  %v184 = vld [vmem:[%s1 + $0x294] sm:$0xf]
  %v185 = vld [vmem:[%s1 + $0x298] sm:$0xf]
  %v186 = vld [vmem:[%s1 + $0x29c] sm:$0xf]
  %v187 = vld [vmem:[%s1 + $0x2a0] sm:$0xf]
  %v188 = vld [vmem:[%s1 + $0x2a4] sm:$0xf]
  %v189 = vld [vmem:[%s1 + $0x2a8] sm:$0xf]
  %v190 = vld [vmem:[%s1 + $0x2ac] sm:$0xf]
  %v191 = vld [vmem:[%s1 + $0x2b0] sm:$0xf]
  %v192 = vld [vmem:[%s1 + $0x2b4] sm:$0xf]
  %v193 = vld [vmem:[%s1 + $0x2b8] sm:$0xf]
  %v194 = vld [vmem:[%s1 + $0x2bc] sm:$0xf]
  %v195 = vld [vmem:[%s1 + $0x2c0] sm:$0xf]
  %v196 = vld [vmem:[%s1 + $0x2c4] sm:$0xf]
  %v197 = vld [vmem:[%s1 + $0x2c8] sm:$0xf]
  %v198 = vld [vmem:[%s1 + $0x2cc] sm:$0xf]
  %v199 = vld [vmem:[%s1 + $0x2d0] sm:$0xf]
  %v200 = vld [vmem:[%s1 + $0x2d4] sm:$0xf]
  %v201 = vld [vmem:[%s1 + $0x2d8] sm:$0xf]
  %v202 = vld [vmem:[%s1 + $0x2dc] sm:$0xf]
  %v203 = vld [vmem:[%s1 + $0x2e0] sm:$0xf]
  %v204 = vld [vmem:[%s1 + $0x2e4] sm:$0xf]
  %v205 = vld [vmem:[%s1 + $0x2e8] sm:$0xf]
  %v206 = vld [vmem:[%s1 + $0x2ec] sm:$0xf]
  %v207 = vld [vmem:[%s1 + $0x2f0] sm:$0xf]
  %v208 = vld [vmem:[%s1 + $0x2f4] sm:$0xf]
  %v209 = vld [vmem:[%s1 + $0x2f8] sm:$0xf]
  %v210 = vld [vmem:[%s1 + $0x2fc] sm:$0xf]
  %v211 = vld [vmem:[%s1 + $0x300] sm:$0xf]
  %v212 = vld [vmem:[%s1 + $0x304] sm:$0xf]
  %v213 = vld [vmem:[%s1 + $0x308] sm:$0xf]
  %v214 = vld [vmem:[%s1 + $0x30c] sm:$0xf]
  %v215 = vld [vmem:[%s1 + $0x310] sm:$0xf]
  %v216 = vld [vmem:[%s1 + $0x314] sm:$0xf]
  %v217 = vld [vmem:[%s1 + $0x318] sm:$0xf]
  %v218 = vld [vmem:[%s1 + $0x31c] sm:$0xf]
  %v219 = vld [vmem:[%s1 + $0x320] sm:$0xf]
  %v220 = vld [vmem:[%s1 + $0x324] sm:$0xf]
  %v221 = vld [vmem:[%s1 + $0x328] sm:$0xf]
  %v222 = vld [vmem:[%s1 + $0x32c] sm:$0xf]
  %v223 = vld [vmem:[%s1 + $0x330] sm:$0xf]
  %v224 = vld [vmem:[%s1 + $0x334] sm:$0xf]
  %v225 = vld [vmem:[%s1 + $0x338] sm:$0xf]
  %v226 = vld [vmem:[%s1 + $0x33c] sm:$0xf]
  %v227 = vld [vmem:[%s1 + $0x340] sm:$0xf]
  %v228 = vld [vmem:[%s1 + $0x344] sm:$0xf]
  %v229 = vld [vmem:[%s1 + $0x348] sm:$0xf]
  %v230 = vld [vmem:[%s1 + $0x34c] sm:$0xf]
  %v231 = vld [vmem:[%s1 + $0x350] sm:$0xf]
  %v232 = vld [vmem:[%s1 + $0x354] sm:$0xf]
  %v233 = vld [vmem:[%s1 + $0x358] sm:$0xf]
  %v234 = vld [vmem:[%s1 + $0x35c] sm:$0xf]
  %v235 = vld [vmem:[%s1 + $0x360] sm:$0xf]
  %v236 = vld [vmem:[%s1 + $0x364] sm:$0xf]
  %v237 = vld [vmem:[%s1 + $0x368] sm:$0xf]
  %v238 = vld [vmem:[%s1 + $0x36c] sm:$0xf]
  %v239 = vld [vmem:[%s1 + $0x370] sm:$0xf]
  %v240 = vld [vmem:[%s1 + $0x374] sm:$0xf]
  %v241 = vld [vmem:[%s1 + $0x378] sm:$0xf]
  %v242 = vld [vmem:[%s1 + $0x37c] sm:$0xf]
  %v243 = vld [vmem:[%s1 + $0x380] sm:$0xf]
  %v244 = vld [vmem:[%s1 + $0x384] sm:$0xf]
  %v245 = vld [vmem:[%s1 + $0x388] sm:$0xf]
  %v246 = vld [vmem:[%s1 + $0x38c] sm:$0xf]
  %v247 = vld [vmem:[%s1 + $0x390] sm:$0xf]
  %v248 = vld [vmem:[%s1 + $0x394] sm:$0xf]
  %v249 = vld [vmem:[%s1 + $0x398] sm:$0xf]
  %v250 = vld [vmem:[%s1 + $0x39c] sm:$0xf]
  %v251 = vld [vmem:[%s1 + $0x3a0] sm:$0xf]
  %v252 = vld [vmem:[%s1 + $0x3a4] sm:$0xf]
  %v253 = vld [vmem:[%s1 + $0x3a8] sm:$0xf]
  %v254 = vld [vmem:[%s1 + $0x3ac] sm:$0xf]
  %v255 = vld [vmem:[%s1 + $0x3b0] sm:$0xf]
  %v256 = vld [vmem:[%s1 + $0x3b4] sm:$0xf]
  %v257 = vld [vmem:[%s1 + $0x3b8] sm:$0xf]
  %v258 = vld [vmem:[%s1 + $0x3bc] sm:$0xf]
  %v259 = vld [vmem:[%s1 + $0x3c0] sm:$0xf]
  %v260 = vld [vmem:[%s1 + $0x3c4] sm:$0xf]
  %v261 = vld [vmem:[%s1 + $0x3c8] sm:$0xf]
  %v262 = vld [vmem:[%s1 + $0x3cc] sm:$0xf]
  %v263 = vld [vmem:[%s1 + $0x3d0] sm:$0xf]
  %v264 = vld [vmem:[%s1 + $0x3d4] sm:$0xf]
  %v265 = vld [vmem:[%s1 + $0x3d8] sm:$0xf]
  %v266 = vld [vmem:[%s1 + $0x3dc] sm:$0xf]
  %v267 = vld [vmem:[%s1 + $0x3e0] sm:$0xf]
  %v268 = vld [vmem:[%s1 + $0x3e4] sm:$0xf]
  %v269 = vld [vmem:[%s1 + $0x3e8] sm:$0xf]
  %v270 = vld [vmem:[%s1 + $0x3ec] sm:$0xf]
  %v271 = vld [vmem:[%s1 + $0x3f0] sm:$0xf]
  %v272 = vld [vmem:[%s1 + $0x3f4] sm:$0xf]
  %v273 = vld [vmem:[%s1 + $0x3f8] sm:$0xf]
  %v274 = vld [vmem:[%s1 + $0x3fc] sm:$0xf]
  %v275 = vld [vmem:[#allocation2] sm:$0x1]
  %v277 = vlaneseq
  %v278 = vshrl.u32 %v277, 7
  %v279 = vsub.s32 0, %v278
  %v280 = vrot.slane %v275, %v279
  %v284 = vcombine.high %v17, %v17
  %v286 = vunpack.c.l.s4 1966171168
  %v287 = vunpack.c.0.s8 %v286
  %v288 = vlaneseq
  %v289 = vshrl.u32 %v288, 7
  %v290 = vsub.s32 %v287, %v289
  %v291 = vrot.slane %v17, %v290
  %v293 = vunpack.c.l.s4 1966171168
  %v294 = vunpack.c.0.s8 %v293
  %v295 = vlaneseq
  %v296 = vshrl.u32 %v295, 7
  %v297 = vsub.s32 %v294, %v296
  %v298 = vrot.slane %v284, %v297
  %v299 = vcombine.high %v291, %v291
  %v300 = vcombine.high %v298, %v298
  %v302 = vunpack.c.l.s4 1966171168
  %v303 = vunpack.c.0.s8 %v302
  %v304 = vlaneseq
  %v305 = vshrl.u32 %v304, 7
  %v306 = vsub.s32 %v303, %v305
  %v307 = vrot.slane %v291, %v306
  %v309 = vunpack.c.l.s4 1966171168
  %v310 = vunpack.c.0.s8 %v309
  %v311 = vlaneseq
  %v312 = vshrl.u32 %v311, 7
  %v313 = vsub.s32 %v310, %v312
  %v314 = vrot.slane %v298, %v313
  %v316 = vunpack.c.l.s4 1966171168
  %v317 = vunpack.c.0.s8 %v316
  %v318 = vlaneseq
  %v319 = vshrl.u32 %v318, 7
  %v320 = vsub.s32 %v317, %v319
  %v321 = vrot.slane %v299, %v320
  %v323 = vunpack.c.l.s4 1966171168
  %v324 = vunpack.c.0.s8 %v323
  %v325 = vlaneseq
  %v326 = vshrl.u32 %v325, 7
  %v327 = vsub.s32 %v324, %v326
  %v328 = vrot.slane %v300, %v327
  %v329 = vcombine.high %v307, %v307
  %v330 = vcombine.high %v314, %v314
  %v331 = vcombine.high %v321, %v321
  %v332 = vcombine.high %v328, %v328
  %v333 = vcombine.high %v18, %v18
  %v335 = vunpack.c.l.s4 1966171168
  %v336 = vunpack.c.0.s8 %v335
  %v337 = vlaneseq
  %v338 = vshrl.u32 %v337, 7
  %v339 = vsub.s32 %v336, %v338
  %v340 = vrot.slane %v18, %v339
  %v342 = vunpack.c.l.s4 1966171168
  %v343 = vunpack.c.0.s8 %v342
  %v344 = vlaneseq
  %v345 = vshrl.u32 %v344, 7
  %v346 = vsub.s32 %v343, %v345
  %v347 = vrot.slane %v333, %v346
  %v348 = vcombine.high %v340, %v340
  %v349 = vcombine.high %v347, %v347
  %v351 = vunpack.c.l.s4 1966171168
  %v352 = vunpack.c.0.s8 %v351
  %v353 = vlaneseq
  %v354 = vshrl.u32 %v353, 7
  %v355 = vsub.s32 %v352, %v354
  %v356 = vrot.slane %v340, %v355
  %v358 = vunpack.c.l.s4 1966171168
  %v359 = vunpack.c.0.s8 %v358
  %v360 = vlaneseq
  %v361 = vshrl.u32 %v360, 7
  %v362 = vsub.s32 %v359, %v361
  %v363 = vrot.slane %v347, %v362
  %v365 = vunpack.c.l.s4 1966171168
  %v366 = vunpack.c.0.s8 %v365
  %v367 = vlaneseq
  %v368 = vshrl.u32 %v367, 7
  %v369 = vsub.s32 %v366, %v368
  %v370 = vrot.slane %v348, %v369
  %v372 = vunpack.c.l.s4 1966171168
  %v373 = vunpack.c.0.s8 %v372
  %v374 = vlaneseq
  %v375 = vshrl.u32 %v374, 7
  %v376 = vsub.s32 %v373, %v375
  %v377 = vrot.slane %v349, %v376
  %v378 = vcombine.high %v356, %v356
  %v379 = vcombine.high %v363, %v363
  %v380 = vcombine.high %v370, %v370
  %v381 = vcombine.high %v377, %v377
  %v654 = vunpack.c.l.b16 %v19
  %v655 = vunpack.c.l.b16 %v20
  %v656 = vunpack.c.l.b16 %v21
  %v657 = vunpack.c.l.b16 %v22
  %v658 = vunpack.c.l.b16 %v23
  %v659 = vunpack.c.l.b16 %v24
  %v660 = vunpack.c.l.b16 %v25
  %v661 = vunpack.c.l.b16 %v26
  %v662 = vunpack.c.l.b16 %v27
  %v663 = vunpack.c.l.b16 %v28
  %v664 = vunpack.c.l.b16 %v29
  %v665 = vunpack.c.l.b16 %v30
  %v666 = vunpack.c.l.b16 %v31
  %v667 = vunpack.c.l.b16 %v32
  %v668 = vunpack.c.l.b16 %v33
  %v669 = vunpack.c.l.b16 %v34
  %v670 = vunpack.c.l.b16 %v35
  %v671 = vunpack.c.l.b16 %v36
  %v672 = vunpack.c.l.b16 %v37
  %v673 = vunpack.c.l.b16 %v38
  %v674 = vunpack.c.l.b16 %v39
  %v675 = vunpack.c.l.b16 %v40
  %v676 = vunpack.c.l.b16 %v41
  %v677 = vunpack.c.l.b16 %v42
  %v678 = vunpack.c.l.b16 %v43
  %v679 = vunpack.c.l.b16 %v44
  %v680 = vunpack.c.l.b16 %v45
  %v681 = vunpack.c.l.b16 %v46
  %v682 = vunpack.c.l.b16 %v47
  %v683 = vunpack.c.l.b16 %v48
  %v684 = vunpack.c.l.b16 %v49
  %v685 = vunpack.c.l.b16 %v50
  %v686 = vunpack.c.l.b16 %v51
  %v687 = vunpack.c.l.b16 %v52
  %v688 = vunpack.c.l.b16 %v53
  %v689 = vunpack.c.l.b16 %v54
  %v690 = vunpack.c.l.b16 %v55
  %v691 = vunpack.c.l.b16 %v56
  %v692 = vunpack.c.l.b16 %v57
  %v693 = vunpack.c.l.b16 %v58
  %v694 = vunpack.c.l.b16 %v59
  %v695 = vunpack.c.l.b16 %v60
  %v696 = vunpack.c.l.b16 %v61
  %v697 = vunpack.c.l.b16 %v62
  %v698 = vunpack.c.l.b16 %v63
  %v699 = vunpack.c.l.b16 %v64
  %v700 = vunpack.c.l.b16 %v65
  %v701 = vunpack.c.l.b16 %v66
  %v702 = vunpack.c.l.b16 %v67
  %v703 = vunpack.c.l.b16 %v68
  %v704 = vunpack.c.l.b16 %v69
  %v705 = vunpack.c.l.b16 %v70
  %v706 = vunpack.c.l.b16 %v71
  %v707 = vunpack.c.l.b16 %v72
  %v708 = vunpack.c.l.b16 %v73
  %v709 = vunpack.c.l.b16 %v74
  %v710 = vunpack.c.l.b16 %v75
  %v711 = vunpack.c.l.b16 %v76
  %v712 = vunpack.c.l.b16 %v77
  %v713 = vunpack.c.l.b16 %v78
  %v714 = vunpack.c.l.b16 %v79
  %v715 = vunpack.c.l.b16 %v80
  %v716 = vunpack.c.l.b16 %v81
  %v717 = vunpack.c.l.b16 %v82
  %v718 = vunpack.c.l.b16 %v83
  %v719 = vunpack.c.l.b16 %v84
  %v720 = vunpack.c.l.b16 %v85
  %v721 = vunpack.c.l.b16 %v86
  %v722 = vunpack.c.l.b16 %v87
  %v723 = vunpack.c.l.b16 %v88
  %v724 = vunpack.c.l.b16 %v89
  %v725 = vunpack.c.l.b16 %v90
  %v726 = vunpack.c.l.b16 %v91
  %v727 = vunpack.c.l.b16 %v92
  %v728 = vunpack.c.l.b16 %v93
  %v729 = vunpack.c.l.b16 %v94
  %v730 = vunpack.c.l.b16 %v95
  %v731 = vunpack.c.l.b16 %v96
  %v732 = vunpack.c.l.b16 %v97
  %v733 = vunpack.c.l.b16 %v98
  %v734 = vunpack.c.l.b16 %v99
  %v735 = vunpack.c.l.b16 %v100
  %v736 = vunpack.c.l.b16 %v101
  %v737 = vunpack.c.l.b16 %v102
  %v738 = vunpack.c.l.b16 %v103
  %v739 = vunpack.c.l.b16 %v104
  %v740 = vunpack.c.l.b16 %v105
  %v741 = vunpack.c.l.b16 %v106
  %v742 = vunpack.c.l.b16 %v107
  %v743 = vunpack.c.l.b16 %v108
  %v744 = vunpack.c.l.b16 %v109
  %v745 = vunpack.c.l.b16 %v110
  %v746 = vunpack.c.l.b16 %v111
  %v747 = vunpack.c.l.b16 %v112
  %v748 = vunpack.c.l.b16 %v113
  %v749 = vunpack.c.l.b16 %v114
  %v750 = vunpack.c.l.b16 %v115
  %v751 = vunpack.c.l.b16 %v116
  %v752 = vunpack.c.l.b16 %v117
  %v753 = vunpack.c.l.b16 %v118
  %v754 = vunpack.c.l.b16 %v119
  %v755 = vunpack.c.l.b16 %v120
  %v756 = vunpack.c.l.b16 %v121
  %v757 = vunpack.c.l.b16 %v122
  %v758 = vunpack.c.l.b16 %v123
  %v759 = vunpack.c.l.b16 %v124
  %v760 = vunpack.c.l.b16 %v125
  %v761 = vunpack.c.l.b16 %v126
  %v762 = vunpack.c.l.b16 %v127
  %v763 = vunpack.c.l.b16 %v128
  %v764 = vunpack.c.l.b16 %v129
  %v765 = vunpack.c.l.b16 %v130
  %v766 = vunpack.c.l.b16 %v131
  %v767 = vunpack.c.l.b16 %v132
  %v768 = vunpack.c.l.b16 %v133
  %v769 = vunpack.c.l.b16 %v134
  %v770 = vunpack.c.l.b16 %v135
  %v771 = vunpack.c.l.b16 %v136
  %v772 = vunpack.c.l.b16 %v137
  %v773 = vunpack.c.l.b16 %v138
  %v774 = vunpack.c.l.b16 %v139
  %v775 = vunpack.c.l.b16 %v140
  %v776 = vunpack.c.l.b16 %v141
  %v777 = vunpack.c.l.b16 %v142
  %v778 = vunpack.c.l.b16 %v143
  %v779 = vunpack.c.l.b16 %v144
  %v780 = vunpack.c.l.b16 %v145
  %v781 = vunpack.c.l.b16 %v146
  %v782 = vunpack.c.l.b16 %v147
  %v783 = vunpack.c.l.b16 %v148
  %v784 = vunpack.c.l.b16 %v149
  %v785 = vunpack.c.l.b16 %v150
  %v786 = vunpack.c.l.b16 %v151
  %v787 = vunpack.c.l.b16 %v152
  %v788 = vunpack.c.l.b16 %v153
  %v789 = vunpack.c.l.b16 %v154
  %v790 = vunpack.c.l.b16 %v155
  %v791 = vunpack.c.l.b16 %v156
  %v792 = vunpack.c.l.b16 %v157
  %v793 = vunpack.c.l.b16 %v158
  %v794 = vunpack.c.l.b16 %v159
  %v795 = vunpack.c.l.b16 %v160
  %v796 = vunpack.c.l.b16 %v161
  %v797 = vunpack.c.l.b16 %v162
  %v798 = vunpack.c.l.b16 %v163
  %v799 = vunpack.c.l.b16 %v164
  %v800 = vunpack.c.l.b16 %v165
  %v801 = vunpack.c.l.b16 %v166
  %v802 = vunpack.c.l.b16 %v167
  %v803 = vunpack.c.l.b16 %v168
  %v804 = vunpack.c.l.b16 %v169
  %v805 = vunpack.c.l.b16 %v170
  %v806 = vunpack.c.l.b16 %v171
  %v807 = vunpack.c.l.b16 %v172
  %v808 = vunpack.c.l.b16 %v173
  %v809 = vunpack.c.l.b16 %v174
  %v810 = vunpack.c.l.b16 %v175
  %v811 = vunpack.c.l.b16 %v176
  %v812 = vunpack.c.l.b16 %v177
  %v813 = vunpack.c.l.b16 %v178
  %v814 = vunpack.c.l.b16 %v179
  %v815 = vunpack.c.l.b16 %v180
  %v816 = vunpack.c.l.b16 %v181
  %v817 = vunpack.c.l.b16 %v182
  %v818 = vunpack.c.l.b16 %v183
  %v819 = vunpack.c.l.b16 %v184
  %v820 = vunpack.c.l.b16 %v185
  %v821 = vunpack.c.l.b16 %v186
  %v822 = vunpack.c.l.b16 %v187
  %v823 = vunpack.c.l.b16 %v188
  %v824 = vunpack.c.l.b16 %v189
  %v825 = vunpack.c.l.b16 %v190
  %v826 = vunpack.c.l.b16 %v191
  %v827 = vunpack.c.l.b16 %v192
  %v828 = vunpack.c.l.b16 %v193
  %v829 = vunpack.c.l.b16 %v194
  %v830 = vunpack.c.l.b16 %v195
  %v831 = vunpack.c.l.b16 %v196
  %v832 = vunpack.c.l.b16 %v197
  %v833 = vunpack.c.l.b16 %v198
  %v834 = vunpack.c.l.b16 %v199
  %v835 = vunpack.c.l.b16 %v200
  %v836 = vunpack.c.l.b16 %v201
  %v837 = vunpack.c.l.b16 %v202
  %v838 = vunpack.c.l.b16 %v203
  %v839 = vunpack.c.l.b16 %v204
  %v840 = vunpack.c.l.b16 %v205
  %v841 = vunpack.c.l.b16 %v206
  %v842 = vunpack.c.l.b16 %v207
  %v843 = vunpack.c.l.b16 %v208
  %v844 = vunpack.c.l.b16 %v209
  %v845 = vunpack.c.l.b16 %v210
  %v846 = vunpack.c.l.b16 %v211
  %v847 = vunpack.c.l.b16 %v212
  %v848 = vunpack.c.l.b16 %v213
  %v849 = vunpack.c.l.b16 %v214
  %v850 = vunpack.c.l.b16 %v215
  %v851 = vunpack.c.l.b16 %v216
  %v852 = vunpack.c.l.b16 %v217
  %v853 = vunpack.c.l.b16 %v218
  %v854 = vunpack.c.l.b16 %v219
  %v855 = vunpack.c.l.b16 %v220
  %v856 = vunpack.c.l.b16 %v221
  %v857 = vunpack.c.l.b16 %v222
  %v858 = vunpack.c.l.b16 %v223
  %v859 = vunpack.c.l.b16 %v224
  %v860 = vunpack.c.l.b16 %v225
  %v861 = vunpack.c.l.b16 %v226
  %v862 = vunpack.c.l.b16 %v227
  %v863 = vunpack.c.l.b16 %v228
  %v864 = vunpack.c.l.b16 %v229
  %v865 = vunpack.c.l.b16 %v230
  %v866 = vunpack.c.l.b16 %v231
  %v867 = vunpack.c.l.b16 %v232
  %v868 = vunpack.c.l.b16 %v233
  %v869 = vunpack.c.l.b16 %v234
  %v870 = vunpack.c.l.b16 %v235
  %v871 = vunpack.c.l.b16 %v236
  %v872 = vunpack.c.l.b16 %v237
  %v873 = vunpack.c.l.b16 %v238
  %v874 = vunpack.c.l.b16 %v239
  %v875 = vunpack.c.l.b16 %v240
  %v876 = vunpack.c.l.b16 %v241
  %v877 = vunpack.c.l.b16 %v242
  %v878 = vunpack.c.l.b16 %v243
  %v879 = vunpack.c.l.b16 %v244
  %v880 = vunpack.c.l.b16 %v245
  %v881 = vunpack.c.l.b16 %v246
  %v882 = vunpack.c.l.b16 %v247
  %v883 = vunpack.c.l.b16 %v248
  %v884 = vunpack.c.l.b16 %v249
  %v885 = vunpack.c.l.b16 %v250
  %v886 = vunpack.c.l.b16 %v251
  %v887 = vunpack.c.l.b16 %v252
  %v888 = vunpack.c.l.b16 %v253
  %v889 = vunpack.c.l.b16 %v254
  %v890 = vunpack.c.l.b16 %v255
  %v891 = vunpack.c.l.b16 %v256
  %v892 = vunpack.c.l.b16 %v257
  %v893 = vunpack.c.l.b16 %v258
  %v894 = vunpack.c.l.b16 %v259
  %v895 = vunpack.c.l.b16 %v260
  %v896 = vunpack.c.l.b16 %v261
  %v897 = vunpack.c.l.b16 %v262
  %v898 = vunpack.c.l.b16 %v263
  %v899 = vunpack.c.l.b16 %v264
  %v900 = vunpack.c.l.b16 %v265
  %v901 = vunpack.c.l.b16 %v266
  %v902 = vunpack.c.l.b16 %v267
  %v903 = vunpack.c.l.b16 %v268
  %v904 = vunpack.c.l.b16 %v269
  %v905 = vunpack.c.l.b16 %v270
  %v906 = vunpack.c.l.b16 %v271
  %v907 = vunpack.c.l.b16 %v272
  %v908 = vunpack.c.l.b16 %v273
  %v909 = vunpack.c.l.b16 %v274
  %v910 = vpack.c.b16 %v655, %v654
  %v911 = vpack.c.b16 %v657, %v656
  %v912 = vpack.c.b16 %v659, %v658
  %v913 = vpack.c.b16 %v661, %v660
  %v914 = vpack.c.b16 %v663, %v662
  %v915 = vpack.c.b16 %v665, %v664
  %v916 = vpack.c.b16 %v667, %v666
  %v917 = vpack.c.b16 %v669, %v668
  %v918 = vpack.c.b16 %v671, %v670
  %v919 = vpack.c.b16 %v673, %v672
  %v920 = vpack.c.b16 %v675, %v674
  %v921 = vpack.c.b16 %v677, %v676
  %v922 = vpack.c.b16 %v679, %v678
  %v923 = vpack.c.b16 %v681, %v680
  %v924 = vpack.c.b16 %v683, %v682
  %v925 = vpack.c.b16 %v685, %v684
  %v926 = vpack.c.b16 %v687, %v686
  %v927 = vpack.c.b16 %v689, %v688
  %v928 = vpack.c.b16 %v691, %v690
  %v929 = vpack.c.b16 %v693, %v692
  %v930 = vpack.c.b16 %v695, %v694
  %v931 = vpack.c.b16 %v697, %v696
  %v932 = vpack.c.b16 %v699, %v698
  %v933 = vpack.c.b16 %v701, %v700
  %v934 = vpack.c.b16 %v703, %v702
  %v935 = vpack.c.b16 %v705, %v704
  %v936 = vpack.c.b16 %v707, %v706
  %v937 = vpack.c.b16 %v709, %v708
  %v938 = vpack.c.b16 %v711, %v710
  %v939 = vpack.c.b16 %v713, %v712
  %v940 = vpack.c.b16 %v715, %v714
  %v941 = vpack.c.b16 %v717, %v716
  %v942 = vpack.c.b16 %v719, %v718
  %v943 = vpack.c.b16 %v721, %v720
  %v944 = vpack.c.b16 %v723, %v722
  %v945 = vpack.c.b16 %v725, %v724
  %v946 = vpack.c.b16 %v727, %v726
  %v947 = vpack.c.b16 %v729, %v728
  %v948 = vpack.c.b16 %v731, %v730
  %v949 = vpack.c.b16 %v733, %v732
  %v950 = vpack.c.b16 %v735, %v734
  %v951 = vpack.c.b16 %v737, %v736
  %v952 = vpack.c.b16 %v739, %v738
  %v953 = vpack.c.b16 %v741, %v740
  %v954 = vpack.c.b16 %v743, %v742
  %v955 = vpack.c.b16 %v745, %v744
  %v956 = vpack.c.b16 %v747, %v746
  %v957 = vpack.c.b16 %v749, %v748
  %v958 = vpack.c.b16 %v751, %v750
  %v959 = vpack.c.b16 %v753, %v752
  %v960 = vpack.c.b16 %v755, %v754
  %v961 = vpack.c.b16 %v757, %v756
  %v962 = vpack.c.b16 %v759, %v758
  %v963 = vpack.c.b16 %v761, %v760
  %v964 = vpack.c.b16 %v763, %v762
  %v965 = vpack.c.b16 %v765, %v764
  %v966 = vpack.c.b16 %v767, %v766
  %v967 = vpack.c.b16 %v769, %v768
  %v968 = vpack.c.b16 %v771, %v770
  %v969 = vpack.c.b16 %v773, %v772
  %v970 = vpack.c.b16 %v775, %v774
  %v971 = vpack.c.b16 %v777, %v776
  %v972 = vpack.c.b16 %v779, %v778
  %v973 = vpack.c.b16 %v781, %v780
  %v974 = vpack.c.b16 %v783, %v782
  %v975 = vpack.c.b16 %v785, %v784
  %v976 = vpack.c.b16 %v787, %v786
  %v977 = vpack.c.b16 %v789, %v788
  %v978 = vpack.c.b16 %v791, %v790
  %v979 = vpack.c.b16 %v793, %v792
  %v980 = vpack.c.b16 %v795, %v794
  %v981 = vpack.c.b16 %v797, %v796
  %v982 = vpack.c.b16 %v799, %v798
  %v983 = vpack.c.b16 %v801, %v800
  %v984 = vpack.c.b16 %v803, %v802
  %v985 = vpack.c.b16 %v805, %v804
  %v986 = vpack.c.b16 %v807, %v806
  %v987 = vpack.c.b16 %v809, %v808
  %v988 = vpack.c.b16 %v811, %v810
  %v989 = vpack.c.b16 %v813, %v812
  %v990 = vpack.c.b16 %v815, %v814
  %v991 = vpack.c.b16 %v817, %v816
  %v992 = vpack.c.b16 %v819, %v818
  %v993 = vpack.c.b16 %v821, %v820
  %v994 = vpack.c.b16 %v823, %v822
  %v995 = vpack.c.b16 %v825, %v824
  %v996 = vpack.c.b16 %v827, %v826
  %v997 = vpack.c.b16 %v829, %v828
  %v998 = vpack.c.b16 %v831, %v830
  %v999 = vpack.c.b16 %v833, %v832
  %v1000 = vpack.c.b16 %v835, %v834
  %v1001 = vpack.c.b16 %v837, %v836
  %v1002 = vpack.c.b16 %v839, %v838
  %v1003 = vpack.c.b16 %v841, %v840
  %v1004 = vpack.c.b16 %v843, %v842
  %v1005 = vpack.c.b16 %v845, %v844
  %v1006 = vpack.c.b16 %v847, %v846
  %v1007 = vpack.c.b16 %v849, %v848
  %v1008 = vpack.c.b16 %v851, %v850
  %v1009 = vpack.c.b16 %v853, %v852
  %v1010 = vpack.c.b16 %v855, %v854
  %v1011 = vpack.c.b16 %v857, %v856
  %v1012 = vpack.c.b16 %v859, %v858
  %v1013 = vpack.c.b16 %v861, %v860
  %v1014 = vpack.c.b16 %v863, %v862
  %v1015 = vpack.c.b16 %v865, %v864
  %v1016 = vpack.c.b16 %v867, %v866
  %v1017 = vpack.c.b16 %v869, %v868
  %v1018 = vpack.c.b16 %v871, %v870
  %v1019 = vpack.c.b16 %v873, %v872
  %v1020 = vpack.c.b16 %v875, %v874
  %v1021 = vpack.c.b16 %v877, %v876
  %v1022 = vpack.c.b16 %v879, %v878
  %v1023 = vpack.c.b16 %v881, %v880
  %v1024 = vpack.c.b16 %v883, %v882
  %v1025 = vpack.c.b16 %v885, %v884
  %v1026 = vpack.c.b16 %v887, %v886
  %v1027 = vpack.c.b16 %v889, %v888
  %v1028 = vpack.c.b16 %v891, %v890
  %v1029 = vpack.c.b16 %v893, %v892
  %v1030 = vpack.c.b16 %v895, %v894
  %v1031 = vpack.c.b16 %v897, %v896
  %v1032 = vpack.c.b16 %v899, %v898
  %v1033 = vpack.c.b16 %v901, %v900
  %v1034 = vpack.c.b16 %v903, %v902
  %v1035 = vpack.c.b16 %v905, %v904
  %v1036 = vpack.c.b16 %v907, %v906
  %v1037 = vpack.c.b16 %v909, %v908
  %1166 = vmatprep.subr.bf16.mxu0 0
  %1167 = vmatpush1.bf16.msra.mxu0 %v910
  %1168 = vmatprep.subr.bf16.mxu0 0
  %1169 = vmatpush1.bf16.msra.mxu0 %v911
  %1170 = vmatprep.subr.bf16.mxu0 0
  %1171 = vmatpush1.bf16.msra.mxu0 %v912
  %1172 = vmatprep.subr.bf16.mxu0 0
  %1173 = vmatpush1.bf16.msra.mxu0 %v913
  %1174 = vmatprep.subr.bf16.mxu0 0
  %1175 = vmatpush1.bf16.msra.mxu0 %v914
  %1176 = vmatprep.subr.bf16.mxu0 0
  %1177 = vmatpush1.bf16.msra.mxu0 %v915
  %1178 = vmatprep.subr.bf16.mxu0 0
  %1179 = vmatpush1.bf16.msra.mxu0 %v916
  %1180 = vmatprep.subr.bf16.mxu0 0
  %1181 = vmatpush1.bf16.msra.mxu0 %v917
  %1182 = vmatprep.subr.bf16.mxu0 0
  %1183 = vmatpush1.bf16.msra.mxu0 %v918
  %1184 = vmatprep.subr.bf16.mxu0 0
  %1185 = vmatpush1.bf16.msra.mxu0 %v919
  %1186 = vmatprep.subr.bf16.mxu0 0
  %1187 = vmatpush1.bf16.msra.mxu0 %v920
  %1188 = vmatprep.subr.bf16.mxu0 0
  %1189 = vmatpush1.bf16.msra.mxu0 %v921
  %1190 = vmatprep.subr.bf16.mxu0 0
  %1191 = vmatpush1.bf16.msra.mxu0 %v922
  %1192 = vmatprep.subr.bf16.mxu0 0
  %1193 = vmatpush1.bf16.msra.mxu0 %v923
  %1194 = vmatprep.subr.bf16.mxu0 0
  %1195 = vmatpush1.bf16.msra.mxu0 %v924
  %1196 = vmatprep.subr.bf16.mxu0 0
  %1197 = vmatpush1.bf16.msra.mxu0 %v925
  %1198 = vmatprep.mubr.bf16.mxu0 %v321
  %1199 = vmatmul.mubr.bf16.gmra.mrb[0].mxu0 %v307
  %v1200 = vpop.f32.mrb[0].mxu0
  %v1201 = vadd.f32 %v280, %v1200
  %v1202 = vpop.f32.mrb[0].mxu0
  %v1203 = vpop.f32.mrb[0].mxu0
  %v1204 = vpop.f32.mrb[0].mxu0
  %1205 = vdwg.mxu0
  %1206 = vmatprep.subr.bf16.mxu0 0
  %1207 = vmatpush1.bf16.msra.mxu0 %v926
  %1208 = vmatprep.subr.bf16.mxu0 0
  %1209 = vmatpush1.bf16.msra.mxu0 %v927
  %1210 = vmatprep.subr.bf16.mxu0 0
  %1211 = vmatpush1.bf16.msra.mxu0 %v928
  %1212 = vmatprep.subr.bf16.mxu0 0
  %1213 = vmatpush1.bf16.msra.mxu0 %v929
  %1214 = vmatprep.subr.bf16.mxu0 0
  %1215 = vmatpush1.bf16.msra.mxu0 %v930
  %1216 = vmatprep.subr.bf16.mxu0 0
  %1217 = vmatpush1.bf16.msra.mxu0 %v931
  %1218 = vmatprep.subr.bf16.mxu0 0
  %1219 = vmatpush1.bf16.msra.mxu0 %v932
  %1220 = vmatprep.subr.bf16.mxu0 0
  %1221 = vmatpush1.bf16.msra.mxu0 %v933
  %1222 = vmatprep.subr.bf16.mxu0 0
  %1223 = vmatpush1.bf16.msra.mxu0 %v934
  %1224 = vmatprep.subr.bf16.mxu0 0
  %1225 = vmatpush1.bf16.msra.mxu0 %v935
  %1226 = vmatprep.subr.bf16.mxu0 0
  %1227 = vmatpush1.bf16.msra.mxu0 %v936
  %1228 = vmatprep.subr.bf16.mxu0 0
  %1229 = vmatpush1.bf16.msra.mxu0 %v937
  %1230 = vmatprep.subr.bf16.mxu0 0
  %1231 = vmatpush1.bf16.msra.mxu0 %v938
  %1232 = vmatprep.subr.bf16.mxu0 0
  %1233 = vmatpush1.bf16.msra.mxu0 %v939
  %1234 = vmatprep.subr.bf16.mxu0 0
  %1235 = vmatpush1.bf16.msra.mxu0 %v940
  %1236 = vmatprep.subr.bf16.mxu0 0
  %1237 = vmatpush1.bf16.msra.mxu0 %v941
  %1238 = vmatprep.mubr.bf16.mxu0 %v331
  %1239 = vmatmul.mubr.bf16.gmra.mrb[0].mxu0 %v329
  %v1240 = vpop.f32.mrb[0].mxu0
  %v1241 = vadd.f32 %v1201, %v1240
  %v1242 = vpop.f32.mrb[0].mxu0
  %v1243 = vpop.f32.mrb[0].mxu0
  %v1244 = vpop.f32.mrb[0].mxu0
  %1245 = vdwg.mxu0
  %1246 = vmatprep.subr.bf16.mxu0 0
  %1247 = vmatpush1.bf16.msra.mxu0 %v942
  %1248 = vmatprep.subr.bf16.mxu0 0
  %1249 = vmatpush1.bf16.msra.mxu0 %v943
  %1250 = vmatprep.subr.bf16.mxu0 0
  %1251 = vmatpush1.bf16.msra.mxu0 %v944
  %1252 = vmatprep.subr.bf16.mxu0 0
  %1253 = vmatpush1.bf16.msra.mxu0 %v945
  %1254 = vmatprep.subr.bf16.mxu0 0
  %1255 = vmatpush1.bf16.msra.mxu0 %v946
  %1256 = vmatprep.subr.bf16.mxu0 0
  %1257 = vmatpush1.bf16.msra.mxu0 %v947
  %1258 = vmatprep.subr.bf16.mxu0 0
  %1259 = vmatpush1.bf16.msra.mxu0 %v948
  %1260 = vmatprep.subr.bf16.mxu0 0
  %1261 = vmatpush1.bf16.msra.mxu0 %v949
  %1262 = vmatprep.subr.bf16.mxu0 0
  %1263 = vmatpush1.bf16.msra.mxu0 %v950
  %1264 = vmatprep.subr.bf16.mxu0 0
  %1265 = vmatpush1.bf16.msra.mxu0 %v951
  %1266 = vmatprep.subr.bf16.mxu0 0
  %1267 = vmatpush1.bf16.msra.mxu0 %v952
  %1268 = vmatprep.subr.bf16.mxu0 0
  %1269 = vmatpush1.bf16.msra.mxu0 %v953
  %1270 = vmatprep.subr.bf16.mxu0 0
  %1271 = vmatpush1.bf16.msra.mxu0 %v954
  %1272 = vmatprep.subr.bf16.mxu0 0
  %1273 = vmatpush1.bf16.msra.mxu0 %v955
  %1274 = vmatprep.subr.bf16.mxu0 0
  %1275 = vmatpush1.bf16.msra.mxu0 %v956
  %1276 = vmatprep.subr.bf16.mxu0 0
  %1277 = vmatpush1.bf16.msra.mxu0 %v957
  %1278 = vmatprep.mubr.bf16.mxu0 %v328
  %1279 = vmatmul.mubr.bf16.gmra.mrb[0].mxu0 %v314
  %v1280 = vpop.f32.mrb[0].mxu0
  %v1281 = vadd.f32 %v1241, %v1280
  %v1282 = vpop.f32.mrb[0].mxu0
  %v1283 = vpop.f32.mrb[0].mxu0
  %v1284 = vpop.f32.mrb[0].mxu0
  %1285 = vdwg.mxu0
  %1286 = vmatprep.subr.bf16.mxu0 0
  %1287 = vmatpush1.bf16.msra.mxu0 %v958
  %1288 = vmatprep.subr.bf16.mxu0 0
  %1289 = vmatpush1.bf16.msra.mxu0 %v959
  %1290 = vmatprep.subr.bf16.mxu0 0
  %1291 = vmatpush1.bf16.msra.mxu0 %v960
  %1292 = vmatprep.subr.bf16.mxu0 0
  %1293 = vmatpush1.bf16.msra.mxu0 %v961
  %1294 = vmatprep.subr.bf16.mxu0 0
  %1295 = vmatpush1.bf16.msra.mxu0 %v962
  %1296 = vmatprep.subr.bf16.mxu0 0
  %1297 = vmatpush1.bf16.msra.mxu0 %v963
  %1298 = vmatprep.subr.bf16.mxu0 0
  %1299 = vmatpush1.bf16.msra.mxu0 %v964
  %1300 = vmatprep.subr.bf16.mxu0 0
  %1301 = vmatpush1.bf16.msra.mxu0 %v965
  %1302 = vmatprep.subr.bf16.mxu0 0
  %1303 = vmatpush1.bf16.msra.mxu0 %v966
  %1304 = vmatprep.subr.bf16.mxu0 0
  %1305 = vmatpush1.bf16.msra.mxu0 %v967
  %1306 = vmatprep.subr.bf16.mxu0 0
  %1307 = vmatpush1.bf16.msra.mxu0 %v968
  %1308 = vmatprep.subr.bf16.mxu0 0
  %1309 = vmatpush1.bf16.msra.mxu0 %v969
  %1310 = vmatprep.subr.bf16.mxu0 0
  %1311 = vmatpush1.bf16.msra.mxu0 %v970
  %1312 = vmatprep.subr.bf16.mxu0 0
  %1313 = vmatpush1.bf16.msra.mxu0 %v971
  %1314 = vmatprep.subr.bf16.mxu0 0
  %1315 = vmatpush1.bf16.msra.mxu0 %v972
  %1316 = vmatprep.subr.bf16.mxu0 0
  %1317 = vmatpush1.bf16.msra.mxu0 %v973
  %1318 = vmatprep.mubr.bf16.mxu0 %v332
  %1319 = vmatmul.mubr.bf16.gmra.mrb[0].mxu0 %v330
  %v1320 = vpop.f32.mrb[0].mxu0
  %v1321 = vadd.f32 %v1281, %v1320
  %v1322 = vpop.f32.mrb[0].mxu0
  %v1323 = vpop.f32.mrb[0].mxu0
  %v1324 = vpop.f32.mrb[0].mxu0
  %1325 = vdwg.mxu0
  %1326 = vmatprep.subr.bf16.mxu0 0
  %1327 = vmatpush1.bf16.msra.mxu0 %v974
  %1328 = vmatprep.subr.bf16.mxu0 0
  %1329 = vmatpush1.bf16.msra.mxu0 %v975
  %1330 = vmatprep.subr.bf16.mxu0 0
  %1331 = vmatpush1.bf16.msra.mxu0 %v976
  %1332 = vmatprep.subr.bf16.mxu0 0
  %1333 = vmatpush1.bf16.msra.mxu0 %v977
  %1334 = vmatprep.subr.bf16.mxu0 0
  %1335 = vmatpush1.bf16.msra.mxu0 %v978
  %1336 = vmatprep.subr.bf16.mxu0 0
  %1337 = vmatpush1.bf16.msra.mxu0 %v979
  %1338 = vmatprep.subr.bf16.mxu0 0
  %1339 = vmatpush1.bf16.msra.mxu0 %v980
  %1340 = vmatprep.subr.bf16.mxu0 0
  %1341 = vmatpush1.bf16.msra.mxu0 %v981
  %1342 = vmatprep.subr.bf16.mxu0 0
  %1343 = vmatpush1.bf16.msra.mxu0 %v982
  %1344 = vmatprep.subr.bf16.mxu0 0
  %1345 = vmatpush1.bf16.msra.mxu0 %v983
  %1346 = vmatprep.subr.bf16.mxu0 0
  %1347 = vmatpush1.bf16.msra.mxu0 %v984
  %1348 = vmatprep.subr.bf16.mxu0 0
  %1349 = vmatpush1.bf16.msra.mxu0 %v985
  %1350 = vmatprep.subr.bf16.mxu0 0
  %1351 = vmatpush1.bf16.msra.mxu0 %v986
  %1352 = vmatprep.subr.bf16.mxu0 0
  %1353 = vmatpush1.bf16.msra.mxu0 %v987
  %1354 = vmatprep.subr.bf16.mxu0 0
  %1355 = vmatpush1.bf16.msra.mxu0 %v988
  %1356 = vmatprep.subr.bf16.mxu0 0
  %1357 = vmatpush1.bf16.msra.mxu0 %v989
  %1358 = vmatprep.mubr.bf16.mxu0 %v370
  %1359 = vmatmul.mubr.bf16.gmra.mrb[0].mxu0 %v356
  %v1360 = vpop.f32.mrb[0].mxu0
  %v1361 = vadd.f32 %v1321, %v1360
  %v1362 = vpop.f32.mrb[0].mxu0
  %v1363 = vpop.f32.mrb[0].mxu0
  %v1364 = vpop.f32.mrb[0].mxu0
  %1365 = vdwg.mxu0
  %1366 = vmatprep.subr.bf16.mxu0 0
  %1367 = vmatpush1.bf16.msra.mxu0 %v990
  %1368 = vmatprep.subr.bf16.mxu0 0
  %1369 = vmatpush1.bf16.msra.mxu0 %v991
  %1370 = vmatprep.subr.bf16.mxu0 0
  %1371 = vmatpush1.bf16.msra.mxu0 %v992
  %1372 = vmatprep.subr.bf16.mxu0 0
  %1373 = vmatpush1.bf16.msra.mxu0 %v993
  %1374 = vmatprep.subr.bf16.mxu0 0
  %1375 = vmatpush1.bf16.msra.mxu0 %v994
  %1376 = vmatprep.subr.bf16.mxu0 0
  %1377 = vmatpush1.bf16.msra.mxu0 %v995
  %1378 = vmatprep.subr.bf16.mxu0 0
  %1379 = vmatpush1.bf16.msra.mxu0 %v996
  %1380 = vmatprep.subr.bf16.mxu0 0
  %1381 = vmatpush1.bf16.msra.mxu0 %v997
  %1382 = vmatprep.subr.bf16.mxu0 0
  %1383 = vmatpush1.bf16.msra.mxu0 %v998
  %1384 = vmatprep.subr.bf16.mxu0 0
  %1385 = vmatpush1.bf16.msra.mxu0 %v999
  %1386 = vmatprep.subr.bf16.mxu0 0
  %1387 = vmatpush1.bf16.msra.mxu0 %v1000
  %1388 = vmatprep.subr.bf16.mxu0 0
  %1389 = vmatpush1.bf16.msra.mxu0 %v1001
  %1390 = vmatprep.subr.bf16.mxu0 0
  %1391 = vmatpush1.bf16.msra.mxu0 %v1002
  %1392 = vmatprep.subr.bf16.mxu0 0
  %1393 = vmatpush1.bf16.msra.mxu0 %v1003
  %1394 = vmatprep.subr.bf16.mxu0 0
  %1395 = vmatpush1.bf16.msra.mxu0 %v1004
  %1396 = vmatprep.subr.bf16.mxu0 0
  %1397 = vmatpush1.bf16.msra.mxu0 %v1005
  %1398 = vmatprep.mubr.bf16.mxu0 %v380
  %1399 = vmatmul.mubr.bf16.gmra.mrb[0].mxu0 %v378
  %v1400 = vpop.f32.mrb[0].mxu0
  %v1401 = vadd.f32 %v1361, %v1400
  %v1402 = vpop.f32.mrb[0].mxu0
  %v1403 = vpop.f32.mrb[0].mxu0
  %v1404 = vpop.f32.mrb[0].mxu0
  %1405 = vdwg.mxu0
  %1406 = vmatprep.subr.bf16.mxu0 0
  %1407 = vmatpush1.bf16.msra.mxu0 %v1006
  %1408 = vmatprep.subr.bf16.mxu0 0
  %1409 = vmatpush1.bf16.msra.mxu0 %v1007
  %1410 = vmatprep.subr.bf16.mxu0 0
  %1411 = vmatpush1.bf16.msra.mxu0 %v1008
  %1412 = vmatprep.subr.bf16.mxu0 0
  %1413 = vmatpush1.bf16.msra.mxu0 %v1009
  %1414 = vmatprep.subr.bf16.mxu0 0
  %1415 = vmatpush1.bf16.msra.mxu0 %v1010
  %1416 = vmatprep.subr.bf16.mxu0 0
  %1417 = vmatpush1.bf16.msra.mxu0 %v1011
  %1418 = vmatprep.subr.bf16.mxu0 0
  %1419 = vmatpush1.bf16.msra.mxu0 %v1012
  %1420 = vmatprep.subr.bf16.mxu0 0
  %1421 = vmatpush1.bf16.msra.mxu0 %v1013
  %1422 = vmatprep.subr.bf16.mxu0 0
  %1423 = vmatpush1.bf16.msra.mxu0 %v1014
  %1424 = vmatprep.subr.bf16.mxu0 0
  %1425 = vmatpush1.bf16.msra.mxu0 %v1015
  %1426 = vmatprep.subr.bf16.mxu0 0
  %1427 = vmatpush1.bf16.msra.mxu0 %v1016
  %1428 = vmatprep.subr.bf16.mxu0 0
  %1429 = vmatpush1.bf16.msra.mxu0 %v1017
  %1430 = vmatprep.subr.bf16.mxu0 0
  %1431 = vmatpush1.bf16.msra.mxu0 %v1018
  %1432 = vmatprep.subr.bf16.mxu0 0
  %1433 = vmatpush1.bf16.msra.mxu0 %v1019
  %1434 = vmatprep.subr.bf16.mxu0 0
  %1435 = vmatpush1.bf16.msra.mxu0 %v1020
  %1436 = vmatprep.subr.bf16.mxu0 0
  %1437 = vmatpush1.bf16.msra.mxu0 %v1021
  %1438 = vmatprep.mubr.bf16.mxu0 %v377
  %1439 = vmatmul.mubr.bf16.gmra.mrb[0].mxu0 %v363
  %v1440 = vpop.f32.mrb[0].mxu0
  %v1441 = vadd.f32 %v1401, %v1440
  %v1442 = vpop.f32.mrb[0].mxu0
  %v1443 = vpop.f32.mrb[0].mxu0
  %v1444 = vpop.f32.mrb[0].mxu0
  %1445 = vdwg.mxu0
  %1446 = vmatprep.subr.bf16.mxu0 0
  %1447 = vmatpush1.bf16.msra.mxu0 %v1022
  %1448 = vmatprep.subr.bf16.mxu0 0
  %1449 = vmatpush1.bf16.msra.mxu0 %v1023
  %1450 = vmatprep.subr.bf16.mxu0 0
  %1451 = vmatpush1.bf16.msra.mxu0 %v1024
  %1452 = vmatprep.subr.bf16.mxu0 0
  %1453 = vmatpush1.bf16.msra.mxu0 %v1025
  %1454 = vmatprep.subr.bf16.mxu0 0
  %1455 = vmatpush1.bf16.msra.mxu0 %v1026
  %1456 = vmatprep.subr.bf16.mxu0 0
  %1457 = vmatpush1.bf16.msra.mxu0 %v1027
  %1458 = vmatprep.subr.bf16.mxu0 0
  %1459 = vmatpush1.bf16.msra.mxu0 %v1028
  %1460 = vmatprep.subr.bf16.mxu0 0
  %1461 = vmatpush1.bf16.msra.mxu0 %v1029
  %1462 = vmatprep.subr.bf16.mxu0 0
  %1463 = vmatpush1.bf16.msra.mxu0 %v1030
  %1464 = vmatprep.subr.bf16.mxu0 0
  %1465 = vmatpush1.bf16.msra.mxu0 %v1031
  %1466 = vmatprep.subr.bf16.mxu0 0
  %1467 = vmatpush1.bf16.msra.mxu0 %v1032
  %1468 = vmatprep.subr.bf16.mxu0 0
  %1469 = vmatpush1.bf16.msra.mxu0 %v1033
  %1470 = vmatprep.subr.bf16.mxu0 0
  %1471 = vmatpush1.bf16.msra.mxu0 %v1034
  %1472 = vmatprep.subr.bf16.mxu0 0
  %1473 = vmatpush1.bf16.msra.mxu0 %v1035
  %1474 = vmatprep.subr.bf16.mxu0 0
  %1475 = vmatpush1.bf16.msra.mxu0 %v1036
  %1476 = vmatprep.subr.bf16.mxu0 0
  %1477 = vmatpush1.bf16.msra.mxu0 %v1037
  %1478 = vmatprep.mubr.bf16.mxu0 %v381
  %1479 = vmatmul.mubr.bf16.gmra.mrb[0].mxu0 %v379
  %v1480 = vpop.f32.mrb[0].mxu0
  %v1481 = vadd.f32 %v1441, %v1480
  %v1482 = vpop.f32.mrb[0].mxu0
  %v1483 = vpop.f32.mrb[0].mxu0
  %v1484 = vpop.f32.mrb[0].mxu0
  %1485 = vdwg.mxu0
  %v1486 = vsub.f32 0.0, %v1481
  %v1487 = vmul.f32 %v1486, 1.442695
  %v1488 = vpow.pop %v1487
  %v1489 = vadd.f32 %v1488, 1.0
  %v1490 = vrcp.pop %v1489
  %v1491 = vmul.f32 1.0, %v1490
  %vm1492 = vcmask 1024
  %1493 = vst.msk [vmem:[%s3] sm:$0x3] %vm1492, %v1491
  // Predicated region
  $region14: #{discriminator_forward.11} parent=0 // pred_check
    _
  $region15: #{discriminator_forward.11} parent=0 // pred_check_branch
    %1495 = sbr.rel (0) target = $region17
  $region16: #{discriminator_forward.11} parent=0 // pred_region
    _
  $region17: #{discriminator_forward.11} parent=0 // pred_fallthru
    _
  // Predicated region
  $region18: #{discriminator_forward.11} parent=0 // pred_check
    _
  $region19: #{discriminator_forward.11} parent=0 // pred_check_branch
    %1497 = sbr.rel (0) target = $region21
  $region20: #{discriminator_forward.11} parent=0 // pred_region
    _
  $region21: #{discriminator_forward.11} parent=0 // pred_fallthru
    _

</llo_original>
